<compile_context>
chip_gen: v7x
topology: tpu7x:2x2x1
jax: 0.10.0
libtpu: 0.0.40
codegen_flags: <defaults>
</compile_context>

<pallas_src>
import numpy as np
import jax
import jax.numpy as jnp
from jax.experimental import pallas as pl
from jax.experimental.pallas import tpu as pltpu


def dims_after_pooling(start, n_pools):
    return start // 2 ** n_pools


# ---------------------------------------------------------------------------
# Parameters (PyTorch layouts, PyTorch-style uniform init).
# ---------------------------------------------------------------------------
def make_params(key, depth, input_size, latent_dims, pose_dims):
    assert all(ax % 2 ** depth == 0 for ax in input_size)
    # TODO(synk): pose_dims == 0 (pose-off) branch not implemented.
    assert pose_dims > 0
    capacity = 8                                      # forced in the reference model
    filters = [capacity * 2 ** d for d in range(depth)]
    unflat_shape = tuple([filters[-1]] + [dims_after_pooling(ax, depth)
                                          for ax in input_size])
    flat_shape = int(np.prod(unflat_shape))

    def init(k, shape, fan_in):
        bound = 1.0 / np.sqrt(max(fan_in, 1))
        return jax.random.uniform(k, shape, jnp.float32, -bound, bound)

    keys = iter(jax.random.split(key, 10 + 4 * depth))
    p = {"filters": filters, "unflat_shape": unflat_shape, "flat_shape": flat_shape,
         "depth": depth, "input_size": tuple(input_size),
         "latent_dims": latent_dims, "pose_dims": pose_dims}
    in_ch = 1
    for d, f in enumerate(filters):
        p[f"enc_w{d}"] = init(next(keys), (f, in_ch, 3, 3), in_ch * 9)   # (Cout,Cin,3,3)
        p[f"enc_b{d}"] = init(next(keys), (f,), in_ch * 9)
        in_ch = f
    p["w_mu"] = init(next(keys), (latent_dims, flat_shape), flat_shape)  # torch (out,in)
    p["b_mu"] = init(next(keys), (latent_dims,), flat_shape)
    p["w_lv"] = init(next(keys), (latent_dims, flat_shape), flat_shape)
    p["b_lv"] = init(next(keys), (latent_dims,), flat_shape)
    p["w_po"] = init(next(keys), (pose_dims, flat_shape), flat_shape)
    p["b_po"] = init(next(keys), (pose_dims,), flat_shape)
    p["dec_lin_w"] = init(next(keys), (flat_shape, latent_dims + pose_dims),
                          latent_dims + pose_dims)                        # torch (out,in)
    p["dec_lin_b"] = init(next(keys), (flat_shape,), latent_dims + pose_dims)
    for d in reversed(range(1, depth)):
        cin, cout = filters[d], filters[d - 1]
        p[f"dec_wT{d}"] = init(next(keys), (cin, cout, 3, 3), cin * 9)    # (Cin,Cout,3,3)
        p[f"dec_bT{d}"] = init(next(keys), (cout,), cin * 9)
    p["dec_wTf"] = init(next(keys), (filters[0], 1, 2, 2), filters[0] * 4)
    p["dec_bTf"] = init(next(keys), (1,), filters[0] * 4)
    return p


# ---------------------------------------------------------------------------
# Pack PyTorch-layout params into kernel constants and record the layer plan.
# In-kernel row layout everywhere: row = (h * W + w) * nb + n, col = channel.
# ---------------------------------------------------------------------------
def build_plan(params, batch_tile):
    nb = int(batch_tile)
    assert nb % 8 == 0, "batch_tile must be a multiple of 8 (f32 sublane)"
    depth = params["depth"]
    filters = params["filters"]
    H, W = params["input_size"]
    L, P = params["latent_dims"], params["pose_dims"]
    bf16, f32 = jnp.bfloat16, jnp.float32

    enc_hw = [(H // 2 ** (d + 1), W // 2 ** (d + 1)) for d in range(depth)]
    bot_h, bot_w = enc_hw[-1]
    s_bot, c_bot = bot_h * bot_w, filters[-1]
    flat = s_bot * c_bot
    assert params["flat_shape"] == flat

    ops, specs = [], []

    def add(arr, dtype):
        arr = jnp.asarray(np.asarray(arr), dtype)
        ops.append(arr)
        nd = arr.ndim
        specs.append(pl.BlockSpec(tuple(int(s) for s in arr.shape),
                                  lambda i, _n=nd: (0,) * _n))
        return len(ops) - 1

    meta = {"nb": nb, "L": L, "P": P, "s_bot": s_bot, "c_bot": c_bot,
            "bot_h": bot_h, "bot_w": bot_w, "enc_hw": enc_hw,
            "depth": depth, "filters": list(filters)}
    flops = 0

    # ---- encoder conv 0 (1-channel input; tiny im2col built at XLA level) ----
    c0 = filters[0]
    w0 = np.asarray(params["enc_w0"]).transpose(2, 3, 1, 0).reshape(9, c0)
    meta["w0"] = add(w0, bf16)
    meta["b0"] = add(np.asarray(params["enc_b0"]).reshape(1, c0), f32)
    oh0, ow0 = enc_hw[0]
    flops += 2 * (oh0 * ow0 * nb) * 9 * c0

    # ---- encoder convs 1..depth-1: one fused (rout, 9*cin)@(9*cin, cout) ----
    enc_layers = []
    for d in range(1, depth):
        oh, ow = enc_hw[d]
        cin, cout = filters[d - 1], filters[d]
        w9 = (np.asarray(params[f"enc_w{d}"])
              .transpose(2, 3, 1, 0).reshape(9 * cin, cout))
        enc_layers.append(dict(
            w=add(w9, bf16),
            b=add(np.asarray(params[f"enc_b{d}"]).reshape(1, cout), f32),
            oh=oh, ow=ow, cin=cin, cout=cout))
        flops += 2 * (oh * ow * nb) * (9 * cin) * cout
    meta["enc_layers"] = enc_layers

    # ---- latent heads (single matmul): reorder torch c-major flatten -> hw-major
    def to_spatial_major(w_t):                       # (flat_torch, cols)
        cols = w_t.shape[1]
        return (w_t.reshape(c_bot, s_bot, cols)
                .transpose(1, 0, 2).reshape(flat, cols))

    w_heads = np.concatenate([np.asarray(params["w_mu"]).T,
                              np.asarray(params["w_lv"]).T,
                              np.asarray(params["w_po"]).T], axis=1)
    meta["w_heads"] = add(to_spatial_major(w_heads), bf16)
    meta["b_heads"] = add(np.concatenate([np.asarray(params["b_mu"]),
                                          np.asarray(params["b_lv"]),
                                          np.asarray(params["b_po"])])
                          .reshape(1, 2 * L + P), f32)
    flops += 2 * nb * flat * (2 * L + P)

    # ---- decoder linear (input order = torch.cat([pose, z])) ----------------
    w_dec = to_spatial_major(np.asarray(params["dec_lin_w"])).T      # (P+L, flat)
    meta["w_dec"] = add(w_dec, bf16)
    meta["b_dec"] = add(np.asarray(params["dec_lin_b"])
                        .reshape(c_bot, s_bot).T.reshape(1, flat), f32)
    flops += 2 * nb * (P + L) * flat

    # ---- decoder transposed convs (k=3, s=2) as dilated stride-1 convs -------
    dec_layers = []
    ih, iw = bot_h, bot_w
    for d in reversed(range(1, depth)):
        p_t = 0 if d == depth - 1 else 1
        oh, ow = (ih - 1) * 2 + 3 - 2 * p_t, (iw - 1) * 2 + 3 - 2 * p_t
        cin, cout = filters[d], filters[d - 1]
        wt = np.asarray(params[f"dec_wT{d}"])                         # (cin,cout,3,3)
        w9 = (np.flip(wt, axis=(2, 3))
              .transpose(2, 3, 0, 1).reshape(9 * cin, cout))
        dec_layers.append(dict(
            w=add(w9, bf16),
            b=add(np.asarray(params[f"dec_bT{d}"]).reshape(1, cout), f32),
            ih=ih, iw=iw, oh=oh, ow=ow, cin=cin, cout=cout, pad=2 - p_t))
        flops += 2 * (oh * ow * nb) * (9 * cin) * cout
        ih, iw = oh, ow
    meta["dec_layers"] = dec_layers

    # ---- final transposed conv: filters[0] -> 1, k=2, s=2, p=1 (no ReLU).
    #      cout == 1, so do it as VPU multiply + lane reduction (lane-dense out).
    oh_f, ow_f = (ih - 1) * 2, (iw - 1) * 2
    wtf = np.asarray(params["dec_wTf"])                               # (c0,1,2,2)
    wf = (np.flip(wtf, axis=(2, 3))
          .transpose(2, 3, 0, 1).reshape(1, 1, 4 * c0))
    meta["final"] = dict(w=add(wf, f32),
                         b=add(np.asarray(params["dec_bTf"]).reshape(1, 1), f32),
                         ih=ih, iw=iw, oh=oh_f, ow=ow_f, cin=c0)
    flops += 2 * (oh_f * ow_f * nb) * (4 * c0)

    meta["out_hw"] = (oh_f, ow_f)
    meta["ops"] = ops
    meta["specs"] = specs
    meta["n_const"] = len(ops)
    meta["flops_per_tile"] = int(flops)
    meta["transcendentals_per_tile"] = int(nb * L)
    return meta


# ---------------------------------------------------------------------------
# The fused kernel body (one batch-tile per grid step; everything in VMEM).
# ---------------------------------------------------------------------------
def _make_kernel(meta):
    nb, L, P = meta["nb"], meta["L"], meta["P"]
    s_bot, c_bot = meta["s_bot"], meta["c_bot"]
    bot_h, bot_w = meta["bot_h"], meta["bot_w"]
    oh0, ow0 = meta["enc_hw"][0]
    c0 = meta["filters"][0]
    enc_layers = meta["enc_layers"]
    dec_layers = meta["dec_layers"]
    final = meta["final"]
    n_const = meta["n_const"]
    f32, bf16 = jnp.float32, jnp.bfloat16

    # Layout helpers.  Activations are staged as (h, w, nb, c) values; every
    # reshape only regroups major dims (the (nb, c) minor tile is untouched) and
    # every slice is static and 8-aligned on the sublane axis.
    def pad_hw(x, ph, pw):
        h, w, n, c = x.shape
        if ph:
            z = jnp.zeros((ph, w, n, c), x.dtype)
            x = jnp.concatenate([z, x, z], axis=0)
            h += 2 * ph
        if pw:
            z = jnp.zeros((h, pw, n, c), x.dtype)
            x = jnp.concatenate([z, x, z], axis=1)
        return x

    def parity(x, axis, r):
        # elements with (index % 2 == r) along an even-sized spatial axis
        h, w, n, c = x.shape
        if axis == 0:
            xr = x.reshape(h // 2, 2 * w * n, c)
            return xr[:, r * w * n:(r + 1) * w * n, :].reshape(h // 2, w, n, c)
        xr = x.reshape(h, w // 2, 2 * n, c)
        return xr[:, :, r * n:(r + 1) * n, :].reshape(h, w // 2, n, c)

    def dilate2(x):
        # insert one zero between elements along both spatial axes
        h, w, n, c = x.shape
        xr = x.reshape(h, w * n, c)
        xr = jnp.concatenate([xr, jnp.zeros_like(xr)], axis=1)
        x = xr.reshape(2 * h, w, n, c)[:2 * h - 1]
        h2 = 2 * h - 1
        xr = x.reshape(h2 * w, n, c)
        xr = jnp.concatenate([xr, jnp.zeros_like(xr)], axis=1)
        return xr.reshape(h2, 2 * w, n, c)[:, :2 * w - 1]

    def kernel(*refs):
        cols0_ref, eps_ref = refs[0], refs[1]
        const = refs[2:2 + n_const]
        xrec_ref, lat_ref = refs[2 + n_const], refs[3 + n_const]

        def cval(i):
            return const[i][...]

        # ------------------------------ encoder ---------------------------
        y = jnp.dot(cols0_ref[0], cval(meta["w0"]),
                    preferred_element_type=f32) + cval(meta["b0"])
        y = jnp.maximum(y, 0.0)                         # (oh0*ow0*nb, c0) f32
        act = y.astype(bf16).reshape(oh0, ow0, nb, c0)

        for lay in enc_layers:                          # k=3, s=2, p=1
            oh, ow, cin, cout = lay["oh"], lay["ow"], lay["cin"], lay["cout"]
            xpad = pad_hw(act, 1, 1)                    # (2oh+2, 2ow+2, nb, cin)
            cols = []
            for kh in range(3):
                sub = parity(xpad, 0, kh % 2)[kh // 2:kh // 2 + oh]
                for kw in range(3):
                    tap = parity(sub, 1, kw % 2)[:, kw // 2:kw // 2 + ow]
                    cols.append(tap.reshape(oh * ow * nb, cin))
            xcol = jnp.concatenate(cols, axis=1)        # (oh*ow*nb, 9*cin) bf16
            y = jnp.dot(xcol, cval(lay["w"]),
                        preferred_element_type=f32) + cval(lay["b"])
            y = jnp.maximum(y, 0.0)
            act = y.astype(bf16).reshape(oh, ow, nb, cout)

        # ------------- latent heads + reparameterisation (training) -------
        # (s_bot*nb, c_bot) -> (nb, flat) via 8-aligned row slices + lane concat
        enc_flat = jnp.concatenate(
            [y[s * nb:(s + 1) * nb, :] for s in range(s_bot)], axis=1).astype(bf16)
        heads = jnp.dot(enc_flat, cval(meta["w_heads"]),
                        preferred_element_type=f32) + cval(meta["b_heads"])
        mu = heads[:, 0:L]
        log_var = heads[:, L:2 * L]
        pose = heads[:, 2 * L:2 * L + P]
        z = eps_ref[0] * jnp.exp(0.5 * log_var) + mu
        lat_ref[0] = jnp.concatenate([mu, log_var, z, pose], axis=1)   # (nb, 3L+P)

        # ------------------- decoder linear + unflatten -------------------
        dec_in = jnp.concatenate([pose, z], axis=1).astype(bf16)   # torch cat order
        dec = jnp.dot(dec_in, cval(meta["w_dec"]),
                      preferred_element_type=f32) + cval(meta["b_dec"])  # (nb, flat)
        rows = jnp.concatenate(
            [dec[:, s * c_bot:(s + 1) * c_bot] for s in range(s_bot)], axis=0)
        cur = rows.reshape(bot_h, bot_w, nb, c_bot)                  # f32

        # ------------- decoder transposed convs (k=3, s=2) ----------------
        for lay in dec_layers:
            oh, ow, cin, cout = lay["oh"], lay["ow"], lay["cin"], lay["cout"]
            xd = pad_hw(dilate2(cur.astype(bf16)), lay["pad"], lay["pad"])
            cols = []
            for kh in range(3):
                for kw in range(3):
                    tap = xd[kh:kh + oh, kw:kw + ow]
                    cols.append(tap.reshape(oh * ow * nb, cin))
            xcol = jnp.concatenate(cols, axis=1)
            y = jnp.dot(xcol, cval(lay["w"]),
                        preferred_element_type=f32) + cval(lay["b"])
            y = jnp.maximum(y, 0.0)
            cur = y.reshape(oh, ow, nb, cout)                        # f32

        # --------- final transposed conv (k=2, s=2, p=1, no ReLU) ----------
        oh_f, ow_f, cin = final["oh"], final["ow"], final["cin"]
        xd = dilate2(cur)                               # pad = k-1-p = 0
        taps = []
        for kh in range(2):
            for kw in range(2):
                tap = xd[kh:kh + oh_f, kw:kw + ow_f]
                taps.append(tap.reshape(oh_f * ow_f, nb, cin))
        x3 = jnp.concatenate(taps, axis=2)              # (oh_f*ow_f, nb, 4*cin) f32
        rec = jnp.sum(x3 * cval(final["w"]), axis=2)    # VPU mul + lane reduce
        xrec_ref[0] = rec.T + cval(final["b"])          # lane-dense (nb, oh_f*ow_f)

    return kernel


# ---------------------------------------------------------------------------
# Public forward wrapper: XLA only builds the raw-input im2col and does the
# final (nb, H*W) -> NCHW reshape / latent split.
# ---------------------------------------------------------------------------
def build_forward(params, batch_tile=8):
    meta = build_plan(params, batch_tile)
    nb, L, P = meta["nb"], meta["L"], meta["P"]
    oh0, ow0 = meta["enc_hw"][0]
    out_h, out_w = meta["out_hw"]
    r0 = oh0 * ow0 * nb
    const_ops = meta["ops"]
    const_specs = list(meta["specs"])
    kernel = _make_kernel(meta)
    const_bytes = sum(int(np.prod(a.shape)) * a.dtype.itemsize for a in const_ops)

    def forward(x, eps):
        n = x.shape[0]
        n_pad = -(-n // nb) * nb
        if n_pad != n:
            x = jnp.pad(x, ((0, n_pad - n), (0, 0), (0, 0), (0, 0)))
            eps = jnp.pad(eps, ((0, n_pad - n), (0, 0)))
        t = n_pad // nb

        # im2col of the 1-channel raw input (k=3, s=2, p=1); rows = (o_h, o_w, n)
        xp = jnp.pad(x[:, 0], ((0, 0), (1, 1), (1, 1)))
        taps = [xp[:, kh:kh + 2 * oh0 - 1:2, kw:kw + 2 * ow0 - 1:2]
                for kh in range(3) for kw in range(3)]
        cols0 = jnp.stack(taps, axis=-1)                       # (n_pad, oh0, ow0, 9)
        cols0 = cols0.reshape(t, nb, oh0, ow0, 9).transpose(0, 2, 3, 1, 4)
        cols0 = cols0.reshape(t, r0, 9).astype(jnp.bfloat16)
        eps_t = eps.astype(jnp.float32).reshape(t, nb, L)

        in_specs = [pl.BlockSpec((1, r0, 9), lambda i: (i, 0, 0)),
                    pl.BlockSpec((1, nb, L), lambda i: (i, 0, 0))] + const_specs
        out_specs = (pl.BlockSpec((1, nb, out_h * out_w), lambda i: (i, 0, 0)),
                     pl.BlockSpec((1, nb, 3 * L + P), lambda i: (i, 0, 0)))
        out_shape = (jax.ShapeDtypeStruct((t, nb, out_h * out_w), jnp.float32),
                     jax.ShapeDtypeStruct((t, nb, 3 * L + P), jnp.float32))

        io_bytes = (cols0.size * 2 + eps_t.size * 4
                    + t * nb * (out_h * out_w + 3 * L + P) * 4)
        cost = pl.CostEstimate(flops=int(meta["flops_per_tile"] * t),
                               transcendentals=int(meta["transcendentals_per_tile"] * t),
                               bytes_accessed=int(const_bytes + io_bytes))

        xrec, lat = pl.pallas_call(
            kernel,
            out_shape=out_shape,
            grid=(t,),
            in_specs=in_specs,
            out_specs=out_specs,
            compiler_params=pltpu.CompilerParams(
                dimension_semantics=("parallel",),
                vmem_limit_bytes=32 * 1024 * 1024),   # v7x-safe; actual use << this
            cost_estimate=cost,
        )(cols0, eps_t, *const_ops)

        # (t, nb, H*W) kernel layout -> public NCHW; latent split at XLA level
        x_recon = xrec.reshape(t * nb, 1, out_h, out_w)[:n]
        lat = lat.reshape(t * nb, 3 * L + P)[:n]
        mu, log_var = lat[:, :L], lat[:, L:2 * L]
        z, pose = lat[:, 2 * L:3 * L], lat[:, 3 * L:]
        return x_recon, mu, log_var, z, pose

    return forward


# ---------------------------------------------------------------------------
# Pure-JAX (f32) reference for a numerical sanity check.
# ---------------------------------------------------------------------------
def reference_forward(params, x, eps):
    depth = params["depth"]
    hi = jax.lax.Precision.HIGHEST
    a = x
    for d in range(depth):
        a = jax.lax.conv_general_dilated(
            a, params[f"enc_w{d}"], window_strides=(2, 2),
            padding=((1, 1), (1, 1)),
            dimension_numbers=("NCHW", "OIHW", "NCHW"), precision=hi)
        a = jax.nn.relu(a + params[f"enc_b{d}"].reshape(1, -1, 1, 1))
    flat = a.reshape(a.shape[0], -1)
    mu = flat @ params["w_mu"].T + params["b_mu"]
    log_var = flat @ params["w_lv"].T + params["b_lv"]
    pose = flat @ params["w_po"].T + params["b_po"]
    z = eps * jnp.exp(0.5 * log_var) + mu
    h = jnp.concatenate([pose, z], axis=-1) @ params["dec_lin_w"].T + params["dec_lin_b"]
    h = h.reshape((x.shape[0],) + tuple(params["unflat_shape"]))

    def conv_t(x_, w_, k, pad):                 # PyTorch ConvTranspose2d semantics
        w_f = jnp.flip(w_, axis=(2, 3))
        w_oi = jnp.transpose(w_f, (1, 0, 2, 3))
        return jax.lax.conv_general_dilated(
            x_, w_oi, window_strides=(1, 1),
            padding=((k - 1 - pad,) * 2, (k - 1 - pad,) * 2),
            lhs_dilation=(2, 2),
            dimension_numbers=("NCHW", "OIHW", "NCHW"), precision=hi)

    for d in reversed(range(1, depth)):
        p_t = 0 if d == depth - 1 else 1
        h = conv_t(h, params[f"dec_wT{d}"], 3, p_t)
        h = jax.nn.relu(h + params[f"dec_bT{d}"].reshape(1, -1, 1, 1))
    h = conv_t(h, params["dec_wTf"], 2, 1) + params["dec_bTf"].reshape(1, -1, 1, 1)
    return h, mu, log_var, z, pose


# ---------------------------------------------------------------------------
if __name__ == "__main__":
    depth = 2
    input_size = (16, 16)
    latent_dims = 8
    pose_dims = 4
    N = 2

    root = jax.random.PRNGKey(0)
    k_params, k_x, k_eps = jax.random.split(root, 3)
    params = make_params(k_params, depth, input_size, latent_dims, pose_dims)

    x = jax.random.normal(k_x, (N, 1) + input_size, jnp.float32)
    # torch.randn_like has no in-kernel equivalent we want to fake: eps is a
    # deterministic input (training-mode reparameterisation semantics).
    eps = jax.random.normal(k_eps, (N, latent_dims), jnp.float32)

    forward = jax.jit(build_forward(params, batch_tile=8))
    x_recon, mu, log_var, z, pose = forward(x, eps)
    jax.block_until_ready((x_recon, mu, log_var, z, pose))

    assert x_recon.shape == (N, 1) + tuple(input_size), x_recon.shape
    assert mu.shape == (N, latent_dims)
    assert log_var.shape == (N, latent_dims)
    assert z.shape == (N, latent_dims)
    assert pose.shape == (N, pose_dims)
    for a in (x_recon, mu, log_var, z, pose):
        assert np.all(np.isfinite(np.asarray(a)))

    # numerical sanity check vs. the f32 reference (kernel uses bf16 MXU operands)
    ref = reference_forward(params, x, eps)
    for name, got, want in zip(("x_recon", "mu", "log_var", "z", "pose"),
                               (x_recon, mu, log_var, z, pose), ref):
        err = float(jnp.max(jnp.abs(got - want)))
        assert err < 0.05, (name, err)

    print("KERNEL_OK")
</pallas_src>

<mosaic_0001>
module attributes {stable_mosaic.version = 11 : i64} {
  func.func @kernel(%arg0: i32, %arg1: memref<1x512x9xbf16, #tpu.memory_space<vmem>>, %arg2: memref<1x8x8xf32, #tpu.memory_space<vmem>>, %arg3: memref<9x8xbf16, #tpu.memory_space<vmem>>, %arg4: memref<1x8xf32, #tpu.memory_space<vmem>>, %arg5: memref<72x16xbf16, #tpu.memory_space<vmem>>, %arg6: memref<1x16xf32, #tpu.memory_space<vmem>>, %arg7: memref<256x20xbf16, #tpu.memory_space<vmem>>, %arg8: memref<1x20xf32, #tpu.memory_space<vmem>>, %arg9: memref<12x256xbf16, #tpu.memory_space<vmem>>, %arg10: memref<1x256xf32, #tpu.memory_space<vmem>>, %arg11: memref<144x8xbf16, #tpu.memory_space<vmem>>, %arg12: memref<1x8xf32, #tpu.memory_space<vmem>>, %arg13: memref<1x1x32xf32, #tpu.memory_space<vmem>>, %arg14: memref<1x1xf32, #tpu.memory_space<vmem>>, %arg15: memref<1x8x256xf32, #tpu.memory_space<vmem>>, %arg16: memref<1x8x28xf32, #tpu.memory_space<vmem>>) attributes {dimension_semantics = [#tpu.dimension_semantics<parallel>], iteration_bounds = array<i64: 1>, scalar_prefetch = 0 : i64, scratch_operands = 0 : i64, tpu.core_type = #tpu.core_type<tc>, window_params = [{transform_indices = @transform_0, window_bounds = array<i64: 1, 512, 9>}, {transform_indices = @transform_1, window_bounds = array<i64: 1, 8, 8>}, {pipeline_mode = #tpu.pipeline_mode<synchronous>, transform_indices = @transform_2, window_bounds = array<i64: 9, 8>}, {pipeline_mode = #tpu.pipeline_mode<synchronous>, transform_indices = @transform_3, window_bounds = array<i64: 1, 8>}, {pipeline_mode = #tpu.pipeline_mode<synchronous>, transform_indices = @transform_4, window_bounds = array<i64: 72, 16>}, {pipeline_mode = #tpu.pipeline_mode<synchronous>, transform_indices = @transform_5, window_bounds = array<i64: 1, 16>}, {pipeline_mode = #tpu.pipeline_mode<synchronous>, transform_indices = @transform_6, window_bounds = array<i64: 256, 20>}, {pipeline_mode = #tpu.pipeline_mode<synchronous>, transform_indices = @transform_7, window_bounds = array<i64: 1, 20>}, {pipeline_mode = #tpu.pipeline_mode<synchronous>, transform_indices = @transform_8, window_bounds = array<i64: 12, 256>}, {pipeline_mode = #tpu.pipeline_mode<synchronous>, transform_indices = @transform_9, window_bounds = array<i64: 1, 256>}, {pipeline_mode = #tpu.pipeline_mode<synchronous>, transform_indices = @transform_10, window_bounds = array<i64: 144, 8>}, {pipeline_mode = #tpu.pipeline_mode<synchronous>, transform_indices = @transform_11, window_bounds = array<i64: 1, 8>}, {pipeline_mode = #tpu.pipeline_mode<synchronous>, transform_indices = @transform_12, window_bounds = array<i64: 1, 1, 32>}, {pipeline_mode = #tpu.pipeline_mode<synchronous>, transform_indices = @transform_13, window_bounds = array<i64: 1, 1>}, {transform_indices = @transform_14, window_bounds = array<i64: 1, 8, 256>}, {transform_indices = @transform_15, window_bounds = array<i64: 1, 8, 28>}]} {
    %c0 = arith.constant 0 : index
    %c0_0 = arith.constant 0 : index
    %c0_1 = arith.constant 0 : index
    %0 = vector.load %arg1[%c0, %c0_0, %c0_1] : memref<1x512x9xbf16, #tpu.memory_space<vmem>>, vector<1x512x9xbf16>
    %1 = vector.shape_cast %0 : vector<1x512x9xbf16> to vector<512x9xbf16>
    %c0_2 = arith.constant 0 : index
    %c0_3 = arith.constant 0 : index
    %2 = vector.load %arg3[%c0_2, %c0_3] : memref<9x8xbf16, #tpu.memory_space<vmem>>, vector<9x8xbf16>
    %cst = arith.constant dense<0.000000e+00> : vector<512x8xf32>
    %3 = tpu.matmul %1, %2, %cst {dimension_numbers = #tpu.dot_dimension_numbers<[1], [0], [0], [1], [0, 0, 1, 1], [], []>} : vector<512x9xbf16>, vector<9x8xbf16>, vector<512x8xf32> -> vector<512x8xf32>
    %c0_4 = arith.constant 0 : index
    %c0_5 = arith.constant 0 : index
    %4 = vector.load %arg4[%c0_4, %c0_5] : memref<1x8xf32, #tpu.memory_space<vmem>>, vector<1x8xf32>
    %5 = vector.broadcast %4 : vector<1x8xf32> to vector<512x8xf32>
    %6 = arith.addf %3, %5 : vector<512x8xf32>
    %cst_6 = arith.constant 0.000000e+00 : f32
    %7 = vector.broadcast %cst_6 : f32 to vector<512x8xf32>
    %8 = arith.maximumf %6, %7 : vector<512x8xf32>
    %9 = arith.truncf %8 : vector<512x8xf32> to vector<512x8xbf16>
    %10 = vector.shape_cast %9 : vector<512x8xbf16> to vector<8x8x8x8xbf16>
    %cst_7 = arith.constant 0.000000e+00 : bf16
    %11 = vector.broadcast %cst_7 : bf16 to vector<1x8x8x8xbf16>
    %12 = tpu.concatenate %11, %10, %11 in 0 : vector<1x8x8x8xbf16>, vector<8x8x8x8xbf16>, vector<1x8x8x8xbf16> -> vector<10x8x8x8xbf16>
    %cst_8 = arith.constant 0.000000e+00 : bf16
    %13 = vector.broadcast %cst_8 : bf16 to vector<10x1x8x8xbf16>
    %14 = tpu.concatenate %13, %12, %13 in 1 : vector<10x1x8x8xbf16>, vector<10x8x8x8xbf16>, vector<10x1x8x8xbf16> -> vector<10x10x8x8xbf16>
    %15 = vector.shape_cast %14 : vector<10x10x8x8xbf16> to vector<5x160x8xbf16>
    %16 = vector.extract_strided_slice %15 {offsets = [0, 0, 0], sizes = [5, 80, 8], strides = [1, 1, 1]} : vector<5x160x8xbf16> to vector<5x80x8xbf16>
    %17 = vector.shape_cast %16 : vector<5x80x8xbf16> to vector<5x10x8x8xbf16>
    %18 = vector.extract_strided_slice %17 {offsets = [0, 0, 0, 0], sizes = [4, 10, 8, 8], strides = [1, 1, 1, 1]} : vector<5x10x8x8xbf16> to vector<4x10x8x8xbf16>
    %19 = vector.shape_cast %18 : vector<4x10x8x8xbf16> to vector<4x5x16x8xbf16>
    %20 = vector.extract_strided_slice %19 {offsets = [0, 0, 0, 0], sizes = [4, 5, 8, 8], strides = [1, 1, 1, 1]} : vector<4x5x16x8xbf16> to vector<4x5x8x8xbf16>
    %21 = vector.extract_strided_slice %20 {offsets = [0, 0, 0, 0], sizes = [4, 4, 8, 8], strides = [1, 1, 1, 1]} : vector<4x5x8x8xbf16> to vector<4x4x8x8xbf16>
    %22 = vector.shape_cast %21 : vector<4x4x8x8xbf16> to vector<128x8xbf16>
    %23 = vector.shape_cast %18 : vector<4x10x8x8xbf16> to vector<4x5x16x8xbf16>
    %24 = vector.extract_strided_slice %23 {offsets = [0, 0, 8, 0], sizes = [4, 5, 8, 8], strides = [1, 1, 1, 1]} : vector<4x5x16x8xbf16> to vector<4x5x8x8xbf16>
    %25 = vector.extract_strided_slice %24 {offsets = [0, 0, 0, 0], sizes = [4, 4, 8, 8], strides = [1, 1, 1, 1]} : vector<4x5x8x8xbf16> to vector<4x4x8x8xbf16>
    %26 = vector.shape_cast %25 : vector<4x4x8x8xbf16> to vector<128x8xbf16>
    %27 = vector.shape_cast %18 : vector<4x10x8x8xbf16> to vector<4x5x16x8xbf16>
    %28 = vector.extract_strided_slice %27 {offsets = [0, 0, 0, 0], sizes = [4, 5, 8, 8], strides = [1, 1, 1, 1]} : vector<4x5x16x8xbf16> to vector<4x5x8x8xbf16>
    %29 = vector.extract_strided_slice %28 {offsets = [0, 1, 0, 0], sizes = [4, 4, 8, 8], strides = [1, 1, 1, 1]} : vector<4x5x8x8xbf16> to vector<4x4x8x8xbf16>
    %30 = vector.shape_cast %29 : vector<4x4x8x8xbf16> to vector<128x8xbf16>
    %31 = vector.shape_cast %14 : vector<10x10x8x8xbf16> to vector<5x160x8xbf16>
    %32 = vector.extract_strided_slice %31 {offsets = [0, 80, 0], sizes = [5, 80, 8], strides = [1, 1, 1]} : vector<5x160x8xbf16> to vector<5x80x8xbf16>
    %33 = vector.shape_cast %32 : vector<5x80x8xbf16> to vector<5x10x8x8xbf16>
    %34 = vector.extract_strided_slice %33 {offsets = [0, 0, 0, 0], sizes = [4, 10, 8, 8], strides = [1, 1, 1, 1]} : vector<5x10x8x8xbf16> to vector<4x10x8x8xbf16>
    %35 = vector.shape_cast %34 : vector<4x10x8x8xbf16> to vector<4x5x16x8xbf16>
    %36 = vector.extract_strided_slice %35 {offsets = [0, 0, 0, 0], sizes = [4, 5, 8, 8], strides = [1, 1, 1, 1]} : vector<4x5x16x8xbf16> to vector<4x5x8x8xbf16>
    %37 = vector.extract_strided_slice %36 {offsets = [0, 0, 0, 0], sizes = [4, 4, 8, 8], strides = [1, 1, 1, 1]} : vector<4x5x8x8xbf16> to vector<4x4x8x8xbf16>
    %38 = vector.shape_cast %37 : vector<4x4x8x8xbf16> to vector<128x8xbf16>
    %39 = vector.shape_cast %34 : vector<4x10x8x8xbf16> to vector<4x5x16x8xbf16>
    %40 = vector.extract_strided_slice %39 {offsets = [0, 0, 8, 0], sizes = [4, 5, 8, 8], strides = [1, 1, 1, 1]} : vector<4x5x16x8xbf16> to vector<4x5x8x8xbf16>
    %41 = vector.extract_strided_slice %40 {offsets = [0, 0, 0, 0], sizes = [4, 4, 8, 8], strides = [1, 1, 1, 1]} : vector<4x5x8x8xbf16> to vector<4x4x8x8xbf16>
    %42 = vector.shape_cast %41 : vector<4x4x8x8xbf16> to vector<128x8xbf16>
    %43 = vector.shape_cast %34 : vector<4x10x8x8xbf16> to vector<4x5x16x8xbf16>
    %44 = vector.extract_strided_slice %43 {offsets = [0, 0, 0, 0], sizes = [4, 5, 8, 8], strides = [1, 1, 1, 1]} : vector<4x5x16x8xbf16> to vector<4x5x8x8xbf16>
    %45 = vector.extract_strided_slice %44 {offsets = [0, 1, 0, 0], sizes = [4, 4, 8, 8], strides = [1, 1, 1, 1]} : vector<4x5x8x8xbf16> to vector<4x4x8x8xbf16>
    %46 = vector.shape_cast %45 : vector<4x4x8x8xbf16> to vector<128x8xbf16>
    %47 = vector.shape_cast %14 : vector<10x10x8x8xbf16> to vector<5x160x8xbf16>
    %48 = vector.extract_strided_slice %47 {offsets = [0, 0, 0], sizes = [5, 80, 8], strides = [1, 1, 1]} : vector<5x160x8xbf16> to vector<5x80x8xbf16>
    %49 = vector.shape_cast %48 : vector<5x80x8xbf16> to vector<5x10x8x8xbf16>
    %50 = vector.extract_strided_slice %49 {offsets = [1, 0, 0, 0], sizes = [4, 10, 8, 8], strides = [1, 1, 1, 1]} : vector<5x10x8x8xbf16> to vector<4x10x8x8xbf16>
    %51 = vector.shape_cast %50 : vector<4x10x8x8xbf16> to vector<4x5x16x8xbf16>
    %52 = vector.extract_strided_slice %51 {offsets = [0, 0, 0, 0], sizes = [4, 5, 8, 8], strides = [1, 1, 1, 1]} : vector<4x5x16x8xbf16> to vector<4x5x8x8xbf16>
    %53 = vector.extract_strided_slice %52 {offsets = [0, 0, 0, 0], sizes = [4, 4, 8, 8], strides = [1, 1, 1, 1]} : vector<4x5x8x8xbf16> to vector<4x4x8x8xbf16>
    %54 = vector.shape_cast %53 : vector<4x4x8x8xbf16> to vector<128x8xbf16>
    %55 = vector.shape_cast %50 : vector<4x10x8x8xbf16> to vector<4x5x16x8xbf16>
    %56 = vector.extract_strided_slice %55 {offsets = [0, 0, 8, 0], sizes = [4, 5, 8, 8], strides = [1, 1, 1, 1]} : vector<4x5x16x8xbf16> to vector<4x5x8x8xbf16>
    %57 = vector.extract_strided_slice %56 {offsets = [0, 0, 0, 0], sizes = [4, 4, 8, 8], strides = [1, 1, 1, 1]} : vector<4x5x8x8xbf16> to vector<4x4x8x8xbf16>
    %58 = vector.shape_cast %57 : vector<4x4x8x8xbf16> to vector<128x8xbf16>
    %59 = vector.shape_cast %50 : vector<4x10x8x8xbf16> to vector<4x5x16x8xbf16>
    %60 = vector.extract_strided_slice %59 {offsets = [0, 0, 0, 0], sizes = [4, 5, 8, 8], strides = [1, 1, 1, 1]} : vector<4x5x16x8xbf16> to vector<4x5x8x8xbf16>
    %61 = vector.extract_strided_slice %60 {offsets = [0, 1, 0, 0], sizes = [4, 4, 8, 8], strides = [1, 1, 1, 1]} : vector<4x5x8x8xbf16> to vector<4x4x8x8xbf16>
    %62 = vector.shape_cast %61 : vector<4x4x8x8xbf16> to vector<128x8xbf16>
    %63 = tpu.concatenate %22, %26, %30, %38, %42, %46, %54, %58, %62 in 1 : vector<128x8xbf16>, vector<128x8xbf16>, vector<128x8xbf16>, vector<128x8xbf16>, vector<128x8xbf16>, vector<128x8xbf16>, vector<128x8xbf16>, vector<128x8xbf16>, vector<128x8xbf16> -> vector<128x72xbf16>
    %c0_9 = arith.constant 0 : index
    %c0_10 = arith.constant 0 : index
    %64 = vector.load %arg5[%c0_9, %c0_10] : memref<72x16xbf16, #tpu.memory_space<vmem>>, vector<72x16xbf16>
    %cst_11 = arith.constant dense<0.000000e+00> : vector<128x16xf32>
    %65 = tpu.matmul %63, %64, %cst_11 {dimension_numbers = #tpu.dot_dimension_numbers<[1], [0], [0], [1], [0, 0, 1, 1], [], []>} : vector<128x72xbf16>, vector<72x16xbf16>, vector<128x16xf32> -> vector<128x16xf32>
    %c0_12 = arith.constant 0 : index
    %c0_13 = arith.constant 0 : index
    %66 = vector.load %arg6[%c0_12, %c0_13] : memref<1x16xf32, #tpu.memory_space<vmem>>, vector<1x16xf32>
    %67 = vector.broadcast %66 : vector<1x16xf32> to vector<128x16xf32>
    %68 = arith.addf %65, %67 : vector<128x16xf32>
    %cst_14 = arith.constant 0.000000e+00 : f32
    %69 = vector.broadcast %cst_14 : f32 to vector<128x16xf32>
    %70 = arith.maximumf %68, %69 : vector<128x16xf32>
    %71 = vector.extract_strided_slice %70 {offsets = [0, 0], sizes = [8, 16], strides = [1, 1]} : vector<128x16xf32> to vector<8x16xf32>
    %72 = vector.extract_strided_slice %70 {offsets = [8, 0], sizes = [8, 16], strides = [1, 1]} : vector<128x16xf32> to vector<8x16xf32>
    %73 = vector.extract_strided_slice %70 {offsets = [16, 0], sizes = [8, 16], strides = [1, 1]} : vector<128x16xf32> to vector<8x16xf32>
    %74 = vector.extract_strided_slice %70 {offsets = [24, 0], sizes = [8, 16], strides = [1, 1]} : vector<128x16xf32> to vector<8x16xf32>
    %75 = vector.extract_strided_slice %70 {offsets = [32, 0], sizes = [8, 16], strides = [1, 1]} : vector<128x16xf32> to vector<8x16xf32>
    %76 = vector.extract_strided_slice %70 {offsets = [40, 0], sizes = [8, 16], strides = [1, 1]} : vector<128x16xf32> to vector<8x16xf32>
    %77 = vector.extract_strided_slice %70 {offsets = [48, 0], sizes = [8, 16], strides = [1, 1]} : vector<128x16xf32> to vector<8x16xf32>
    %78 = vector.extract_strided_slice %70 {offsets = [56, 0], sizes = [8, 16], strides = [1, 1]} : vector<128x16xf32> to vector<8x16xf32>
    %79 = vector.extract_strided_slice %70 {offsets = [64, 0], sizes = [8, 16], strides = [1, 1]} : vector<128x16xf32> to vector<8x16xf32>
    %80 = vector.extract_strided_slice %70 {offsets = [72, 0], sizes = [8, 16], strides = [1, 1]} : vector<128x16xf32> to vector<8x16xf32>
    %81 = vector.extract_strided_slice %70 {offsets = [80, 0], sizes = [8, 16], strides = [1, 1]} : vector<128x16xf32> to vector<8x16xf32>
    %82 = vector.extract_strided_slice %70 {offsets = [88, 0], sizes = [8, 16], strides = [1, 1]} : vector<128x16xf32> to vector<8x16xf32>
    %83 = vector.extract_strided_slice %70 {offsets = [96, 0], sizes = [8, 16], strides = [1, 1]} : vector<128x16xf32> to vector<8x16xf32>
    %84 = vector.extract_strided_slice %70 {offsets = [104, 0], sizes = [8, 16], strides = [1, 1]} : vector<128x16xf32> to vector<8x16xf32>
    %85 = vector.extract_strided_slice %70 {offsets = [112, 0], sizes = [8, 16], strides = [1, 1]} : vector<128x16xf32> to vector<8x16xf32>
    %86 = vector.extract_strided_slice %70 {offsets = [120, 0], sizes = [8, 16], strides = [1, 1]} : vector<128x16xf32> to vector<8x16xf32>
    %87 = tpu.concatenate %71, %72, %73, %74, %75, %76, %77, %78, %79, %80, %81, %82, %83, %84, %85, %86 in 1 : vector<8x16xf32>, vector<8x16xf32>, vector<8x16xf32>, vector<8x16xf32>, vector<8x16xf32>, vector<8x16xf32>, vector<8x16xf32>, vector<8x16xf32>, vector<8x16xf32>, vector<8x16xf32>, vector<8x16xf32>, vector<8x16xf32>, vector<8x16xf32>, vector<8x16xf32>, vector<8x16xf32>, vector<8x16xf32> -> vector<8x256xf32>
    %88 = arith.truncf %87 : vector<8x256xf32> to vector<8x256xbf16>
    %c0_15 = arith.constant 0 : index
    %c0_16 = arith.constant 0 : index
    %89 = vector.load %arg7[%c0_15, %c0_16] : memref<256x20xbf16, #tpu.memory_space<vmem>>, vector<256x20xbf16>
    %cst_17 = arith.constant dense<0.000000e+00> : vector<8x20xf32>
    %90 = tpu.matmul %88, %89, %cst_17 {dimension_numbers = #tpu.dot_dimension_numbers<[1], [0], [0], [1], [0, 0, 1, 1], [], []>} : vector<8x256xbf16>, vector<256x20xbf16>, vector<8x20xf32> -> vector<8x20xf32>
    %c0_18 = arith.constant 0 : index
    %c0_19 = arith.constant 0 : index
    %91 = vector.load %arg8[%c0_18, %c0_19] : memref<1x20xf32, #tpu.memory_space<vmem>>, vector<1x20xf32>
    %92 = vector.broadcast %91 : vector<1x20xf32> to vector<8x20xf32>
    %93 = arith.addf %90, %92 : vector<8x20xf32>
    %94 = vector.extract_strided_slice %93 {offsets = [0, 0], sizes = [8, 8], strides = [1, 1]} : vector<8x20xf32> to vector<8x8xf32>
    %95 = vector.extract_strided_slice %93 {offsets = [0, 8], sizes = [8, 8], strides = [1, 1]} : vector<8x20xf32> to vector<8x8xf32>
    %96 = vector.extract_strided_slice %93 {offsets = [0, 16], sizes = [8, 4], strides = [1, 1]} : vector<8x20xf32> to vector<8x4xf32>
    %c0_20 = arith.constant 0 : index
    %c0_21 = arith.constant 0 : index
    %c0_22 = arith.constant 0 : index
    %97 = vector.load %arg2[%c0_20, %c0_21, %c0_22] : memref<1x8x8xf32, #tpu.memory_space<vmem>>, vector<1x8x8xf32>
    %98 = vector.shape_cast %97 : vector<1x8x8xf32> to vector<8x8xf32>
    %cst_23 = arith.constant 5.000000e-01 : f32
    %99 = vector.broadcast %cst_23 : f32 to vector<8x8xf32>
    %100 = arith.mulf %99, %95 : vector<8x8xf32>
    %101 = math.exp %100 : vector<8x8xf32>
    %102 = arith.mulf %98, %101 : vector<8x8xf32>
    %103 = arith.addf %102, %94 : vector<8x8xf32>
    %104 = tpu.concatenate %94, %95, %103, %96 in 1 : vector<8x8xf32>, vector<8x8xf32>, vector<8x8xf32>, vector<8x4xf32> -> vector<8x28xf32>
    %c0_24 = arith.constant 0 : index
    %c0_25 = arith.constant 0 : index
    %c0_26 = arith.constant 0 : index
    %105 = vector.load %arg16[%c0_24, %c0_25, %c0_26] : memref<1x8x28xf32, #tpu.memory_space<vmem>>, vector<1x8x28xf32>
    %106 = vector.shape_cast %105 : vector<1x8x28xf32> to vector<8x28xf32>
    %107 = vector.shape_cast %104 : vector<8x28xf32> to vector<1x8x28xf32>
    tpu.vector_store %arg16[%c0_24, %c0_25, %c0_26], %107 {strides = array<i32>} : memref<1x8x28xf32, #tpu.memory_space<vmem>>, vector<1x8x28xf32>,
    %108 = tpu.concatenate %96, %103 in 1 : vector<8x4xf32>, vector<8x8xf32> -> vector<8x12xf32>
    %109 = arith.truncf %108 : vector<8x12xf32> to vector<8x12xbf16>
    %c0_27 = arith.constant 0 : index
    %c0_28 = arith.constant 0 : index
    %110 = vector.load %arg9[%c0_27, %c0_28] : memref<12x256xbf16, #tpu.memory_space<vmem>>, vector<12x256xbf16>
    %cst_29 = arith.constant dense<0.000000e+00> : vector<8x256xf32>
    %111 = tpu.matmul %109, %110, %cst_29 {dimension_numbers = #tpu.dot_dimension_numbers<[1], [0], [0], [1], [0, 0, 1, 1], [], []>} : vector<8x12xbf16>, vector<12x256xbf16>, vector<8x256xf32> -> vector<8x256xf32>
    %c0_30 = arith.constant 0 : index
    %c0_31 = arith.constant 0 : index
    %112 = vector.load %arg10[%c0_30, %c0_31] : memref<1x256xf32, #tpu.memory_space<vmem>>, vector<1x256xf32>
    %113 = vector.broadcast %112 : vector<1x256xf32> to vector<8x256xf32>
    %114 = arith.addf %111, %113 : vector<8x256xf32>
    %115 = vector.extract_strided_slice %114 {offsets = [0, 0], sizes = [8, 16], strides = [1, 1]} : vector<8x256xf32> to vector<8x16xf32>
    %116 = vector.extract_strided_slice %114 {offsets = [0, 16], sizes = [8, 16], strides = [1, 1]} : vector<8x256xf32> to vector<8x16xf32>
    %117 = vector.extract_strided_slice %114 {offsets = [0, 32], sizes = [8, 16], strides = [1, 1]} : vector<8x256xf32> to vector<8x16xf32>
    %118 = vector.extract_strided_slice %114 {offsets = [0, 48], sizes = [8, 16], strides = [1, 1]} : vector<8x256xf32> to vector<8x16xf32>
    %119 = vector.extract_strided_slice %114 {offsets = [0, 64], sizes = [8, 16], strides = [1, 1]} : vector<8x256xf32> to vector<8x16xf32>
    %120 = vector.extract_strided_slice %114 {offsets = [0, 80], sizes = [8, 16], strides = [1, 1]} : vector<8x256xf32> to vector<8x16xf32>
    %121 = vector.extract_strided_slice %114 {offsets = [0, 96], sizes = [8, 16], strides = [1, 1]} : vector<8x256xf32> to vector<8x16xf32>
    %122 = vector.extract_strided_slice %114 {offsets = [0, 112], sizes = [8, 16], strides = [1, 1]} : vector<8x256xf32> to vector<8x16xf32>
    %123 = vector.extract_strided_slice %114 {offsets = [0, 128], sizes = [8, 16], strides = [1, 1]} : vector<8x256xf32> to vector<8x16xf32>
    %124 = vector.extract_strided_slice %114 {offsets = [0, 144], sizes = [8, 16], strides = [1, 1]} : vector<8x256xf32> to vector<8x16xf32>
    %125 = vector.extract_strided_slice %114 {offsets = [0, 160], sizes = [8, 16], strides = [1, 1]} : vector<8x256xf32> to vector<8x16xf32>
    %126 = vector.extract_strided_slice %114 {offsets = [0, 176], sizes = [8, 16], strides = [1, 1]} : vector<8x256xf32> to vector<8x16xf32>
    %127 = vector.extract_strided_slice %114 {offsets = [0, 192], sizes = [8, 16], strides = [1, 1]} : vector<8x256xf32> to vector<8x16xf32>
    %128 = vector.extract_strided_slice %114 {offsets = [0, 208], sizes = [8, 16], strides = [1, 1]} : vector<8x256xf32> to vector<8x16xf32>
    %129 = vector.extract_strided_slice %114 {offsets = [0, 224], sizes = [8, 16], strides = [1, 1]} : vector<8x256xf32> to vector<8x16xf32>
    %130 = vector.extract_strided_slice %114 {offsets = [0, 240], sizes = [8, 16], strides = [1, 1]} : vector<8x256xf32> to vector<8x16xf32>
    %131 = tpu.concatenate %115, %116, %117, %118, %119, %120, %121, %122, %123, %124, %125, %126, %127, %128, %129, %130 in 0 : vector<8x16xf32>, vector<8x16xf32>, vector<8x16xf32>, vector<8x16xf32>, vector<8x16xf32>, vector<8x16xf32>, vector<8x16xf32>, vector<8x16xf32>, vector<8x16xf32>, vector<8x16xf32>, vector<8x16xf32>, vector<8x16xf32>, vector<8x16xf32>, vector<8x16xf32>, vector<8x16xf32>, vector<8x16xf32> -> vector<128x16xf32>
    %132 = vector.shape_cast %131 : vector<128x16xf32> to vector<4x4x8x16xf32>
    %133 = arith.truncf %132 : vector<4x4x8x16xf32> to vector<4x4x8x16xbf16>
    %134 = vector.shape_cast %133 : vector<4x4x8x16xbf16> to vector<4x32x16xbf16>
    %cst_32 = arith.constant 0.000000e+00 : bf16
    %135 = vector.broadcast %cst_32 : bf16 to vector<4x32x16xbf16>
    %136 = tpu.concatenate %134, %135 in 1 : vector<4x32x16xbf16>, vector<4x32x16xbf16> -> vector<4x64x16xbf16>
    %137 = vector.shape_cast %136 : vector<4x64x16xbf16> to vector<8x4x8x16xbf16>
    %138 = vector.extract_strided_slice %137 {offsets = [0, 0, 0, 0], sizes = [7, 4, 8, 16], strides = [1, 1, 1, 1]} : vector<8x4x8x16xbf16> to vector<7x4x8x16xbf16>
    %139 = vector.shape_cast %138 : vector<7x4x8x16xbf16> to vector<28x8x16xbf16>
    %cst_33 = arith.constant 0.000000e+00 : bf16
    %140 = vector.broadcast %cst_33 : bf16 to vector<28x8x16xbf16>
    %141 = tpu.concatenate %139, %140 in 1 : vector<28x8x16xbf16>, vector<28x8x16xbf16> -> vector<28x16x16xbf16>
    %142 = vector.shape_cast %141 : vector<28x16x16xbf16> to vector<7x8x8x16xbf16>
    %143 = vector.extract_strided_slice %142 {offsets = [0, 0, 0, 0], sizes = [7, 7, 8, 16], strides = [1, 1, 1, 1]} : vector<7x8x8x16xbf16> to vector<7x7x8x16xbf16>
    %cst_34 = arith.constant 0.000000e+00 : bf16
    %144 = vector.broadcast %cst_34 : bf16 to vector<2x7x8x16xbf16>
    %145 = tpu.concatenate %144, %143, %144 in 0 : vector<2x7x8x16xbf16>, vector<7x7x8x16xbf16>, vector<2x7x8x16xbf16> -> vector<11x7x8x16xbf16>
    %cst_35 = arith.constant 0.000000e+00 : bf16
    %146 = vector.broadcast %cst_35 : bf16 to vector<11x2x8x16xbf16>
    %147 = tpu.concatenate %146, %145, %146 in 1 : vector<11x2x8x16xbf16>, vector<11x7x8x16xbf16>, vector<11x2x8x16xbf16> -> vector<11x11x8x16xbf16>
    %148 = vector.extract_strided_slice %147 {offsets = [0, 0, 0, 0], sizes = [9, 9, 8, 16], strides = [1, 1, 1, 1]} : vector<11x11x8x16xbf16> to vector<9x9x8x16xbf16>
    %149 = vector.shape_cast %148 : vector<9x9x8x16xbf16> to vector<648x16xbf16>
    %150 = vector.extract_strided_slice %147 {offsets = [0, 1, 0, 0], sizes = [9, 9, 8, 16], strides = [1, 1, 1, 1]} : vector<11x11x8x16xbf16> to vector<9x9x8x16xbf16>
    %151 = vector.shape_cast %150 : vector<9x9x8x16xbf16> to vector<648x16xbf16>
    %152 = vector.extract_strided_slice %147 {offsets = [0, 2, 0, 0], sizes = [9, 9, 8, 16], strides = [1, 1, 1, 1]} : vector<11x11x8x16xbf16> to vector<9x9x8x16xbf16>
    %153 = vector.shape_cast %152 : vector<9x9x8x16xbf16> to vector<648x16xbf16>
    %154 = vector.extract_strided_slice %147 {offsets = [1, 0, 0, 0], sizes = [9, 9, 8, 16], strides = [1, 1, 1, 1]} : vector<11x11x8x16xbf16> to vector<9x9x8x16xbf16>
    %155 = vector.shape_cast %154 : vector<9x9x8x16xbf16> to vector<648x16xbf16>
    %156 = vector.extract_strided_slice %147 {offsets = [1, 1, 0, 0], sizes = [9, 9, 8, 16], strides = [1, 1, 1, 1]} : vector<11x11x8x16xbf16> to vector<9x9x8x16xbf16>
    %157 = vector.shape_cast %156 : vector<9x9x8x16xbf16> to vector<648x16xbf16>
    %158 = vector.extract_strided_slice %147 {offsets = [1, 2, 0, 0], sizes = [9, 9, 8, 16], strides = [1, 1, 1, 1]} : vector<11x11x8x16xbf16> to vector<9x9x8x16xbf16>
    %159 = vector.shape_cast %158 : vector<9x9x8x16xbf16> to vector<648x16xbf16>
    %160 = vector.extract_strided_slice %147 {offsets = [2, 0, 0, 0], sizes = [9, 9, 8, 16], strides = [1, 1, 1, 1]} : vector<11x11x8x16xbf16> to vector<9x9x8x16xbf16>
    %161 = vector.shape_cast %160 : vector<9x9x8x16xbf16> to vector<648x16xbf16>
    %162 = vector.extract_strided_slice %147 {offsets = [2, 1, 0, 0], sizes = [9, 9, 8, 16], strides = [1, 1, 1, 1]} : vector<11x11x8x16xbf16> to vector<9x9x8x16xbf16>
    %163 = vector.shape_cast %162 : vector<9x9x8x16xbf16> to vector<648x16xbf16>
    %164 = vector.extract_strided_slice %147 {offsets = [2, 2, 0, 0], sizes = [9, 9, 8, 16], strides = [1, 1, 1, 1]} : vector<11x11x8x16xbf16> to vector<9x9x8x16xbf16>
    %165 = vector.shape_cast %164 : vector<9x9x8x16xbf16> to vector<648x16xbf16>
    %166 = tpu.concatenate %149, %151, %153, %155, %157, %159, %161, %163, %165 in 1 : vector<648x16xbf16>, vector<648x16xbf16>, vector<648x16xbf16>, vector<648x16xbf16>, vector<648x16xbf16>, vector<648x16xbf16>, vector<648x16xbf16>, vector<648x16xbf16>, vector<648x16xbf16> -> vector<648x144xbf16>
    %c0_36 = arith.constant 0 : index
    %c0_37 = arith.constant 0 : index
    %167 = vector.load %arg11[%c0_36, %c0_37] : memref<144x8xbf16, #tpu.memory_space<vmem>>, vector<144x8xbf16>
    %cst_38 = arith.constant dense<0.000000e+00> : vector<648x8xf32>
    %168 = tpu.matmul %166, %167, %cst_38 {dimension_numbers = #tpu.dot_dimension_numbers<[1], [0], [0], [1], [0, 0, 1, 1], [], []>} : vector<648x144xbf16>, vector<144x8xbf16>, vector<648x8xf32> -> vector<648x8xf32>
    %c0_39 = arith.constant 0 : index
    %c0_40 = arith.constant 0 : index
    %169 = vector.load %arg12[%c0_39, %c0_40] : memref<1x8xf32, #tpu.memory_space<vmem>>, vector<1x8xf32>
    %170 = vector.broadcast %169 : vector<1x8xf32> to vector<648x8xf32>
    %171 = arith.addf %168, %170 : vector<648x8xf32>
    %cst_41 = arith.constant 0.000000e+00 : f32
    %172 = vector.broadcast %cst_41 : f32 to vector<648x8xf32>
    %173 = arith.maximumf %171, %172 : vector<648x8xf32>
    %174 = vector.shape_cast %173 : vector<648x8xf32> to vector<9x9x8x8xf32>
    %175 = vector.shape_cast %174 : vector<9x9x8x8xf32> to vector<9x72x8xf32>
    %cst_42 = arith.constant 0.000000e+00 : f32
    %176 = vector.broadcast %cst_42 : f32 to vector<9x72x8xf32>
    %177 = tpu.concatenate %175, %176 in 1 : vector<9x72x8xf32>, vector<9x72x8xf32> -> vector<9x144x8xf32>
    %178 = vector.shape_cast %177 : vector<9x144x8xf32> to vector<18x9x8x8xf32>
    %179 = vector.extract_strided_slice %178 {offsets = [0, 0, 0, 0], sizes = [17, 9, 8, 8], strides = [1, 1, 1, 1]} : vector<18x9x8x8xf32> to vector<17x9x8x8xf32>
    %180 = vector.shape_cast %179 : vector<17x9x8x8xf32> to vector<153x8x8xf32>
    %cst_43 = arith.constant 0.000000e+00 : f32
    %181 = vector.broadcast %cst_43 : f32 to vector<153x8x8xf32>
    %182 = tpu.concatenate %180, %181 in 1 : vector<153x8x8xf32>, vector<153x8x8xf32> -> vector<153x16x8xf32>
    %183 = vector.shape_cast %182 : vector<153x16x8xf32> to vector<17x18x8x8xf32>
    %184 = vector.extract_strided_slice %183 {offsets = [0, 0, 0, 0], sizes = [17, 17, 8, 8], strides = [1, 1, 1, 1]} : vector<17x18x8x8xf32> to vector<17x17x8x8xf32>
    %185 = vector.extract_strided_slice %184 {offsets = [0, 0, 0, 0], sizes = [16, 16, 8, 8], strides = [1, 1, 1, 1]} : vector<17x17x8x8xf32> to vector<16x16x8x8xf32>
    %186 = vector.shape_cast %185 : vector<16x16x8x8xf32> to vector<256x8x8xf32>
    %187 = vector.extract_strided_slice %184 {offsets = [0, 1, 0, 0], sizes = [16, 16, 8, 8], strides = [1, 1, 1, 1]} : vector<17x17x8x8xf32> to vector<16x16x8x8xf32>
    %188 = vector.shape_cast %187 : vector<16x16x8x8xf32> to vector<256x8x8xf32>
    %189 = vector.extract_strided_slice %184 {offsets = [1, 0, 0, 0], sizes = [16, 16, 8, 8], strides = [1, 1, 1, 1]} : vector<17x17x8x8xf32> to vector<16x16x8x8xf32>
    %190 = vector.shape_cast %189 : vector<16x16x8x8xf32> to vector<256x8x8xf32>
    %191 = vector.extract_strided_slice %184 {offsets = [1, 1, 0, 0], sizes = [16, 16, 8, 8], strides = [1, 1, 1, 1]} : vector<17x17x8x8xf32> to vector<16x16x8x8xf32>
    %192 = vector.shape_cast %191 : vector<16x16x8x8xf32> to vector<256x8x8xf32>
    %193 = tpu.concatenate %186, %188, %190, %192 in 2 : vector<256x8x8xf32>, vector<256x8x8xf32>, vector<256x8x8xf32>, vector<256x8x8xf32> -> vector<256x8x32xf32>
    %c0_44 = arith.constant 0 : index
    %c0_45 = arith.constant 0 : index
    %c0_46 = arith.constant 0 : index
    %194 = vector.load %arg13[%c0_44, %c0_45, %c0_46] : memref<1x1x32xf32, #tpu.memory_space<vmem>>, vector<1x1x32xf32>
    %195 = vector.broadcast %194 : vector<1x1x32xf32> to vector<256x8x32xf32>
    %196 = arith.mulf %193, %195 : vector<256x8x32xf32>
    %cst_47 = arith.constant dense<0.000000e+00> : vector<256x8xf32>
    %197 = vector.multi_reduction <add>, %196, %cst_47 [2] : vector<256x8x32xf32> to vector<256x8xf32>
    %198 = tpu.transpose %197, [1, 0] : vector<256x8xf32> -> vector<8x256xf32>
    %c0_48 = arith.constant 0 : index
    %c0_49 = arith.constant 0 : index
    %199 = vector.load %arg14[%c0_48, %c0_49] : memref<1x1xf32, #tpu.memory_space<vmem>>, vector<1x1xf32>
    %200 = vector.broadcast %199 : vector<1x1xf32> to vector<8x256xf32>
    %201 = arith.addf %198, %200 : vector<8x256xf32>
    %c0_50 = arith.constant 0 : index
    %c0_51 = arith.constant 0 : index
    %c0_52 = arith.constant 0 : index
    %202 = vector.load %arg15[%c0_50, %c0_51, %c0_52] : memref<1x8x256xf32, #tpu.memory_space<vmem>>, vector<1x8x256xf32>
    %203 = vector.shape_cast %202 : vector<1x8x256xf32> to vector<8x256xf32>
    %204 = vector.shape_cast %201 : vector<8x256xf32> to vector<1x8x256xf32>
    tpu.vector_store %arg15[%c0_50, %c0_51, %c0_52], %204 {strides = array<i32>} : memref<1x8x256xf32, #tpu.memory_space<vmem>>, vector<1x8x256xf32>,
    return
  }
  func.func @transform_0(%arg0: i32) -> (i32, i32, i32) {
    %c0_i32 = arith.constant 0 : i32
    %c0_i32_0 = arith.constant 0 : i32
    %c0_i32_1 = arith.constant 0 : i32
    return %arg0, %c0_i32, %c0_i32_0 : i32, i32, i32
  }
  func.func @transform_1(%arg0: i32) -> (i32, i32, i32) {
    %c0_i32 = arith.constant 0 : i32
    %c0_i32_0 = arith.constant 0 : i32
    %c0_i32_1 = arith.constant 0 : i32
    return %arg0, %c0_i32, %c0_i32_0 : i32, i32, i32
  }
  func.func @transform_2(%arg0: i32) -> (i32, i32) {
    %c0_i32 = arith.constant 0 : i32
    %c0_i32_0 = arith.constant 0 : i32
    %c0_i32_1 = arith.constant 0 : i32
    return %c0_i32, %c0_i32_0 : i32, i32
  }
  func.func @transform_3(%arg0: i32) -> (i32, i32) {
    %c0_i32 = arith.constant 0 : i32
    %c0_i32_0 = arith.constant 0 : i32
    %c0_i32_1 = arith.constant 0 : i32
    return %c0_i32, %c0_i32_0 : i32, i32
  }
  func.func @transform_4(%arg0: i32) -> (i32, i32) {
    %c0_i32 = arith.constant 0 : i32
    %c0_i32_0 = arith.constant 0 : i32
    %c0_i32_1 = arith.constant 0 : i32
    return %c0_i32, %c0_i32_0 : i32, i32
  }
  func.func @transform_5(%arg0: i32) -> (i32, i32) {
    %c0_i32 = arith.constant 0 : i32
    %c0_i32_0 = arith.constant 0 : i32
    %c0_i32_1 = arith.constant 0 : i32
    return %c0_i32, %c0_i32_0 : i32, i32
  }
  func.func @transform_6(%arg0: i32) -> (i32, i32) {
    %c0_i32 = arith.constant 0 : i32
    %c0_i32_0 = arith.constant 0 : i32
    %c0_i32_1 = arith.constant 0 : i32
    return %c0_i32, %c0_i32_0 : i32, i32
  }
  func.func @transform_7(%arg0: i32) -> (i32, i32) {
    %c0_i32 = arith.constant 0 : i32
    %c0_i32_0 = arith.constant 0 : i32
    %c0_i32_1 = arith.constant 0 : i32
    return %c0_i32, %c0_i32_0 : i32, i32
  }
  func.func @transform_8(%arg0: i32) -> (i32, i32) {
    %c0_i32 = arith.constant 0 : i32
    %c0_i32_0 = arith.constant 0 : i32
    %c0_i32_1 = arith.constant 0 : i32
    return %c0_i32, %c0_i32_0 : i32, i32
  }
  func.func @transform_9(%arg0: i32) -> (i32, i32) {
    %c0_i32 = arith.constant 0 : i32
    %c0_i32_0 = arith.constant 0 : i32
    %c0_i32_1 = arith.constant 0 : i32
    return %c0_i32, %c0_i32_0 : i32, i32
  }
  func.func @transform_10(%arg0: i32) -> (i32, i32) {
    %c0_i32 = arith.constant 0 : i32
    %c0_i32_0 = arith.constant 0 : i32
    %c0_i32_1 = arith.constant 0 : i32
    return %c0_i32, %c0_i32_0 : i32, i32
  }
  func.func @transform_11(%arg0: i32) -> (i32, i32) {
    %c0_i32 = arith.constant 0 : i32
    %c0_i32_0 = arith.constant 0 : i32
    %c0_i32_1 = arith.constant 0 : i32
    return %c0_i32, %c0_i32_0 : i32, i32
  }
  func.func @transform_12(%arg0: i32) -> (i32, i32, i32) {
    %c0_i32 = arith.constant 0 : i32
    %c0_i32_0 = arith.constant 0 : i32
    %c0_i32_1 = arith.constant 0 : i32
    %c0_i32_2 = arith.constant 0 : i32
    return %c0_i32, %c0_i32_0, %c0_i32_1 : i32, i32, i32
  }
  func.func @transform_13(%arg0: i32) -> (i32, i32) {
    %c0_i32 = arith.constant 0 : i32
    %c0_i32_0 = arith.constant 0 : i32
    %c0_i32_1 = arith.constant 0 : i32
    return %c0_i32, %c0_i32_0 : i32, i32
  }
  func.func @transform_14(%arg0: i32) -> (i32, i32, i32) {
    %c0_i32 = arith.constant 0 : i32
    %c0_i32_0 = arith.constant 0 : i32
    %c0_i32_1 = arith.constant 0 : i32
    return %arg0, %c0_i32, %c0_i32_0 : i32, i32, i32
  }
  func.func @transform_15(%arg0: i32) -> (i32, i32, i32) {
    %c0_i32 = arith.constant 0 : i32
    %c0_i32_0 = arith.constant 0 : i32
    %c0_i32_1 = arith.constant 0 : i32
    return %arg0, %c0_i32, %c0_i32_0 : i32, i32, i32
  }
}

</mosaic_0001>

<llo_original>
// kernel: forward.1
$region0: #{forward.1}
  #allocation0 [shape = 'u32[]', space=smem, size = 0x4, offset = 0x4, fixed_abs, tag = 'smem constant byte address 0x4 - core index']
  #allocation1 [shape = 'u32[144,128]{1,0:T(1,128)}', space=vmem, size = 0x12000, scoped, tag = 'internal scratch']
  #allocation2 [shape = 'f32[1,1]{1,0:T(1,128)S(1)}', space=vmem, size = 0x200, scoped, tag = 'scoped memory for forward.1']
  %s0 = inlined_call_operand.vmem [shape: bf16[1,512,9], index: 0, kind: input, shape index: {}]
  %s1 = inlined_call_operand.vmem [shape: f32[1,8,8], index: 1, kind: input, shape index: {}]
  %s2 = inlined_call_operand.vmem [shape: bf16[9,8], index: 2, kind: input, shape index: {}]
  %s3 = inlined_call_operand.vmem [shape: f32[1,8], index: 3, kind: input, shape index: {}]
  %s4 = inlined_call_operand.vmem [shape: bf16[72,16], index: 4, kind: input, shape index: {}]
  %s5 = inlined_call_operand.vmem [shape: f32[1,16], index: 5, kind: input, shape index: {}]
  %s6 = inlined_call_operand.vmem [shape: bf16[256,20], index: 6, kind: input, shape index: {}]
  %s7 = inlined_call_operand.vmem [shape: f32[1,20], index: 7, kind: input, shape index: {}]
  %s8 = inlined_call_operand.vmem [shape: bf16[12,256], index: 8, kind: input, shape index: {}]
  %s9 = inlined_call_operand.vmem [shape: f32[1,256], index: 9, kind: input, shape index: {}]
  %s10 = inlined_call_operand.vmem [shape: bf16[144,8], index: 10, kind: input, shape index: {}]
  %s11 = inlined_call_operand.vmem [shape: f32[1,8], index: 11, kind: input, shape index: {}]
  %s12 = inlined_call_operand.vmem [shape: f32[1,1,32], index: 12, kind: input, shape index: {}]
  %s13 = inlined_call_operand.<no memory space> [shape: f32[1,1], index: 13, kind: input, shape index: {}]
  %s14 = inlined_call_operand.vmem [shape: f32[1,8,256], index: 14, kind: output, shape index: {0}]
  %s15 = inlined_call_operand.vmem [shape: f32[1,8,28], index: 15, kind: output, shape index: {1}]
  %16 = xla_tuple %s14, %s15
  %s17 = sld [smem:[#allocation0]]
  $region74: #{forward.1} parent=0
    _
  %s19 = ssub.s32 1, %s17
  %s20 = scalar_select 0, %s19, %s17
  %v21 = vstv %s13
  %22 = vst [vmem:[#allocation2] sm:$0x1] %v21
  // Predicated region
  $region2: #{forward.1} parent=0 // pred_check
    _
  $region3: #{forward.1} parent=0 // pred_check_branch
    %24 = sbr.rel (0) target = $region5
  $region4: #{forward.1} parent=0 // pred_region
    _
  $region5: #{forward.1} parent=0 // pred_fallthru
    _
  // Predicated region
  $region6: #{forward.1} parent=0 // pred_check
    _
  $region7: #{forward.1} parent=0 // pred_check_branch
    %26 = sbr.rel (0) target = $region9
  $region8: #{forward.1} parent=0 // pred_region
    _
  $region9: #{forward.1} parent=0 // pred_fallthru
    _
  // Predicated region
  $region10: #{forward.1} parent=0 // pred_check
    _
  $region11: #{forward.1} parent=0 // pred_check_branch
    %28 = sbr.rel (0) target = $region13
  $region12: #{forward.1} parent=0 // pred_region
    _
  $region13: #{forward.1} parent=0 // pred_fallthru
    _
  // Predicated region
  $region14: #{forward.1} parent=0 // pred_check
    _
  $region15: #{forward.1} parent=0 // pred_check_branch
    %30 = sbr.rel (0) target = $region17
  $region16: #{forward.1} parent=0 // pred_region
    _
  $region17: #{forward.1} parent=0 // pred_fallthru
    _
  // Predicated region
  $region18: #{forward.1} parent=0 // pred_check
    _
  $region19: #{forward.1} parent=0 // pred_check_branch
    %32 = sbr.rel (0) target = $region21
  $region20: #{forward.1} parent=0 // pred_region
    _
  $region21: #{forward.1} parent=0 // pred_fallthru
    _
  // Predicated region
  $region22: #{forward.1} parent=0 // pred_check
    _
  $region23: #{forward.1} parent=0 // pred_check_branch
    %34 = sbr.rel (0) target = $region25
  $region24: #{forward.1} parent=0 // pred_region
    _
  $region25: #{forward.1} parent=0 // pred_fallthru
    _
  // Predicated region
  $region26: #{forward.1} parent=0 // pred_check
    _
  $region27: #{forward.1} parent=0 // pred_check_branch
    %36 = sbr.rel (0) target = $region29
  $region28: #{forward.1} parent=0 // pred_region
    _
  $region29: #{forward.1} parent=0 // pred_fallthru
    _
  // Predicated region
  $region30: #{forward.1} parent=0 // pred_check
    _
  $region31: #{forward.1} parent=0 // pred_check_branch
    %38 = sbr.rel (0) target = $region33
  $region32: #{forward.1} parent=0 // pred_region
    _
  $region33: #{forward.1} parent=0 // pred_fallthru
    _
  // Predicated region
  $region34: #{forward.1} parent=0 // pred_check
    _
  $region35: #{forward.1} parent=0 // pred_check_branch
    %40 = sbr.rel (0) target = $region37
  $region36: #{forward.1} parent=0 // pred_region
    _
  $region37: #{forward.1} parent=0 // pred_fallthru
    _
  // Predicated region
  $region38: #{forward.1} parent=0 // pred_check
    _
  $region39: #{forward.1} parent=0 // pred_check_branch
    %42 = sbr.rel (0) target = $region41
  $region40: #{forward.1} parent=0 // pred_region
    _
  $region41: #{forward.1} parent=0 // pred_fallthru
    _
  // Predicated region
  $region42: #{forward.1} parent=0 // pred_check
    _
  $region43: #{forward.1} parent=0 // pred_check_branch
    %44 = sbr.rel (0) target = $region45
  $region44: #{forward.1} parent=0 // pred_region
    _
  $region45: #{forward.1} parent=0 // pred_fallthru
    _
  // Predicated region
  $region46: #{forward.1} parent=0 // pred_check
    _
  $region47: #{forward.1} parent=0 // pred_check_branch
    %46 = sbr.rel (0) target = $region49
  $region48: #{forward.1} parent=0 // pred_region
    _
  $region49: #{forward.1} parent=0 // pred_fallthru
    _
  // Predicated region
  $region50: #{forward.1} parent=0 // pred_check
    _
  $region51: #{forward.1} parent=0 // pred_check_branch
    %48 = sbr.rel (0) target = $region53
  $region52: #{forward.1} parent=0 // pred_region
    _
  $region53: #{forward.1} parent=0 // pred_fallthru
    _
  // Predicated region
  $region54: #{forward.1} parent=0 // pred_check
    _
  $region55: #{forward.1} parent=0 // pred_check_branch
    %50 = sbr.rel (0) target = $region57
  $region56: #{forward.1} parent=0 // pred_region
    _
  $region57: #{forward.1} parent=0 // pred_fallthru
    _
  %v52 = vld [vmem:[%s0] sm:$0xf]
  %v53 = vld [vmem:[%s0 + $0x4] sm:$0xf]
  %v54 = vld [vmem:[%s0 + $0x8] sm:$0xf]
  %v55 = vld [vmem:[%s0 + $0xc] sm:$0xf]
  %v56 = vld [vmem:[%s0 + $0x10] sm:$0xf]
  %v57 = vld [vmem:[%s0 + $0x14] sm:$0xf]
  %v58 = vld [vmem:[%s0 + $0x18] sm:$0xf]
  %v59 = vld [vmem:[%s0 + $0x1c] sm:$0xf]
  %v60 = vld [vmem:[%s0 + $0x20] sm:$0xf]
  %v61 = vld [vmem:[%s0 + $0x24] sm:$0xf]
  %v62 = vld [vmem:[%s0 + $0x28] sm:$0xf]
  %v63 = vld [vmem:[%s0 + $0x2c] sm:$0xf]
  %v64 = vld [vmem:[%s0 + $0x30] sm:$0xf]
  %v65 = vld [vmem:[%s0 + $0x34] sm:$0xf]
  %v66 = vld [vmem:[%s0 + $0x38] sm:$0xf]
  %v67 = vld [vmem:[%s0 + $0x3c] sm:$0xf]
  %v68 = vld [vmem:[%s0 + $0x40] sm:$0xf]
  %v69 = vld [vmem:[%s0 + $0x44] sm:$0xf]
  %v70 = vld [vmem:[%s0 + $0x48] sm:$0xf]
  %v71 = vld [vmem:[%s0 + $0x4c] sm:$0xf]
  %v72 = vld [vmem:[%s0 + $0x50] sm:$0xf]
  %v73 = vld [vmem:[%s0 + $0x54] sm:$0xf]
  %v74 = vld [vmem:[%s0 + $0x58] sm:$0xf]
  %v75 = vld [vmem:[%s0 + $0x5c] sm:$0xf]
  %v76 = vld [vmem:[%s0 + $0x60] sm:$0xf]
  %v77 = vld [vmem:[%s0 + $0x64] sm:$0xf]
  %v78 = vld [vmem:[%s0 + $0x68] sm:$0xf]
  %v79 = vld [vmem:[%s0 + $0x6c] sm:$0xf]
  %v80 = vld [vmem:[%s0 + $0x70] sm:$0xf]
  %v81 = vld [vmem:[%s0 + $0x74] sm:$0xf]
  %v82 = vld [vmem:[%s0 + $0x78] sm:$0xf]
  %v83 = vld [vmem:[%s0 + $0x7c] sm:$0xf]
  %v84 = vld [vmem:[%s0 + $0x80] sm:$0xf]
  %v85 = vld [vmem:[%s0 + $0x84] sm:$0xf]
  %v86 = vld [vmem:[%s0 + $0x88] sm:$0xf]
  %v87 = vld [vmem:[%s0 + $0x8c] sm:$0xf]
  %v88 = vld [vmem:[%s0 + $0x90] sm:$0xf]
  %v89 = vld [vmem:[%s0 + $0x94] sm:$0xf]
  %v90 = vld [vmem:[%s0 + $0x98] sm:$0xf]
  %v91 = vld [vmem:[%s0 + $0x9c] sm:$0xf]
  %v92 = vld [vmem:[%s0 + $0xa0] sm:$0xf]
  %v93 = vld [vmem:[%s0 + $0xa4] sm:$0xf]
  %v94 = vld [vmem:[%s0 + $0xa8] sm:$0xf]
  %v95 = vld [vmem:[%s0 + $0xac] sm:$0xf]
  %v96 = vld [vmem:[%s0 + $0xb0] sm:$0xf]
  %v97 = vld [vmem:[%s0 + $0xb4] sm:$0xf]
  %v98 = vld [vmem:[%s0 + $0xb8] sm:$0xf]
  %v99 = vld [vmem:[%s0 + $0xbc] sm:$0xf]
  %v100 = vld [vmem:[%s0 + $0xc0] sm:$0xf]
  %v101 = vld [vmem:[%s0 + $0xc4] sm:$0xf]
  %v102 = vld [vmem:[%s0 + $0xc8] sm:$0xf]
  %v103 = vld [vmem:[%s0 + $0xcc] sm:$0xf]
  %v104 = vld [vmem:[%s0 + $0xd0] sm:$0xf]
  %v105 = vld [vmem:[%s0 + $0xd4] sm:$0xf]
  %v106 = vld [vmem:[%s0 + $0xd8] sm:$0xf]
  %v107 = vld [vmem:[%s0 + $0xdc] sm:$0xf]
  %v108 = vld [vmem:[%s0 + $0xe0] sm:$0xf]
  %v109 = vld [vmem:[%s0 + $0xe4] sm:$0xf]
  %v110 = vld [vmem:[%s0 + $0xe8] sm:$0xf]
  %v111 = vld [vmem:[%s0 + $0xec] sm:$0xf]
  %v112 = vld [vmem:[%s0 + $0xf0] sm:$0xf]
  %v113 = vld [vmem:[%s0 + $0xf4] sm:$0xf]
  %v114 = vld [vmem:[%s0 + $0xf8] sm:$0xf]
  %v115 = vld [vmem:[%s0 + $0xfc] sm:$0xf]
  %v116 = vld [vmem:[%s2] sm:$0xf]
  %v117 = vld [vmem:[%s2 + $0x4] sm:$0x1]
  %v118 = vld [vmem:[%s3] sm:$0x1]
  %v120 = vlaneseq
  %v121 = vshrl.u32 %v120, 7
  %v122 = vsub.s32 0, %v121
  %v123 = vrot.slane %v118, %v122
  %v189 = vunpack.c.l.b16 %v52
  %v190 = vunpack.c.l.b16 %v53
  %v191 = vunpack.c.l.b16 %v54
  %v192 = vunpack.c.l.b16 %v55
  %v193 = vunpack.c.l.b16 %v56
  %v194 = vunpack.c.l.b16 %v57
  %v195 = vunpack.c.l.b16 %v58
  %v196 = vunpack.c.l.b16 %v59
  %v197 = vunpack.c.l.b16 %v60
  %v198 = vunpack.c.l.b16 %v61
  %v199 = vunpack.c.l.b16 %v62
  %v200 = vunpack.c.l.b16 %v63
  %v201 = vunpack.c.l.b16 %v64
  %v202 = vunpack.c.l.b16 %v65
  %v203 = vunpack.c.l.b16 %v66
  %v204 = vunpack.c.l.b16 %v67
  %v205 = vunpack.c.l.b16 %v68
  %v206 = vunpack.c.l.b16 %v69
  %v207 = vunpack.c.l.b16 %v70
  %v208 = vunpack.c.l.b16 %v71
  %v209 = vunpack.c.l.b16 %v72
  %v210 = vunpack.c.l.b16 %v73
  %v211 = vunpack.c.l.b16 %v74
  %v212 = vunpack.c.l.b16 %v75
  %v213 = vunpack.c.l.b16 %v76
  %v214 = vunpack.c.l.b16 %v77
  %v215 = vunpack.c.l.b16 %v78
  %v216 = vunpack.c.l.b16 %v79
  %v217 = vunpack.c.l.b16 %v80
  %v218 = vunpack.c.l.b16 %v81
  %v219 = vunpack.c.l.b16 %v82
  %v220 = vunpack.c.l.b16 %v83
  %v221 = vunpack.c.l.b16 %v84
  %v222 = vunpack.c.l.b16 %v85
  %v223 = vunpack.c.l.b16 %v86
  %v224 = vunpack.c.l.b16 %v87
  %v225 = vunpack.c.l.b16 %v88
  %v226 = vunpack.c.l.b16 %v89
  %v227 = vunpack.c.l.b16 %v90
  %v228 = vunpack.c.l.b16 %v91
  %v229 = vunpack.c.l.b16 %v92
  %v230 = vunpack.c.l.b16 %v93
  %v231 = vunpack.c.l.b16 %v94
  %v232 = vunpack.c.l.b16 %v95
  %v233 = vunpack.c.l.b16 %v96
  %v234 = vunpack.c.l.b16 %v97
  %v235 = vunpack.c.l.b16 %v98
  %v236 = vunpack.c.l.b16 %v99
  %v237 = vunpack.c.l.b16 %v100
  %v238 = vunpack.c.l.b16 %v101
  %v239 = vunpack.c.l.b16 %v102
  %v240 = vunpack.c.l.b16 %v103
  %v241 = vunpack.c.l.b16 %v104
  %v242 = vunpack.c.l.b16 %v105
  %v243 = vunpack.c.l.b16 %v106
  %v244 = vunpack.c.l.b16 %v107
  %v245 = vunpack.c.l.b16 %v108
  %v246 = vunpack.c.l.b16 %v109
  %v247 = vunpack.c.l.b16 %v110
  %v248 = vunpack.c.l.b16 %v111
  %v249 = vunpack.c.l.b16 %v112
  %v250 = vunpack.c.l.b16 %v113
  %v251 = vunpack.c.l.b16 %v114
  %v252 = vunpack.c.l.b16 %v115
  %v253 = vpack.c.b16 %v190, %v189
  %v254 = vpack.c.b16 %v192, %v191
  %v255 = vpack.c.b16 %v194, %v193
  %v256 = vpack.c.b16 %v196, %v195
  %v257 = vpack.c.b16 %v198, %v197
  %v258 = vpack.c.b16 %v200, %v199
  %v259 = vpack.c.b16 %v202, %v201
  %v260 = vpack.c.b16 %v204, %v203
  %v261 = vpack.c.b16 %v206, %v205
  %v262 = vpack.c.b16 %v208, %v207
  %v263 = vpack.c.b16 %v210, %v209
  %v264 = vpack.c.b16 %v212, %v211
  %v265 = vpack.c.b16 %v214, %v213
  %v266 = vpack.c.b16 %v216, %v215
  %v267 = vpack.c.b16 %v218, %v217
  %v268 = vpack.c.b16 %v220, %v219
  %v269 = vpack.c.b16 %v222, %v221
  %v270 = vpack.c.b16 %v224, %v223
  %v271 = vpack.c.b16 %v226, %v225
  %v272 = vpack.c.b16 %v228, %v227
  %v273 = vpack.c.b16 %v230, %v229
  %v274 = vpack.c.b16 %v232, %v231
  %v275 = vpack.c.b16 %v234, %v233
  %v276 = vpack.c.b16 %v236, %v235
  %v277 = vpack.c.b16 %v238, %v237
  %v278 = vpack.c.b16 %v240, %v239
  %v279 = vpack.c.b16 %v242, %v241
  %v280 = vpack.c.b16 %v244, %v243
  %v281 = vpack.c.b16 %v246, %v245
  %v282 = vpack.c.b16 %v248, %v247
  %v283 = vpack.c.b16 %v250, %v249
  %v284 = vpack.c.b16 %v252, %v251
  %v287 = vunpack.c.l.b16 %v116
  %v288 = vunpack.c.l.b16 %v117
  %v289 = vpack.c.b16 %v288, %v287
  %vm290 = vcmask 72704
  %v292 = vsel %vm290, %v253, 0
  %v295 = vsel %vm290, %v254, 0
  %v298 = vsel %vm290, %v255, 0
  %v301 = vsel %vm290, %v256, 0
  %v304 = vsel %vm290, %v257, 0
  %v307 = vsel %vm290, %v258, 0
  %v310 = vsel %vm290, %v259, 0
  %v313 = vsel %vm290, %v260, 0
  %v316 = vsel %vm290, %v261, 0
  %v319 = vsel %vm290, %v262, 0
  %v322 = vsel %vm290, %v263, 0
  %v325 = vsel %vm290, %v264, 0
  %v328 = vsel %vm290, %v265, 0
  %v331 = vsel %vm290, %v266, 0
  %v334 = vsel %vm290, %v267, 0
  %v337 = vsel %vm290, %v268, 0
  %v340 = vsel %vm290, %v269, 0
  %v343 = vsel %vm290, %v270, 0
  %v346 = vsel %vm290, %v271, 0
  %v349 = vsel %vm290, %v272, 0
  %v352 = vsel %vm290, %v273, 0
  %v355 = vsel %vm290, %v274, 0
  %v358 = vsel %vm290, %v275, 0
  %v361 = vsel %vm290, %v276, 0
  %v364 = vsel %vm290, %v277, 0
  %v367 = vsel %vm290, %v278, 0
  %v370 = vsel %vm290, %v279, 0
  %v373 = vsel %vm290, %v280, 0
  %v376 = vsel %vm290, %v281, 0
  %v379 = vsel %vm290, %v282, 0
  %v382 = vsel %vm290, %v283, 0
  %v385 = vsel %vm290, %v284, 0
  %vm387 = vcmask 1043456
  %vm388 = vcmask 1044480
  %v389 = vsel %vm387, 4294967295, 65535
  %v390 = vsel %vm388, %v389, 0
  %v392 = vand.u32 %v289, %v390
  %394 = vmatprep.subr.bf16.mxu0 0
  %395 = vmatpush1.bf16.msra.mxu0 %v392
  %396 = vmatprep.subr.bf16.mxu0 0
  %397 = vmatpush1.bf16.msra.mxu0 0
  %398 = vmatprep.subr.bf16.mxu0 0
  %399 = vmatpush1.bf16.msra.mxu0 0
  %400 = vmatprep.subr.bf16.mxu0 0
  %401 = vmatpush1.bf16.msra.mxu0 0
  %402 = vmatprep.subr.bf16.mxu0 0
  %403 = vmatpush1.bf16.msra.mxu0 0
  %404 = vmatprep.subr.bf16.mxu0 0
  %405 = vmatpush1.bf16.msra.mxu0 0
  %406 = vmatprep.subr.bf16.mxu0 0
  %407 = vmatpush1.bf16.msra.mxu0 0
  %408 = vmatprep.subr.bf16.mxu0 0
  %409 = vmatpush1.bf16.msra.mxu0 0
  %410 = vmatprep.subr.bf16.mxu0 0
  %411 = vmatpush1.bf16.msra.mxu0 0
  %412 = vmatprep.subr.bf16.mxu0 0
  %413 = vmatpush1.bf16.msra.mxu0 0
  %414 = vmatprep.subr.bf16.mxu0 0
  %415 = vmatpush1.bf16.msra.mxu0 0
  %416 = vmatprep.subr.bf16.mxu0 0
  %417 = vmatpush1.bf16.msra.mxu0 0
  %418 = vmatprep.subr.bf16.mxu0 0
  %419 = vmatpush1.bf16.msra.mxu0 0
  %420 = vmatprep.subr.bf16.mxu0 0
  %421 = vmatpush1.bf16.msra.mxu0 0
  %422 = vmatprep.subr.bf16.mxu0 0
  %423 = vmatpush1.bf16.msra.mxu0 0
  %424 = vmatprep.subr.bf16.mxu0 0
  %425 = vmatpush1.bf16.msra.mxu0 0
  %426 = vmatprep.mubr.bf16.mxu0 0
  %427 = vmatmul.mubr.bf16.gmra.mrb[0].mxu0 %v292
  %v428 = vpop.f32.mrb[0].mxu0
  %v429 = vadd.f32 %v123, %v428
  %v430 = vpop.f32.mrb[0].mxu0
  %v431 = vpop.f32.mrb[0].mxu0
  %v432 = vadd.f32 %v123, %v431
  %v433 = vpop.f32.mrb[0].mxu0
  %434 = vmatprep.mubr.bf16.mxu0 0
  %435 = vmatmul.mubr.bf16.gmra.mrb[0].mxu0 %v295
  %v436 = vpop.f32.mrb[0].mxu0
  %v437 = vadd.f32 %v123, %v436
  %v438 = vpop.f32.mrb[0].mxu0
  %v439 = vpop.f32.mrb[0].mxu0
  %v440 = vadd.f32 %v123, %v439
  %v441 = vpop.f32.mrb[0].mxu0
  %442 = vmatprep.mubr.bf16.mxu0 0
  %443 = vmatmul.mubr.bf16.gmra.mrb[0].mxu0 %v298
  %v444 = vpop.f32.mrb[0].mxu0
  %v445 = vadd.f32 %v123, %v444
  %v446 = vpop.f32.mrb[0].mxu0
  %v447 = vpop.f32.mrb[0].mxu0
  %v448 = vadd.f32 %v123, %v447
  %v449 = vpop.f32.mrb[0].mxu0
  %450 = vmatprep.mubr.bf16.mxu0 0
  %451 = vmatmul.mubr.bf16.gmra.mrb[0].mxu0 %v301
  %v452 = vpop.f32.mrb[0].mxu0
  %v453 = vadd.f32 %v123, %v452
  %v454 = vpop.f32.mrb[0].mxu0
  %v455 = vpop.f32.mrb[0].mxu0
  %v456 = vadd.f32 %v123, %v455
  %v457 = vpop.f32.mrb[0].mxu0
  %458 = vmatprep.mubr.bf16.mxu0 0
  %459 = vmatmul.mubr.bf16.gmra.mrb[0].mxu0 %v304
  %v460 = vpop.f32.mrb[0].mxu0
  %v461 = vadd.f32 %v123, %v460
  %v462 = vpop.f32.mrb[0].mxu0
  %v463 = vpop.f32.mrb[0].mxu0
  %v464 = vadd.f32 %v123, %v463
  %v465 = vpop.f32.mrb[0].mxu0
  %466 = vmatprep.mubr.bf16.mxu0 0
  %467 = vmatmul.mubr.bf16.gmra.mrb[0].mxu0 %v307
  %v468 = vpop.f32.mrb[0].mxu0
  %v469 = vadd.f32 %v123, %v468
  %v470 = vpop.f32.mrb[0].mxu0
  %v471 = vpop.f32.mrb[0].mxu0
  %v472 = vadd.f32 %v123, %v471
  %v473 = vpop.f32.mrb[0].mxu0
  %474 = vmatprep.mubr.bf16.mxu0 0
  %475 = vmatmul.mubr.bf16.gmra.mrb[0].mxu0 %v310
  %v476 = vpop.f32.mrb[0].mxu0
  %v477 = vadd.f32 %v123, %v476
  %v478 = vpop.f32.mrb[0].mxu0
  %v479 = vpop.f32.mrb[0].mxu0
  %v480 = vadd.f32 %v123, %v479
  %v481 = vpop.f32.mrb[0].mxu0
  %482 = vmatprep.mubr.bf16.mxu0 0
  %483 = vmatmul.mubr.bf16.gmra.mrb[0].mxu0 %v313
  %v484 = vpop.f32.mrb[0].mxu0
  %v485 = vadd.f32 %v123, %v484
  %v486 = vpop.f32.mrb[0].mxu0
  %v487 = vpop.f32.mrb[0].mxu0
  %v488 = vadd.f32 %v123, %v487
  %v489 = vpop.f32.mrb[0].mxu0
  %490 = vmatprep.mubr.bf16.mxu0 0
  %491 = vmatmul.mubr.bf16.gmra.mrb[0].mxu0 %v316
  %v492 = vpop.f32.mrb[0].mxu0
  %v493 = vadd.f32 %v123, %v492
  %v494 = vpop.f32.mrb[0].mxu0
  %v495 = vpop.f32.mrb[0].mxu0
  %v496 = vadd.f32 %v123, %v495
  %v497 = vpop.f32.mrb[0].mxu0
  %498 = vmatprep.mubr.bf16.mxu0 0
  %499 = vmatmul.mubr.bf16.gmra.mrb[0].mxu0 %v319
  %v500 = vpop.f32.mrb[0].mxu0
  %v501 = vadd.f32 %v123, %v500
  %v502 = vpop.f32.mrb[0].mxu0
  %v503 = vpop.f32.mrb[0].mxu0
  %v504 = vadd.f32 %v123, %v503
  %v505 = vpop.f32.mrb[0].mxu0
  %506 = vmatprep.mubr.bf16.mxu0 0
  %507 = vmatmul.mubr.bf16.gmra.mrb[0].mxu0 %v322
  %v508 = vpop.f32.mrb[0].mxu0
  %v509 = vadd.f32 %v123, %v508
  %v510 = vpop.f32.mrb[0].mxu0
  %v511 = vpop.f32.mrb[0].mxu0
  %v512 = vadd.f32 %v123, %v511
  %v513 = vpop.f32.mrb[0].mxu0
  %514 = vmatprep.mubr.bf16.mxu0 0
  %515 = vmatmul.mubr.bf16.gmra.mrb[0].mxu0 %v325
  %v516 = vpop.f32.mrb[0].mxu0
  %v517 = vadd.f32 %v123, %v516
  %v518 = vpop.f32.mrb[0].mxu0
  %v519 = vpop.f32.mrb[0].mxu0
  %v520 = vadd.f32 %v123, %v519
  %v521 = vpop.f32.mrb[0].mxu0
  %522 = vmatprep.mubr.bf16.mxu0 0
  %523 = vmatmul.mubr.bf16.gmra.mrb[0].mxu0 %v328
  %v524 = vpop.f32.mrb[0].mxu0
  %v525 = vadd.f32 %v123, %v524
  %v526 = vpop.f32.mrb[0].mxu0
  %v527 = vpop.f32.mrb[0].mxu0
  %v528 = vadd.f32 %v123, %v527
  %v529 = vpop.f32.mrb[0].mxu0
  %530 = vmatprep.mubr.bf16.mxu0 0
  %531 = vmatmul.mubr.bf16.gmra.mrb[0].mxu0 %v331
  %v532 = vpop.f32.mrb[0].mxu0
  %v533 = vadd.f32 %v123, %v532
  %v534 = vpop.f32.mrb[0].mxu0
  %v535 = vpop.f32.mrb[0].mxu0
  %v536 = vadd.f32 %v123, %v535
  %v537 = vpop.f32.mrb[0].mxu0
  %538 = vmatprep.mubr.bf16.mxu0 0
  %539 = vmatmul.mubr.bf16.gmra.mrb[0].mxu0 %v334
  %v540 = vpop.f32.mrb[0].mxu0
  %v541 = vadd.f32 %v123, %v540
  %v542 = vpop.f32.mrb[0].mxu0
  %v543 = vpop.f32.mrb[0].mxu0
  %v544 = vadd.f32 %v123, %v543
  %v545 = vpop.f32.mrb[0].mxu0
  %546 = vmatprep.mubr.bf16.mxu0 0
  %547 = vmatmul.mubr.bf16.gmra.mrb[0].mxu0 %v337
  %v548 = vpop.f32.mrb[0].mxu0
  %v549 = vadd.f32 %v123, %v548
  %v550 = vpop.f32.mrb[0].mxu0
  %v551 = vpop.f32.mrb[0].mxu0
  %v552 = vadd.f32 %v123, %v551
  %v553 = vpop.f32.mrb[0].mxu0
  %554 = vmatprep.mubr.bf16.mxu0 0
  %555 = vmatmul.mubr.bf16.gmra.mrb[0].mxu0 %v340
  %v556 = vpop.f32.mrb[0].mxu0
  %v557 = vadd.f32 %v123, %v556
  %v558 = vpop.f32.mrb[0].mxu0
  %v559 = vpop.f32.mrb[0].mxu0
  %v560 = vadd.f32 %v123, %v559
  %v561 = vpop.f32.mrb[0].mxu0
  %562 = vmatprep.mubr.bf16.mxu0 0
  %563 = vmatmul.mubr.bf16.gmra.mrb[0].mxu0 %v343
  %v564 = vpop.f32.mrb[0].mxu0
  %v565 = vadd.f32 %v123, %v564
  %v566 = vpop.f32.mrb[0].mxu0
  %v567 = vpop.f32.mrb[0].mxu0
  %v568 = vadd.f32 %v123, %v567
  %v569 = vpop.f32.mrb[0].mxu0
  %570 = vmatprep.mubr.bf16.mxu0 0
  %571 = vmatmul.mubr.bf16.gmra.mrb[0].mxu0 %v346
  %v572 = vpop.f32.mrb[0].mxu0
  %v573 = vadd.f32 %v123, %v572
  %v574 = vpop.f32.mrb[0].mxu0
  %v575 = vpop.f32.mrb[0].mxu0
  %v576 = vadd.f32 %v123, %v575
  %v577 = vpop.f32.mrb[0].mxu0
  %578 = vmatprep.mubr.bf16.mxu0 0
  %579 = vmatmul.mubr.bf16.gmra.mrb[0].mxu0 %v349
  %v580 = vpop.f32.mrb[0].mxu0
  %v581 = vadd.f32 %v123, %v580
  %v582 = vpop.f32.mrb[0].mxu0
  %v583 = vpop.f32.mrb[0].mxu0
  %v584 = vadd.f32 %v123, %v583
  %v585 = vpop.f32.mrb[0].mxu0
  %586 = vmatprep.mubr.bf16.mxu0 0
  %587 = vmatmul.mubr.bf16.gmra.mrb[0].mxu0 %v352
  %v588 = vpop.f32.mrb[0].mxu0
  %v589 = vadd.f32 %v123, %v588
  %v590 = vpop.f32.mrb[0].mxu0
  %v591 = vpop.f32.mrb[0].mxu0
  %v592 = vadd.f32 %v123, %v591
  %v593 = vpop.f32.mrb[0].mxu0
  %594 = vmatprep.mubr.bf16.mxu0 0
  %595 = vmatmul.mubr.bf16.gmra.mrb[0].mxu0 %v355
  %v596 = vpop.f32.mrb[0].mxu0
  %v597 = vadd.f32 %v123, %v596
  %v598 = vpop.f32.mrb[0].mxu0
  %v599 = vpop.f32.mrb[0].mxu0
  %v600 = vadd.f32 %v123, %v599
  %v601 = vpop.f32.mrb[0].mxu0
  %602 = vmatprep.mubr.bf16.mxu0 0
  %603 = vmatmul.mubr.bf16.gmra.mrb[0].mxu0 %v358
  %v604 = vpop.f32.mrb[0].mxu0
  %v605 = vadd.f32 %v123, %v604
  %v606 = vpop.f32.mrb[0].mxu0
  %v607 = vpop.f32.mrb[0].mxu0
  %v608 = vadd.f32 %v123, %v607
  %v609 = vpop.f32.mrb[0].mxu0
  %610 = vmatprep.mubr.bf16.mxu0 0
  %611 = vmatmul.mubr.bf16.gmra.mrb[0].mxu0 %v361
  %v612 = vpop.f32.mrb[0].mxu0
  %v613 = vadd.f32 %v123, %v612
  %v614 = vpop.f32.mrb[0].mxu0
  %v615 = vpop.f32.mrb[0].mxu0
  %v616 = vadd.f32 %v123, %v615
  %v617 = vpop.f32.mrb[0].mxu0
  %618 = vmatprep.mubr.bf16.mxu0 0
  %619 = vmatmul.mubr.bf16.gmra.mrb[0].mxu0 %v364
  %v620 = vpop.f32.mrb[0].mxu0
  %v621 = vadd.f32 %v123, %v620
  %v622 = vpop.f32.mrb[0].mxu0
  %v623 = vpop.f32.mrb[0].mxu0
  %v624 = vadd.f32 %v123, %v623
  %v625 = vpop.f32.mrb[0].mxu0
  %626 = vmatprep.mubr.bf16.mxu0 0
  %627 = vmatmul.mubr.bf16.gmra.mrb[0].mxu0 %v367
  %v628 = vpop.f32.mrb[0].mxu0
  %v629 = vadd.f32 %v123, %v628
  %v630 = vpop.f32.mrb[0].mxu0
  %v631 = vpop.f32.mrb[0].mxu0
  %v632 = vadd.f32 %v123, %v631
  %v633 = vpop.f32.mrb[0].mxu0
  %634 = vmatprep.mubr.bf16.mxu0 0
  %635 = vmatmul.mubr.bf16.gmra.mrb[0].mxu0 %v370
  %v636 = vpop.f32.mrb[0].mxu0
  %v637 = vadd.f32 %v123, %v636
  %v638 = vpop.f32.mrb[0].mxu0
  %v639 = vpop.f32.mrb[0].mxu0
  %v640 = vadd.f32 %v123, %v639
  %v641 = vpop.f32.mrb[0].mxu0
  %642 = vmatprep.mubr.bf16.mxu0 0
  %643 = vmatmul.mubr.bf16.gmra.mrb[0].mxu0 %v373
  %v644 = vpop.f32.mrb[0].mxu0
  %v645 = vadd.f32 %v123, %v644
  %v646 = vpop.f32.mrb[0].mxu0
  %v647 = vpop.f32.mrb[0].mxu0
  %v648 = vadd.f32 %v123, %v647
  %v649 = vpop.f32.mrb[0].mxu0
  %650 = vmatprep.mubr.bf16.mxu0 0
  %651 = vmatmul.mubr.bf16.gmra.mrb[0].mxu0 %v376
  %v652 = vpop.f32.mrb[0].mxu0
  %v653 = vadd.f32 %v123, %v652
  %v654 = vpop.f32.mrb[0].mxu0
  %v655 = vpop.f32.mrb[0].mxu0
  %v656 = vadd.f32 %v123, %v655
  %v657 = vpop.f32.mrb[0].mxu0
  %658 = vmatprep.mubr.bf16.mxu0 0
  %659 = vmatmul.mubr.bf16.gmra.mrb[0].mxu0 %v379
  %v660 = vpop.f32.mrb[0].mxu0
  %v661 = vadd.f32 %v123, %v660
  %v662 = vpop.f32.mrb[0].mxu0
  %v663 = vpop.f32.mrb[0].mxu0
  %v664 = vadd.f32 %v123, %v663
  %v665 = vpop.f32.mrb[0].mxu0
  %666 = vmatprep.mubr.bf16.mxu0 0
  %667 = vmatmul.mubr.bf16.gmra.mrb[0].mxu0 %v382
  %v668 = vpop.f32.mrb[0].mxu0
  %v669 = vadd.f32 %v123, %v668
  %v670 = vpop.f32.mrb[0].mxu0
  %v671 = vpop.f32.mrb[0].mxu0
  %v672 = vadd.f32 %v123, %v671
  %v673 = vpop.f32.mrb[0].mxu0
  %674 = vmatprep.mubr.bf16.mxu0 0
  %675 = vmatmul.mubr.bf16.gmra.mrb[0].mxu0 %v385
  %v676 = vpop.f32.mrb[0].mxu0
  %v677 = vadd.f32 %v123, %v676
  %v678 = vpop.f32.mrb[0].mxu0
  %v679 = vpop.f32.mrb[0].mxu0
  %v680 = vadd.f32 %v123, %v679
  %v681 = vpop.f32.mrb[0].mxu0
  %682 = vdwg.mxu0
  %v683 = vmax.f32 %v429, 0.0
  %v684 = vmax.f32 %v432, 0.0
  %v685 = vmax.f32 %v437, 0.0
  %v686 = vmax.f32 %v440, 0.0
  %v687 = vmax.f32 %v445, 0.0
  %v688 = vmax.f32 %v448, 0.0
  %v689 = vmax.f32 %v453, 0.0
  %v690 = vmax.f32 %v456, 0.0
  %v691 = vmax.f32 %v461, 0.0
  %v692 = vmax.f32 %v464, 0.0
  %v693 = vmax.f32 %v469, 0.0
  %v694 = vmax.f32 %v472, 0.0
  %v695 = vmax.f32 %v477, 0.0
  %v696 = vmax.f32 %v480, 0.0
  %v697 = vmax.f32 %v485, 0.0
  %v698 = vmax.f32 %v488, 0.0
  %v699 = vmax.f32 %v493, 0.0
  %v700 = vmax.f32 %v496, 0.0
  %v701 = vmax.f32 %v501, 0.0
  %v702 = vmax.f32 %v504, 0.0
  %v703 = vmax.f32 %v509, 0.0
  %v704 = vmax.f32 %v512, 0.0
  %v705 = vmax.f32 %v517, 0.0
  %v706 = vmax.f32 %v520, 0.0
  %v707 = vmax.f32 %v525, 0.0
  %v708 = vmax.f32 %v528, 0.0
  %v709 = vmax.f32 %v533, 0.0
  %v710 = vmax.f32 %v536, 0.0
  %v711 = vmax.f32 %v541, 0.0
  %v712 = vmax.f32 %v544, 0.0
  %v713 = vmax.f32 %v549, 0.0
  %v714 = vmax.f32 %v552, 0.0
  %v715 = vmax.f32 %v557, 0.0
  %v716 = vmax.f32 %v560, 0.0
  %v717 = vmax.f32 %v565, 0.0
  %v718 = vmax.f32 %v568, 0.0
  %v719 = vmax.f32 %v573, 0.0
  %v720 = vmax.f32 %v576, 0.0
  %v721 = vmax.f32 %v581, 0.0
  %v722 = vmax.f32 %v584, 0.0
  %v723 = vmax.f32 %v589, 0.0
  %v724 = vmax.f32 %v592, 0.0
  %v725 = vmax.f32 %v597, 0.0
  %v726 = vmax.f32 %v600, 0.0
  %v727 = vmax.f32 %v605, 0.0
  %v728 = vmax.f32 %v608, 0.0
  %v729 = vmax.f32 %v613, 0.0
  %v730 = vmax.f32 %v616, 0.0
  %v731 = vmax.f32 %v621, 0.0
  %v732 = vmax.f32 %v624, 0.0
  %v733 = vmax.f32 %v629, 0.0
  %v734 = vmax.f32 %v632, 0.0
  %v735 = vmax.f32 %v637, 0.0
  %v736 = vmax.f32 %v640, 0.0
  %v737 = vmax.f32 %v645, 0.0
  %v738 = vmax.f32 %v648, 0.0
  %v739 = vmax.f32 %v653, 0.0
  %v740 = vmax.f32 %v656, 0.0
  %v741 = vmax.f32 %v661, 0.0
  %v742 = vmax.f32 %v664, 0.0
  %v743 = vmax.f32 %v669, 0.0
  %v744 = vmax.f32 %v672, 0.0
  %v745 = vmax.f32 %v677, 0.0
  %v746 = vmax.f32 %v680, 0.0
  %v747 = vpack.c.bf16 %v684, %v683
  %v748 = vpack.c.bf16 %v686, %v685
  %v749 = vpack.c.bf16 %v688, %v687
  %v750 = vpack.c.bf16 %v690, %v689
  %v751 = vpack.c.bf16 %v692, %v691
  %v752 = vpack.c.bf16 %v694, %v693
  %v753 = vpack.c.bf16 %v696, %v695
  %v754 = vpack.c.bf16 %v698, %v697
  %v755 = vpack.c.bf16 %v700, %v699
  %v756 = vpack.c.bf16 %v702, %v701
  %v757 = vpack.c.bf16 %v704, %v703
  %v758 = vpack.c.bf16 %v706, %v705
  %v759 = vpack.c.bf16 %v708, %v707
  %v760 = vpack.c.bf16 %v710, %v709
  %v761 = vpack.c.bf16 %v712, %v711
  %v762 = vpack.c.bf16 %v714, %v713
  %v763 = vpack.c.bf16 %v716, %v715
  %v764 = vpack.c.bf16 %v718, %v717
  %v765 = vpack.c.bf16 %v720, %v719
  %v766 = vpack.c.bf16 %v722, %v721
  %v767 = vpack.c.bf16 %v724, %v723
  %v768 = vpack.c.bf16 %v726, %v725
  %v769 = vpack.c.bf16 %v728, %v727
  %v770 = vpack.c.bf16 %v730, %v729
  %v771 = vpack.c.bf16 %v732, %v731
  %v772 = vpack.c.bf16 %v734, %v733
  %v773 = vpack.c.bf16 %v736, %v735
  %v774 = vpack.c.bf16 %v738, %v737
  %v775 = vpack.c.bf16 %v740, %v739
  %v776 = vpack.c.bf16 %v742, %v741
  %v777 = vpack.c.bf16 %v744, %v743
  %v778 = vpack.c.bf16 %v746, %v745
  %v811 = vunpack.c.l.b16 %v747
  %v812 = vunpack.c.h.b16 %v747
  %v813 = vunpack.c.l.b16 %v748
  %v814 = vunpack.c.h.b16 %v748
  %v815 = vunpack.c.l.b16 %v749
  %v816 = vunpack.c.h.b16 %v749
  %v817 = vunpack.c.l.b16 %v750
  %v818 = vunpack.c.h.b16 %v750
  %v819 = vunpack.c.l.b16 %v751
  %v820 = vunpack.c.h.b16 %v751
  %v821 = vunpack.c.l.b16 %v752
  %v822 = vunpack.c.h.b16 %v752
  %v823 = vunpack.c.l.b16 %v753
  %v824 = vunpack.c.h.b16 %v753
  %v825 = vunpack.c.l.b16 %v754
  %v826 = vunpack.c.h.b16 %v754
  %v827 = vunpack.c.l.b16 %v755
  %v828 = vunpack.c.h.b16 %v755
  %v829 = vunpack.c.l.b16 %v756
  %v830 = vunpack.c.h.b16 %v756
  %v831 = vunpack.c.l.b16 %v757
  %v832 = vunpack.c.h.b16 %v757
  %v833 = vunpack.c.l.b16 %v758
  %v834 = vunpack.c.h.b16 %v758
  %v835 = vunpack.c.l.b16 %v759
  %v836 = vunpack.c.h.b16 %v759
  %v837 = vunpack.c.l.b16 %v760
  %v838 = vunpack.c.h.b16 %v760
  %v839 = vunpack.c.l.b16 %v761
  %v840 = vunpack.c.h.b16 %v761
  %v841 = vunpack.c.l.b16 %v762
  %v842 = vunpack.c.h.b16 %v762
  %v843 = vunpack.c.l.b16 %v763
  %v844 = vunpack.c.h.b16 %v763
  %v845 = vunpack.c.l.b16 %v764
  %v846 = vunpack.c.h.b16 %v764
  %v847 = vunpack.c.l.b16 %v765
  %v848 = vunpack.c.h.b16 %v765
  %v849 = vunpack.c.l.b16 %v766
  %v850 = vunpack.c.h.b16 %v766
  %v851 = vunpack.c.l.b16 %v767
  %v852 = vunpack.c.h.b16 %v767
  %v853 = vunpack.c.l.b16 %v768
  %v854 = vunpack.c.h.b16 %v768
  %v855 = vunpack.c.l.b16 %v769
  %v856 = vunpack.c.h.b16 %v769
  %v857 = vunpack.c.l.b16 %v770
  %v858 = vunpack.c.h.b16 %v770
  %v859 = vunpack.c.l.b16 %v771
  %v860 = vunpack.c.h.b16 %v771
  %v861 = vunpack.c.l.b16 %v772
  %v862 = vunpack.c.h.b16 %v772
  %v863 = vunpack.c.l.b16 %v773
  %v864 = vunpack.c.h.b16 %v773
  %v865 = vunpack.c.l.b16 %v774
  %v866 = vunpack.c.h.b16 %v774
  %v867 = vunpack.c.l.b16 %v775
  %v868 = vunpack.c.h.b16 %v775
  %v869 = vunpack.c.l.b16 %v776
  %v870 = vunpack.c.h.b16 %v776
  %v871 = vunpack.c.l.b16 %v777
  %v872 = vunpack.c.h.b16 %v777
  %v873 = vunpack.c.l.b16 %v778
  %v874 = vunpack.c.h.b16 %v778
  %v876 = vunpack.c.l.b16 0
  %v877 = vpack.c.b16 %v876, %v876
  %v878 = vpack.c.b16 %v820, %v876
  %v879 = vpack.c.b16 %v824, %v822
  %v880 = vpack.c.b16 %v836, %v876
  %v881 = vpack.c.b16 %v840, %v838
  %v882 = vpack.c.b16 %v852, %v876
  %v883 = vpack.c.b16 %v856, %v854
  %v884 = vpack.c.b16 %v821, %v819
  %v885 = vpack.c.b16 %v825, %v823
  %v886 = vpack.c.b16 %v837, %v835
  %v887 = vpack.c.b16 %v841, %v839
  %v888 = vpack.c.b16 %v853, %v851
  %v889 = vpack.c.b16 %v857, %v855
  %890 = vrot.lane.b32.xlu0 %v877, 8
  %v891 = vpop.permute.xlu0 %890
  %892 = vrot.lane.b32.xlu0 %v884, 8
  %v893 = vpop.permute.xlu0 %892
  %894 = vrot.lane.b32.xlu0 %v885, 8
  %v895 = vpop.permute.xlu0 %894
  %896 = vrot.lane.b32.xlu0 %v886, 8
  %v897 = vpop.permute.xlu0 %896
  %898 = vrot.lane.b32.xlu0 %v887, 8
  %v899 = vpop.permute.xlu0 %898
  %900 = vrot.lane.b32.xlu0 %v888, 8
  %v901 = vpop.permute.xlu0 %900
  %902 = vrot.lane.b32.xlu0 %v889, 8
  %v903 = vpop.permute.xlu0 %902
  %v904 = vpack.c.b16 %v822, %v820
  %v905 = vpack.c.b16 %v826, %v824
  %v906 = vpack.c.b16 %v838, %v836
  %v907 = vpack.c.b16 %v842, %v840
  %v908 = vpack.c.b16 %v854, %v852
  %v909 = vpack.c.b16 %v858, %v856
  %910 = vrot.lane.b32.xlu0 %v877, 16
  %v911 = vpop.permute.xlu0 %910
  %912 = vrot.lane.b32.xlu0 %v904, 16
  %v913 = vpop.permute.xlu0 %912
  %914 = vrot.lane.b32.xlu0 %v905, 16
  %v915 = vpop.permute.xlu0 %914
  %916 = vrot.lane.b32.xlu0 %v906, 16
  %v917 = vpop.permute.xlu0 %916
  %918 = vrot.lane.b32.xlu0 %v907, 16
  %v919 = vpop.permute.xlu0 %918
  %920 = vrot.lane.b32.xlu0 %v908, 16
  %v921 = vpop.permute.xlu0 %920
  %922 = vrot.lane.b32.xlu0 %v909, 16
  %v923 = vpop.permute.xlu0 %922
  %v924 = vpack.c.b16 %v812, %v876
  %v925 = vpack.c.b16 %v816, %v814
  %v926 = vpack.c.b16 %v828, %v876
  %v927 = vpack.c.b16 %v832, %v830
  %v928 = vpack.c.b16 %v844, %v876
  %v929 = vpack.c.b16 %v848, %v846
  %v930 = vpack.c.b16 %v860, %v876
  %v931 = vpack.c.b16 %v864, %v862
  %932 = vrot.lane.b32.xlu0 %v924, 24
  %v933 = vpop.permute.xlu0 %932
  %934 = vrot.lane.b32.xlu0 %v925, 24
  %v935 = vpop.permute.xlu0 %934
  %936 = vrot.lane.b32.xlu0 %v926, 24
  %v937 = vpop.permute.xlu0 %936
  %938 = vrot.lane.b32.xlu0 %v927, 24
  %v939 = vpop.permute.xlu0 %938
  %940 = vrot.lane.b32.xlu0 %v928, 24
  %v941 = vpop.permute.xlu0 %940
  %942 = vrot.lane.b32.xlu0 %v929, 24
  %v943 = vpop.permute.xlu0 %942
  %944 = vrot.lane.b32.xlu0 %v930, 24
  %v945 = vpop.permute.xlu0 %944
  %946 = vrot.lane.b32.xlu0 %v931, 24
  %v947 = vpop.permute.xlu0 %946
  %v948 = vpack.c.b16 %v813, %v811
  %v949 = vpack.c.b16 %v817, %v815
  %v950 = vpack.c.b16 %v829, %v827
  %v951 = vpack.c.b16 %v833, %v831
  %v952 = vpack.c.b16 %v845, %v843
  %v953 = vpack.c.b16 %v849, %v847
  %v954 = vpack.c.b16 %v861, %v859
  %v955 = vpack.c.b16 %v865, %v863
  %956 = vrot.lane.b32.xlu0 %v948, 32
  %v957 = vpop.permute.xlu0 %956
  %958 = vrot.lane.b32.xlu0 %v949, 32
  %v959 = vpop.permute.xlu0 %958
  %960 = vrot.lane.b32.xlu0 %v950, 32
  %v961 = vpop.permute.xlu0 %960
  %962 = vrot.lane.b32.xlu0 %v951, 32
  %v963 = vpop.permute.xlu0 %962
  %964 = vrot.lane.b32.xlu0 %v952, 32
  %v965 = vpop.permute.xlu0 %964
  %966 = vrot.lane.b32.xlu0 %v953, 32
  %v967 = vpop.permute.xlu0 %966
  %968 = vrot.lane.b32.xlu0 %v954, 32
  %v969 = vpop.permute.xlu0 %968
  %970 = vrot.lane.b32.xlu0 %v955, 32
  %v971 = vpop.permute.xlu0 %970
  %v972 = vpack.c.b16 %v814, %v812
  %v973 = vpack.c.b16 %v818, %v816
  %v974 = vpack.c.b16 %v830, %v828
  %v975 = vpack.c.b16 %v834, %v832
  %v976 = vpack.c.b16 %v846, %v844
  %v977 = vpack.c.b16 %v850, %v848
  %v978 = vpack.c.b16 %v862, %v860
  %v979 = vpack.c.b16 %v866, %v864
  %980 = vrot.lane.b32.xlu0 %v972, 40
  %v981 = vpop.permute.xlu0 %980
  %982 = vrot.lane.b32.xlu0 %v973, 40
  %v983 = vpop.permute.xlu0 %982
  %984 = vrot.lane.b32.xlu0 %v974, 40
  %v985 = vpop.permute.xlu0 %984
  %986 = vrot.lane.b32.xlu0 %v975, 40
  %v987 = vpop.permute.xlu0 %986
  %988 = vrot.lane.b32.xlu0 %v976, 40
  %v989 = vpop.permute.xlu0 %988
  %990 = vrot.lane.b32.xlu0 %v977, 40
  %v991 = vpop.permute.xlu0 %990
  %992 = vrot.lane.b32.xlu0 %v978, 40
  %v993 = vpop.permute.xlu0 %992
  %994 = vrot.lane.b32.xlu0 %v979, 40
  %v995 = vpop.permute.xlu0 %994
  %v996 = vpack.c.b16 %v868, %v876
  %v997 = vpack.c.b16 %v872, %v870
  %998 = vrot.lane.b32.xlu0 %v878, 48
  %v999 = vpop.permute.xlu0 %998
  %1000 = vrot.lane.b32.xlu0 %v879, 48
  %v1001 = vpop.permute.xlu0 %1000
  %1002 = vrot.lane.b32.xlu0 %v880, 48
  %v1003 = vpop.permute.xlu0 %1002
  %1004 = vrot.lane.b32.xlu0 %v881, 48
  %v1005 = vpop.permute.xlu0 %1004
  %1006 = vrot.lane.b32.xlu0 %v882, 48
  %v1007 = vpop.permute.xlu0 %1006
  %1008 = vrot.lane.b32.xlu0 %v883, 48
  %v1009 = vpop.permute.xlu0 %1008
  %1010 = vrot.lane.b32.xlu0 %v996, 48
  %v1011 = vpop.permute.xlu0 %1010
  %1012 = vrot.lane.b32.xlu0 %v997, 48
  %v1013 = vpop.permute.xlu0 %1012
  %v1014 = vpack.c.b16 %v869, %v867
  %v1015 = vpack.c.b16 %v873, %v871
  %1016 = vrot.lane.b32.xlu0 %v884, 56
  %v1017 = vpop.permute.xlu0 %1016
  %1018 = vrot.lane.b32.xlu0 %v885, 56
  %v1019 = vpop.permute.xlu0 %1018
  %1020 = vrot.lane.b32.xlu0 %v886, 56
  %v1021 = vpop.permute.xlu0 %1020
  %1022 = vrot.lane.b32.xlu0 %v887, 56
  %v1023 = vpop.permute.xlu0 %1022
  %1024 = vrot.lane.b32.xlu0 %v888, 56
  %v1025 = vpop.permute.xlu0 %1024
  %1026 = vrot.lane.b32.xlu0 %v889, 56
  %v1027 = vpop.permute.xlu0 %1026
  %1028 = vrot.lane.b32.xlu0 %v1014, 56
  %v1029 = vpop.permute.xlu0 %1028
  %1030 = vrot.lane.b32.xlu0 %v1015, 56
  %v1031 = vpop.permute.xlu0 %1030
  %v1032 = vpack.c.b16 %v870, %v868
  %v1033 = vpack.c.b16 %v874, %v872
  %1034 = vrot.lane.b32.xlu0 %v904, 64
  %v1035 = vpop.permute.xlu0 %1034
  %1036 = vrot.lane.b32.xlu0 %v905, 64
  %v1037 = vpop.permute.xlu0 %1036
  %1038 = vrot.lane.b32.xlu0 %v906, 64
  %v1039 = vpop.permute.xlu0 %1038
  %1040 = vrot.lane.b32.xlu0 %v907, 64
  %v1041 = vpop.permute.xlu0 %1040
  %1042 = vrot.lane.b32.xlu0 %v908, 64
  %v1043 = vpop.permute.xlu0 %1042
  %1044 = vrot.lane.b32.xlu0 %v909, 64
  %v1045 = vpop.permute.xlu0 %1044
  %1046 = vrot.lane.b32.xlu0 %v1032, 64
  %v1047 = vpop.permute.xlu0 %1046
  %1048 = vrot.lane.b32.xlu0 %v1033, 64
  %v1049 = vpop.permute.xlu0 %1048
  %vm1050 = vcmask 64512
  %v1053 = vsel %vm1050, %v877, %v891
  %v1056 = vsel %vm1050, %v878, %v893
  %v1059 = vsel %vm1050, %v879, %v895
  %v1062 = vsel %vm1050, %v880, %v897
  %v1065 = vsel %vm1050, %v881, %v899
  %v1068 = vsel %vm1050, %v882, %v901
  %v1071 = vsel %vm1050, %v883, %v903
  %vm1072 = vcmask 130048
  %v1074 = vsel %vm1072, %v1053, %v911
  %v1076 = vsel %vm1072, %v1056, %v913
  %v1078 = vsel %vm1072, %v1059, %v915
  %v1080 = vsel %vm1072, %v1062, %v917
  %v1082 = vsel %vm1072, %v1065, %v919
  %v1084 = vsel %vm1072, %v1068, %v921
  %v1086 = vsel %vm1072, %v1071, %v923
  %vm1087 = vcmask 195584
  %v1089 = vsel %vm1087, %v1074, %v933
  %v1091 = vsel %vm1087, %v1074, %v935
  %v1093 = vsel %vm1087, %v1076, %v937
  %v1095 = vsel %vm1087, %v1078, %v939
  %v1097 = vsel %vm1087, %v1080, %v941
  %v1099 = vsel %vm1087, %v1082, %v943
  %v1101 = vsel %vm1087, %v1084, %v945
  %v1103 = vsel %vm1087, %v1086, %v947
  %vm1104 = vcmask 261120
  %v1106 = vsel %vm1104, %v1089, %v957
  %v1108 = vsel %vm1104, %v1091, %v959
  %v1110 = vsel %vm1104, %v1093, %v961
  %v1112 = vsel %vm1104, %v1095, %v963
  %v1114 = vsel %vm1104, %v1097, %v965
  %v1116 = vsel %vm1104, %v1099, %v967
  %v1118 = vsel %vm1104, %v1101, %v969
  %v1120 = vsel %vm1104, %v1103, %v971
  %vm1121 = vcmask 326656
  %v1123 = vsel %vm1121, %v1106, %v981
  %v1125 = vsel %vm1121, %v1108, %v983
  %v1127 = vsel %vm1121, %v1110, %v985
  %v1129 = vsel %vm1121, %v1112, %v987
  %v1131 = vsel %vm1121, %v1114, %v989
  %v1133 = vsel %vm1121, %v1116, %v991
  %v1135 = vsel %vm1121, %v1118, %v993
  %v1137 = vsel %vm1121, %v1120, %v995
  %vm1138 = vcmask 392192
  %v1140 = vsel %vm1138, %v1123, %v999
  %v1142 = vsel %vm1138, %v1125, %v1001
  %v1144 = vsel %vm1138, %v1127, %v1003
  %v1146 = vsel %vm1138, %v1129, %v1005
  %v1148 = vsel %vm1138, %v1131, %v1007
  %v1150 = vsel %vm1138, %v1133, %v1009
  %v1152 = vsel %vm1138, %v1135, %v1011
  %v1154 = vsel %vm1138, %v1137, %v1013
  %vm1155 = vcmask 457728
  %v1157 = vsel %vm1155, %v1140, %v1017
  %v1159 = vsel %vm1155, %v1142, %v1019
  %v1161 = vsel %vm1155, %v1144, %v1021
  %v1163 = vsel %vm1155, %v1146, %v1023
  %v1165 = vsel %vm1155, %v1148, %v1025
  %v1167 = vsel %vm1155, %v1150, %v1027
  %v1169 = vsel %vm1155, %v1152, %v1029
  %v1171 = vsel %vm1155, %v1154, %v1031
  %vm1172 = vcmask 523264
  %v1174 = vsel %vm1172, %v1157, %v1035
  %v1176 = vsel %vm1172, %v1159, %v1037
  %v1178 = vsel %vm1172, %v1161, %v1039
  %v1180 = vsel %vm1172, %v1163, %v1041
  %v1182 = vsel %vm1172, %v1165, %v1043
  %v1184 = vsel %vm1172, %v1167, %v1045
  %v1186 = vsel %vm1172, %v1169, %v1047
  %v1188 = vsel %vm1172, %v1171, %v1049
  %v1189 = vld [vmem:[%s4] sm:$0xf]
  %v1190 = vld [vmem:[%s4 + $0x4] sm:$0xf]
  %v1191 = vld [vmem:[%s4 + $0x8] sm:$0xf]
  %v1192 = vld [vmem:[%s4 + $0xc] sm:$0xf]
  %v1193 = vld [vmem:[%s4 + $0x10] sm:$0xf]
  %v1194 = vld [vmem:[%s4 + $0x14] sm:$0xf]
  %v1195 = vld [vmem:[%s4 + $0x18] sm:$0xf]
  %v1196 = vld [vmem:[%s4 + $0x1c] sm:$0xf]
  %v1197 = vld [vmem:[%s4 + $0x20] sm:$0xf]
  %v1198 = vld [vmem:[%s5] sm:$0x1]
  %v1200 = vlaneseq
  %v1201 = vshrl.u32 %v1200, 7
  %v1202 = vsub.s32 0, %v1201
  %v1203 = vrot.slane %v1198, %v1202
  %v1214 = vunpack.c.l.b16 %v1189
  %v1215 = vunpack.c.l.b16 %v1190
  %v1216 = vunpack.c.l.b16 %v1191
  %v1217 = vunpack.c.l.b16 %v1192
  %v1218 = vunpack.c.l.b16 %v1193
  %v1219 = vunpack.c.l.b16 %v1194
  %v1220 = vunpack.c.l.b16 %v1195
  %v1221 = vunpack.c.l.b16 %v1196
  %v1222 = vunpack.c.l.b16 %v1197
  %v1223 = vpack.c.b16 %v1215, %v1214
  %v1224 = vpack.c.b16 %v1217, %v1216
  %v1225 = vpack.c.b16 %v1219, %v1218
  %v1226 = vpack.c.b16 %v1221, %v1220
  %v1227 = vpack.c.b16 %v1222, %v1222
  %vm1232 = vcmask 588800
  %v1233 = vsel %vm1232, %v1174, 0
  %v1235 = vsel %vm1232, %v1176, 0
  %v1237 = vsel %vm1232, %v1178, 0
  %v1239 = vsel %vm1232, %v1180, 0
  %v1241 = vsel %vm1232, %v1182, 0
  %v1243 = vsel %vm1232, %v1184, 0
  %v1245 = vsel %vm1232, %v1186, 0
  %v1247 = vsel %vm1232, %v1188, 0
  %v1250 = vsel %vm387, %v1227, 0
  %1252 = vmatprep.subr.bf16.mxu0 0
  %1253 = vmatpush1.bf16.msra.mxu0 %v1223
  %1254 = vmatprep.subr.bf16.mxu0 0
  %1255 = vmatpush1.bf16.msra.mxu0 %v1224
  %1256 = vmatprep.subr.bf16.mxu0 0
  %1257 = vmatpush1.bf16.msra.mxu0 %v1225
  %1258 = vmatprep.subr.bf16.mxu0 0
  %1259 = vmatpush1.bf16.msra.mxu0 %v1226
  %1260 = vmatprep.subr.bf16.mxu0 0
  %1261 = vmatpush1.bf16.msra.mxu0 %v1250
  %1262 = vmatprep.subr.bf16.mxu0 0
  %1263 = vmatpush1.bf16.msra.mxu0 0
  %1264 = vmatprep.subr.bf16.mxu0 0
  %1265 = vmatpush1.bf16.msra.mxu0 0
  %1266 = vmatprep.subr.bf16.mxu0 0
  %1267 = vmatpush1.bf16.msra.mxu0 0
  %1268 = vmatprep.subr.bf16.mxu0 0
  %1269 = vmatpush1.bf16.msra.mxu0 0
  %1270 = vmatprep.subr.bf16.mxu0 0
  %1271 = vmatpush1.bf16.msra.mxu0 0
  %1272 = vmatprep.subr.bf16.mxu0 0
  %1273 = vmatpush1.bf16.msra.mxu0 0
  %1274 = vmatprep.subr.bf16.mxu0 0
  %1275 = vmatpush1.bf16.msra.mxu0 0
  %1276 = vmatprep.subr.bf16.mxu0 0
  %1277 = vmatpush1.bf16.msra.mxu0 0
  %1278 = vmatprep.subr.bf16.mxu0 0
  %1279 = vmatpush1.bf16.msra.mxu0 0
  %1280 = vmatprep.subr.bf16.mxu0 0
  %1281 = vmatpush1.bf16.msra.mxu0 0
  %1282 = vmatprep.subr.bf16.mxu0 0
  %1283 = vmatpush1.bf16.msra.mxu0 0
  %1284 = vmatprep.mubr.bf16.mxu0 0
  %1285 = vmatmul.mubr.bf16.gmra.mrb[0].mxu0 %v1233
  %v1286 = vpop.f32.mrb[0].mxu0
  %v1287 = vadd.f32 %v1203, %v1286
  %v1288 = vpop.f32.mrb[0].mxu0
  %v1289 = vpop.f32.mrb[0].mxu0
  %v1290 = vadd.f32 %v1203, %v1289
  %v1291 = vpop.f32.mrb[0].mxu0
  %1292 = vmatprep.mubr.bf16.mxu0 0
  %1293 = vmatmul.mubr.bf16.gmra.mrb[0].mxu0 %v1235
  %v1294 = vpop.f32.mrb[0].mxu0
  %v1295 = vadd.f32 %v1203, %v1294
  %v1296 = vpop.f32.mrb[0].mxu0
  %v1297 = vpop.f32.mrb[0].mxu0
  %v1298 = vadd.f32 %v1203, %v1297
  %v1299 = vpop.f32.mrb[0].mxu0
  %1300 = vmatprep.mubr.bf16.mxu0 0
  %1301 = vmatmul.mubr.bf16.gmra.mrb[0].mxu0 %v1237
  %v1302 = vpop.f32.mrb[0].mxu0
  %v1303 = vadd.f32 %v1203, %v1302
  %v1304 = vpop.f32.mrb[0].mxu0
  %v1305 = vpop.f32.mrb[0].mxu0
  %v1306 = vadd.f32 %v1203, %v1305
  %v1307 = vpop.f32.mrb[0].mxu0
  %1308 = vmatprep.mubr.bf16.mxu0 0
  %1309 = vmatmul.mubr.bf16.gmra.mrb[0].mxu0 %v1239
  %v1310 = vpop.f32.mrb[0].mxu0
  %v1311 = vadd.f32 %v1203, %v1310
  %v1312 = vpop.f32.mrb[0].mxu0
  %v1313 = vpop.f32.mrb[0].mxu0
  %v1314 = vadd.f32 %v1203, %v1313
  %v1315 = vpop.f32.mrb[0].mxu0
  %1316 = vmatprep.mubr.bf16.mxu0 0
  %1317 = vmatmul.mubr.bf16.gmra.mrb[0].mxu0 %v1241
  %v1318 = vpop.f32.mrb[0].mxu0
  %v1319 = vadd.f32 %v1203, %v1318
  %v1320 = vpop.f32.mrb[0].mxu0
  %v1321 = vpop.f32.mrb[0].mxu0
  %v1322 = vadd.f32 %v1203, %v1321
  %v1323 = vpop.f32.mrb[0].mxu0
  %1324 = vmatprep.mubr.bf16.mxu0 0
  %1325 = vmatmul.mubr.bf16.gmra.mrb[0].mxu0 %v1243
  %v1326 = vpop.f32.mrb[0].mxu0
  %v1327 = vadd.f32 %v1203, %v1326
  %v1328 = vpop.f32.mrb[0].mxu0
  %v1329 = vpop.f32.mrb[0].mxu0
  %v1330 = vadd.f32 %v1203, %v1329
  %v1331 = vpop.f32.mrb[0].mxu0
  %1332 = vmatprep.mubr.bf16.mxu0 0
  %1333 = vmatmul.mubr.bf16.gmra.mrb[0].mxu0 %v1245
  %v1334 = vpop.f32.mrb[0].mxu0
  %v1335 = vadd.f32 %v1203, %v1334
  %v1336 = vpop.f32.mrb[0].mxu0
  %v1337 = vpop.f32.mrb[0].mxu0
  %v1338 = vadd.f32 %v1203, %v1337
  %v1339 = vpop.f32.mrb[0].mxu0
  %1340 = vmatprep.mubr.bf16.mxu0 0
  %1341 = vmatmul.mubr.bf16.gmra.mrb[0].mxu0 %v1247
  %v1342 = vpop.f32.mrb[0].mxu0
  %v1343 = vadd.f32 %v1203, %v1342
  %v1344 = vpop.f32.mrb[0].mxu0
  %v1345 = vpop.f32.mrb[0].mxu0
  %v1346 = vadd.f32 %v1203, %v1345
  %v1347 = vpop.f32.mrb[0].mxu0
  %1348 = vdwg.mxu0
  %v1349 = vmax.f32 %v1287, 0.0
  %v1350 = vmax.f32 %v1290, 0.0
  %v1351 = vmax.f32 %v1295, 0.0
  %v1352 = vmax.f32 %v1298, 0.0
  %v1353 = vmax.f32 %v1303, 0.0
  %v1354 = vmax.f32 %v1306, 0.0
  %v1355 = vmax.f32 %v1311, 0.0
  %v1356 = vmax.f32 %v1314, 0.0
  %v1357 = vmax.f32 %v1319, 0.0
  %v1358 = vmax.f32 %v1322, 0.0
  %v1359 = vmax.f32 %v1327, 0.0
  %v1360 = vmax.f32 %v1330, 0.0
  %v1361 = vmax.f32 %v1335, 0.0
  %v1362 = vmax.f32 %v1338, 0.0
  %v1363 = vmax.f32 %v1343, 0.0
  %v1364 = vmax.f32 %v1346, 0.0
  %1366 = vrot.lane.b32.xlu0 %v1350, 16
  %v1367 = vpop.permute.xlu0 %1366
  %1370 = vrot.lane.b32.xlu0 %v1351, 32
  %v1371 = vpop.permute.xlu0 %1370
  %1374 = vrot.lane.b32.xlu0 %v1352, 48
  %v1375 = vpop.permute.xlu0 %1374
  %1378 = vrot.lane.b32.xlu0 %v1353, 64
  %v1379 = vpop.permute.xlu0 %1378
  %1382 = vrot.lane.b32.xlu0 %v1354, 80
  %v1383 = vpop.permute.xlu0 %1382
  %1386 = vrot.lane.b32.xlu0 %v1355, 96
  %v1387 = vpop.permute.xlu0 %1386
  %1390 = vrot.lane.b32.xlu0 %v1356, 112
  %v1391 = vpop.permute.xlu0 %1390
  %1394 = vrot.lane.b32.xlu0 %v1358, 16
  %v1395 = vpop.permute.xlu0 %1394
  %1398 = vrot.lane.b32.xlu0 %v1359, 32
  %v1399 = vpop.permute.xlu0 %1398
  %1402 = vrot.lane.b32.xlu0 %v1360, 48
  %v1403 = vpop.permute.xlu0 %1402
  %1406 = vrot.lane.b32.xlu0 %v1361, 64
  %v1407 = vpop.permute.xlu0 %1406
  %1410 = vrot.lane.b32.xlu0 %v1362, 80
  %v1411 = vpop.permute.xlu0 %1410
  %1414 = vrot.lane.b32.xlu0 %v1363, 96
  %v1415 = vpop.permute.xlu0 %1414
  %1418 = vrot.lane.b32.xlu0 %v1364, 112
  %v1419 = vpop.permute.xlu0 %1418
  %v1421 = vsel %vm1072, %v1349, %v1367
  %v1422 = vsel %vm1104, %v1421, %v1371
  %v1423 = vsel %vm1138, %v1422, %v1375
  %v1424 = vsel %vm1172, %v1423, %v1379
  %vm1425 = vcmask 654336
  %v1426 = vsel %vm1425, %v1424, %v1383
  %vm1427 = vcmask 785408
  %v1428 = vsel %vm1427, %v1426, %v1387
  %vm1429 = vcmask 916480
  %v1430 = vsel %vm1429, %v1428, %v1391
  %v1431 = vsel %vm1072, %v1357, %v1395
  %v1432 = vsel %vm1104, %v1431, %v1399
  %v1433 = vsel %vm1138, %v1432, %v1403
  %v1434 = vsel %vm1172, %v1433, %v1407
  %v1435 = vsel %vm1425, %v1434, %v1411
  %v1436 = vsel %vm1427, %v1435, %v1415
  %v1437 = vsel %vm1429, %v1436, %v1419
  %v1438 = vpack.c.bf16 %v1430, %v1430
  %v1439 = vpack.c.bf16 %v1437, %v1437
  %v1440 = vld [vmem:[%s6] sm:$0xf]
  %v1441 = vld [vmem:[%s6 + $0x4] sm:$0xf]
  %v1442 = vld [vmem:[%s6 + $0x8] sm:$0xf]
  %v1443 = vld [vmem:[%s6 + $0xc] sm:$0xf]
  %v1444 = vld [vmem:[%s6 + $0x10] sm:$0xf]
  %v1445 = vld [vmem:[%s6 + $0x14] sm:$0xf]
  %v1446 = vld [vmem:[%s6 + $0x18] sm:$0xf]
  %v1447 = vld [vmem:[%s6 + $0x1c] sm:$0xf]
  %v1448 = vld [vmem:[%s6 + $0x20] sm:$0xf]
  %v1449 = vld [vmem:[%s6 + $0x24] sm:$0xf]
  %v1450 = vld [vmem:[%s6 + $0x28] sm:$0xf]
  %v1451 = vld [vmem:[%s6 + $0x2c] sm:$0xf]
  %v1452 = vld [vmem:[%s6 + $0x30] sm:$0xf]
  %v1453 = vld [vmem:[%s6 + $0x34] sm:$0xf]
  %v1454 = vld [vmem:[%s6 + $0x38] sm:$0xf]
  %v1455 = vld [vmem:[%s6 + $0x3c] sm:$0xf]
  %v1456 = vld [vmem:[%s6 + $0x40] sm:$0xf]
  %v1457 = vld [vmem:[%s6 + $0x44] sm:$0xf]
  %v1458 = vld [vmem:[%s6 + $0x48] sm:$0xf]
  %v1459 = vld [vmem:[%s6 + $0x4c] sm:$0xf]
  %v1460 = vld [vmem:[%s6 + $0x50] sm:$0xf]
  %v1461 = vld [vmem:[%s6 + $0x54] sm:$0xf]
  %v1462 = vld [vmem:[%s6 + $0x58] sm:$0xf]
  %v1463 = vld [vmem:[%s6 + $0x5c] sm:$0xf]
  %v1464 = vld [vmem:[%s6 + $0x60] sm:$0xf]
  %v1465 = vld [vmem:[%s6 + $0x64] sm:$0xf]
  %v1466 = vld [vmem:[%s6 + $0x68] sm:$0xf]
  %v1467 = vld [vmem:[%s6 + $0x6c] sm:$0xf]
  %v1468 = vld [vmem:[%s6 + $0x70] sm:$0xf]
  %v1469 = vld [vmem:[%s6 + $0x74] sm:$0xf]
  %v1470 = vld [vmem:[%s6 + $0x78] sm:$0xf]
  %v1471 = vld [vmem:[%s6 + $0x7c] sm:$0xf]
  %v1472 = vld [vmem:[%s7] sm:$0x1]
  %v1474 = vlaneseq
  %v1475 = vshrl.u32 %v1474, 7
  %v1476 = vsub.s32 0, %v1475
  %v1477 = vrot.slane %v1472, %v1476
  %v1511 = vunpack.c.l.b16 %v1440
  %v1512 = vunpack.c.l.b16 %v1441
  %v1513 = vunpack.c.l.b16 %v1442
  %v1514 = vunpack.c.l.b16 %v1443
  %v1515 = vunpack.c.l.b16 %v1444
  %v1516 = vunpack.c.l.b16 %v1445
  %v1517 = vunpack.c.l.b16 %v1446
  %v1518 = vunpack.c.l.b16 %v1447
  %v1519 = vunpack.c.l.b16 %v1448
  %v1520 = vunpack.c.l.b16 %v1449
  %v1521 = vunpack.c.l.b16 %v1450
  %v1522 = vunpack.c.l.b16 %v1451
  %v1523 = vunpack.c.l.b16 %v1452
  %v1524 = vunpack.c.l.b16 %v1453
  %v1525 = vunpack.c.l.b16 %v1454
  %v1526 = vunpack.c.l.b16 %v1455
  %v1527 = vunpack.c.l.b16 %v1456
  %v1528 = vunpack.c.l.b16 %v1457
  %v1529 = vunpack.c.l.b16 %v1458
  %v1530 = vunpack.c.l.b16 %v1459
  %v1531 = vunpack.c.l.b16 %v1460
  %v1532 = vunpack.c.l.b16 %v1461
  %v1533 = vunpack.c.l.b16 %v1462
  %v1534 = vunpack.c.l.b16 %v1463
  %v1535 = vunpack.c.l.b16 %v1464
  %v1536 = vunpack.c.l.b16 %v1465
  %v1537 = vunpack.c.l.b16 %v1466
  %v1538 = vunpack.c.l.b16 %v1467
  %v1539 = vunpack.c.l.b16 %v1468
  %v1540 = vunpack.c.l.b16 %v1469
  %v1541 = vunpack.c.l.b16 %v1470
  %v1542 = vunpack.c.l.b16 %v1471
  %v1543 = vpack.c.b16 %v1512, %v1511
  %v1544 = vpack.c.b16 %v1514, %v1513
  %v1545 = vpack.c.b16 %v1516, %v1515
  %v1546 = vpack.c.b16 %v1518, %v1517
  %v1547 = vpack.c.b16 %v1520, %v1519
  %v1548 = vpack.c.b16 %v1522, %v1521
  %v1549 = vpack.c.b16 %v1524, %v1523
  %v1550 = vpack.c.b16 %v1526, %v1525
  %v1551 = vpack.c.b16 %v1528, %v1527
  %v1552 = vpack.c.b16 %v1530, %v1529
  %v1553 = vpack.c.b16 %v1532, %v1531
  %v1554 = vpack.c.b16 %v1534, %v1533
  %v1555 = vpack.c.b16 %v1536, %v1535
  %v1556 = vpack.c.b16 %v1538, %v1537
  %v1557 = vpack.c.b16 %v1540, %v1539
  %v1558 = vpack.c.b16 %v1542, %v1541
  %1575 = vmatprep.subr.bf16.mxu0 0
  %1576 = vmatpush1.bf16.msra.mxu0 %v1543
  %1577 = vmatprep.subr.bf16.mxu0 0
  %1578 = vmatpush1.bf16.msra.mxu0 %v1544
  %1579 = vmatprep.subr.bf16.mxu0 0
  %1580 = vmatpush1.bf16.msra.mxu0 %v1545
  %1581 = vmatprep.subr.bf16.mxu0 0
  %1582 = vmatpush1.bf16.msra.mxu0 %v1546
  %1583 = vmatprep.subr.bf16.mxu0 0
  %1584 = vmatpush1.bf16.msra.mxu0 %v1547
  %1585 = vmatprep.subr.bf16.mxu0 0
  %1586 = vmatpush1.bf16.msra.mxu0 %v1548
  %1587 = vmatprep.subr.bf16.mxu0 0
  %1588 = vmatpush1.bf16.msra.mxu0 %v1549
  %1589 = vmatprep.subr.bf16.mxu0 0
  %1590 = vmatpush1.bf16.msra.mxu0 %v1550
  %1591 = vmatprep.subr.bf16.mxu0 0
  %1592 = vmatpush1.bf16.msra.mxu0 %v1551
  %1593 = vmatprep.subr.bf16.mxu0 0
  %1594 = vmatpush1.bf16.msra.mxu0 %v1552
  %1595 = vmatprep.subr.bf16.mxu0 0
  %1596 = vmatpush1.bf16.msra.mxu0 %v1553
  %1597 = vmatprep.subr.bf16.mxu0 0
  %1598 = vmatpush1.bf16.msra.mxu0 %v1554
  %1599 = vmatprep.subr.bf16.mxu0 0
  %1600 = vmatpush1.bf16.msra.mxu0 %v1555
  %1601 = vmatprep.subr.bf16.mxu0 0
  %1602 = vmatpush1.bf16.msra.mxu0 %v1556
  %1603 = vmatprep.subr.bf16.mxu0 0
  %1604 = vmatpush1.bf16.msra.mxu0 %v1557
  %1605 = vmatprep.subr.bf16.mxu0 0
  %1606 = vmatpush1.bf16.msra.mxu0 %v1558
  %1607 = vmatprep.mubr.bf16.mxu0 %v1439
  %1608 = vmatmul.mubr.bf16.gmra.mrb[0].mxu0 %v1438
  %v1609 = vpop.f32.mrb[0].mxu0
  %v1610 = vadd.f32 %v1477, %v1609
  %v1611 = vpop.f32.mrb[0].mxu0
  %v1612 = vpop.f32.mrb[0].mxu0
  %v1613 = vpop.f32.mrb[0].mxu0
  %1614 = vdwg.mxu0
  %v1615 = vld [vmem:[%s1] sm:$0xff]
  %v1616 = vmul.f32 %v1610, 0.5
  %v1617 = vmul.f32 %v1616, 1.442695
  %v1618 = vpow.pop %v1617
  %1620 = vrot.lane.b32.xlu0 %v1618, 120
  %v1621 = vpop.permute.xlu0 %1620
  %v1623 = vmul.f32 %v1615, %v1621
  %v1624 = vadd.f32 %v1623, %v1610
  %1626 = vrot.lane.b32.xlu0 %v1624, 16
  %v1627 = vpop.permute.xlu0 %1626
  %1630 = vrot.lane.b32.xlu0 %v1610, 8
  %v1631 = vpop.permute.xlu0 %1630
  %v1633 = vsel %vm1072, %v1610, %v1627
  %v1634 = vsel %vm1087, %v1633, %v1631
  %vm1635 = vcmask 228352
  %1636 = vst.msk [vmem:[%s15] sm:$0xff] %vm1635, %v1634
  %1637 = vrot.lane.b32.xlu0 %v1610, 112
  %v1638 = vpop.permute.xlu0 %1637
  %1640 = vrot.lane.b32.xlu0 %v1624, 4
  %v1641 = vpop.permute.xlu0 %1640
  %vm1643 = vcmask 31744
  %v1644 = vsel %vm1643, %v1638, %v1641
  %v1645 = vpack.c.bf16 %v1644, %v1644
  %v1646 = vld [vmem:[%s8] sm:$0xff]
  %v1647 = vld [vmem:[%s8 + $0x8] sm:$0x33]
  %v1648 = vld [vmem:[%s9] sm:$0x3]
  %v1650 = vlaneseq
  %v1651 = vshrl.u32 %v1650, 7
  %v1652 = vsub.s32 0, %v1651
  %v1653 = vrot.slane %v1648, %v1652
  %v1654 = vlaneseq
  %v1655 = vshrl.u32 %v1654, 7
  %v1656 = vsub.s32 1, %v1655
  %v1657 = vrot.slane %v1648, %v1656
  %v1662 = vunpack.c.l.b16 %v1646
  %v1663 = vunpack.c.h.b16 %v1646
  %v1664 = vunpack.c.l.b16 %v1647
  %v1665 = vunpack.c.h.b16 %v1647
  %v1666 = vpack.c.b16 %v1664, %v1662
  %v1667 = vpack.c.b16 %v1665, %v1663
  %vm1668 = vcmask 97280
  %v1670 = vsel %vm1668, %v1645, 0
  %vm1672 = vcmask 1045504
  %v1674 = vsel %vm1672, %v1666, 0
  %v1677 = vsel %vm1672, %v1667, 0
  %1679 = vmatprep.subr.bf16.mxu0 %v1677
  %1680 = vmatpush1.bf16.msra.mxu0 %v1674
  %1681 = vmatprep.subr.bf16.mxu0 0
  %1682 = vmatpush1.bf16.msra.mxu0 0
  %1683 = vmatprep.subr.bf16.mxu0 0
  %1684 = vmatpush1.bf16.msra.mxu0 0
  %1685 = vmatprep.subr.bf16.mxu0 0
  %1686 = vmatpush1.bf16.msra.mxu0 0
  %1687 = vmatprep.subr.bf16.mxu0 0
  %1688 = vmatpush1.bf16.msra.mxu0 0
  %1689 = vmatprep.subr.bf16.mxu0 0
  %1690 = vmatpush1.bf16.msra.mxu0 0
  %1691 = vmatprep.subr.bf16.mxu0 0
  %1692 = vmatpush1.bf16.msra.mxu0 0
  %1693 = vmatprep.subr.bf16.mxu0 0
  %1694 = vmatpush1.bf16.msra.mxu0 0
  %1695 = vmatprep.subr.bf16.mxu0 0
  %1696 = vmatpush1.bf16.msra.mxu0 0
  %1697 = vmatprep.subr.bf16.mxu0 0
  %1698 = vmatpush1.bf16.msra.mxu0 0
  %1699 = vmatprep.subr.bf16.mxu0 0
  %1700 = vmatpush1.bf16.msra.mxu0 0
  %1701 = vmatprep.subr.bf16.mxu0 0
  %1702 = vmatpush1.bf16.msra.mxu0 0
  %1703 = vmatprep.subr.bf16.mxu0 0
  %1704 = vmatpush1.bf16.msra.mxu0 0
  %1705 = vmatprep.subr.bf16.mxu0 0
  %1706 = vmatpush1.bf16.msra.mxu0 0
  %1707 = vmatprep.subr.bf16.mxu0 0
  %1708 = vmatpush1.bf16.msra.mxu0 0
  %1709 = vmatprep.subr.bf16.mxu0 0
  %1710 = vmatpush1.bf16.msra.mxu0 0
  %1711 = vmatprep.mubr.bf16.mxu0 0
  %1712 = vmatmul.mubr.bf16.gmra.mrb[0].mxu0 %v1670
  %v1713 = vpop.f32.mrb[0].mxu0
  %v1714 = vadd.f32 %v1653, %v1713
  %v1715 = vpop.f32.mrb[0].mxu0
  %v1716 = vadd.f32 %v1657, %v1715
  %v1717 = vpop.f32.mrb[0].mxu0
  %v1718 = vpop.f32.mrb[0].mxu0
  %1719 = vdwg.mxu0
  %1721 = vrot.lane.b32.xlu0 %v1714, 112
  %v1722 = vpop.permute.xlu0 %1721
  %1724 = vrot.lane.b32.xlu0 %v1714, 96
  %v1725 = vpop.permute.xlu0 %1724
  %1727 = vrot.lane.b32.xlu0 %v1714, 80
  %v1728 = vpop.permute.xlu0 %1727
  %1730 = vrot.lane.b32.xlu0 %v1714, 64
  %v1731 = vpop.permute.xlu0 %1730
  %1733 = vrot.lane.b32.xlu0 %v1714, 48
  %v1734 = vpop.permute.xlu0 %1733
  %1736 = vrot.lane.b32.xlu0 %v1714, 32
  %v1737 = vpop.permute.xlu0 %1736
  %1739 = vrot.lane.b32.xlu0 %v1714, 16
  %v1740 = vpop.permute.xlu0 %1739
  %1743 = vrot.lane.b32.xlu0 %v1716, 112
  %v1744 = vpop.permute.xlu0 %1743
  %1746 = vrot.lane.b32.xlu0 %v1716, 96
  %v1747 = vpop.permute.xlu0 %1746
  %1749 = vrot.lane.b32.xlu0 %v1716, 80
  %v1750 = vpop.permute.xlu0 %1749
  %1752 = vrot.lane.b32.xlu0 %v1716, 64
  %v1753 = vpop.permute.xlu0 %1752
  %1755 = vrot.lane.b32.xlu0 %v1716, 48
  %v1756 = vpop.permute.xlu0 %1755
  %1758 = vrot.lane.b32.xlu0 %v1716, 32
  %v1759 = vpop.permute.xlu0 %1758
  %1761 = vrot.lane.b32.xlu0 %v1716, 16
  %v1762 = vpop.permute.xlu0 %1761
  %v1764 = vpack.c.bf16 %v1714, %v1714
  %v1765 = vpack.c.bf16 %v1722, %v1722
  %v1766 = vpack.c.bf16 %v1725, %v1725
  %v1767 = vpack.c.bf16 %v1728, %v1728
  %v1768 = vpack.c.bf16 %v1731, %v1731
  %v1769 = vpack.c.bf16 %v1734, %v1734
  %v1770 = vpack.c.bf16 %v1737, %v1737
  %v1771 = vpack.c.bf16 %v1740, %v1740
  %v1772 = vpack.c.bf16 %v1716, %v1716
  %v1773 = vpack.c.bf16 %v1744, %v1744
  %v1774 = vpack.c.bf16 %v1747, %v1747
  %v1775 = vpack.c.bf16 %v1750, %v1750
  %v1776 = vpack.c.bf16 %v1753, %v1753
  %v1777 = vpack.c.bf16 %v1756, %v1756
  %v1778 = vpack.c.bf16 %v1759, %v1759
  %v1779 = vpack.c.bf16 %v1762, %v1762
  %v1796 = vunpack.c.l.b16 %v1764
  %v1797 = vunpack.c.l.b16 %v1765
  %v1798 = vunpack.c.l.b16 %v1766
  %v1799 = vunpack.c.l.b16 %v1767
  %v1800 = vunpack.c.l.b16 %v1768
  %v1801 = vunpack.c.l.b16 %v1769
  %v1802 = vunpack.c.l.b16 %v1770
  %v1803 = vunpack.c.l.b16 %v1771
  %v1804 = vunpack.c.l.b16 %v1772
  %v1805 = vunpack.c.l.b16 %v1773
  %v1806 = vunpack.c.l.b16 %v1774
  %v1807 = vunpack.c.l.b16 %v1775
  %v1808 = vunpack.c.l.b16 %v1776
  %v1809 = vunpack.c.l.b16 %v1777
  %v1810 = vunpack.c.l.b16 %v1778
  %v1811 = vunpack.c.l.b16 %v1779
  %v1812 = vunpack.c.h.b16 0
  %v1813 = vpack.c.b16 %v1796, %v1796
  %v1814 = vpack.c.b16 %v1797, %v1797
  %v1815 = vpack.c.b16 %v1798, %v1798
  %v1816 = vpack.c.b16 %v1799, %v1799
  %v1817 = vpack.c.b16 %v1812, %v1812
  %v1818 = vpack.c.b16 %v1800, %v1800
  %v1819 = vpack.c.b16 %v1801, %v1801
  %v1820 = vpack.c.b16 %v1802, %v1802
  %v1821 = vpack.c.b16 %v1803, %v1803
  %v1822 = vpack.c.b16 %v1804, %v1804
  %v1823 = vpack.c.b16 %v1805, %v1805
  %v1824 = vpack.c.b16 %v1806, %v1806
  %v1825 = vpack.c.b16 %v1807, %v1807
  %v1826 = vpack.c.b16 %v1808, %v1808
  %v1827 = vpack.c.b16 %v1809, %v1809
  %v1828 = vpack.c.b16 %v1810, %v1810
  %v1829 = vpack.c.b16 %v1811, %v1811
  %v1832 = vsel %vm387, %v1813, 0
  %v1834 = vsel %vm387, %v1814, 0
  %v1836 = vsel %vm387, %v1815, 0
  %v1838 = vsel %vm387, %v1816, 0
  %v1839 = vsel %vm387, %v877, 0
  %v1841 = vsel %vm387, %v1817, 0
  %v1843 = vsel %vm387, %v1818, 0
  %v1845 = vsel %vm387, %v1819, 0
  %v1847 = vsel %vm387, %v1820, 0
  %v1849 = vsel %vm387, %v1821, 0
  %v1851 = vsel %vm387, %v1822, 0
  %v1853 = vsel %vm387, %v1823, 0
  %v1855 = vsel %vm387, %v1824, 0
  %v1857 = vsel %vm387, %v1825, 0
  %v1859 = vsel %vm387, %v1826, 0
  %v1861 = vsel %vm387, %v1827, 0
  %v1863 = vsel %vm387, %v1828, 0
  %v1865 = vsel %vm387, %v1829, 0
  %v1884 = vunpack.c.l.b16 %v1832
  %v1885 = vunpack.c.h.b16 %v1832
  %v1886 = vunpack.c.l.b16 %v1834
  %v1887 = vunpack.c.h.b16 %v1834
  %v1888 = vunpack.c.l.b16 %v1836
  %v1889 = vunpack.c.h.b16 %v1836
  %v1890 = vunpack.c.l.b16 %v1838
  %v1891 = vunpack.c.l.b16 %v1839
  %v1892 = vunpack.c.h.b16 %v1839
  %v1893 = vunpack.c.l.b16 %v1841
  %v1894 = vunpack.c.h.b16 %v1841
  %v1895 = vunpack.c.l.b16 %v1843
  %v1896 = vunpack.c.h.b16 %v1843
  %v1897 = vunpack.c.l.b16 %v1845
  %v1898 = vunpack.c.h.b16 %v1845
  %v1899 = vunpack.c.l.b16 %v1847
  %v1900 = vunpack.c.h.b16 %v1847
  %v1901 = vunpack.c.l.b16 %v1849
  %v1902 = vunpack.c.l.b16 %v1851
  %v1903 = vunpack.c.h.b16 %v1851
  %v1904 = vunpack.c.l.b16 %v1853
  %v1905 = vunpack.c.h.b16 %v1853
  %v1906 = vunpack.c.l.b16 %v1855
  %v1907 = vunpack.c.h.b16 %v1855
  %v1908 = vunpack.c.l.b16 %v1857
  %v1909 = vunpack.c.l.b16 %v1859
  %v1910 = vunpack.c.h.b16 %v1859
  %v1911 = vunpack.c.l.b16 %v1861
  %v1912 = vunpack.c.h.b16 %v1861
  %v1913 = vunpack.c.l.b16 %v1863
  %v1914 = vunpack.c.h.b16 %v1863
  %v1915 = vunpack.c.l.b16 %v1865
  %v1916 = vpack.c.b16 %v1885, %v1884
  %v1917 = vpack.c.b16 %v1887, %v1886
  %v1918 = vpack.c.b16 %v1889, %v1888
  %v1919 = vpack.c.b16 %v876, %v1890
  %v1920 = vpack.c.b16 %v1891, %v876
  %v1921 = vpack.c.b16 %v1893, %v1892
  %v1922 = vpack.c.b16 %v1891, %v1894
  %v1923 = vpack.c.b16 %v1896, %v1895
  %v1924 = vpack.c.b16 %v1898, %v1897
  %v1925 = vpack.c.b16 %v1900, %v1899
  %v1926 = vpack.c.b16 %v876, %v1901
  %v1927 = vpack.c.b16 %v1903, %v1902
  %v1928 = vpack.c.b16 %v1905, %v1904
  %v1929 = vpack.c.b16 %v1907, %v1906
  %v1930 = vpack.c.b16 %v876, %v1908
  %v1931 = vpack.c.b16 %v1910, %v1909
  %v1932 = vpack.c.b16 %v1912, %v1911
  %v1933 = vpack.c.b16 %v1914, %v1913
  %v1934 = vpack.c.b16 %v1915, %v1915
  %v1935 = vpack.c.b16 %v1884, %v876
  %v1936 = vpack.c.b16 %v1886, %v1885
  %v1937 = vpack.c.b16 %v1888, %v1887
  %v1938 = vpack.c.b16 %v1890, %v1889
  %v1939 = vpack.c.b16 %v1892, %v1891
  %v1940 = vpack.c.b16 %v1894, %v1893
  %v1941 = vpack.c.b16 %v876, %v1893
  %v1942 = vpack.c.b16 %v1895, %v876
  %v1943 = vpack.c.b16 %v1897, %v1896
  %v1944 = vpack.c.b16 %v1899, %v1898
  %v1945 = vpack.c.b16 %v1901, %v1900
  %v1946 = vpack.c.b16 %v1902, %v876
  %v1947 = vpack.c.b16 %v1904, %v1903
  %v1948 = vpack.c.b16 %v1906, %v1905
  %v1949 = vpack.c.b16 %v1908, %v1907
  %v1950 = vpack.c.b16 %v1909, %v876
  %v1951 = vpack.c.b16 %v1911, %v1910
  %v1952 = vpack.c.b16 %v1913, %v1912
  %v1953 = vpack.c.b16 %v1915, %v1914
  %1954 = vrot.lane.b32.xlu0 %v1935, 16
  %v1955 = vpop.permute.xlu0 %1954
  %1956 = vrot.lane.b32.xlu0 %v1936, 16
  %v1957 = vpop.permute.xlu0 %1956
  %1958 = vrot.lane.b32.xlu0 %v1937, 16
  %v1959 = vpop.permute.xlu0 %1958
  %1960 = vrot.lane.b32.xlu0 %v1938, 16
  %v1961 = vpop.permute.xlu0 %1960
  %1962 = vrot.lane.b32.xlu0 %v1939, 16
  %v1963 = vpop.permute.xlu0 %1962
  %1964 = vrot.lane.b32.xlu0 %v1940, 16
  %v1965 = vpop.permute.xlu0 %1964
  %1966 = vrot.lane.b32.xlu0 %v1941, 16
  %v1967 = vpop.permute.xlu0 %1966
  %1968 = vrot.lane.b32.xlu0 %v1942, 16
  %v1969 = vpop.permute.xlu0 %1968
  %1970 = vrot.lane.b32.xlu0 %v1943, 16
  %v1971 = vpop.permute.xlu0 %1970
  %1972 = vrot.lane.b32.xlu0 %v1944, 16
  %v1973 = vpop.permute.xlu0 %1972
  %1974 = vrot.lane.b32.xlu0 %v1945, 16
  %v1975 = vpop.permute.xlu0 %1974
  %1976 = vrot.lane.b32.xlu0 %v1946, 16
  %v1977 = vpop.permute.xlu0 %1976
  %1978 = vrot.lane.b32.xlu0 %v1947, 16
  %v1979 = vpop.permute.xlu0 %1978
  %1980 = vrot.lane.b32.xlu0 %v1948, 16
  %v1981 = vpop.permute.xlu0 %1980
  %1982 = vrot.lane.b32.xlu0 %v1949, 16
  %v1983 = vpop.permute.xlu0 %1982
  %1984 = vrot.lane.b32.xlu0 %v1950, 16
  %v1985 = vpop.permute.xlu0 %1984
  %1986 = vrot.lane.b32.xlu0 %v1951, 16
  %v1987 = vpop.permute.xlu0 %1986
  %1988 = vrot.lane.b32.xlu0 %v1952, 16
  %v1989 = vpop.permute.xlu0 %1988
  %1990 = vrot.lane.b32.xlu0 %v1953, 16
  %v1991 = vpop.permute.xlu0 %1990
  %v1992 = vpack.c.b16 %v876, %v1915
  %1993 = vrot.lane.b32.xlu0 %v877, 32
  %v1994 = vpop.permute.xlu0 %1993
  %1995 = vrot.lane.b32.xlu0 %v1916, 32
  %v1996 = vpop.permute.xlu0 %1995
  %1997 = vrot.lane.b32.xlu0 %v1917, 32
  %v1998 = vpop.permute.xlu0 %1997
  %1999 = vrot.lane.b32.xlu0 %v1918, 32
  %v2000 = vpop.permute.xlu0 %1999
  %2001 = vrot.lane.b32.xlu0 %v1919, 32
  %v2002 = vpop.permute.xlu0 %2001
  %2003 = vrot.lane.b32.xlu0 %v1920, 32
  %v2004 = vpop.permute.xlu0 %2003
  %2005 = vrot.lane.b32.xlu0 %v1921, 32
  %v2006 = vpop.permute.xlu0 %2005
  %2007 = vrot.lane.b32.xlu0 %v1922, 32
  %v2008 = vpop.permute.xlu0 %2007
  %2009 = vrot.lane.b32.xlu0 %v1923, 32
  %v2010 = vpop.permute.xlu0 %2009
  %2011 = vrot.lane.b32.xlu0 %v1924, 32
  %v2012 = vpop.permute.xlu0 %2011
  %2013 = vrot.lane.b32.xlu0 %v1925, 32
  %v2014 = vpop.permute.xlu0 %2013
  %2015 = vrot.lane.b32.xlu0 %v1926, 32
  %v2016 = vpop.permute.xlu0 %2015
  %2017 = vrot.lane.b32.xlu0 %v1927, 32
  %v2018 = vpop.permute.xlu0 %2017
  %2019 = vrot.lane.b32.xlu0 %v1928, 32
  %v2020 = vpop.permute.xlu0 %2019
  %2021 = vrot.lane.b32.xlu0 %v1929, 32
  %v2022 = vpop.permute.xlu0 %2021
  %2023 = vrot.lane.b32.xlu0 %v1930, 32
  %v2024 = vpop.permute.xlu0 %2023
  %2025 = vrot.lane.b32.xlu0 %v1931, 32
  %v2026 = vpop.permute.xlu0 %2025
  %2027 = vrot.lane.b32.xlu0 %v1932, 32
  %v2028 = vpop.permute.xlu0 %2027
  %2029 = vrot.lane.b32.xlu0 %v1933, 32
  %v2030 = vpop.permute.xlu0 %2029
  %2031 = vrot.lane.b32.xlu0 %v1992, 32
  %v2032 = vpop.permute.xlu0 %2031
  %2033 = vrot.lane.b32.xlu0 %v877, 48
  %v2034 = vpop.permute.xlu0 %2033
  %2035 = vrot.lane.b32.xlu0 %v1935, 48
  %v2036 = vpop.permute.xlu0 %2035
  %2037 = vrot.lane.b32.xlu0 %v1936, 48
  %v2038 = vpop.permute.xlu0 %2037
  %2039 = vrot.lane.b32.xlu0 %v1937, 48
  %v2040 = vpop.permute.xlu0 %2039
  %2041 = vrot.lane.b32.xlu0 %v1938, 48
  %v2042 = vpop.permute.xlu0 %2041
  %2043 = vrot.lane.b32.xlu0 %v1939, 48
  %v2044 = vpop.permute.xlu0 %2043
  %2045 = vrot.lane.b32.xlu0 %v1940, 48
  %v2046 = vpop.permute.xlu0 %2045
  %2047 = vrot.lane.b32.xlu0 %v1941, 48
  %v2048 = vpop.permute.xlu0 %2047
  %2049 = vrot.lane.b32.xlu0 %v1942, 48
  %v2050 = vpop.permute.xlu0 %2049
  %2051 = vrot.lane.b32.xlu0 %v1943, 48
  %v2052 = vpop.permute.xlu0 %2051
  %2053 = vrot.lane.b32.xlu0 %v1944, 48
  %v2054 = vpop.permute.xlu0 %2053
  %2055 = vrot.lane.b32.xlu0 %v1945, 48
  %v2056 = vpop.permute.xlu0 %2055
  %2057 = vrot.lane.b32.xlu0 %v1946, 48
  %v2058 = vpop.permute.xlu0 %2057
  %2059 = vrot.lane.b32.xlu0 %v1947, 48
  %v2060 = vpop.permute.xlu0 %2059
  %2061 = vrot.lane.b32.xlu0 %v1948, 48
  %v2062 = vpop.permute.xlu0 %2061
  %2063 = vrot.lane.b32.xlu0 %v1949, 48
  %v2064 = vpop.permute.xlu0 %2063
  %2065 = vrot.lane.b32.xlu0 %v1950, 48
  %v2066 = vpop.permute.xlu0 %2065
  %2067 = vrot.lane.b32.xlu0 %v1951, 48
  %v2068 = vpop.permute.xlu0 %2067
  %2069 = vrot.lane.b32.xlu0 %v1952, 48
  %v2070 = vpop.permute.xlu0 %2069
  %2071 = vrot.lane.b32.xlu0 %v1953, 48
  %v2072 = vpop.permute.xlu0 %2071
  %2073 = vrot.lane.b32.xlu0 %v877, 64
  %v2074 = vpop.permute.xlu0 %2073
  %2075 = vrot.lane.b32.xlu0 %v1916, 64
  %v2076 = vpop.permute.xlu0 %2075
  %2077 = vrot.lane.b32.xlu0 %v1917, 64
  %v2078 = vpop.permute.xlu0 %2077
  %2079 = vrot.lane.b32.xlu0 %v1918, 64
  %v2080 = vpop.permute.xlu0 %2079
  %2081 = vrot.lane.b32.xlu0 %v1919, 64
  %v2082 = vpop.permute.xlu0 %2081
  %2083 = vrot.lane.b32.xlu0 %v1920, 64
  %v2084 = vpop.permute.xlu0 %2083
  %2085 = vrot.lane.b32.xlu0 %v1921, 64
  %v2086 = vpop.permute.xlu0 %2085
  %2087 = vrot.lane.b32.xlu0 %v1922, 64
  %v2088 = vpop.permute.xlu0 %2087
  %2089 = vrot.lane.b32.xlu0 %v1923, 64
  %v2090 = vpop.permute.xlu0 %2089
  %2091 = vrot.lane.b32.xlu0 %v1924, 64
  %v2092 = vpop.permute.xlu0 %2091
  %2093 = vrot.lane.b32.xlu0 %v1925, 64
  %v2094 = vpop.permute.xlu0 %2093
  %2095 = vrot.lane.b32.xlu0 %v1926, 64
  %v2096 = vpop.permute.xlu0 %2095
  %2097 = vrot.lane.b32.xlu0 %v1927, 64
  %v2098 = vpop.permute.xlu0 %2097
  %2099 = vrot.lane.b32.xlu0 %v1928, 64
  %v2100 = vpop.permute.xlu0 %2099
  %2101 = vrot.lane.b32.xlu0 %v1929, 64
  %v2102 = vpop.permute.xlu0 %2101
  %2103 = vrot.lane.b32.xlu0 %v1930, 64
  %v2104 = vpop.permute.xlu0 %2103
  %2105 = vrot.lane.b32.xlu0 %v1931, 64
  %v2106 = vpop.permute.xlu0 %2105
  %2107 = vrot.lane.b32.xlu0 %v1932, 64
  %v2108 = vpop.permute.xlu0 %2107
  %2109 = vrot.lane.b32.xlu0 %v1933, 64
  %v2110 = vpop.permute.xlu0 %2109
  %2111 = vrot.lane.b32.xlu0 %v1992, 64
  %v2112 = vpop.permute.xlu0 %2111
  %2113 = vrot.lane.b32.xlu0 %v877, 80
  %v2114 = vpop.permute.xlu0 %2113
  %2115 = vrot.lane.b32.xlu0 %v1935, 80
  %v2116 = vpop.permute.xlu0 %2115
  %2117 = vrot.lane.b32.xlu0 %v1936, 80
  %v2118 = vpop.permute.xlu0 %2117
  %2119 = vrot.lane.b32.xlu0 %v1937, 80
  %v2120 = vpop.permute.xlu0 %2119
  %2121 = vrot.lane.b32.xlu0 %v1938, 80
  %v2122 = vpop.permute.xlu0 %2121
  %2123 = vrot.lane.b32.xlu0 %v1939, 80
  %v2124 = vpop.permute.xlu0 %2123
  %2125 = vrot.lane.b32.xlu0 %v1940, 80
  %v2126 = vpop.permute.xlu0 %2125
  %2127 = vrot.lane.b32.xlu0 %v1941, 80
  %v2128 = vpop.permute.xlu0 %2127
  %2129 = vrot.lane.b32.xlu0 %v1942, 80
  %v2130 = vpop.permute.xlu0 %2129
  %2131 = vrot.lane.b32.xlu0 %v1943, 80
  %v2132 = vpop.permute.xlu0 %2131
  %2133 = vrot.lane.b32.xlu0 %v1944, 80
  %v2134 = vpop.permute.xlu0 %2133
  %2135 = vrot.lane.b32.xlu0 %v1945, 80
  %v2136 = vpop.permute.xlu0 %2135
  %2137 = vrot.lane.b32.xlu0 %v1946, 80
  %v2138 = vpop.permute.xlu0 %2137
  %2139 = vrot.lane.b32.xlu0 %v1947, 80
  %v2140 = vpop.permute.xlu0 %2139
  %2141 = vrot.lane.b32.xlu0 %v1948, 80
  %v2142 = vpop.permute.xlu0 %2141
  %2143 = vrot.lane.b32.xlu0 %v1949, 80
  %v2144 = vpop.permute.xlu0 %2143
  %2145 = vrot.lane.b32.xlu0 %v1950, 80
  %v2146 = vpop.permute.xlu0 %2145
  %2147 = vrot.lane.b32.xlu0 %v1951, 80
  %v2148 = vpop.permute.xlu0 %2147
  %2149 = vrot.lane.b32.xlu0 %v1952, 80
  %v2150 = vpop.permute.xlu0 %2149
  %2151 = vrot.lane.b32.xlu0 %v1953, 80
  %v2152 = vpop.permute.xlu0 %2151
  %2153 = vrot.lane.b32.xlu0 %v877, 96
  %v2154 = vpop.permute.xlu0 %2153
  %2155 = vrot.lane.b32.xlu0 %v1916, 96
  %v2156 = vpop.permute.xlu0 %2155
  %2157 = vrot.lane.b32.xlu0 %v1917, 96
  %v2158 = vpop.permute.xlu0 %2157
  %2159 = vrot.lane.b32.xlu0 %v1918, 96
  %v2160 = vpop.permute.xlu0 %2159
  %2161 = vrot.lane.b32.xlu0 %v1919, 96
  %v2162 = vpop.permute.xlu0 %2161
  %2163 = vrot.lane.b32.xlu0 %v1920, 96
  %v2164 = vpop.permute.xlu0 %2163
  %2165 = vrot.lane.b32.xlu0 %v1921, 96
  %v2166 = vpop.permute.xlu0 %2165
  %2167 = vrot.lane.b32.xlu0 %v1922, 96
  %v2168 = vpop.permute.xlu0 %2167
  %2169 = vrot.lane.b32.xlu0 %v1923, 96
  %v2170 = vpop.permute.xlu0 %2169
  %2171 = vrot.lane.b32.xlu0 %v1924, 96
  %v2172 = vpop.permute.xlu0 %2171
  %2173 = vrot.lane.b32.xlu0 %v1925, 96
  %v2174 = vpop.permute.xlu0 %2173
  %2175 = vrot.lane.b32.xlu0 %v1926, 96
  %v2176 = vpop.permute.xlu0 %2175
  %2177 = vrot.lane.b32.xlu0 %v1927, 96
  %v2178 = vpop.permute.xlu0 %2177
  %2179 = vrot.lane.b32.xlu0 %v1928, 96
  %v2180 = vpop.permute.xlu0 %2179
  %2181 = vrot.lane.b32.xlu0 %v1929, 96
  %v2182 = vpop.permute.xlu0 %2181
  %2183 = vrot.lane.b32.xlu0 %v1930, 96
  %v2184 = vpop.permute.xlu0 %2183
  %2185 = vrot.lane.b32.xlu0 %v1931, 96
  %v2186 = vpop.permute.xlu0 %2185
  %2187 = vrot.lane.b32.xlu0 %v1932, 96
  %v2188 = vpop.permute.xlu0 %2187
  %2189 = vrot.lane.b32.xlu0 %v1933, 96
  %v2190 = vpop.permute.xlu0 %2189
  %2191 = vrot.lane.b32.xlu0 %v1992, 96
  %v2192 = vpop.permute.xlu0 %2191
  %2193 = vrot.lane.b32.xlu0 %v1935, 112
  %v2194 = vpop.permute.xlu0 %2193
  %2195 = vrot.lane.b32.xlu0 %v1936, 112
  %v2196 = vpop.permute.xlu0 %2195
  %2197 = vrot.lane.b32.xlu0 %v1937, 112
  %v2198 = vpop.permute.xlu0 %2197
  %2199 = vrot.lane.b32.xlu0 %v1938, 112
  %v2200 = vpop.permute.xlu0 %2199
  %2201 = vrot.lane.b32.xlu0 %v877, 112
  %v2202 = vpop.permute.xlu0 %2201
  %2203 = vrot.lane.b32.xlu0 %v1939, 112
  %v2204 = vpop.permute.xlu0 %2203
  %2205 = vrot.lane.b32.xlu0 %v1940, 112
  %v2206 = vpop.permute.xlu0 %2205
  %2207 = vrot.lane.b32.xlu0 %v1941, 112
  %v2208 = vpop.permute.xlu0 %2207
  %2209 = vrot.lane.b32.xlu0 %v1942, 112
  %v2210 = vpop.permute.xlu0 %2209
  %2211 = vrot.lane.b32.xlu0 %v1943, 112
  %v2212 = vpop.permute.xlu0 %2211
  %2213 = vrot.lane.b32.xlu0 %v1944, 112
  %v2214 = vpop.permute.xlu0 %2213
  %2215 = vrot.lane.b32.xlu0 %v1945, 112
  %v2216 = vpop.permute.xlu0 %2215
  %2217 = vrot.lane.b32.xlu0 %v1946, 112
  %v2218 = vpop.permute.xlu0 %2217
  %2219 = vrot.lane.b32.xlu0 %v1947, 112
  %v2220 = vpop.permute.xlu0 %2219
  %2221 = vrot.lane.b32.xlu0 %v1948, 112
  %v2222 = vpop.permute.xlu0 %2221
  %2223 = vrot.lane.b32.xlu0 %v1949, 112
  %v2224 = vpop.permute.xlu0 %2223
  %2225 = vrot.lane.b32.xlu0 %v1950, 112
  %v2226 = vpop.permute.xlu0 %2225
  %2227 = vrot.lane.b32.xlu0 %v1951, 112
  %v2228 = vpop.permute.xlu0 %2227
  %2229 = vrot.lane.b32.xlu0 %v1952, 112
  %v2230 = vpop.permute.xlu0 %2229
  %2231 = vrot.lane.b32.xlu0 %v1953, 112
  %v2232 = vpop.permute.xlu0 %2231
  %v2233 = vsel %vm1072, %v877, %v911
  %v2235 = vsel %vm1072, %v877, %v1955
  %v2238 = vsel %vm1072, %v1916, %v1957
  %v2241 = vsel %vm1072, %v1917, %v1959
  %v2244 = vsel %vm1072, %v1918, %v1961
  %v2246 = vsel %vm1072, %v1919, %v911
  %v2249 = vsel %vm1072, %v1920, %v1963
  %v2252 = vsel %vm1072, %v1921, %v1965
  %v2254 = vsel %vm1072, %v1922, %v1963
  %v2256 = vsel %vm1072, %v1921, %v1967
  %v2258 = vsel %vm1072, %v877, %v1969
  %v2261 = vsel %vm1072, %v1923, %v1971
  %v2264 = vsel %vm1072, %v1924, %v1973
  %v2267 = vsel %vm1072, %v1925, %v1975
  %v2269 = vsel %vm1072, %v1926, %v911
  %v2271 = vsel %vm1072, %v877, %v1977
  %v2274 = vsel %vm1072, %v1927, %v1979
  %v2277 = vsel %vm1072, %v1928, %v1981
  %v2280 = vsel %vm1072, %v1929, %v1983
  %v2282 = vsel %vm1072, %v1930, %v911
  %v2284 = vsel %vm1072, %v877, %v1985
  %v2287 = vsel %vm1072, %v1931, %v1987
  %v2290 = vsel %vm1072, %v1932, %v1989
  %v2293 = vsel %vm1072, %v1933, %v1991
  %v2295 = vsel %vm1072, %v1934, %v911
  %v2297 = vsel %vm1104, %v2233, %v1994
  %v2299 = vsel %vm1104, %v2235, %v1996
  %v2301 = vsel %vm1104, %v2238, %v1998
  %v2303 = vsel %vm1104, %v2241, %v2000
  %v2305 = vsel %vm1104, %v2244, %v2002
  %v2307 = vsel %vm1104, %v2246, %v2004
  %v2309 = vsel %vm1104, %v2249, %v2006
  %v2311 = vsel %vm1104, %v2252, %v2008
  %v2312 = vsel %vm1104, %v2254, %v2006
  %v2313 = vsel %vm1104, %v2256, %v1994
  %v2315 = vsel %vm1104, %v2258, %v2010
  %v2317 = vsel %vm1104, %v2261, %v2012
  %v2319 = vsel %vm1104, %v2264, %v2014
  %v2321 = vsel %vm1104, %v2267, %v2016
  %v2322 = vsel %vm1104, %v2269, %v2004
  %v2324 = vsel %vm1104, %v2271, %v2018
  %v2326 = vsel %vm1104, %v2274, %v2020
  %v2328 = vsel %vm1104, %v2277, %v2022
  %v2330 = vsel %vm1104, %v2280, %v2024
  %v2331 = vsel %vm1104, %v2282, %v2004
  %v2333 = vsel %vm1104, %v2284, %v2026
  %v2335 = vsel %vm1104, %v2287, %v2028
  %v2337 = vsel %vm1104, %v2290, %v2030
  %v2339 = vsel %vm1104, %v2293, %v2032
  %v2340 = vsel %vm1104, %v2295, %v1994
  %v2342 = vsel %vm1138, %v2297, %v2034
  %v2344 = vsel %vm1138, %v2297, %v2036
  %v2346 = vsel %vm1138, %v2297, %v2038
  %v2348 = vsel %vm1138, %v2297, %v2040
  %v2350 = vsel %vm1138, %v2297, %v2042
  %v2351 = vsel %vm1138, %v2299, %v2034
  %v2353 = vsel %vm1138, %v2301, %v2044
  %v2355 = vsel %vm1138, %v2303, %v2046
  %v2356 = vsel %vm1138, %v2305, %v2044
  %v2358 = vsel %vm1138, %v2307, %v2048
  %v2360 = vsel %vm1138, %v2309, %v2050
  %v2362 = vsel %vm1138, %v2311, %v2052
  %v2364 = vsel %vm1138, %v2312, %v2054
  %v2366 = vsel %vm1138, %v2313, %v2056
  %v2367 = vsel %vm1138, %v2315, %v2034
  %v2368 = vsel %vm1138, %v2317, %v2044
  %v2369 = vsel %vm1138, %v2319, %v2046
  %v2370 = vsel %vm1138, %v2321, %v2044
  %v2371 = vsel %vm1138, %v2322, %v2048
  %v2373 = vsel %vm1138, %v2309, %v2058
  %v2375 = vsel %vm1138, %v2311, %v2060
  %v2377 = vsel %vm1138, %v2312, %v2062
  %v2379 = vsel %vm1138, %v2313, %v2064
  %v2380 = vsel %vm1138, %v2324, %v2034
  %v2381 = vsel %vm1138, %v2326, %v2044
  %v2382 = vsel %vm1138, %v2328, %v2046
  %v2383 = vsel %vm1138, %v2330, %v2044
  %v2384 = vsel %vm1138, %v2331, %v2048
  %v2386 = vsel %vm1138, %v2309, %v2066
  %v2388 = vsel %vm1138, %v2311, %v2068
  %v2390 = vsel %vm1138, %v2312, %v2070
  %v2392 = vsel %vm1138, %v2313, %v2072
  %v2393 = vsel %vm1138, %v2333, %v2034
  %v2394 = vsel %vm1138, %v2335, %v2034
  %v2395 = vsel %vm1138, %v2337, %v2034
  %v2396 = vsel %vm1138, %v2339, %v2034
  %v2397 = vsel %vm1138, %v2340, %v2034
  %v2399 = vsel %vm1172, %v2342, %v2074
  %v2401 = vsel %vm1172, %v2344, %v2076
  %v2403 = vsel %vm1172, %v2346, %v2078
  %v2405 = vsel %vm1172, %v2348, %v2080
  %v2407 = vsel %vm1172, %v2350, %v2082
  %v2409 = vsel %vm1172, %v2351, %v2084
  %v2411 = vsel %vm1172, %v2353, %v2086
  %v2413 = vsel %vm1172, %v2355, %v2088
  %v2414 = vsel %vm1172, %v2356, %v2086
  %v2415 = vsel %vm1172, %v2358, %v2074
  %v2417 = vsel %vm1172, %v2360, %v2090
  %v2419 = vsel %vm1172, %v2362, %v2092
  %v2421 = vsel %vm1172, %v2364, %v2094
  %v2423 = vsel %vm1172, %v2366, %v2096
  %v2424 = vsel %vm1172, %v2367, %v2084
  %v2425 = vsel %vm1172, %v2368, %v2086
  %v2426 = vsel %vm1172, %v2369, %v2088
  %v2427 = vsel %vm1172, %v2370, %v2086
  %v2428 = vsel %vm1172, %v2371, %v2074
  %v2430 = vsel %vm1172, %v2373, %v2098
  %v2432 = vsel %vm1172, %v2375, %v2100
  %v2434 = vsel %vm1172, %v2377, %v2102
  %v2436 = vsel %vm1172, %v2379, %v2104
  %v2437 = vsel %vm1172, %v2380, %v2084
  %v2438 = vsel %vm1172, %v2381, %v2086
  %v2439 = vsel %vm1172, %v2382, %v2088
  %v2440 = vsel %vm1172, %v2383, %v2086
  %v2441 = vsel %vm1172, %v2384, %v2074
  %v2443 = vsel %vm1172, %v2386, %v2106
  %v2445 = vsel %vm1172, %v2388, %v2108
  %v2447 = vsel %vm1172, %v2390, %v2110
  %v2449 = vsel %vm1172, %v2392, %v2112
  %v2450 = vsel %vm1172, %v2393, %v2074
  %v2451 = vsel %vm1172, %v2394, %v2074
  %v2452 = vsel %vm1172, %v2395, %v2074
  %v2453 = vsel %vm1172, %v2396, %v2074
  %v2454 = vsel %vm1172, %v2397, %v2074
  %v2456 = vsel %vm1425, %v2399, %v2114
  %v2458 = vsel %vm1425, %v2399, %v2116
  %v2460 = vsel %vm1425, %v2401, %v2118
  %v2462 = vsel %vm1425, %v2403, %v2120
  %v2464 = vsel %vm1425, %v2405, %v2122
  %v2465 = vsel %vm1425, %v2407, %v2114
  %v2467 = vsel %vm1425, %v2409, %v2124
  %v2469 = vsel %vm1425, %v2411, %v2126
  %v2470 = vsel %vm1425, %v2413, %v2124
  %v2472 = vsel %vm1425, %v2414, %v2128
  %v2474 = vsel %vm1425, %v2415, %v2130
  %v2476 = vsel %vm1425, %v2417, %v2132
  %v2478 = vsel %vm1425, %v2419, %v2134
  %v2480 = vsel %vm1425, %v2421, %v2136
  %v2481 = vsel %vm1425, %v2423, %v2114
  %v2482 = vsel %vm1425, %v2424, %v2124
  %v2483 = vsel %vm1425, %v2425, %v2126
  %v2484 = vsel %vm1425, %v2426, %v2124
  %v2485 = vsel %vm1425, %v2427, %v2128
  %v2487 = vsel %vm1425, %v2428, %v2138
  %v2489 = vsel %vm1425, %v2430, %v2140
  %v2491 = vsel %vm1425, %v2432, %v2142
  %v2493 = vsel %vm1425, %v2434, %v2144
  %v2494 = vsel %vm1425, %v2436, %v2114
  %v2495 = vsel %vm1425, %v2437, %v2124
  %v2496 = vsel %vm1425, %v2438, %v2126
  %v2497 = vsel %vm1425, %v2439, %v2124
  %v2498 = vsel %vm1425, %v2440, %v2128
  %v2500 = vsel %vm1425, %v2441, %v2146
  %v2502 = vsel %vm1425, %v2443, %v2148
  %v2504 = vsel %vm1425, %v2445, %v2150
  %v2506 = vsel %vm1425, %v2447, %v2152
  %v2507 = vsel %vm1425, %v2449, %v2114
  %v2508 = vsel %vm1425, %v2450, %v2114
  %v2509 = vsel %vm1425, %v2451, %v2114
  %v2510 = vsel %vm1425, %v2452, %v2114
  %v2511 = vsel %vm1425, %v2453, %v2114
  %v2512 = vsel %vm1425, %v2454, %v2114
  %v2514 = vsel %vm1427, %v2456, %v2154
  %v2516 = vsel %vm1427, %v2456, %v2156
  %v2518 = vsel %vm1427, %v2456, %v2158
  %v2520 = vsel %vm1427, %v2456, %v2160
  %v2522 = vsel %vm1427, %v2458, %v2162
  %v2524 = vsel %vm1427, %v2460, %v2164
  %v2526 = vsel %vm1427, %v2462, %v2166
  %v2528 = vsel %vm1427, %v2464, %v2168
  %v2529 = vsel %vm1427, %v2465, %v2166
  %v2530 = vsel %vm1427, %v2467, %v2154
  %v2532 = vsel %vm1427, %v2469, %v2170
  %v2534 = vsel %vm1427, %v2470, %v2172
  %v2536 = vsel %vm1427, %v2472, %v2174
  %v2538 = vsel %vm1427, %v2474, %v2176
  %v2539 = vsel %vm1427, %v2476, %v2164
  %v2540 = vsel %vm1427, %v2478, %v2166
  %v2541 = vsel %vm1427, %v2480, %v2168
  %v2542 = vsel %vm1427, %v2481, %v2166
  %v2543 = vsel %vm1427, %v2482, %v2154
  %v2545 = vsel %vm1427, %v2483, %v2178
  %v2547 = vsel %vm1427, %v2484, %v2180
  %v2549 = vsel %vm1427, %v2485, %v2182
  %v2551 = vsel %vm1427, %v2487, %v2184
  %v2552 = vsel %vm1427, %v2489, %v2164
  %v2553 = vsel %vm1427, %v2491, %v2166
  %v2554 = vsel %vm1427, %v2493, %v2168
  %v2555 = vsel %vm1427, %v2494, %v2166
  %v2556 = vsel %vm1427, %v2495, %v2154
  %v2558 = vsel %vm1427, %v2496, %v2186
  %v2560 = vsel %vm1427, %v2497, %v2188
  %v2562 = vsel %vm1427, %v2498, %v2190
  %v2564 = vsel %vm1427, %v2500, %v2192
  %v2565 = vsel %vm1427, %v2502, %v2154
  %v2566 = vsel %vm1427, %v2504, %v2154
  %v2567 = vsel %vm1427, %v2506, %v2154
  %v2568 = vsel %vm1427, %v2507, %v2154
  %v2569 = vsel %vm1427, %v2508, %v2154
  %v2570 = vsel %vm1427, %v2509, %v2154
  %v2571 = vsel %vm1427, %v2510, %v2154
  %v2572 = vsel %vm1427, %v2511, %v2154
  %v2573 = vsel %vm1427, %v2512, %v2154
  %v2575 = vsel %vm1429, %v2514, %v2194
  %v2578 = vsel %vm1429, %v2516, %v2196
  %v2581 = vsel %vm1429, %v2518, %v2198
  %v2584 = vsel %vm1429, %v2520, %v2200
  %v2587 = vsel %vm1429, %v2522, %v2202
  %v2590 = vsel %vm1429, %v2524, %v2204
  %v2593 = vsel %vm1429, %v2526, %v2206
  %v2595 = vsel %vm1429, %v2528, %v2204
  %v2598 = vsel %vm1429, %v2529, %v2208
  %v2601 = vsel %vm1429, %v2530, %v2210
  %v2604 = vsel %vm1429, %v2532, %v2212
  %v2607 = vsel %vm1429, %v2534, %v2214
  %v2610 = vsel %vm1429, %v2536, %v2216
  %v2612 = vsel %vm1429, %v2538, %v2202
  %v2614 = vsel %vm1429, %v2539, %v2204
  %v2616 = vsel %vm1429, %v2540, %v2206
  %v2618 = vsel %vm1429, %v2541, %v2204
  %v2620 = vsel %vm1429, %v2542, %v2208
  %v2623 = vsel %vm1429, %v2543, %v2218
  %v2626 = vsel %vm1429, %v2545, %v2220
  %v2629 = vsel %vm1429, %v2547, %v2222
  %v2632 = vsel %vm1429, %v2549, %v2224
  %v2634 = vsel %vm1429, %v2551, %v2202
  %v2636 = vsel %vm1429, %v2552, %v2204
  %v2638 = vsel %vm1429, %v2553, %v2206
  %v2640 = vsel %vm1429, %v2554, %v2204
  %v2642 = vsel %vm1429, %v2555, %v2208
  %v2645 = vsel %vm1429, %v2556, %v2226
  %v2648 = vsel %vm1429, %v2558, %v2228
  %v2651 = vsel %vm1429, %v2560, %v2230
  %v2654 = vsel %vm1429, %v2562, %v2232
  %v2656 = vsel %vm1429, %v2564, %v2202
  %v2658 = vsel %vm1429, %v2565, %v2202
  %v2660 = vsel %vm1429, %v2566, %v2202
  %v2662 = vsel %vm1429, %v2567, %v2202
  %v2664 = vsel %vm1429, %v2568, %v2202
  %v2666 = vsel %vm1429, %v2569, %v2202
  %v2668 = vsel %vm1429, %v2570, %v2202
  %v2670 = vsel %vm1429, %v2571, %v2202
  %v2672 = vsel %vm1429, %v2572, %v2202
  %v2674 = vsel %vm1429, %v2573, %v2202
  %v2676 = vld [vmem:[%s10] sm:$0xf]
  %v2677 = vld [vmem:[%s10 + $0x4] sm:$0xf]
  %v2678 = vld [vmem:[%s10 + $0x8] sm:$0xf]
  %v2679 = vld [vmem:[%s10 + $0xc] sm:$0xf]
  %v2680 = vld [vmem:[%s10 + $0x10] sm:$0xf]
  %v2681 = vld [vmem:[%s10 + $0x14] sm:$0xf]
  %v2682 = vld [vmem:[%s10 + $0x18] sm:$0xf]
  %v2683 = vld [vmem:[%s10 + $0x1c] sm:$0xf]
  %v2684 = vld [vmem:[%s10 + $0x20] sm:$0xf]
  %v2685 = vld [vmem:[%s10 + $0x24] sm:$0xf]
  %v2686 = vld [vmem:[%s10 + $0x28] sm:$0xf]
  %v2687 = vld [vmem:[%s10 + $0x2c] sm:$0xf]
  %v2688 = vld [vmem:[%s10 + $0x30] sm:$0xf]
  %v2689 = vld [vmem:[%s10 + $0x34] sm:$0xf]
  %v2690 = vld [vmem:[%s10 + $0x38] sm:$0xf]
  %v2691 = vld [vmem:[%s10 + $0x3c] sm:$0xf]
  %v2692 = vld [vmem:[%s10 + $0x40] sm:$0xf]
  %v2693 = vld [vmem:[%s10 + $0x44] sm:$0xf]
  %v2694 = vld [vmem:[%s11] sm:$0x1]
  %v2696 = vlaneseq
  %v2697 = vshrl.u32 %v2696, 7
  %v2698 = vsub.s32 0, %v2697
  %v2699 = vrot.slane %v2694, %v2698
  %v2719 = vunpack.c.l.b16 %v2676
  %v2720 = vunpack.c.l.b16 %v2677
  %v2721 = vunpack.c.l.b16 %v2678
  %v2722 = vunpack.c.l.b16 %v2679
  %v2723 = vunpack.c.l.b16 %v2680
  %v2724 = vunpack.c.l.b16 %v2681
  %v2725 = vunpack.c.l.b16 %v2682
  %v2726 = vunpack.c.l.b16 %v2683
  %v2727 = vunpack.c.l.b16 %v2684
  %v2728 = vunpack.c.l.b16 %v2685
  %v2729 = vunpack.c.l.b16 %v2686
  %v2730 = vunpack.c.l.b16 %v2687
  %v2731 = vunpack.c.l.b16 %v2688
  %v2732 = vunpack.c.l.b16 %v2689
  %v2733 = vunpack.c.l.b16 %v2690
  %v2734 = vunpack.c.l.b16 %v2691
  %v2735 = vunpack.c.l.b16 %v2692
  %v2736 = vunpack.c.l.b16 %v2693
  %v2737 = vpack.c.b16 %v2720, %v2719
  %v2738 = vpack.c.b16 %v2722, %v2721
  %v2739 = vpack.c.b16 %v2724, %v2723
  %v2740 = vpack.c.b16 %v2726, %v2725
  %v2741 = vpack.c.b16 %v2728, %v2727
  %v2742 = vpack.c.b16 %v2730, %v2729
  %v2743 = vpack.c.b16 %v2732, %v2731
  %v2744 = vpack.c.b16 %v2734, %v2733
  %v2745 = vpack.c.b16 %v2736, %v2735
  %v2755 = vsel %vm1072, %v1916, 0
  %v2757 = vsel %vm1072, %v1917, 0
  %v2759 = vsel %vm1072, %v1918, 0
  %v2761 = vsel %vm1072, %v1919, 0
  %v2763 = vsel %vm1072, %v1920, 0
  %v2765 = vsel %vm1072, %v1921, 0
  %v2767 = vsel %vm1072, %v1922, 0
  %v2769 = vsel %vm1072, %v877, 0
  %v2771 = vsel %vm1072, %v1923, 0
  %v2773 = vsel %vm1072, %v1924, 0
  %v2775 = vsel %vm1072, %v1925, 0
  %v2777 = vsel %vm1072, %v1926, 0
  %v2779 = vsel %vm1072, %v1927, 0
  %v2781 = vsel %vm1072, %v1928, 0
  %v2783 = vsel %vm1072, %v1929, 0
  %v2785 = vsel %vm1072, %v1930, 0
  %v2787 = vsel %vm1072, %v1931, 0
  %v2789 = vsel %vm1072, %v1932, 0
  %v2791 = vsel %vm1072, %v1933, 0
  %v2794 = vsel %vm1072, %v1992, 0
  %2796 = vmatprep.subr.bf16.mxu0 0
  %2797 = vmatpush1.bf16.msra.mxu0 %v2737
  %2798 = vmatprep.subr.bf16.mxu0 0
  %2799 = vmatpush1.bf16.msra.mxu0 %v2738
  %2800 = vmatprep.subr.bf16.mxu0 0
  %2801 = vmatpush1.bf16.msra.mxu0 %v2739
  %2802 = vmatprep.subr.bf16.mxu0 0
  %2803 = vmatpush1.bf16.msra.mxu0 %v2740
  %2804 = vmatprep.subr.bf16.mxu0 0
  %2805 = vmatpush1.bf16.msra.mxu0 %v2741
  %2806 = vmatprep.subr.bf16.mxu0 0
  %2807 = vmatpush1.bf16.msra.mxu0 %v2742
  %2808 = vmatprep.subr.bf16.mxu0 0
  %2809 = vmatpush1.bf16.msra.mxu0 %v2743
  %2810 = vmatprep.subr.bf16.mxu0 0
  %2811 = vmatpush1.bf16.msra.mxu0 %v2744
  %2812 = vmatprep.subr.bf16.mxu0 0
  %2813 = vmatpush1.bf16.msra.mxu0 %v2745
  %2814 = vmatprep.subr.bf16.mxu0 0
  %2815 = vmatpush1.bf16.msra.mxu0 0
  %2816 = vmatprep.subr.bf16.mxu0 0
  %2817 = vmatpush1.bf16.msra.mxu0 0
  %2818 = vmatprep.subr.bf16.mxu0 0
  %2819 = vmatpush1.bf16.msra.mxu0 0
  %2820 = vmatprep.subr.bf16.mxu0 0
  %2821 = vmatpush1.bf16.msra.mxu0 0
  %2822 = vmatprep.subr.bf16.mxu0 0
  %2823 = vmatpush1.bf16.msra.mxu0 0
  %2824 = vmatprep.subr.bf16.mxu0 0
  %2825 = vmatpush1.bf16.msra.mxu0 0
  %2826 = vmatprep.subr.bf16.mxu0 0
  %2827 = vmatpush1.bf16.msra.mxu0 0
  %2828 = vmatprep.mubr.bf16.mxu0 %v2755
  %2829 = vmatmul.mubr.bf16.gmra.mrb[0].mxu0 %v2575
  %v2830 = vpop.f32.mrb[0].mxu0
  %v2831 = vadd.f32 %v2699, %v2830
  %v2832 = vpop.f32.mrb[0].mxu0
  %v2833 = vpop.f32.mrb[0].mxu0
  %v2834 = vadd.f32 %v2699, %v2833
  %v2835 = vpop.f32.mrb[0].mxu0
  %2836 = vmatprep.mubr.bf16.mxu0 %v2757
  %2837 = vmatmul.mubr.bf16.gmra.mrb[0].mxu0 %v2578
  %v2838 = vpop.f32.mrb[0].mxu0
  %v2839 = vadd.f32 %v2699, %v2838
  %v2840 = vpop.f32.mrb[0].mxu0
  %v2841 = vpop.f32.mrb[0].mxu0
  %v2842 = vadd.f32 %v2699, %v2841
  %v2843 = vpop.f32.mrb[0].mxu0
  %2844 = vmatprep.mubr.bf16.mxu0 %v2759
  %2845 = vmatmul.mubr.bf16.gmra.mrb[0].mxu0 %v2581
  %v2846 = vpop.f32.mrb[0].mxu0
  %v2847 = vadd.f32 %v2699, %v2846
  %v2848 = vpop.f32.mrb[0].mxu0
  %v2849 = vpop.f32.mrb[0].mxu0
  %v2850 = vadd.f32 %v2699, %v2849
  %v2851 = vpop.f32.mrb[0].mxu0
  %2852 = vmatprep.mubr.bf16.mxu0 %v2761
  %2853 = vmatmul.mubr.bf16.gmra.mrb[0].mxu0 %v2584
  %v2854 = vpop.f32.mrb[0].mxu0
  %v2855 = vadd.f32 %v2699, %v2854
  %v2856 = vpop.f32.mrb[0].mxu0
  %v2857 = vpop.f32.mrb[0].mxu0
  %v2858 = vadd.f32 %v2699, %v2857
  %v2859 = vpop.f32.mrb[0].mxu0
  %2860 = vmatprep.mubr.bf16.mxu0 %v2763
  %2861 = vmatmul.mubr.bf16.gmra.mrb[0].mxu0 %v2587
  %v2862 = vpop.f32.mrb[0].mxu0
  %v2863 = vadd.f32 %v2699, %v2862
  %v2864 = vpop.f32.mrb[0].mxu0
  %v2865 = vpop.f32.mrb[0].mxu0
  %v2866 = vadd.f32 %v2699, %v2865
  %v2867 = vpop.f32.mrb[0].mxu0
  %2868 = vmatprep.mubr.bf16.mxu0 %v2765
  %2869 = vmatmul.mubr.bf16.gmra.mrb[0].mxu0 %v2590
  %v2870 = vpop.f32.mrb[0].mxu0
  %v2871 = vadd.f32 %v2699, %v2870
  %v2872 = vpop.f32.mrb[0].mxu0
  %v2873 = vpop.f32.mrb[0].mxu0
  %v2874 = vadd.f32 %v2699, %v2873
  %v2875 = vpop.f32.mrb[0].mxu0
  %2876 = vmatprep.mubr.bf16.mxu0 %v2767
  %2877 = vmatmul.mubr.bf16.gmra.mrb[0].mxu0 %v2593
  %v2878 = vpop.f32.mrb[0].mxu0
  %v2879 = vadd.f32 %v2699, %v2878
  %v2880 = vpop.f32.mrb[0].mxu0
  %v2881 = vpop.f32.mrb[0].mxu0
  %v2882 = vadd.f32 %v2699, %v2881
  %v2883 = vpop.f32.mrb[0].mxu0
  %2884 = vmatprep.mubr.bf16.mxu0 %v2765
  %2885 = vmatmul.mubr.bf16.gmra.mrb[0].mxu0 %v2595
  %v2886 = vpop.f32.mrb[0].mxu0
  %v2887 = vadd.f32 %v2699, %v2886
  %v2888 = vpop.f32.mrb[0].mxu0
  %v2889 = vpop.f32.mrb[0].mxu0
  %v2890 = vadd.f32 %v2699, %v2889
  %v2891 = vpop.f32.mrb[0].mxu0
  %2892 = vmatprep.mubr.bf16.mxu0 %v2769
  %2893 = vmatmul.mubr.bf16.gmra.mrb[0].mxu0 %v2598
  %v2894 = vpop.f32.mrb[0].mxu0
  %v2895 = vadd.f32 %v2699, %v2894
  %v2896 = vpop.f32.mrb[0].mxu0
  %v2897 = vpop.f32.mrb[0].mxu0
  %v2898 = vadd.f32 %v2699, %v2897
  %v2899 = vpop.f32.mrb[0].mxu0
  %2900 = vmatprep.mubr.bf16.mxu0 %v2771
  %2901 = vmatmul.mubr.bf16.gmra.mrb[0].mxu0 %v2601
  %v2902 = vpop.f32.mrb[0].mxu0
  %v2903 = vadd.f32 %v2699, %v2902
  %v2904 = vpop.f32.mrb[0].mxu0
  %v2905 = vpop.f32.mrb[0].mxu0
  %v2906 = vadd.f32 %v2699, %v2905
  %v2907 = vpop.f32.mrb[0].mxu0
  %2908 = vmatprep.mubr.bf16.mxu0 %v2773
  %2909 = vmatmul.mubr.bf16.gmra.mrb[0].mxu0 %v2604
  %v2910 = vpop.f32.mrb[0].mxu0
  %v2911 = vadd.f32 %v2699, %v2910
  %v2912 = vpop.f32.mrb[0].mxu0
  %v2913 = vpop.f32.mrb[0].mxu0
  %v2914 = vadd.f32 %v2699, %v2913
  %v2915 = vpop.f32.mrb[0].mxu0
  %2916 = vmatprep.mubr.bf16.mxu0 %v2775
  %2917 = vmatmul.mubr.bf16.gmra.mrb[0].mxu0 %v2607
  %v2918 = vpop.f32.mrb[0].mxu0
  %v2919 = vadd.f32 %v2699, %v2918
  %v2920 = vpop.f32.mrb[0].mxu0
  %v2921 = vpop.f32.mrb[0].mxu0
  %v2922 = vadd.f32 %v2699, %v2921
  %v2923 = vpop.f32.mrb[0].mxu0
  %2924 = vmatprep.mubr.bf16.mxu0 %v2777
  %2925 = vmatmul.mubr.bf16.gmra.mrb[0].mxu0 %v2610
  %v2926 = vpop.f32.mrb[0].mxu0
  %v2927 = vadd.f32 %v2699, %v2926
  %v2928 = vpop.f32.mrb[0].mxu0
  %v2929 = vpop.f32.mrb[0].mxu0
  %v2930 = vadd.f32 %v2699, %v2929
  %v2931 = vpop.f32.mrb[0].mxu0
  %2932 = vmatprep.mubr.bf16.mxu0 %v2763
  %2933 = vmatmul.mubr.bf16.gmra.mrb[0].mxu0 %v2612
  %v2934 = vpop.f32.mrb[0].mxu0
  %v2935 = vadd.f32 %v2699, %v2934
  %v2936 = vpop.f32.mrb[0].mxu0
  %v2937 = vpop.f32.mrb[0].mxu0
  %v2938 = vadd.f32 %v2699, %v2937
  %v2939 = vpop.f32.mrb[0].mxu0
  %2940 = vmatprep.mubr.bf16.mxu0 %v2765
  %2941 = vmatmul.mubr.bf16.gmra.mrb[0].mxu0 %v2614
  %v2942 = vpop.f32.mrb[0].mxu0
  %v2943 = vadd.f32 %v2699, %v2942
  %v2944 = vpop.f32.mrb[0].mxu0
  %v2945 = vpop.f32.mrb[0].mxu0
  %v2946 = vadd.f32 %v2699, %v2945
  %v2947 = vpop.f32.mrb[0].mxu0
  %2948 = vmatprep.mubr.bf16.mxu0 %v2767
  %2949 = vmatmul.mubr.bf16.gmra.mrb[0].mxu0 %v2616
  %v2950 = vpop.f32.mrb[0].mxu0
  %v2951 = vadd.f32 %v2699, %v2950
  %v2952 = vpop.f32.mrb[0].mxu0
  %v2953 = vpop.f32.mrb[0].mxu0
  %v2954 = vadd.f32 %v2699, %v2953
  %v2955 = vpop.f32.mrb[0].mxu0
  %2956 = vmatprep.mubr.bf16.mxu0 %v2765
  %2957 = vmatmul.mubr.bf16.gmra.mrb[0].mxu0 %v2618
  %v2958 = vpop.f32.mrb[0].mxu0
  %v2959 = vadd.f32 %v2699, %v2958
  %v2960 = vpop.f32.mrb[0].mxu0
  %v2961 = vpop.f32.mrb[0].mxu0
  %v2962 = vadd.f32 %v2699, %v2961
  %v2963 = vpop.f32.mrb[0].mxu0
  %2964 = vmatprep.mubr.bf16.mxu0 %v2769
  %2965 = vmatmul.mubr.bf16.gmra.mrb[0].mxu0 %v2620
  %v2966 = vpop.f32.mrb[0].mxu0
  %v2967 = vadd.f32 %v2699, %v2966
  %v2968 = vpop.f32.mrb[0].mxu0
  %v2969 = vpop.f32.mrb[0].mxu0
  %v2970 = vadd.f32 %v2699, %v2969
  %v2971 = vpop.f32.mrb[0].mxu0
  %2972 = vmatprep.mubr.bf16.mxu0 %v2779
  %2973 = vmatmul.mubr.bf16.gmra.mrb[0].mxu0 %v2623
  %v2974 = vpop.f32.mrb[0].mxu0
  %v2975 = vadd.f32 %v2699, %v2974
  %v2976 = vpop.f32.mrb[0].mxu0
  %v2977 = vpop.f32.mrb[0].mxu0
  %v2978 = vadd.f32 %v2699, %v2977
  %v2979 = vpop.f32.mrb[0].mxu0
  %2980 = vmatprep.mubr.bf16.mxu0 %v2781
  %2981 = vmatmul.mubr.bf16.gmra.mrb[0].mxu0 %v2626
  %v2982 = vpop.f32.mrb[0].mxu0
  %v2983 = vadd.f32 %v2699, %v2982
  %v2984 = vpop.f32.mrb[0].mxu0
  %v2985 = vpop.f32.mrb[0].mxu0
  %v2986 = vadd.f32 %v2699, %v2985
  %v2987 = vpop.f32.mrb[0].mxu0
  %2988 = vmatprep.mubr.bf16.mxu0 %v2783
  %2989 = vmatmul.mubr.bf16.gmra.mrb[0].mxu0 %v2629
  %v2990 = vpop.f32.mrb[0].mxu0
  %v2991 = vadd.f32 %v2699, %v2990
  %v2992 = vpop.f32.mrb[0].mxu0
  %v2993 = vpop.f32.mrb[0].mxu0
  %v2994 = vadd.f32 %v2699, %v2993
  %v2995 = vpop.f32.mrb[0].mxu0
  %2996 = vmatprep.mubr.bf16.mxu0 %v2785
  %2997 = vmatmul.mubr.bf16.gmra.mrb[0].mxu0 %v2632
  %v2998 = vpop.f32.mrb[0].mxu0
  %v2999 = vadd.f32 %v2699, %v2998
  %v3000 = vpop.f32.mrb[0].mxu0
  %v3001 = vpop.f32.mrb[0].mxu0
  %v3002 = vadd.f32 %v2699, %v3001
  %v3003 = vpop.f32.mrb[0].mxu0
  %3004 = vmatprep.mubr.bf16.mxu0 %v2763
  %3005 = vmatmul.mubr.bf16.gmra.mrb[0].mxu0 %v2634
  %v3006 = vpop.f32.mrb[0].mxu0
  %v3007 = vadd.f32 %v2699, %v3006
  %v3008 = vpop.f32.mrb[0].mxu0
  %v3009 = vpop.f32.mrb[0].mxu0
  %v3010 = vadd.f32 %v2699, %v3009
  %v3011 = vpop.f32.mrb[0].mxu0
  %3012 = vmatprep.mubr.bf16.mxu0 %v2765
  %3013 = vmatmul.mubr.bf16.gmra.mrb[0].mxu0 %v2636
  %v3014 = vpop.f32.mrb[0].mxu0
  %v3015 = vadd.f32 %v2699, %v3014
  %v3016 = vpop.f32.mrb[0].mxu0
  %v3017 = vpop.f32.mrb[0].mxu0
  %v3018 = vadd.f32 %v2699, %v3017
  %v3019 = vpop.f32.mrb[0].mxu0
  %3020 = vmatprep.mubr.bf16.mxu0 %v2767
  %3021 = vmatmul.mubr.bf16.gmra.mrb[0].mxu0 %v2638
  %v3022 = vpop.f32.mrb[0].mxu0
  %v3023 = vadd.f32 %v2699, %v3022
  %v3024 = vpop.f32.mrb[0].mxu0
  %v3025 = vpop.f32.mrb[0].mxu0
  %v3026 = vadd.f32 %v2699, %v3025
  %v3027 = vpop.f32.mrb[0].mxu0
  %3028 = vmatprep.mubr.bf16.mxu0 %v2765
  %3029 = vmatmul.mubr.bf16.gmra.mrb[0].mxu0 %v2640
  %v3030 = vpop.f32.mrb[0].mxu0
  %v3031 = vadd.f32 %v2699, %v3030
  %v3032 = vpop.f32.mrb[0].mxu0
  %v3033 = vpop.f32.mrb[0].mxu0
  %v3034 = vadd.f32 %v2699, %v3033
  %v3035 = vpop.f32.mrb[0].mxu0
  %3036 = vmatprep.mubr.bf16.mxu0 %v2769
  %3037 = vmatmul.mubr.bf16.gmra.mrb[0].mxu0 %v2642
  %v3038 = vpop.f32.mrb[0].mxu0
  %v3039 = vadd.f32 %v2699, %v3038
  %v3040 = vpop.f32.mrb[0].mxu0
  %v3041 = vpop.f32.mrb[0].mxu0
  %v3042 = vadd.f32 %v2699, %v3041
  %v3043 = vpop.f32.mrb[0].mxu0
  %3044 = vmatprep.mubr.bf16.mxu0 %v2787
  %3045 = vmatmul.mubr.bf16.gmra.mrb[0].mxu0 %v2645
  %v3046 = vpop.f32.mrb[0].mxu0
  %v3047 = vadd.f32 %v2699, %v3046
  %v3048 = vpop.f32.mrb[0].mxu0
  %v3049 = vpop.f32.mrb[0].mxu0
  %v3050 = vadd.f32 %v2699, %v3049
  %v3051 = vpop.f32.mrb[0].mxu0
  %3052 = vmatprep.mubr.bf16.mxu0 %v2789
  %3053 = vmatmul.mubr.bf16.gmra.mrb[0].mxu0 %v2648
  %v3054 = vpop.f32.mrb[0].mxu0
  %v3055 = vadd.f32 %v2699, %v3054
  %v3056 = vpop.f32.mrb[0].mxu0
  %v3057 = vpop.f32.mrb[0].mxu0
  %v3058 = vadd.f32 %v2699, %v3057
  %v3059 = vpop.f32.mrb[0].mxu0
  %3060 = vmatprep.mubr.bf16.mxu0 %v2791
  %3061 = vmatmul.mubr.bf16.gmra.mrb[0].mxu0 %v2651
  %v3062 = vpop.f32.mrb[0].mxu0
  %v3063 = vadd.f32 %v2699, %v3062
  %v3064 = vpop.f32.mrb[0].mxu0
  %v3065 = vpop.f32.mrb[0].mxu0
  %v3066 = vadd.f32 %v2699, %v3065
  %v3067 = vpop.f32.mrb[0].mxu0
  %3068 = vmatprep.mubr.bf16.mxu0 %v2794
  %3069 = vmatmul.mubr.bf16.gmra.mrb[0].mxu0 %v2654
  %v3070 = vpop.f32.mrb[0].mxu0
  %v3071 = vadd.f32 %v2699, %v3070
  %v3072 = vpop.f32.mrb[0].mxu0
  %v3073 = vpop.f32.mrb[0].mxu0
  %v3074 = vadd.f32 %v2699, %v3073
  %v3075 = vpop.f32.mrb[0].mxu0
  %3076 = vmatprep.mubr.bf16.mxu0 %v2769
  %3077 = vmatmul.mubr.bf16.gmra.mrb[0].mxu0 %v2656
  %v3078 = vpop.f32.mrb[0].mxu0
  %v3079 = vadd.f32 %v2699, %v3078
  %v3080 = vpop.f32.mrb[0].mxu0
  %v3081 = vpop.f32.mrb[0].mxu0
  %v3082 = vadd.f32 %v2699, %v3081
  %v3083 = vpop.f32.mrb[0].mxu0
  %3084 = vmatprep.mubr.bf16.mxu0 %v2769
  %3085 = vmatmul.mubr.bf16.gmra.mrb[0].mxu0 %v2658
  %v3086 = vpop.f32.mrb[0].mxu0
  %v3087 = vadd.f32 %v2699, %v3086
  %v3088 = vpop.f32.mrb[0].mxu0
  %v3089 = vpop.f32.mrb[0].mxu0
  %v3090 = vadd.f32 %v2699, %v3089
  %v3091 = vpop.f32.mrb[0].mxu0
  %3092 = vmatprep.mubr.bf16.mxu0 %v2769
  %3093 = vmatmul.mubr.bf16.gmra.mrb[0].mxu0 %v2660
  %v3094 = vpop.f32.mrb[0].mxu0
  %v3095 = vadd.f32 %v2699, %v3094
  %v3096 = vpop.f32.mrb[0].mxu0
  %v3097 = vpop.f32.mrb[0].mxu0
  %v3098 = vadd.f32 %v2699, %v3097
  %v3099 = vpop.f32.mrb[0].mxu0
  %3100 = vmatprep.mubr.bf16.mxu0 %v2769
  %3101 = vmatmul.mubr.bf16.gmra.mrb[0].mxu0 %v2662
  %v3102 = vpop.f32.mrb[0].mxu0
  %v3103 = vadd.f32 %v2699, %v3102
  %v3104 = vpop.f32.mrb[0].mxu0
  %v3105 = vpop.f32.mrb[0].mxu0
  %v3106 = vadd.f32 %v2699, %v3105
  %v3107 = vpop.f32.mrb[0].mxu0
  %3108 = vmatprep.mubr.bf16.mxu0 %v2769
  %3109 = vmatmul.mubr.bf16.gmra.mrb[0].mxu0 %v2664
  %v3110 = vpop.f32.mrb[0].mxu0
  %v3111 = vadd.f32 %v2699, %v3110
  %v3112 = vpop.f32.mrb[0].mxu0
  %v3113 = vpop.f32.mrb[0].mxu0
  %v3114 = vadd.f32 %v2699, %v3113
  %v3115 = vpop.f32.mrb[0].mxu0
  %3116 = vmatprep.mubr.bf16.mxu0 %v2769
  %3117 = vmatmul.mubr.bf16.gmra.mrb[0].mxu0 %v2666
  %v3118 = vpop.f32.mrb[0].mxu0
  %v3119 = vadd.f32 %v2699, %v3118
  %v3120 = vpop.f32.mrb[0].mxu0
  %v3121 = vpop.f32.mrb[0].mxu0
  %v3122 = vadd.f32 %v2699, %v3121
  %v3123 = vpop.f32.mrb[0].mxu0
  %3124 = vmatprep.mubr.bf16.mxu0 %v2769
  %3125 = vmatmul.mubr.bf16.gmra.mrb[0].mxu0 %v2668
  %v3126 = vpop.f32.mrb[0].mxu0
  %v3127 = vadd.f32 %v2699, %v3126
  %v3128 = vpop.f32.mrb[0].mxu0
  %v3129 = vpop.f32.mrb[0].mxu0
  %v3130 = vadd.f32 %v2699, %v3129
  %v3131 = vpop.f32.mrb[0].mxu0
  %3132 = vmatprep.mubr.bf16.mxu0 %v2769
  %3133 = vmatmul.mubr.bf16.gmra.mrb[0].mxu0 %v2670
  %v3134 = vpop.f32.mrb[0].mxu0
  %v3135 = vadd.f32 %v2699, %v3134
  %v3136 = vpop.f32.mrb[0].mxu0
  %v3137 = vpop.f32.mrb[0].mxu0
  %v3138 = vadd.f32 %v2699, %v3137
  %v3139 = vpop.f32.mrb[0].mxu0
  %3140 = vmatprep.mubr.bf16.mxu0 %v2769
  %3141 = vmatmul.mubr.bf16.gmra.mrb[0].mxu0 %v2672
  %v3142 = vpop.f32.mrb[0].mxu0
  %v3143 = vadd.f32 %v2699, %v3142
  %v3144 = vpop.f32.mrb[0].mxu0
  %v3145 = vpop.f32.mrb[0].mxu0
  %v3146 = vadd.f32 %v2699, %v3145
  %v3147 = vpop.f32.mrb[0].mxu0
  %3148 = vmatprep.mubr.bf16.mxu0 %v2769
  %3149 = vmatmul.mubr.bf16.gmra.mrb[0].mxu0 %v2674
  %v3150 = vpop.f32.mrb[0].mxu0
  %v3151 = vadd.f32 %v2699, %v3150
  %v3152 = vpop.f32.mrb[0].mxu0
  %v3153 = vpop.f32.mrb[0].mxu0
  %v3154 = vpop.f32.mrb[0].mxu0
  %3155 = vdwg.mxu0
  %v3156 = vmax.f32 %v2831, 0.0
  %v3157 = vmax.f32 %v2834, 0.0
  %v3158 = vmax.f32 %v2839, 0.0
  %v3159 = vmax.f32 %v2842, 0.0
  %v3160 = vmax.f32 %v2847, 0.0
  %v3161 = vmax.f32 %v2850, 0.0
  %v3162 = vmax.f32 %v2855, 0.0
  %v3163 = vmax.f32 %v2858, 0.0
  %v3164 = vmax.f32 %v2863, 0.0
  %v3165 = vmax.f32 %v2866, 0.0
  %v3166 = vmax.f32 %v2871, 0.0
  %v3167 = vmax.f32 %v2874, 0.0
  %v3168 = vmax.f32 %v2879, 0.0
  %v3169 = vmax.f32 %v2882, 0.0
  %v3170 = vmax.f32 %v2887, 0.0
  %v3171 = vmax.f32 %v2890, 0.0
  %v3172 = vmax.f32 %v2895, 0.0
  %v3173 = vmax.f32 %v2898, 0.0
  %v3174 = vmax.f32 %v2903, 0.0
  %v3175 = vmax.f32 %v2906, 0.0
  %v3176 = vmax.f32 %v2911, 0.0
  %v3177 = vmax.f32 %v2914, 0.0
  %v3178 = vmax.f32 %v2919, 0.0
  %v3179 = vmax.f32 %v2922, 0.0
  %v3180 = vmax.f32 %v2927, 0.0
  %v3181 = vmax.f32 %v2930, 0.0
  %v3182 = vmax.f32 %v2935, 0.0
  %v3183 = vmax.f32 %v2938, 0.0
  %v3184 = vmax.f32 %v2943, 0.0
  %v3185 = vmax.f32 %v2946, 0.0
  %v3186 = vmax.f32 %v2951, 0.0
  %v3187 = vmax.f32 %v2954, 0.0
  %v3188 = vmax.f32 %v2959, 0.0
  %v3189 = vmax.f32 %v2962, 0.0
  %v3190 = vmax.f32 %v2967, 0.0
  %v3191 = vmax.f32 %v2970, 0.0
  %v3192 = vmax.f32 %v2975, 0.0
  %v3193 = vmax.f32 %v2978, 0.0
  %v3194 = vmax.f32 %v2983, 0.0
  %v3195 = vmax.f32 %v2986, 0.0
  %v3196 = vmax.f32 %v2991, 0.0
  %v3197 = vmax.f32 %v2994, 0.0
  %v3198 = vmax.f32 %v2999, 0.0
  %v3199 = vmax.f32 %v3002, 0.0
  %v3200 = vmax.f32 %v3007, 0.0
  %v3201 = vmax.f32 %v3010, 0.0
  %v3202 = vmax.f32 %v3015, 0.0
  %v3203 = vmax.f32 %v3018, 0.0
  %v3204 = vmax.f32 %v3023, 0.0
  %v3205 = vmax.f32 %v3026, 0.0
  %v3206 = vmax.f32 %v3031, 0.0
  %v3207 = vmax.f32 %v3034, 0.0
  %v3208 = vmax.f32 %v3039, 0.0
  %v3209 = vmax.f32 %v3042, 0.0
  %v3210 = vmax.f32 %v3047, 0.0
  %v3211 = vmax.f32 %v3050, 0.0
  %v3212 = vmax.f32 %v3055, 0.0
  %v3213 = vmax.f32 %v3058, 0.0
  %v3214 = vmax.f32 %v3063, 0.0
  %v3215 = vmax.f32 %v3066, 0.0
  %v3216 = vmax.f32 %v3071, 0.0
  %v3217 = vmax.f32 %v3074, 0.0
  %v3218 = vmax.f32 %v3079, 0.0
  %v3219 = vmax.f32 %v3082, 0.0
  %v3220 = vmax.f32 %v3087, 0.0
  %v3221 = vmax.f32 %v3090, 0.0
  %v3222 = vmax.f32 %v3095, 0.0
  %v3223 = vmax.f32 %v3098, 0.0
  %v3224 = vmax.f32 %v3103, 0.0
  %v3225 = vmax.f32 %v3106, 0.0
  %v3226 = vmax.f32 %v3111, 0.0
  %v3227 = vmax.f32 %v3114, 0.0
  %v3228 = vmax.f32 %v3119, 0.0
  %v3229 = vmax.f32 %v3122, 0.0
  %v3230 = vmax.f32 %v3127, 0.0
  %v3231 = vmax.f32 %v3130, 0.0
  %v3232 = vmax.f32 %v3135, 0.0
  %v3233 = vmax.f32 %v3138, 0.0
  %v3234 = vmax.f32 %v3143, 0.0
  %v3235 = vmax.f32 %v3146, 0.0
  %v3236 = vmax.f32 %v3151, 0.0
  %3302 = vrot.lane.b32.xlu0 0.0, 8
  %v3303 = vpop.permute.xlu0 %3302
  %3304 = vrot.lane.b32.xlu0 %v3157, 8
  %v3305 = vpop.permute.xlu0 %3304
  %3306 = vrot.lane.b32.xlu0 %v3158, 8
  %v3307 = vpop.permute.xlu0 %3306
  %3308 = vrot.lane.b32.xlu0 %v3159, 8
  %v3309 = vpop.permute.xlu0 %3308
  %3310 = vrot.lane.b32.xlu0 %v3160, 8
  %v3311 = vpop.permute.xlu0 %3310
  %3312 = vrot.lane.b32.xlu0 %v3161, 8
  %v3313 = vpop.permute.xlu0 %3312
  %3314 = vrot.lane.b32.xlu0 %v3162, 8
  %v3315 = vpop.permute.xlu0 %3314
  %3316 = vrot.lane.b32.xlu0 %v3163, 8
  %v3317 = vpop.permute.xlu0 %3316
  %3318 = vrot.lane.b32.xlu0 %v3164, 8
  %v3319 = vpop.permute.xlu0 %3318
  %3320 = vrot.lane.b32.xlu0 %v3166, 8
  %v3321 = vpop.permute.xlu0 %3320
  %3322 = vrot.lane.b32.xlu0 %v3167, 8
  %v3323 = vpop.permute.xlu0 %3322
  %3324 = vrot.lane.b32.xlu0 %v3168, 8
  %v3325 = vpop.permute.xlu0 %3324
  %3326 = vrot.lane.b32.xlu0 %v3169, 8
  %v3327 = vpop.permute.xlu0 %3326
  %3328 = vrot.lane.b32.xlu0 %v3170, 8
  %v3329 = vpop.permute.xlu0 %3328
  %3330 = vrot.lane.b32.xlu0 %v3171, 8
  %v3331 = vpop.permute.xlu0 %3330
  %3332 = vrot.lane.b32.xlu0 %v3172, 8
  %v3333 = vpop.permute.xlu0 %3332
  %3334 = vrot.lane.b32.xlu0 %v3173, 8
  %v3335 = vpop.permute.xlu0 %3334
  %3336 = vrot.lane.b32.xlu0 %v3175, 8
  %v3337 = vpop.permute.xlu0 %3336
  %3338 = vrot.lane.b32.xlu0 %v3176, 8
  %v3339 = vpop.permute.xlu0 %3338
  %3340 = vrot.lane.b32.xlu0 %v3177, 8
  %v3341 = vpop.permute.xlu0 %3340
  %3342 = vrot.lane.b32.xlu0 %v3178, 8
  %v3343 = vpop.permute.xlu0 %3342
  %3344 = vrot.lane.b32.xlu0 %v3179, 8
  %v3345 = vpop.permute.xlu0 %3344
  %3346 = vrot.lane.b32.xlu0 %v3180, 8
  %v3347 = vpop.permute.xlu0 %3346
  %3348 = vrot.lane.b32.xlu0 %v3181, 8
  %v3349 = vpop.permute.xlu0 %3348
  %3350 = vrot.lane.b32.xlu0 %v3182, 8
  %v3351 = vpop.permute.xlu0 %3350
  %3352 = vrot.lane.b32.xlu0 %v3184, 8
  %v3353 = vpop.permute.xlu0 %3352
  %3354 = vrot.lane.b32.xlu0 %v3185, 8
  %v3355 = vpop.permute.xlu0 %3354
  %3356 = vrot.lane.b32.xlu0 %v3186, 8
  %v3357 = vpop.permute.xlu0 %3356
  %3358 = vrot.lane.b32.xlu0 %v3187, 8
  %v3359 = vpop.permute.xlu0 %3358
  %3360 = vrot.lane.b32.xlu0 %v3188, 8
  %v3361 = vpop.permute.xlu0 %3360
  %3362 = vrot.lane.b32.xlu0 %v3189, 8
  %v3363 = vpop.permute.xlu0 %3362
  %3364 = vrot.lane.b32.xlu0 %v3190, 8
  %v3365 = vpop.permute.xlu0 %3364
  %3366 = vrot.lane.b32.xlu0 %v3191, 8
  %v3367 = vpop.permute.xlu0 %3366
  %3368 = vrot.lane.b32.xlu0 %v3193, 8
  %v3369 = vpop.permute.xlu0 %3368
  %3370 = vrot.lane.b32.xlu0 %v3194, 8
  %v3371 = vpop.permute.xlu0 %3370
  %3372 = vrot.lane.b32.xlu0 %v3195, 8
  %v3373 = vpop.permute.xlu0 %3372
  %3374 = vrot.lane.b32.xlu0 %v3196, 8
  %v3375 = vpop.permute.xlu0 %3374
  %3376 = vrot.lane.b32.xlu0 %v3197, 8
  %v3377 = vpop.permute.xlu0 %3376
  %3378 = vrot.lane.b32.xlu0 %v3198, 8
  %v3379 = vpop.permute.xlu0 %3378
  %3380 = vrot.lane.b32.xlu0 %v3199, 8
  %v3381 = vpop.permute.xlu0 %3380
  %3382 = vrot.lane.b32.xlu0 %v3200, 8
  %v3383 = vpop.permute.xlu0 %3382
  %3384 = vrot.lane.b32.xlu0 %v3202, 8
  %v3385 = vpop.permute.xlu0 %3384
  %3386 = vrot.lane.b32.xlu0 %v3203, 8
  %v3387 = vpop.permute.xlu0 %3386
  %3388 = vrot.lane.b32.xlu0 %v3204, 8
  %v3389 = vpop.permute.xlu0 %3388
  %3390 = vrot.lane.b32.xlu0 %v3205, 8
  %v3391 = vpop.permute.xlu0 %3390
  %3392 = vrot.lane.b32.xlu0 %v3206, 8
  %v3393 = vpop.permute.xlu0 %3392
  %3394 = vrot.lane.b32.xlu0 %v3207, 8
  %v3395 = vpop.permute.xlu0 %3394
  %3396 = vrot.lane.b32.xlu0 %v3208, 8
  %v3397 = vpop.permute.xlu0 %3396
  %3398 = vrot.lane.b32.xlu0 %v3209, 8
  %v3399 = vpop.permute.xlu0 %3398
  %3400 = vrot.lane.b32.xlu0 %v3211, 8
  %v3401 = vpop.permute.xlu0 %3400
  %3402 = vrot.lane.b32.xlu0 %v3212, 8
  %v3403 = vpop.permute.xlu0 %3402
  %3404 = vrot.lane.b32.xlu0 %v3213, 8
  %v3405 = vpop.permute.xlu0 %3404
  %3406 = vrot.lane.b32.xlu0 %v3214, 8
  %v3407 = vpop.permute.xlu0 %3406
  %3408 = vrot.lane.b32.xlu0 %v3215, 8
  %v3409 = vpop.permute.xlu0 %3408
  %3410 = vrot.lane.b32.xlu0 %v3216, 8
  %v3411 = vpop.permute.xlu0 %3410
  %3412 = vrot.lane.b32.xlu0 %v3217, 8
  %v3413 = vpop.permute.xlu0 %3412
  %3414 = vrot.lane.b32.xlu0 %v3218, 8
  %v3415 = vpop.permute.xlu0 %3414
  %3416 = vrot.lane.b32.xlu0 %v3220, 8
  %v3417 = vpop.permute.xlu0 %3416
  %3418 = vrot.lane.b32.xlu0 %v3221, 8
  %v3419 = vpop.permute.xlu0 %3418
  %3420 = vrot.lane.b32.xlu0 %v3222, 8
  %v3421 = vpop.permute.xlu0 %3420
  %3422 = vrot.lane.b32.xlu0 %v3223, 8
  %v3423 = vpop.permute.xlu0 %3422
  %3424 = vrot.lane.b32.xlu0 %v3224, 8
  %v3425 = vpop.permute.xlu0 %3424
  %3426 = vrot.lane.b32.xlu0 %v3225, 8
  %v3427 = vpop.permute.xlu0 %3426
  %3428 = vrot.lane.b32.xlu0 %v3226, 8
  %v3429 = vpop.permute.xlu0 %3428
  %3430 = vrot.lane.b32.xlu0 %v3227, 8
  %v3431 = vpop.permute.xlu0 %3430
  %3512 = vrot.lane.b32.xlu0 0.0, 16
  %v3513 = vpop.permute.xlu0 %3512
  %3514 = vrot.lane.b32.xlu0 %v3165, 16
  %v3515 = vpop.permute.xlu0 %3514
  %3516 = vrot.lane.b32.xlu0 %v3166, 16
  %v3517 = vpop.permute.xlu0 %3516
  %3518 = vrot.lane.b32.xlu0 %v3167, 16
  %v3519 = vpop.permute.xlu0 %3518
  %3520 = vrot.lane.b32.xlu0 %v3168, 16
  %v3521 = vpop.permute.xlu0 %3520
  %3522 = vrot.lane.b32.xlu0 %v3169, 16
  %v3523 = vpop.permute.xlu0 %3522
  %3524 = vrot.lane.b32.xlu0 %v3170, 16
  %v3525 = vpop.permute.xlu0 %3524
  %3526 = vrot.lane.b32.xlu0 %v3171, 16
  %v3527 = vpop.permute.xlu0 %3526
  %3528 = vrot.lane.b32.xlu0 %v3172, 16
  %v3529 = vpop.permute.xlu0 %3528
  %3530 = vrot.lane.b32.xlu0 %v3174, 16
  %v3531 = vpop.permute.xlu0 %3530
  %3532 = vrot.lane.b32.xlu0 %v3175, 16
  %v3533 = vpop.permute.xlu0 %3532
  %3534 = vrot.lane.b32.xlu0 %v3176, 16
  %v3535 = vpop.permute.xlu0 %3534
  %3536 = vrot.lane.b32.xlu0 %v3177, 16
  %v3537 = vpop.permute.xlu0 %3536
  %3538 = vrot.lane.b32.xlu0 %v3178, 16
  %v3539 = vpop.permute.xlu0 %3538
  %3540 = vrot.lane.b32.xlu0 %v3179, 16
  %v3541 = vpop.permute.xlu0 %3540
  %3542 = vrot.lane.b32.xlu0 %v3180, 16
  %v3543 = vpop.permute.xlu0 %3542
  %3544 = vrot.lane.b32.xlu0 %v3181, 16
  %v3545 = vpop.permute.xlu0 %3544
  %3546 = vrot.lane.b32.xlu0 %v3183, 16
  %v3547 = vpop.permute.xlu0 %3546
  %3548 = vrot.lane.b32.xlu0 %v3184, 16
  %v3549 = vpop.permute.xlu0 %3548
  %3550 = vrot.lane.b32.xlu0 %v3185, 16
  %v3551 = vpop.permute.xlu0 %3550
  %3552 = vrot.lane.b32.xlu0 %v3186, 16
  %v3553 = vpop.permute.xlu0 %3552
  %3554 = vrot.lane.b32.xlu0 %v3187, 16
  %v3555 = vpop.permute.xlu0 %3554
  %3556 = vrot.lane.b32.xlu0 %v3188, 16
  %v3557 = vpop.permute.xlu0 %3556
  %3558 = vrot.lane.b32.xlu0 %v3189, 16
  %v3559 = vpop.permute.xlu0 %3558
  %3560 = vrot.lane.b32.xlu0 %v3190, 16
  %v3561 = vpop.permute.xlu0 %3560
  %3562 = vrot.lane.b32.xlu0 %v3192, 16
  %v3563 = vpop.permute.xlu0 %3562
  %3564 = vrot.lane.b32.xlu0 %v3193, 16
  %v3565 = vpop.permute.xlu0 %3564
  %3566 = vrot.lane.b32.xlu0 %v3194, 16
  %v3567 = vpop.permute.xlu0 %3566
  %3568 = vrot.lane.b32.xlu0 %v3195, 16
  %v3569 = vpop.permute.xlu0 %3568
  %3570 = vrot.lane.b32.xlu0 %v3196, 16
  %v3571 = vpop.permute.xlu0 %3570
  %3572 = vrot.lane.b32.xlu0 %v3197, 16
  %v3573 = vpop.permute.xlu0 %3572
  %3574 = vrot.lane.b32.xlu0 %v3198, 16
  %v3575 = vpop.permute.xlu0 %3574
  %3576 = vrot.lane.b32.xlu0 %v3199, 16
  %v3577 = vpop.permute.xlu0 %3576
  %3578 = vrot.lane.b32.xlu0 %v3201, 16
  %v3579 = vpop.permute.xlu0 %3578
  %3580 = vrot.lane.b32.xlu0 %v3202, 16
  %v3581 = vpop.permute.xlu0 %3580
  %3582 = vrot.lane.b32.xlu0 %v3203, 16
  %v3583 = vpop.permute.xlu0 %3582
  %3584 = vrot.lane.b32.xlu0 %v3204, 16
  %v3585 = vpop.permute.xlu0 %3584
  %3586 = vrot.lane.b32.xlu0 %v3205, 16
  %v3587 = vpop.permute.xlu0 %3586
  %3588 = vrot.lane.b32.xlu0 %v3206, 16
  %v3589 = vpop.permute.xlu0 %3588
  %3590 = vrot.lane.b32.xlu0 %v3207, 16
  %v3591 = vpop.permute.xlu0 %3590
  %3592 = vrot.lane.b32.xlu0 %v3208, 16
  %v3593 = vpop.permute.xlu0 %3592
  %3594 = vrot.lane.b32.xlu0 %v3210, 16
  %v3595 = vpop.permute.xlu0 %3594
  %3596 = vrot.lane.b32.xlu0 %v3211, 16
  %v3597 = vpop.permute.xlu0 %3596
  %3598 = vrot.lane.b32.xlu0 %v3212, 16
  %v3599 = vpop.permute.xlu0 %3598
  %3600 = vrot.lane.b32.xlu0 %v3213, 16
  %v3601 = vpop.permute.xlu0 %3600
  %3602 = vrot.lane.b32.xlu0 %v3214, 16
  %v3603 = vpop.permute.xlu0 %3602
  %3604 = vrot.lane.b32.xlu0 %v3215, 16
  %v3605 = vpop.permute.xlu0 %3604
  %3606 = vrot.lane.b32.xlu0 %v3216, 16
  %v3607 = vpop.permute.xlu0 %3606
  %3608 = vrot.lane.b32.xlu0 %v3217, 16
  %v3609 = vpop.permute.xlu0 %3608
  %3610 = vrot.lane.b32.xlu0 %v3219, 16
  %v3611 = vpop.permute.xlu0 %3610
  %3612 = vrot.lane.b32.xlu0 %v3220, 16
  %v3613 = vpop.permute.xlu0 %3612
  %3614 = vrot.lane.b32.xlu0 %v3221, 16
  %v3615 = vpop.permute.xlu0 %3614
  %3616 = vrot.lane.b32.xlu0 %v3222, 16
  %v3617 = vpop.permute.xlu0 %3616
  %3618 = vrot.lane.b32.xlu0 %v3223, 16
  %v3619 = vpop.permute.xlu0 %3618
  %3620 = vrot.lane.b32.xlu0 %v3224, 16
  %v3621 = vpop.permute.xlu0 %3620
  %3622 = vrot.lane.b32.xlu0 %v3225, 16
  %v3623 = vpop.permute.xlu0 %3622
  %3624 = vrot.lane.b32.xlu0 %v3226, 16
  %v3625 = vpop.permute.xlu0 %3624
  %3626 = vrot.lane.b32.xlu0 %v3228, 16
  %v3627 = vpop.permute.xlu0 %3626
  %3628 = vrot.lane.b32.xlu0 %v3229, 16
  %v3629 = vpop.permute.xlu0 %3628
  %3630 = vrot.lane.b32.xlu0 %v3230, 16
  %v3631 = vpop.permute.xlu0 %3630
  %3632 = vrot.lane.b32.xlu0 %v3231, 16
  %v3633 = vpop.permute.xlu0 %3632
  %3634 = vrot.lane.b32.xlu0 %v3232, 16
  %v3635 = vpop.permute.xlu0 %3634
  %3636 = vrot.lane.b32.xlu0 %v3233, 16
  %v3637 = vpop.permute.xlu0 %3636
  %3638 = vrot.lane.b32.xlu0 %v3234, 16
  %v3639 = vpop.permute.xlu0 %3638
  %3640 = vrot.lane.b32.xlu0 %v3235, 16
  %v3641 = vpop.permute.xlu0 %3640
  %3708 = vrot.lane.b32.xlu0 0.0, 24
  %v3709 = vpop.permute.xlu0 %3708
  %3710 = vrot.lane.b32.xlu0 %v3166, 24
  %v3711 = vpop.permute.xlu0 %3710
  %3712 = vrot.lane.b32.xlu0 %v3167, 24
  %v3713 = vpop.permute.xlu0 %3712
  %3714 = vrot.lane.b32.xlu0 %v3168, 24
  %v3715 = vpop.permute.xlu0 %3714
  %3716 = vrot.lane.b32.xlu0 %v3169, 24
  %v3717 = vpop.permute.xlu0 %3716
  %3718 = vrot.lane.b32.xlu0 %v3170, 24
  %v3719 = vpop.permute.xlu0 %3718
  %3720 = vrot.lane.b32.xlu0 %v3171, 24
  %v3721 = vpop.permute.xlu0 %3720
  %3722 = vrot.lane.b32.xlu0 %v3172, 24
  %v3723 = vpop.permute.xlu0 %3722
  %3724 = vrot.lane.b32.xlu0 %v3173, 24
  %v3725 = vpop.permute.xlu0 %3724
  %3726 = vrot.lane.b32.xlu0 %v3175, 24
  %v3727 = vpop.permute.xlu0 %3726
  %3728 = vrot.lane.b32.xlu0 %v3176, 24
  %v3729 = vpop.permute.xlu0 %3728
  %3730 = vrot.lane.b32.xlu0 %v3177, 24
  %v3731 = vpop.permute.xlu0 %3730
  %3732 = vrot.lane.b32.xlu0 %v3178, 24
  %v3733 = vpop.permute.xlu0 %3732
  %3734 = vrot.lane.b32.xlu0 %v3179, 24
  %v3735 = vpop.permute.xlu0 %3734
  %3736 = vrot.lane.b32.xlu0 %v3180, 24
  %v3737 = vpop.permute.xlu0 %3736
  %3738 = vrot.lane.b32.xlu0 %v3181, 24
  %v3739 = vpop.permute.xlu0 %3738
  %3740 = vrot.lane.b32.xlu0 %v3182, 24
  %v3741 = vpop.permute.xlu0 %3740
  %3742 = vrot.lane.b32.xlu0 %v3184, 24
  %v3743 = vpop.permute.xlu0 %3742
  %3744 = vrot.lane.b32.xlu0 %v3185, 24
  %v3745 = vpop.permute.xlu0 %3744
  %3746 = vrot.lane.b32.xlu0 %v3186, 24
  %v3747 = vpop.permute.xlu0 %3746
  %3748 = vrot.lane.b32.xlu0 %v3187, 24
  %v3749 = vpop.permute.xlu0 %3748
  %3750 = vrot.lane.b32.xlu0 %v3188, 24
  %v3751 = vpop.permute.xlu0 %3750
  %3752 = vrot.lane.b32.xlu0 %v3189, 24
  %v3753 = vpop.permute.xlu0 %3752
  %3754 = vrot.lane.b32.xlu0 %v3190, 24
  %v3755 = vpop.permute.xlu0 %3754
  %3756 = vrot.lane.b32.xlu0 %v3191, 24
  %v3757 = vpop.permute.xlu0 %3756
  %3758 = vrot.lane.b32.xlu0 %v3193, 24
  %v3759 = vpop.permute.xlu0 %3758
  %3760 = vrot.lane.b32.xlu0 %v3194, 24
  %v3761 = vpop.permute.xlu0 %3760
  %3762 = vrot.lane.b32.xlu0 %v3195, 24
  %v3763 = vpop.permute.xlu0 %3762
  %3764 = vrot.lane.b32.xlu0 %v3196, 24
  %v3765 = vpop.permute.xlu0 %3764
  %3766 = vrot.lane.b32.xlu0 %v3197, 24
  %v3767 = vpop.permute.xlu0 %3766
  %3768 = vrot.lane.b32.xlu0 %v3198, 24
  %v3769 = vpop.permute.xlu0 %3768
  %3770 = vrot.lane.b32.xlu0 %v3199, 24
  %v3771 = vpop.permute.xlu0 %3770
  %3772 = vrot.lane.b32.xlu0 %v3200, 24
  %v3773 = vpop.permute.xlu0 %3772
  %3774 = vrot.lane.b32.xlu0 %v3202, 24
  %v3775 = vpop.permute.xlu0 %3774
  %3776 = vrot.lane.b32.xlu0 %v3203, 24
  %v3777 = vpop.permute.xlu0 %3776
  %3778 = vrot.lane.b32.xlu0 %v3204, 24
  %v3779 = vpop.permute.xlu0 %3778
  %3780 = vrot.lane.b32.xlu0 %v3205, 24
  %v3781 = vpop.permute.xlu0 %3780
  %3782 = vrot.lane.b32.xlu0 %v3206, 24
  %v3783 = vpop.permute.xlu0 %3782
  %3784 = vrot.lane.b32.xlu0 %v3207, 24
  %v3785 = vpop.permute.xlu0 %3784
  %3786 = vrot.lane.b32.xlu0 %v3208, 24
  %v3787 = vpop.permute.xlu0 %3786
  %3788 = vrot.lane.b32.xlu0 %v3209, 24
  %v3789 = vpop.permute.xlu0 %3788
  %3790 = vrot.lane.b32.xlu0 %v3211, 24
  %v3791 = vpop.permute.xlu0 %3790
  %3792 = vrot.lane.b32.xlu0 %v3212, 24
  %v3793 = vpop.permute.xlu0 %3792
  %3794 = vrot.lane.b32.xlu0 %v3213, 24
  %v3795 = vpop.permute.xlu0 %3794
  %3796 = vrot.lane.b32.xlu0 %v3214, 24
  %v3797 = vpop.permute.xlu0 %3796
  %3798 = vrot.lane.b32.xlu0 %v3215, 24
  %v3799 = vpop.permute.xlu0 %3798
  %3800 = vrot.lane.b32.xlu0 %v3216, 24
  %v3801 = vpop.permute.xlu0 %3800
  %3802 = vrot.lane.b32.xlu0 %v3217, 24
  %v3803 = vpop.permute.xlu0 %3802
  %3804 = vrot.lane.b32.xlu0 %v3218, 24
  %v3805 = vpop.permute.xlu0 %3804
  %3806 = vrot.lane.b32.xlu0 %v3220, 24
  %v3807 = vpop.permute.xlu0 %3806
  %3808 = vrot.lane.b32.xlu0 %v3221, 24
  %v3809 = vpop.permute.xlu0 %3808
  %3810 = vrot.lane.b32.xlu0 %v3222, 24
  %v3811 = vpop.permute.xlu0 %3810
  %3812 = vrot.lane.b32.xlu0 %v3223, 24
  %v3813 = vpop.permute.xlu0 %3812
  %3814 = vrot.lane.b32.xlu0 %v3224, 24
  %v3815 = vpop.permute.xlu0 %3814
  %3816 = vrot.lane.b32.xlu0 %v3225, 24
  %v3817 = vpop.permute.xlu0 %3816
  %3818 = vrot.lane.b32.xlu0 %v3226, 24
  %v3819 = vpop.permute.xlu0 %3818
  %3820 = vrot.lane.b32.xlu0 %v3227, 24
  %v3821 = vpop.permute.xlu0 %3820
  %3822 = vrot.lane.b32.xlu0 %v3229, 24
  %v3823 = vpop.permute.xlu0 %3822
  %3824 = vrot.lane.b32.xlu0 %v3230, 24
  %v3825 = vpop.permute.xlu0 %3824
  %3826 = vrot.lane.b32.xlu0 %v3231, 24
  %v3827 = vpop.permute.xlu0 %3826
  %3828 = vrot.lane.b32.xlu0 %v3232, 24
  %v3829 = vpop.permute.xlu0 %3828
  %3830 = vrot.lane.b32.xlu0 %v3233, 24
  %v3831 = vpop.permute.xlu0 %3830
  %3832 = vrot.lane.b32.xlu0 %v3234, 24
  %v3833 = vpop.permute.xlu0 %3832
  %3834 = vrot.lane.b32.xlu0 %v3235, 24
  %v3835 = vpop.permute.xlu0 %3834
  %3836 = vrot.lane.b32.xlu0 %v3236, 24
  %v3837 = vpop.permute.xlu0 %3836
  %v3903 = vsel %vm1050, %v3156, %v3303
  %v3904 = vsel %vm1050, 0.0, %v3305
  %v3905 = vsel %vm1050, %v3157, %v3303
  %v3906 = vsel %vm1050, 0.0, %v3307
  %v3907 = vsel %vm1050, %v3158, %v3303
  %v3908 = vsel %vm1050, 0.0, %v3309
  %v3909 = vsel %vm1050, %v3159, %v3303
  %v3910 = vsel %vm1050, 0.0, %v3311
  %v3911 = vsel %vm1050, %v3160, %v3303
  %v3912 = vsel %vm1050, 0.0, %v3313
  %v3913 = vsel %vm1050, %v3161, %v3303
  %v3914 = vsel %vm1050, 0.0, %v3315
  %v3915 = vsel %vm1050, %v3162, %v3303
  %v3916 = vsel %vm1050, 0.0, %v3317
  %v3917 = vsel %vm1050, %v3163, %v3303
  %v3918 = vsel %vm1050, 0.0, %v3319
  %v3919 = vsel %vm1050, 0.0, %v3303
  %v3920 = vsel %vm1050, %v3165, %v3303
  %v3921 = vsel %vm1050, 0.0, %v3321
  %v3922 = vsel %vm1050, %v3166, %v3303
  %v3923 = vsel %vm1050, 0.0, %v3323
  %v3924 = vsel %vm1050, %v3167, %v3303
  %v3925 = vsel %vm1050, 0.0, %v3325
  %v3926 = vsel %vm1050, %v3168, %v3303
  %v3927 = vsel %vm1050, 0.0, %v3327
  %v3928 = vsel %vm1050, %v3169, %v3303
  %v3929 = vsel %vm1050, 0.0, %v3329
  %v3930 = vsel %vm1050, %v3170, %v3303
  %v3931 = vsel %vm1050, 0.0, %v3331
  %v3932 = vsel %vm1050, %v3171, %v3303
  %v3933 = vsel %vm1050, 0.0, %v3333
  %v3934 = vsel %vm1050, %v3172, %v3303
  %v3935 = vsel %vm1050, 0.0, %v3335
  %v3936 = vsel %vm1050, %v3174, %v3303
  %v3937 = vsel %vm1050, 0.0, %v3337
  %v3938 = vsel %vm1050, %v3175, %v3303
  %v3939 = vsel %vm1050, 0.0, %v3339
  %v3940 = vsel %vm1050, %v3176, %v3303
  %v3941 = vsel %vm1050, 0.0, %v3341
  %v3942 = vsel %vm1050, %v3177, %v3303
  %v3943 = vsel %vm1050, 0.0, %v3343
  %v3944 = vsel %vm1050, %v3178, %v3303
  %v3945 = vsel %vm1050, 0.0, %v3345
  %v3946 = vsel %vm1050, %v3179, %v3303
  %v3947 = vsel %vm1050, 0.0, %v3347
  %v3948 = vsel %vm1050, %v3180, %v3303
  %v3949 = vsel %vm1050, 0.0, %v3349
  %v3950 = vsel %vm1050, %v3181, %v3303
  %v3951 = vsel %vm1050, 0.0, %v3351
  %v3952 = vsel %vm1050, %v3183, %v3303
  %v3953 = vsel %vm1050, 0.0, %v3353
  %v3954 = vsel %vm1050, %v3184, %v3303
  %v3955 = vsel %vm1050, 0.0, %v3355
  %v3956 = vsel %vm1050, %v3185, %v3303
  %v3957 = vsel %vm1050, 0.0, %v3357
  %v3958 = vsel %vm1050, %v3186, %v3303
  %v3959 = vsel %vm1050, 0.0, %v3359
  %v3960 = vsel %vm1050, %v3187, %v3303
  %v3961 = vsel %vm1050, 0.0, %v3361
  %v3962 = vsel %vm1050, %v3188, %v3303
  %v3963 = vsel %vm1050, 0.0, %v3363
  %v3964 = vsel %vm1050, %v3189, %v3303
  %v3965 = vsel %vm1050, 0.0, %v3365
  %v3966 = vsel %vm1050, %v3190, %v3303
  %v3967 = vsel %vm1050, 0.0, %v3367
  %v3968 = vsel %vm1050, %v3192, %v3303
  %v3969 = vsel %vm1050, 0.0, %v3369
  %v3970 = vsel %vm1050, %v3193, %v3303
  %v3971 = vsel %vm1050, 0.0, %v3371
  %v3972 = vsel %vm1050, %v3194, %v3303
  %v3973 = vsel %vm1050, 0.0, %v3373
  %v3974 = vsel %vm1050, %v3195, %v3303
  %v3975 = vsel %vm1050, 0.0, %v3375
  %v3976 = vsel %vm1050, %v3196, %v3303
  %v3977 = vsel %vm1050, 0.0, %v3377
  %v3978 = vsel %vm1050, %v3197, %v3303
  %v3979 = vsel %vm1050, 0.0, %v3379
  %v3980 = vsel %vm1050, %v3198, %v3303
  %v3981 = vsel %vm1050, 0.0, %v3381
  %v3982 = vsel %vm1050, %v3199, %v3303
  %v3983 = vsel %vm1050, 0.0, %v3383
  %v3984 = vsel %vm1050, %v3201, %v3303
  %v3985 = vsel %vm1050, 0.0, %v3385
  %v3986 = vsel %vm1050, %v3202, %v3303
  %v3987 = vsel %vm1050, 0.0, %v3387
  %v3988 = vsel %vm1050, %v3203, %v3303
  %v3989 = vsel %vm1050, 0.0, %v3389
  %v3990 = vsel %vm1050, %v3204, %v3303
  %v3991 = vsel %vm1050, 0.0, %v3391
  %v3992 = vsel %vm1050, %v3205, %v3303
  %v3993 = vsel %vm1050, 0.0, %v3393
  %v3994 = vsel %vm1050, %v3206, %v3303
  %v3995 = vsel %vm1050, 0.0, %v3395
  %v3996 = vsel %vm1050, %v3207, %v3303
  %v3997 = vsel %vm1050, 0.0, %v3397
  %v3998 = vsel %vm1050, %v3208, %v3303
  %v3999 = vsel %vm1050, 0.0, %v3399
  %v4000 = vsel %vm1050, %v3210, %v3303
  %v4001 = vsel %vm1050, 0.0, %v3401
  %v4002 = vsel %vm1050, %v3211, %v3303
  %v4003 = vsel %vm1050, 0.0, %v3403
  %v4004 = vsel %vm1050, %v3212, %v3303
  %v4005 = vsel %vm1050, 0.0, %v3405
  %v4006 = vsel %vm1050, %v3213, %v3303
  %v4007 = vsel %vm1050, 0.0, %v3407
  %v4008 = vsel %vm1050, %v3214, %v3303
  %v4009 = vsel %vm1050, 0.0, %v3409
  %v4010 = vsel %vm1050, %v3215, %v3303
  %v4011 = vsel %vm1050, 0.0, %v3411
  %v4012 = vsel %vm1050, %v3216, %v3303
  %v4013 = vsel %vm1050, 0.0, %v3413
  %v4014 = vsel %vm1050, %v3217, %v3303
  %v4015 = vsel %vm1050, 0.0, %v3415
  %v4016 = vsel %vm1050, %v3219, %v3303
  %v4017 = vsel %vm1050, 0.0, %v3417
  %v4018 = vsel %vm1050, %v3220, %v3303
  %v4019 = vsel %vm1050, 0.0, %v3419
  %v4020 = vsel %vm1050, %v3221, %v3303
  %v4021 = vsel %vm1050, 0.0, %v3421
  %v4022 = vsel %vm1050, %v3222, %v3303
  %v4023 = vsel %vm1050, 0.0, %v3423
  %v4024 = vsel %vm1050, %v3223, %v3303
  %v4025 = vsel %vm1050, 0.0, %v3425
  %v4026 = vsel %vm1050, %v3224, %v3303
  %v4027 = vsel %vm1050, 0.0, %v3427
  %v4028 = vsel %vm1050, %v3225, %v3303
  %v4029 = vsel %vm1050, 0.0, %v3429
  %v4030 = vsel %vm1050, %v3226, %v3303
  %v4031 = vsel %vm1050, 0.0, %v3431
  %v4032 = vsel %vm1072, %v3903, %v3513
  %v4033 = vsel %vm1072, %v3904, %v3513
  %v4034 = vsel %vm1072, %v3905, %v3513
  %v4035 = vsel %vm1072, %v3906, %v3513
  %v4036 = vsel %vm1072, %v3907, %v3513
  %v4037 = vsel %vm1072, %v3908, %v3513
  %v4038 = vsel %vm1072, %v3909, %v3513
  %v4039 = vsel %vm1072, %v3910, %v3513
  %v4040 = vsel %vm1072, %v3911, %v3513
  %v4041 = vsel %vm1072, %v3912, %v3513
  %v4042 = vsel %vm1072, %v3913, %v3513
  %v4043 = vsel %vm1072, %v3914, %v3513
  %v4044 = vsel %vm1072, %v3915, %v3513
  %v4045 = vsel %vm1072, %v3916, %v3513
  %v4046 = vsel %vm1072, %v3917, %v3513
  %v4047 = vsel %vm1072, %v3918, %v3513
  %v4048 = vsel %vm1072, %v3919, %v3515
  %v4049 = vsel %vm1072, %v3919, %v3513
  %v4050 = vsel %vm1072, %v3919, %v3517
  %v4051 = vsel %vm1072, %v3919, %v3519
  %v4052 = vsel %vm1072, %v3919, %v3521
  %v4053 = vsel %vm1072, %v3919, %v3523
  %v4054 = vsel %vm1072, %v3919, %v3525
  %v4055 = vsel %vm1072, %v3919, %v3527
  %v4056 = vsel %vm1072, %v3919, %v3529
  %v4057 = vsel %vm1072, %v3920, %v3513
  %v4058 = vsel %vm1072, %v3921, %v3513
  %v4059 = vsel %vm1072, %v3922, %v3513
  %v4060 = vsel %vm1072, %v3923, %v3513
  %v4061 = vsel %vm1072, %v3924, %v3513
  %v4062 = vsel %vm1072, %v3925, %v3513
  %v4063 = vsel %vm1072, %v3926, %v3513
  %v4064 = vsel %vm1072, %v3927, %v3513
  %v4065 = vsel %vm1072, %v3928, %v3513
  %v4066 = vsel %vm1072, %v3929, %v3513
  %v4067 = vsel %vm1072, %v3930, %v3513
  %v4068 = vsel %vm1072, %v3931, %v3513
  %v4069 = vsel %vm1072, %v3932, %v3513
  %v4070 = vsel %vm1072, %v3933, %v3513
  %v4071 = vsel %vm1072, %v3934, %v3513
  %v4072 = vsel %vm1072, %v3935, %v3513
  %v4073 = vsel %vm1072, %v3919, %v3531
  %v4074 = vsel %vm1072, %v3919, %v3533
  %v4075 = vsel %vm1072, %v3919, %v3535
  %v4076 = vsel %vm1072, %v3919, %v3537
  %v4077 = vsel %vm1072, %v3919, %v3539
  %v4078 = vsel %vm1072, %v3919, %v3541
  %v4079 = vsel %vm1072, %v3919, %v3543
  %v4080 = vsel %vm1072, %v3919, %v3545
  %v4081 = vsel %vm1072, %v3936, %v3513
  %v4082 = vsel %vm1072, %v3937, %v3513
  %v4083 = vsel %vm1072, %v3938, %v3513
  %v4084 = vsel %vm1072, %v3939, %v3513
  %v4085 = vsel %vm1072, %v3940, %v3513
  %v4086 = vsel %vm1072, %v3941, %v3513
  %v4087 = vsel %vm1072, %v3942, %v3513
  %v4088 = vsel %vm1072, %v3943, %v3513
  %v4089 = vsel %vm1072, %v3944, %v3513
  %v4090 = vsel %vm1072, %v3945, %v3513
  %v4091 = vsel %vm1072, %v3946, %v3513
  %v4092 = vsel %vm1072, %v3947, %v3513
  %v4093 = vsel %vm1072, %v3948, %v3513
  %v4094 = vsel %vm1072, %v3949, %v3513
  %v4095 = vsel %vm1072, %v3950, %v3513
  %v4096 = vsel %vm1072, %v3951, %v3513
  %v4097 = vsel %vm1072, %v3919, %v3547
  %v4098 = vsel %vm1072, %v3919, %v3549
  %v4099 = vsel %vm1072, %v3919, %v3551
  %v4100 = vsel %vm1072, %v3919, %v3553
  %v4101 = vsel %vm1072, %v3919, %v3555
  %v4102 = vsel %vm1072, %v3919, %v3557
  %v4103 = vsel %vm1072, %v3919, %v3559
  %v4104 = vsel %vm1072, %v3919, %v3561
  %v4105 = vsel %vm1072, %v3952, %v3513
  %v4106 = vsel %vm1072, %v3953, %v3513
  %v4107 = vsel %vm1072, %v3954, %v3513
  %v4108 = vsel %vm1072, %v3955, %v3513
  %v4109 = vsel %vm1072, %v3956, %v3513
  %v4110 = vsel %vm1072, %v3957, %v3513
  %v4111 = vsel %vm1072, %v3958, %v3513
  %v4112 = vsel %vm1072, %v3959, %v3513
  %v4113 = vsel %vm1072, %v3960, %v3513
  %v4114 = vsel %vm1072, %v3961, %v3513
  %v4115 = vsel %vm1072, %v3962, %v3513
  %v4116 = vsel %vm1072, %v3963, %v3513
  %v4117 = vsel %vm1072, %v3964, %v3513
  %v4118 = vsel %vm1072, %v3965, %v3513
  %v4119 = vsel %vm1072, %v3966, %v3513
  %v4120 = vsel %vm1072, %v3967, %v3513
  %v4121 = vsel %vm1072, %v3919, %v3563
  %v4122 = vsel %vm1072, %v3919, %v3565
  %v4123 = vsel %vm1072, %v3919, %v3567
  %v4124 = vsel %vm1072, %v3919, %v3569
  %v4125 = vsel %vm1072, %v3919, %v3571
  %v4126 = vsel %vm1072, %v3919, %v3573
  %v4127 = vsel %vm1072, %v3919, %v3575
  %v4128 = vsel %vm1072, %v3919, %v3577
  %v4129 = vsel %vm1072, %v3968, %v3513
  %v4130 = vsel %vm1072, %v3969, %v3513
  %v4131 = vsel %vm1072, %v3970, %v3513
  %v4132 = vsel %vm1072, %v3971, %v3513
  %v4133 = vsel %vm1072, %v3972, %v3513
  %v4134 = vsel %vm1072, %v3973, %v3513
  %v4135 = vsel %vm1072, %v3974, %v3513
  %v4136 = vsel %vm1072, %v3975, %v3513
  %v4137 = vsel %vm1072, %v3976, %v3513
  %v4138 = vsel %vm1072, %v3977, %v3513
  %v4139 = vsel %vm1072, %v3978, %v3513
  %v4140 = vsel %vm1072, %v3979, %v3513
  %v4141 = vsel %vm1072, %v3980, %v3513
  %v4142 = vsel %vm1072, %v3981, %v3513
  %v4143 = vsel %vm1072, %v3982, %v3513
  %v4144 = vsel %vm1072, %v3983, %v3513
  %v4145 = vsel %vm1072, %v3919, %v3579
  %v4146 = vsel %vm1072, %v3919, %v3581
  %v4147 = vsel %vm1072, %v3919, %v3583
  %v4148 = vsel %vm1072, %v3919, %v3585
  %v4149 = vsel %vm1072, %v3919, %v3587
  %v4150 = vsel %vm1072, %v3919, %v3589
  %v4151 = vsel %vm1072, %v3919, %v3591
  %v4152 = vsel %vm1072, %v3919, %v3593
  %v4153 = vsel %vm1072, %v3984, %v3513
  %v4154 = vsel %vm1072, %v3985, %v3513
  %v4155 = vsel %vm1072, %v3986, %v3513
  %v4156 = vsel %vm1072, %v3987, %v3513
  %v4157 = vsel %vm1072, %v3988, %v3513
  %v4158 = vsel %vm1072, %v3989, %v3513
  %v4159 = vsel %vm1072, %v3990, %v3513
  %v4160 = vsel %vm1072, %v3991, %v3513
  %v4161 = vsel %vm1072, %v3992, %v3513
  %v4162 = vsel %vm1072, %v3993, %v3513
  %v4163 = vsel %vm1072, %v3994, %v3513
  %v4164 = vsel %vm1072, %v3995, %v3513
  %v4165 = vsel %vm1072, %v3996, %v3513
  %v4166 = vsel %vm1072, %v3997, %v3513
  %v4167 = vsel %vm1072, %v3998, %v3513
  %v4168 = vsel %vm1072, %v3999, %v3513
  %v4169 = vsel %vm1072, %v3919, %v3595
  %v4170 = vsel %vm1072, %v3919, %v3597
  %v4171 = vsel %vm1072, %v3919, %v3599
  %v4172 = vsel %vm1072, %v3919, %v3601
  %v4173 = vsel %vm1072, %v3919, %v3603
  %v4174 = vsel %vm1072, %v3919, %v3605
  %v4175 = vsel %vm1072, %v3919, %v3607
  %v4176 = vsel %vm1072, %v3919, %v3609
  %v4177 = vsel %vm1072, %v4000, %v3513
  %v4178 = vsel %vm1072, %v4001, %v3513
  %v4179 = vsel %vm1072, %v4002, %v3513
  %v4180 = vsel %vm1072, %v4003, %v3513
  %v4181 = vsel %vm1072, %v4004, %v3513
  %v4182 = vsel %vm1072, %v4005, %v3513
  %v4183 = vsel %vm1072, %v4006, %v3513
  %v4184 = vsel %vm1072, %v4007, %v3513
  %v4185 = vsel %vm1072, %v4008, %v3513
  %v4186 = vsel %vm1072, %v4009, %v3513
  %v4187 = vsel %vm1072, %v4010, %v3513
  %v4188 = vsel %vm1072, %v4011, %v3513
  %v4189 = vsel %vm1072, %v4012, %v3513
  %v4190 = vsel %vm1072, %v4013, %v3513
  %v4191 = vsel %vm1072, %v4014, %v3513
  %v4192 = vsel %vm1072, %v4015, %v3513
  %v4193 = vsel %vm1072, %v3919, %v3611
  %v4194 = vsel %vm1072, %v3919, %v3613
  %v4195 = vsel %vm1072, %v3919, %v3615
  %v4196 = vsel %vm1072, %v3919, %v3617
  %v4197 = vsel %vm1072, %v3919, %v3619
  %v4198 = vsel %vm1072, %v3919, %v3621
  %v4199 = vsel %vm1072, %v3919, %v3623
  %v4200 = vsel %vm1072, %v3919, %v3625
  %v4201 = vsel %vm1072, %v4016, %v3513
  %v4202 = vsel %vm1072, %v4017, %v3513
  %v4203 = vsel %vm1072, %v4018, %v3513
  %v4204 = vsel %vm1072, %v4019, %v3513
  %v4205 = vsel %vm1072, %v4020, %v3513
  %v4206 = vsel %vm1072, %v4021, %v3513
  %v4207 = vsel %vm1072, %v4022, %v3513
  %v4208 = vsel %vm1072, %v4023, %v3513
  %v4209 = vsel %vm1072, %v4024, %v3513
  %v4210 = vsel %vm1072, %v4025, %v3513
  %v4211 = vsel %vm1072, %v4026, %v3513
  %v4212 = vsel %vm1072, %v4027, %v3513
  %v4213 = vsel %vm1072, %v4028, %v3513
  %v4214 = vsel %vm1072, %v4029, %v3513
  %v4215 = vsel %vm1072, %v4030, %v3513
  %v4216 = vsel %vm1072, %v4031, %v3513
  %v4217 = vsel %vm1072, %v3919, %v3627
  %v4218 = vsel %vm1072, %v3919, %v3629
  %v4219 = vsel %vm1072, %v3919, %v3631
  %v4220 = vsel %vm1072, %v3919, %v3633
  %v4221 = vsel %vm1072, %v3919, %v3635
  %v4222 = vsel %vm1072, %v3919, %v3637
  %v4223 = vsel %vm1072, %v3919, %v3639
  %v4224 = vsel %vm1072, %v3919, %v3641
  %v4225 = vsel %vm1087, %v4032, %v3709
  %v4226 = vsel %vm1087, %v4033, %v3709
  %v4227 = vsel %vm1087, %v4034, %v3709
  %v4228 = vsel %vm1087, %v4035, %v3709
  %v4229 = vsel %vm1087, %v4036, %v3709
  %v4230 = vsel %vm1087, %v4037, %v3709
  %v4231 = vsel %vm1087, %v4038, %v3709
  %v4232 = vsel %vm1087, %v4039, %v3709
  %v4233 = vsel %vm1087, %v4040, %v3709
  %v4234 = vsel %vm1087, %v4041, %v3709
  %v4235 = vsel %vm1087, %v4042, %v3709
  %v4236 = vsel %vm1087, %v4043, %v3709
  %v4237 = vsel %vm1087, %v4044, %v3709
  %v4238 = vsel %vm1087, %v4045, %v3709
  %v4239 = vsel %vm1087, %v4046, %v3709
  %v4240 = vsel %vm1087, %v4047, %v3709
  %v4241 = vsel %vm1087, %v4048, %v3709
  %v4242 = vsel %vm1087, %v4049, %v3711
  %v4243 = vsel %vm1087, %v4050, %v3709
  %v4244 = vsel %vm1087, %v4049, %v3713
  %v4245 = vsel %vm1087, %v4051, %v3709
  %v4246 = vsel %vm1087, %v4049, %v3715
  %v4247 = vsel %vm1087, %v4052, %v3709
  %v4248 = vsel %vm1087, %v4049, %v3717
  %v4249 = vsel %vm1087, %v4053, %v3709
  %v4250 = vsel %vm1087, %v4049, %v3719
  %v4251 = vsel %vm1087, %v4054, %v3709
  %v4252 = vsel %vm1087, %v4049, %v3721
  %v4253 = vsel %vm1087, %v4055, %v3709
  %v4254 = vsel %vm1087, %v4049, %v3723
  %v4255 = vsel %vm1087, %v4056, %v3709
  %v4256 = vsel %vm1087, %v4049, %v3725
  %v4257 = vsel %vm1087, %v4057, %v3709
  %v4258 = vsel %vm1087, %v4058, %v3709
  %v4259 = vsel %vm1087, %v4059, %v3709
  %v4260 = vsel %vm1087, %v4060, %v3709
  %v4261 = vsel %vm1087, %v4061, %v3709
  %v4262 = vsel %vm1087, %v4062, %v3709
  %v4263 = vsel %vm1087, %v4063, %v3709
  %v4264 = vsel %vm1087, %v4064, %v3709
  %v4265 = vsel %vm1087, %v4065, %v3709
  %v4266 = vsel %vm1087, %v4066, %v3709
  %v4267 = vsel %vm1087, %v4067, %v3709
  %v4268 = vsel %vm1087, %v4068, %v3709
  %v4269 = vsel %vm1087, %v4069, %v3709
  %v4270 = vsel %vm1087, %v4070, %v3709
  %v4271 = vsel %vm1087, %v4071, %v3709
  %v4272 = vsel %vm1087, %v4072, %v3709
  %v4273 = vsel %vm1087, %v4073, %v3709
  %v4274 = vsel %vm1087, %v4049, %v3727
  %v4275 = vsel %vm1087, %v4074, %v3709
  %v4276 = vsel %vm1087, %v4049, %v3729
  %v4277 = vsel %vm1087, %v4075, %v3709
  %v4278 = vsel %vm1087, %v4049, %v3731
  %v4279 = vsel %vm1087, %v4076, %v3709
  %v4280 = vsel %vm1087, %v4049, %v3733
  %v4281 = vsel %vm1087, %v4077, %v3709
  %v4282 = vsel %vm1087, %v4049, %v3735
  %v4283 = vsel %vm1087, %v4078, %v3709
  %v4284 = vsel %vm1087, %v4049, %v3737
  %v4285 = vsel %vm1087, %v4079, %v3709
  %v4286 = vsel %vm1087, %v4049, %v3739
  %v4287 = vsel %vm1087, %v4080, %v3709
  %v4288 = vsel %vm1087, %v4049, %v3741
  %v4289 = vsel %vm1087, %v4081, %v3709
  %v4290 = vsel %vm1087, %v4082, %v3709
  %v4291 = vsel %vm1087, %v4083, %v3709
  %v4292 = vsel %vm1087, %v4084, %v3709
  %v4293 = vsel %vm1087, %v4085, %v3709
  %v4294 = vsel %vm1087, %v4086, %v3709
  %v4295 = vsel %vm1087, %v4087, %v3709
  %v4296 = vsel %vm1087, %v4088, %v3709
  %v4297 = vsel %vm1087, %v4089, %v3709
  %v4298 = vsel %vm1087, %v4090, %v3709
  %v4299 = vsel %vm1087, %v4091, %v3709
  %v4300 = vsel %vm1087, %v4092, %v3709
  %v4301 = vsel %vm1087, %v4093, %v3709
  %v4302 = vsel %vm1087, %v4094, %v3709
  %v4303 = vsel %vm1087, %v4095, %v3709
  %v4304 = vsel %vm1087, %v4096, %v3709
  %v4305 = vsel %vm1087, %v4097, %v3709
  %v4306 = vsel %vm1087, %v4049, %v3743
  %v4307 = vsel %vm1087, %v4098, %v3709
  %v4308 = vsel %vm1087, %v4049, %v3745
  %v4309 = vsel %vm1087, %v4099, %v3709
  %v4310 = vsel %vm1087, %v4049, %v3747
  %v4311 = vsel %vm1087, %v4100, %v3709
  %v4312 = vsel %vm1087, %v4049, %v3749
  %v4313 = vsel %vm1087, %v4101, %v3709
  %v4314 = vsel %vm1087, %v4049, %v3751
  %v4315 = vsel %vm1087, %v4102, %v3709
  %v4316 = vsel %vm1087, %v4049, %v3753
  %v4317 = vsel %vm1087, %v4103, %v3709
  %v4318 = vsel %vm1087, %v4049, %v3755
  %v4319 = vsel %vm1087, %v4104, %v3709
  %v4320 = vsel %vm1087, %v4049, %v3757
  %v4321 = vsel %vm1087, %v4105, %v3709
  %v4322 = vsel %vm1087, %v4106, %v3709
  %v4323 = vsel %vm1087, %v4107, %v3709
  %v4324 = vsel %vm1087, %v4108, %v3709
  %v4325 = vsel %vm1087, %v4109, %v3709
  %v4326 = vsel %vm1087, %v4110, %v3709
  %v4327 = vsel %vm1087, %v4111, %v3709
  %v4328 = vsel %vm1087, %v4112, %v3709
  %v4329 = vsel %vm1087, %v4113, %v3709
  %v4330 = vsel %vm1087, %v4114, %v3709
  %v4331 = vsel %vm1087, %v4115, %v3709
  %v4332 = vsel %vm1087, %v4116, %v3709
  %v4333 = vsel %vm1087, %v4117, %v3709
  %v4334 = vsel %vm1087, %v4118, %v3709
  %v4335 = vsel %vm1087, %v4119, %v3709
  %v4336 = vsel %vm1087, %v4120, %v3709
  %v4337 = vsel %vm1087, %v4121, %v3709
  %v4338 = vsel %vm1087, %v4049, %v3759
  %v4339 = vsel %vm1087, %v4122, %v3709
  %v4340 = vsel %vm1087, %v4049, %v3761
  %v4341 = vsel %vm1087, %v4123, %v3709
  %v4342 = vsel %vm1087, %v4049, %v3763
  %v4343 = vsel %vm1087, %v4124, %v3709
  %v4344 = vsel %vm1087, %v4049, %v3765
  %v4345 = vsel %vm1087, %v4125, %v3709
  %v4346 = vsel %vm1087, %v4049, %v3767
  %v4347 = vsel %vm1087, %v4126, %v3709
  %v4348 = vsel %vm1087, %v4049, %v3769
  %v4349 = vsel %vm1087, %v4127, %v3709
  %v4350 = vsel %vm1087, %v4049, %v3771
  %v4351 = vsel %vm1087, %v4128, %v3709
  %v4352 = vsel %vm1087, %v4049, %v3773
  %v4353 = vsel %vm1087, %v4129, %v3709
  %v4354 = vsel %vm1087, %v4130, %v3709
  %v4355 = vsel %vm1087, %v4131, %v3709
  %v4356 = vsel %vm1087, %v4132, %v3709
  %v4357 = vsel %vm1087, %v4133, %v3709
  %v4358 = vsel %vm1087, %v4134, %v3709
  %v4359 = vsel %vm1087, %v4135, %v3709
  %v4360 = vsel %vm1087, %v4136, %v3709
  %v4361 = vsel %vm1087, %v4137, %v3709
  %v4362 = vsel %vm1087, %v4138, %v3709
  %v4363 = vsel %vm1087, %v4139, %v3709
  %v4364 = vsel %vm1087, %v4140, %v3709
  %v4365 = vsel %vm1087, %v4141, %v3709
  %v4366 = vsel %vm1087, %v4142, %v3709
  %v4367 = vsel %vm1087, %v4143, %v3709
  %v4368 = vsel %vm1087, %v4144, %v3709
  %v4369 = vsel %vm1087, %v4145, %v3709
  %v4370 = vsel %vm1087, %v4049, %v3775
  %v4371 = vsel %vm1087, %v4146, %v3709
  %v4372 = vsel %vm1087, %v4049, %v3777
  %v4373 = vsel %vm1087, %v4147, %v3709
  %v4374 = vsel %vm1087, %v4049, %v3779
  %v4375 = vsel %vm1087, %v4148, %v3709
  %v4376 = vsel %vm1087, %v4049, %v3781
  %v4377 = vsel %vm1087, %v4149, %v3709
  %v4378 = vsel %vm1087, %v4049, %v3783
  %v4379 = vsel %vm1087, %v4150, %v3709
  %v4380 = vsel %vm1087, %v4049, %v3785
  %v4381 = vsel %vm1087, %v4151, %v3709
  %v4382 = vsel %vm1087, %v4049, %v3787
  %v4383 = vsel %vm1087, %v4152, %v3709
  %v4384 = vsel %vm1087, %v4049, %v3789
  %v4385 = vsel %vm1087, %v4153, %v3709
  %v4386 = vsel %vm1087, %v4154, %v3709
  %v4387 = vsel %vm1087, %v4155, %v3709
  %v4388 = vsel %vm1087, %v4156, %v3709
  %v4389 = vsel %vm1087, %v4157, %v3709
  %v4390 = vsel %vm1087, %v4158, %v3709
  %v4391 = vsel %vm1087, %v4159, %v3709
  %v4392 = vsel %vm1087, %v4160, %v3709
  %v4393 = vsel %vm1087, %v4161, %v3709
  %v4394 = vsel %vm1087, %v4162, %v3709
  %v4395 = vsel %vm1087, %v4163, %v3709
  %v4396 = vsel %vm1087, %v4164, %v3709
  %v4397 = vsel %vm1087, %v4165, %v3709
  %v4398 = vsel %vm1087, %v4166, %v3709
  %v4399 = vsel %vm1087, %v4167, %v3709
  %v4400 = vsel %vm1087, %v4168, %v3709
  %v4401 = vsel %vm1087, %v4169, %v3709
  %v4402 = vsel %vm1087, %v4049, %v3791
  %v4403 = vsel %vm1087, %v4170, %v3709
  %v4404 = vsel %vm1087, %v4049, %v3793
  %v4405 = vsel %vm1087, %v4171, %v3709
  %v4406 = vsel %vm1087, %v4049, %v3795
  %v4407 = vsel %vm1087, %v4172, %v3709
  %v4408 = vsel %vm1087, %v4049, %v3797
  %v4409 = vsel %vm1087, %v4173, %v3709
  %v4410 = vsel %vm1087, %v4049, %v3799
  %v4411 = vsel %vm1087, %v4174, %v3709
  %v4412 = vsel %vm1087, %v4049, %v3801
  %v4413 = vsel %vm1087, %v4175, %v3709
  %v4414 = vsel %vm1087, %v4049, %v3803
  %v4415 = vsel %vm1087, %v4176, %v3709
  %v4416 = vsel %vm1087, %v4049, %v3805
  %v4417 = vsel %vm1087, %v4177, %v3709
  %v4418 = vsel %vm1087, %v4178, %v3709
  %v4419 = vsel %vm1087, %v4179, %v3709
  %v4420 = vsel %vm1087, %v4180, %v3709
  %v4421 = vsel %vm1087, %v4181, %v3709
  %v4422 = vsel %vm1087, %v4182, %v3709
  %v4423 = vsel %vm1087, %v4183, %v3709
  %v4424 = vsel %vm1087, %v4184, %v3709
  %v4425 = vsel %vm1087, %v4185, %v3709
  %v4426 = vsel %vm1087, %v4186, %v3709
  %v4427 = vsel %vm1087, %v4187, %v3709
  %v4428 = vsel %vm1087, %v4188, %v3709
  %v4429 = vsel %vm1087, %v4189, %v3709
  %v4430 = vsel %vm1087, %v4190, %v3709
  %v4431 = vsel %vm1087, %v4191, %v3709
  %v4432 = vsel %vm1087, %v4192, %v3709
  %v4433 = vsel %vm1087, %v4193, %v3709
  %v4434 = vsel %vm1087, %v4049, %v3807
  %v4435 = vsel %vm1087, %v4194, %v3709
  %v4436 = vsel %vm1087, %v4049, %v3809
  %v4437 = vsel %vm1087, %v4195, %v3709
  %v4438 = vsel %vm1087, %v4049, %v3811
  %v4439 = vsel %vm1087, %v4196, %v3709
  %v4440 = vsel %vm1087, %v4049, %v3813
  %v4441 = vsel %vm1087, %v4197, %v3709
  %v4442 = vsel %vm1087, %v4049, %v3815
  %v4443 = vsel %vm1087, %v4198, %v3709
  %v4444 = vsel %vm1087, %v4049, %v3817
  %v4445 = vsel %vm1087, %v4199, %v3709
  %v4446 = vsel %vm1087, %v4049, %v3819
  %v4447 = vsel %vm1087, %v4200, %v3709
  %v4448 = vsel %vm1087, %v4049, %v3821
  %v4449 = vsel %vm1087, %v4201, %v3709
  %v4450 = vsel %vm1087, %v4202, %v3709
  %v4451 = vsel %vm1087, %v4203, %v3709
  %v4452 = vsel %vm1087, %v4204, %v3709
  %v4453 = vsel %vm1087, %v4205, %v3709
  %v4454 = vsel %vm1087, %v4206, %v3709
  %v4455 = vsel %vm1087, %v4207, %v3709
  %v4456 = vsel %vm1087, %v4208, %v3709
  %v4457 = vsel %vm1087, %v4209, %v3709
  %v4458 = vsel %vm1087, %v4210, %v3709
  %v4459 = vsel %vm1087, %v4211, %v3709
  %v4460 = vsel %vm1087, %v4212, %v3709
  %v4461 = vsel %vm1087, %v4213, %v3709
  %v4462 = vsel %vm1087, %v4214, %v3709
  %v4463 = vsel %vm1087, %v4215, %v3709
  %v4464 = vsel %vm1087, %v4216, %v3709
  %v4465 = vsel %vm1087, %v4217, %v3709
  %v4466 = vsel %vm1087, %v4049, %v3823
  %v4467 = vsel %vm1087, %v4218, %v3709
  %v4468 = vsel %vm1087, %v4049, %v3825
  %v4469 = vsel %vm1087, %v4219, %v3709
  %v4470 = vsel %vm1087, %v4049, %v3827
  %v4471 = vsel %vm1087, %v4220, %v3709
  %v4472 = vsel %vm1087, %v4049, %v3829
  %v4473 = vsel %vm1087, %v4221, %v3709
  %v4474 = vsel %vm1087, %v4049, %v3831
  %v4475 = vsel %vm1087, %v4222, %v3709
  %v4476 = vsel %vm1087, %v4049, %v3833
  %v4477 = vsel %vm1087, %v4223, %v3709
  %v4478 = vsel %vm1087, %v4049, %v3835
  %v4479 = vsel %vm1087, %v4224, %v3709
  %v4480 = vsel %vm1087, %v4049, %v3837
  %v4481 = vld [vmem:[%s12] sm:$0x1]
  %v4483 = vlaneseq
  %v4484 = vshrl.u32 %v4483, 7
  %v4485 = vsub.s32 0, %v4484
  %v4486 = vrot.slane %v4481, %v4485
  %v4488 = vmul.f32 %v4225, %v4486
  %v4489 = vmul.f32 %v4226, %v4486
  %v4490 = vmul.f32 %v4227, %v4486
  %v4491 = vmul.f32 %v4228, %v4486
  %v4492 = vmul.f32 %v4229, %v4486
  %v4493 = vmul.f32 %v4230, %v4486
  %v4494 = vmul.f32 %v4231, %v4486
  %v4495 = vmul.f32 %v4232, %v4486
  %v4496 = vmul.f32 %v4233, %v4486
  %v4497 = vmul.f32 %v4234, %v4486
  %v4498 = vmul.f32 %v4235, %v4486
  %v4499 = vmul.f32 %v4236, %v4486
  %v4500 = vmul.f32 %v4237, %v4486
  %v4501 = vmul.f32 %v4238, %v4486
  %v4502 = vmul.f32 %v4239, %v4486
  %v4503 = vmul.f32 %v4240, %v4486
  %v4504 = vmul.f32 %v4241, %v4486
  %v4505 = vmul.f32 %v4242, %v4486
  %v4506 = vmul.f32 %v4243, %v4486
  %v4507 = vmul.f32 %v4244, %v4486
  %v4508 = vmul.f32 %v4245, %v4486
  %v4509 = vmul.f32 %v4246, %v4486
  %v4510 = vmul.f32 %v4247, %v4486
  %v4511 = vmul.f32 %v4248, %v4486
  %v4512 = vmul.f32 %v4249, %v4486
  %v4513 = vmul.f32 %v4250, %v4486
  %v4514 = vmul.f32 %v4251, %v4486
  %v4515 = vmul.f32 %v4252, %v4486
  %v4516 = vmul.f32 %v4253, %v4486
  %v4517 = vmul.f32 %v4254, %v4486
  %v4518 = vmul.f32 %v4255, %v4486
  %v4519 = vmul.f32 %v4256, %v4486
  %v4520 = vmul.f32 %v4257, %v4486
  %v4521 = vmul.f32 %v4258, %v4486
  %v4522 = vmul.f32 %v4259, %v4486
  %v4523 = vmul.f32 %v4260, %v4486
  %v4524 = vmul.f32 %v4261, %v4486
  %v4525 = vmul.f32 %v4262, %v4486
  %v4526 = vmul.f32 %v4263, %v4486
  %v4527 = vmul.f32 %v4264, %v4486
  %v4528 = vmul.f32 %v4265, %v4486
  %v4529 = vmul.f32 %v4266, %v4486
  %v4530 = vmul.f32 %v4267, %v4486
  %v4531 = vmul.f32 %v4268, %v4486
  %v4532 = vmul.f32 %v4269, %v4486
  %v4533 = vmul.f32 %v4270, %v4486
  %v4534 = vmul.f32 %v4271, %v4486
  %v4535 = vmul.f32 %v4272, %v4486
  %v4536 = vmul.f32 %v4273, %v4486
  %v4537 = vmul.f32 %v4274, %v4486
  %v4538 = vmul.f32 %v4275, %v4486
  %v4539 = vmul.f32 %v4276, %v4486
  %v4540 = vmul.f32 %v4277, %v4486
  %v4541 = vmul.f32 %v4278, %v4486
  %v4542 = vmul.f32 %v4279, %v4486
  %v4543 = vmul.f32 %v4280, %v4486
  %v4544 = vmul.f32 %v4281, %v4486
  %v4545 = vmul.f32 %v4282, %v4486
  %v4546 = vmul.f32 %v4283, %v4486
  %v4547 = vmul.f32 %v4284, %v4486
  %v4548 = vmul.f32 %v4285, %v4486
  %v4549 = vmul.f32 %v4286, %v4486
  %v4550 = vmul.f32 %v4287, %v4486
  %v4551 = vmul.f32 %v4288, %v4486
  %v4552 = vmul.f32 %v4289, %v4486
  %v4553 = vmul.f32 %v4290, %v4486
  %v4554 = vmul.f32 %v4291, %v4486
  %v4555 = vmul.f32 %v4292, %v4486
  %v4556 = vmul.f32 %v4293, %v4486
  %v4557 = vmul.f32 %v4294, %v4486
  %v4558 = vmul.f32 %v4295, %v4486
  %v4559 = vmul.f32 %v4296, %v4486
  %v4560 = vmul.f32 %v4297, %v4486
  %v4561 = vmul.f32 %v4298, %v4486
  %v4562 = vmul.f32 %v4299, %v4486
  %v4563 = vmul.f32 %v4300, %v4486
  %v4564 = vmul.f32 %v4301, %v4486
  %v4565 = vmul.f32 %v4302, %v4486
  %v4566 = vmul.f32 %v4303, %v4486
  %v4567 = vmul.f32 %v4304, %v4486
  %v4568 = vmul.f32 %v4305, %v4486
  %v4569 = vmul.f32 %v4306, %v4486
  %v4570 = vmul.f32 %v4307, %v4486
  %v4571 = vmul.f32 %v4308, %v4486
  %v4572 = vmul.f32 %v4309, %v4486
  %v4573 = vmul.f32 %v4310, %v4486
  %v4574 = vmul.f32 %v4311, %v4486
  %v4575 = vmul.f32 %v4312, %v4486
  %v4576 = vmul.f32 %v4313, %v4486
  %v4577 = vmul.f32 %v4314, %v4486
  %v4578 = vmul.f32 %v4315, %v4486
  %v4579 = vmul.f32 %v4316, %v4486
  %v4580 = vmul.f32 %v4317, %v4486
  %v4581 = vmul.f32 %v4318, %v4486
  %v4582 = vmul.f32 %v4319, %v4486
  %v4583 = vmul.f32 %v4320, %v4486
  %v4584 = vmul.f32 %v4321, %v4486
  %v4585 = vmul.f32 %v4322, %v4486
  %v4586 = vmul.f32 %v4323, %v4486
  %v4587 = vmul.f32 %v4324, %v4486
  %v4588 = vmul.f32 %v4325, %v4486
  %v4589 = vmul.f32 %v4326, %v4486
  %v4590 = vmul.f32 %v4327, %v4486
  %v4591 = vmul.f32 %v4328, %v4486
  %v4592 = vmul.f32 %v4329, %v4486
  %v4593 = vmul.f32 %v4330, %v4486
  %v4594 = vmul.f32 %v4331, %v4486
  %v4595 = vmul.f32 %v4332, %v4486
  %v4596 = vmul.f32 %v4333, %v4486
  %v4597 = vmul.f32 %v4334, %v4486
  %v4598 = vmul.f32 %v4335, %v4486
  %v4599 = vmul.f32 %v4336, %v4486
  %v4600 = vmul.f32 %v4337, %v4486
  %v4601 = vmul.f32 %v4338, %v4486
  %v4602 = vmul.f32 %v4339, %v4486
  %v4603 = vmul.f32 %v4340, %v4486
  %v4604 = vmul.f32 %v4341, %v4486
  %v4605 = vmul.f32 %v4342, %v4486
  %v4606 = vmul.f32 %v4343, %v4486
  %v4607 = vmul.f32 %v4344, %v4486
  %v4608 = vmul.f32 %v4345, %v4486
  %v4609 = vmul.f32 %v4346, %v4486
  %v4610 = vmul.f32 %v4347, %v4486
  %v4611 = vmul.f32 %v4348, %v4486
  %v4612 = vmul.f32 %v4349, %v4486
  %v4613 = vmul.f32 %v4350, %v4486
  %v4614 = vmul.f32 %v4351, %v4486
  %v4615 = vmul.f32 %v4352, %v4486
  %v4616 = vmul.f32 %v4353, %v4486
  %v4617 = vmul.f32 %v4354, %v4486
  %v4618 = vmul.f32 %v4355, %v4486
  %v4619 = vmul.f32 %v4356, %v4486
  %v4620 = vmul.f32 %v4357, %v4486
  %v4621 = vmul.f32 %v4358, %v4486
  %v4622 = vmul.f32 %v4359, %v4486
  %v4623 = vmul.f32 %v4360, %v4486
  %v4624 = vmul.f32 %v4361, %v4486
  %v4625 = vmul.f32 %v4362, %v4486
  %v4626 = vmul.f32 %v4363, %v4486
  %v4627 = vmul.f32 %v4364, %v4486
  %v4628 = vmul.f32 %v4365, %v4486
  %v4629 = vmul.f32 %v4366, %v4486
  %v4630 = vmul.f32 %v4367, %v4486
  %v4631 = vmul.f32 %v4368, %v4486
  %v4632 = vmul.f32 %v4369, %v4486
  %v4633 = vmul.f32 %v4370, %v4486
  %v4634 = vmul.f32 %v4371, %v4486
  %v4635 = vmul.f32 %v4372, %v4486
  %v4636 = vmul.f32 %v4373, %v4486
  %v4637 = vmul.f32 %v4374, %v4486
  %v4638 = vmul.f32 %v4375, %v4486
  %v4639 = vmul.f32 %v4376, %v4486
  %v4640 = vmul.f32 %v4377, %v4486
  %v4641 = vmul.f32 %v4378, %v4486
  %v4642 = vmul.f32 %v4379, %v4486
  %v4643 = vmul.f32 %v4380, %v4486
  %v4644 = vmul.f32 %v4381, %v4486
  %v4645 = vmul.f32 %v4382, %v4486
  %v4646 = vmul.f32 %v4383, %v4486
  %v4647 = vmul.f32 %v4384, %v4486
  %v4648 = vmul.f32 %v4385, %v4486
  %v4649 = vmul.f32 %v4386, %v4486
  %v4650 = vmul.f32 %v4387, %v4486
  %v4651 = vmul.f32 %v4388, %v4486
  %v4652 = vmul.f32 %v4389, %v4486
  %v4653 = vmul.f32 %v4390, %v4486
  %v4654 = vmul.f32 %v4391, %v4486
  %v4655 = vmul.f32 %v4392, %v4486
  %v4656 = vmul.f32 %v4393, %v4486
  %v4657 = vmul.f32 %v4394, %v4486
  %v4658 = vmul.f32 %v4395, %v4486
  %v4659 = vmul.f32 %v4396, %v4486
  %v4660 = vmul.f32 %v4397, %v4486
  %v4661 = vmul.f32 %v4398, %v4486
  %v4662 = vmul.f32 %v4399, %v4486
  %v4663 = vmul.f32 %v4400, %v4486
  %v4664 = vmul.f32 %v4401, %v4486
  %v4665 = vmul.f32 %v4402, %v4486
  %v4666 = vmul.f32 %v4403, %v4486
  %v4667 = vmul.f32 %v4404, %v4486
  %v4668 = vmul.f32 %v4405, %v4486
  %v4669 = vmul.f32 %v4406, %v4486
  %v4670 = vmul.f32 %v4407, %v4486
  %v4671 = vmul.f32 %v4408, %v4486
  %v4672 = vmul.f32 %v4409, %v4486
  %v4673 = vmul.f32 %v4410, %v4486
  %v4674 = vmul.f32 %v4411, %v4486
  %v4675 = vmul.f32 %v4412, %v4486
  %v4676 = vmul.f32 %v4413, %v4486
  %v4677 = vmul.f32 %v4414, %v4486
  %v4678 = vmul.f32 %v4415, %v4486
  %v4679 = vmul.f32 %v4416, %v4486
  %v4680 = vmul.f32 %v4417, %v4486
  %v4681 = vmul.f32 %v4418, %v4486
  %v4682 = vmul.f32 %v4419, %v4486
  %v4683 = vmul.f32 %v4420, %v4486
  %v4684 = vmul.f32 %v4421, %v4486
  %v4685 = vmul.f32 %v4422, %v4486
  %v4686 = vmul.f32 %v4423, %v4486
  %v4687 = vmul.f32 %v4424, %v4486
  %v4688 = vmul.f32 %v4425, %v4486
  %v4689 = vmul.f32 %v4426, %v4486
  %v4690 = vmul.f32 %v4427, %v4486
  %v4691 = vmul.f32 %v4428, %v4486
  %v4692 = vmul.f32 %v4429, %v4486
  %v4693 = vmul.f32 %v4430, %v4486
  %v4694 = vmul.f32 %v4431, %v4486
  %v4695 = vmul.f32 %v4432, %v4486
  %v4696 = vmul.f32 %v4433, %v4486
  %v4697 = vmul.f32 %v4434, %v4486
  %v4698 = vmul.f32 %v4435, %v4486
  %v4699 = vmul.f32 %v4436, %v4486
  %v4700 = vmul.f32 %v4437, %v4486
  %v4701 = vmul.f32 %v4438, %v4486
  %v4702 = vmul.f32 %v4439, %v4486
  %v4703 = vmul.f32 %v4440, %v4486
  %v4704 = vmul.f32 %v4441, %v4486
  %v4705 = vmul.f32 %v4442, %v4486
  %v4706 = vmul.f32 %v4443, %v4486
  %v4707 = vmul.f32 %v4444, %v4486
  %v4708 = vmul.f32 %v4445, %v4486
  %v4709 = vmul.f32 %v4446, %v4486
  %v4710 = vmul.f32 %v4447, %v4486
  %v4711 = vmul.f32 %v4448, %v4486
  %v4712 = vmul.f32 %v4449, %v4486
  %v4713 = vmul.f32 %v4450, %v4486
  %v4714 = vmul.f32 %v4451, %v4486
  %v4715 = vmul.f32 %v4452, %v4486
  %v4716 = vmul.f32 %v4453, %v4486
  %v4717 = vmul.f32 %v4454, %v4486
  %v4718 = vmul.f32 %v4455, %v4486
  %v4719 = vmul.f32 %v4456, %v4486
  %v4720 = vmul.f32 %v4457, %v4486
  %v4721 = vmul.f32 %v4458, %v4486
  %v4722 = vmul.f32 %v4459, %v4486
  %v4723 = vmul.f32 %v4460, %v4486
  %v4724 = vmul.f32 %v4461, %v4486
  %v4725 = vmul.f32 %v4462, %v4486
  %v4726 = vmul.f32 %v4463, %v4486
  %v4727 = vmul.f32 %v4464, %v4486
  %v4728 = vmul.f32 %v4465, %v4486
  %v4729 = vmul.f32 %v4466, %v4486
  %v4730 = vmul.f32 %v4467, %v4486
  %v4731 = vmul.f32 %v4468, %v4486
  %v4732 = vmul.f32 %v4469, %v4486
  %v4733 = vmul.f32 %v4470, %v4486
  %v4734 = vmul.f32 %v4471, %v4486
  %v4735 = vmul.f32 %v4472, %v4486
  %v4736 = vmul.f32 %v4473, %v4486
  %v4737 = vmul.f32 %v4474, %v4486
  %v4738 = vmul.f32 %v4475, %v4486
  %v4739 = vmul.f32 %v4476, %v4486
  %v4740 = vmul.f32 %v4477, %v4486
  %v4741 = vmul.f32 %v4478, %v4486
  %v4742 = vmul.f32 %v4479, %v4486
  %v4743 = vmul.f32 %v4480, %v4486
  %v4744 = vsel %vm1104, %v4488, 0.0
  %4745 = vadd.xlane.f32.xlu0 %v4744
  %v4746 = vpop.xlane.xlu0 %4745
  %v4747 = vsel %vm1104, %v4489, 0.0
  %4748 = vadd.xlane.f32.xlu0 %v4747
  %v4749 = vpop.xlane.xlu0 %4748
  %v4750 = vsel %vm1104, %v4490, 0.0
  %4751 = vadd.xlane.f32.xlu0 %v4750
  %v4752 = vpop.xlane.xlu0 %4751
  %v4753 = vsel %vm1104, %v4491, 0.0
  %4754 = vadd.xlane.f32.xlu0 %v4753
  %v4755 = vpop.xlane.xlu0 %4754
  %v4756 = vsel %vm1104, %v4492, 0.0
  %4757 = vadd.xlane.f32.xlu0 %v4756
  %v4758 = vpop.xlane.xlu0 %4757
  %v4759 = vsel %vm1104, %v4493, 0.0
  %4760 = vadd.xlane.f32.xlu0 %v4759
  %v4761 = vpop.xlane.xlu0 %4760
  %v4762 = vsel %vm1104, %v4494, 0.0
  %4763 = vadd.xlane.f32.xlu0 %v4762
  %v4764 = vpop.xlane.xlu0 %4763
  %v4765 = vsel %vm1104, %v4495, 0.0
  %4766 = vadd.xlane.f32.xlu0 %v4765
  %v4767 = vpop.xlane.xlu0 %4766
  %v4768 = vsel %vm1104, %v4496, 0.0
  %4769 = vadd.xlane.f32.xlu0 %v4768
  %v4770 = vpop.xlane.xlu0 %4769
  %v4771 = vsel %vm1104, %v4497, 0.0
  %4772 = vadd.xlane.f32.xlu0 %v4771
  %v4773 = vpop.xlane.xlu0 %4772
  %v4774 = vsel %vm1104, %v4498, 0.0
  %4775 = vadd.xlane.f32.xlu0 %v4774
  %v4776 = vpop.xlane.xlu0 %4775
  %v4777 = vsel %vm1104, %v4499, 0.0
  %4778 = vadd.xlane.f32.xlu0 %v4777
  %v4779 = vpop.xlane.xlu0 %4778
  %v4780 = vsel %vm1104, %v4500, 0.0
  %4781 = vadd.xlane.f32.xlu0 %v4780
  %v4782 = vpop.xlane.xlu0 %4781
  %v4783 = vsel %vm1104, %v4501, 0.0
  %4784 = vadd.xlane.f32.xlu0 %v4783
  %v4785 = vpop.xlane.xlu0 %4784
  %v4786 = vsel %vm1104, %v4502, 0.0
  %4787 = vadd.xlane.f32.xlu0 %v4786
  %v4788 = vpop.xlane.xlu0 %4787
  %v4789 = vsel %vm1104, %v4503, 0.0
  %4790 = vadd.xlane.f32.xlu0 %v4789
  %v4791 = vpop.xlane.xlu0 %4790
  %v4792 = vsel %vm1104, %v4504, 0.0
  %4793 = vadd.xlane.f32.xlu0 %v4792
  %v4794 = vpop.xlane.xlu0 %4793
  %v4795 = vsel %vm1104, %v4505, 0.0
  %4796 = vadd.xlane.f32.xlu0 %v4795
  %v4797 = vpop.xlane.xlu0 %4796
  %v4798 = vsel %vm1104, %v4506, 0.0
  %4799 = vadd.xlane.f32.xlu0 %v4798
  %v4800 = vpop.xlane.xlu0 %4799
  %v4801 = vsel %vm1104, %v4507, 0.0
  %4802 = vadd.xlane.f32.xlu0 %v4801
  %v4803 = vpop.xlane.xlu0 %4802
  %v4804 = vsel %vm1104, %v4508, 0.0
  %4805 = vadd.xlane.f32.xlu0 %v4804
  %v4806 = vpop.xlane.xlu0 %4805
  %v4807 = vsel %vm1104, %v4509, 0.0
  %4808 = vadd.xlane.f32.xlu0 %v4807
  %v4809 = vpop.xlane.xlu0 %4808
  %v4810 = vsel %vm1104, %v4510, 0.0
  %4811 = vadd.xlane.f32.xlu0 %v4810
  %v4812 = vpop.xlane.xlu0 %4811
  %v4813 = vsel %vm1104, %v4511, 0.0
  %4814 = vadd.xlane.f32.xlu0 %v4813
  %v4815 = vpop.xlane.xlu0 %4814
  %v4816 = vsel %vm1104, %v4512, 0.0
  %4817 = vadd.xlane.f32.xlu0 %v4816
  %v4818 = vpop.xlane.xlu0 %4817
  %v4819 = vsel %vm1104, %v4513, 0.0
  %4820 = vadd.xlane.f32.xlu0 %v4819
  %v4821 = vpop.xlane.xlu0 %4820
  %v4822 = vsel %vm1104, %v4514, 0.0
  %4823 = vadd.xlane.f32.xlu0 %v4822
  %v4824 = vpop.xlane.xlu0 %4823
  %v4825 = vsel %vm1104, %v4515, 0.0
  %4826 = vadd.xlane.f32.xlu0 %v4825
  %v4827 = vpop.xlane.xlu0 %4826
  %v4828 = vsel %vm1104, %v4516, 0.0
  %4829 = vadd.xlane.f32.xlu0 %v4828
  %v4830 = vpop.xlane.xlu0 %4829
  %v4831 = vsel %vm1104, %v4517, 0.0
  %4832 = vadd.xlane.f32.xlu0 %v4831
  %v4833 = vpop.xlane.xlu0 %4832
  %v4834 = vsel %vm1104, %v4518, 0.0
  %4835 = vadd.xlane.f32.xlu0 %v4834
  %v4836 = vpop.xlane.xlu0 %4835
  %v4837 = vsel %vm1104, %v4519, 0.0
  %4838 = vadd.xlane.f32.xlu0 %v4837
  %v4839 = vpop.xlane.xlu0 %4838
  %v4840 = vsel %vm1104, %v4520, 0.0
  %4841 = vadd.xlane.f32.xlu0 %v4840
  %v4842 = vpop.xlane.xlu0 %4841
  %v4843 = vsel %vm1104, %v4521, 0.0
  %4844 = vadd.xlane.f32.xlu0 %v4843
  %v4845 = vpop.xlane.xlu0 %4844
  %v4846 = vsel %vm1104, %v4522, 0.0
  %4847 = vadd.xlane.f32.xlu0 %v4846
  %v4848 = vpop.xlane.xlu0 %4847
  %v4849 = vsel %vm1104, %v4523, 0.0
  %4850 = vadd.xlane.f32.xlu0 %v4849
  %v4851 = vpop.xlane.xlu0 %4850
  %v4852 = vsel %vm1104, %v4524, 0.0
  %4853 = vadd.xlane.f32.xlu0 %v4852
  %v4854 = vpop.xlane.xlu0 %4853
  %v4855 = vsel %vm1104, %v4525, 0.0
  %4856 = vadd.xlane.f32.xlu0 %v4855
  %v4857 = vpop.xlane.xlu0 %4856
  %v4858 = vsel %vm1104, %v4526, 0.0
  %4859 = vadd.xlane.f32.xlu0 %v4858
  %v4860 = vpop.xlane.xlu0 %4859
  %v4861 = vsel %vm1104, %v4527, 0.0
  %4862 = vadd.xlane.f32.xlu0 %v4861
  %v4863 = vpop.xlane.xlu0 %4862
  %v4864 = vsel %vm1104, %v4528, 0.0
  %4865 = vadd.xlane.f32.xlu0 %v4864
  %v4866 = vpop.xlane.xlu0 %4865
  %v4867 = vsel %vm1104, %v4529, 0.0
  %4868 = vadd.xlane.f32.xlu0 %v4867
  %v4869 = vpop.xlane.xlu0 %4868
  %v4870 = vsel %vm1104, %v4530, 0.0
  %4871 = vadd.xlane.f32.xlu0 %v4870
  %v4872 = vpop.xlane.xlu0 %4871
  %v4873 = vsel %vm1104, %v4531, 0.0
  %4874 = vadd.xlane.f32.xlu0 %v4873
  %v4875 = vpop.xlane.xlu0 %4874
  %v4876 = vsel %vm1104, %v4532, 0.0
  %4877 = vadd.xlane.f32.xlu0 %v4876
  %v4878 = vpop.xlane.xlu0 %4877
  %v4879 = vsel %vm1104, %v4533, 0.0
  %4880 = vadd.xlane.f32.xlu0 %v4879
  %v4881 = vpop.xlane.xlu0 %4880
  %v4882 = vsel %vm1104, %v4534, 0.0
  %4883 = vadd.xlane.f32.xlu0 %v4882
  %v4884 = vpop.xlane.xlu0 %4883
  %v4885 = vsel %vm1104, %v4535, 0.0
  %4886 = vadd.xlane.f32.xlu0 %v4885
  %v4887 = vpop.xlane.xlu0 %4886
  %v4888 = vsel %vm1104, %v4536, 0.0
  %4889 = vadd.xlane.f32.xlu0 %v4888
  %v4890 = vpop.xlane.xlu0 %4889
  %v4891 = vsel %vm1104, %v4537, 0.0
  %4892 = vadd.xlane.f32.xlu0 %v4891
  %v4893 = vpop.xlane.xlu0 %4892
  %v4894 = vsel %vm1104, %v4538, 0.0
  %4895 = vadd.xlane.f32.xlu0 %v4894
  %v4896 = vpop.xlane.xlu0 %4895
  %v4897 = vsel %vm1104, %v4539, 0.0
  %4898 = vadd.xlane.f32.xlu0 %v4897
  %v4899 = vpop.xlane.xlu0 %4898
  %v4900 = vsel %vm1104, %v4540, 0.0
  %4901 = vadd.xlane.f32.xlu0 %v4900
  %v4902 = vpop.xlane.xlu0 %4901
  %v4903 = vsel %vm1104, %v4541, 0.0
  %4904 = vadd.xlane.f32.xlu0 %v4903
  %v4905 = vpop.xlane.xlu0 %4904
  %v4906 = vsel %vm1104, %v4542, 0.0
  %4907 = vadd.xlane.f32.xlu0 %v4906
  %v4908 = vpop.xlane.xlu0 %4907
  %v4909 = vsel %vm1104, %v4543, 0.0
  %4910 = vadd.xlane.f32.xlu0 %v4909
  %v4911 = vpop.xlane.xlu0 %4910
  %v4912 = vsel %vm1104, %v4544, 0.0
  %4913 = vadd.xlane.f32.xlu0 %v4912
  %v4914 = vpop.xlane.xlu0 %4913
  %v4915 = vsel %vm1104, %v4545, 0.0
  %4916 = vadd.xlane.f32.xlu0 %v4915
  %v4917 = vpop.xlane.xlu0 %4916
  %v4918 = vsel %vm1104, %v4546, 0.0
  %4919 = vadd.xlane.f32.xlu0 %v4918
  %v4920 = vpop.xlane.xlu0 %4919
  %v4921 = vsel %vm1104, %v4547, 0.0
  %4922 = vadd.xlane.f32.xlu0 %v4921
  %v4923 = vpop.xlane.xlu0 %4922
  %v4924 = vsel %vm1104, %v4548, 0.0
  %4925 = vadd.xlane.f32.xlu0 %v4924
  %v4926 = vpop.xlane.xlu0 %4925
  %v4927 = vsel %vm1104, %v4549, 0.0
  %4928 = vadd.xlane.f32.xlu0 %v4927
  %v4929 = vpop.xlane.xlu0 %4928
  %v4930 = vsel %vm1104, %v4550, 0.0
  %4931 = vadd.xlane.f32.xlu0 %v4930
  %v4932 = vpop.xlane.xlu0 %4931
  %v4933 = vsel %vm1104, %v4551, 0.0
  %4934 = vadd.xlane.f32.xlu0 %v4933
  %v4935 = vpop.xlane.xlu0 %4934
  %v4936 = vsel %vm1104, %v4552, 0.0
  %4937 = vadd.xlane.f32.xlu0 %v4936
  %v4938 = vpop.xlane.xlu0 %4937
  %v4939 = vsel %vm1104, %v4553, 0.0
  %4940 = vadd.xlane.f32.xlu0 %v4939
  %v4941 = vpop.xlane.xlu0 %4940
  %v4942 = vsel %vm1104, %v4554, 0.0
  %4943 = vadd.xlane.f32.xlu0 %v4942
  %v4944 = vpop.xlane.xlu0 %4943
  %v4945 = vsel %vm1104, %v4555, 0.0
  %4946 = vadd.xlane.f32.xlu0 %v4945
  %v4947 = vpop.xlane.xlu0 %4946
  %v4948 = vsel %vm1104, %v4556, 0.0
  %4949 = vadd.xlane.f32.xlu0 %v4948
  %v4950 = vpop.xlane.xlu0 %4949
  %v4951 = vsel %vm1104, %v4557, 0.0
  %4952 = vadd.xlane.f32.xlu0 %v4951
  %v4953 = vpop.xlane.xlu0 %4952
  %v4954 = vsel %vm1104, %v4558, 0.0
  %4955 = vadd.xlane.f32.xlu0 %v4954
  %v4956 = vpop.xlane.xlu0 %4955
  %v4957 = vsel %vm1104, %v4559, 0.0
  %4958 = vadd.xlane.f32.xlu0 %v4957
  %v4959 = vpop.xlane.xlu0 %4958
  %v4960 = vsel %vm1104, %v4560, 0.0
  %4961 = vadd.xlane.f32.xlu0 %v4960
  %v4962 = vpop.xlane.xlu0 %4961
  %v4963 = vsel %vm1104, %v4561, 0.0
  %4964 = vadd.xlane.f32.xlu0 %v4963
  %v4965 = vpop.xlane.xlu0 %4964
  %v4966 = vsel %vm1104, %v4562, 0.0
  %4967 = vadd.xlane.f32.xlu0 %v4966
  %v4968 = vpop.xlane.xlu0 %4967
  %v4969 = vsel %vm1104, %v4563, 0.0
  %4970 = vadd.xlane.f32.xlu0 %v4969
  %v4971 = vpop.xlane.xlu0 %4970
  %v4972 = vsel %vm1104, %v4564, 0.0
  %4973 = vadd.xlane.f32.xlu0 %v4972
  %v4974 = vpop.xlane.xlu0 %4973
  %v4975 = vsel %vm1104, %v4565, 0.0
  %4976 = vadd.xlane.f32.xlu0 %v4975
  %v4977 = vpop.xlane.xlu0 %4976
  %v4978 = vsel %vm1104, %v4566, 0.0
  %4979 = vadd.xlane.f32.xlu0 %v4978
  %v4980 = vpop.xlane.xlu0 %4979
  %v4981 = vsel %vm1104, %v4567, 0.0
  %4982 = vadd.xlane.f32.xlu0 %v4981
  %v4983 = vpop.xlane.xlu0 %4982
  %v4984 = vsel %vm1104, %v4568, 0.0
  %4985 = vadd.xlane.f32.xlu0 %v4984
  %v4986 = vpop.xlane.xlu0 %4985
  %v4987 = vsel %vm1104, %v4569, 0.0
  %4988 = vadd.xlane.f32.xlu0 %v4987
  %v4989 = vpop.xlane.xlu0 %4988
  %v4990 = vsel %vm1104, %v4570, 0.0
  %4991 = vadd.xlane.f32.xlu0 %v4990
  %v4992 = vpop.xlane.xlu0 %4991
  %v4993 = vsel %vm1104, %v4571, 0.0
  %4994 = vadd.xlane.f32.xlu0 %v4993
  %v4995 = vpop.xlane.xlu0 %4994
  %v4996 = vsel %vm1104, %v4572, 0.0
  %4997 = vadd.xlane.f32.xlu0 %v4996
  %v4998 = vpop.xlane.xlu0 %4997
  %v4999 = vsel %vm1104, %v4573, 0.0
  %5000 = vadd.xlane.f32.xlu0 %v4999
  %v5001 = vpop.xlane.xlu0 %5000
  %v5002 = vsel %vm1104, %v4574, 0.0
  %5003 = vadd.xlane.f32.xlu0 %v5002
  %v5004 = vpop.xlane.xlu0 %5003
  %v5005 = vsel %vm1104, %v4575, 0.0
  %5006 = vadd.xlane.f32.xlu0 %v5005
  %v5007 = vpop.xlane.xlu0 %5006
  %v5008 = vsel %vm1104, %v4576, 0.0
  %5009 = vadd.xlane.f32.xlu0 %v5008
  %v5010 = vpop.xlane.xlu0 %5009
  %v5011 = vsel %vm1104, %v4577, 0.0
  %5012 = vadd.xlane.f32.xlu0 %v5011
  %v5013 = vpop.xlane.xlu0 %5012
  %v5014 = vsel %vm1104, %v4578, 0.0
  %5015 = vadd.xlane.f32.xlu0 %v5014
  %v5016 = vpop.xlane.xlu0 %5015
  %v5017 = vsel %vm1104, %v4579, 0.0
  %5018 = vadd.xlane.f32.xlu0 %v5017
  %v5019 = vpop.xlane.xlu0 %5018
  %v5020 = vsel %vm1104, %v4580, 0.0
  %5021 = vadd.xlane.f32.xlu0 %v5020
  %v5022 = vpop.xlane.xlu0 %5021
  %v5023 = vsel %vm1104, %v4581, 0.0
  %5024 = vadd.xlane.f32.xlu0 %v5023
  %v5025 = vpop.xlane.xlu0 %5024
  %v5026 = vsel %vm1104, %v4582, 0.0
  %5027 = vadd.xlane.f32.xlu0 %v5026
  %v5028 = vpop.xlane.xlu0 %5027
  %v5029 = vsel %vm1104, %v4583, 0.0
  %5030 = vadd.xlane.f32.xlu0 %v5029
  %v5031 = vpop.xlane.xlu0 %5030
  %v5032 = vsel %vm1104, %v4584, 0.0
  %5033 = vadd.xlane.f32.xlu0 %v5032
  %v5034 = vpop.xlane.xlu0 %5033
  %v5035 = vsel %vm1104, %v4585, 0.0
  %5036 = vadd.xlane.f32.xlu0 %v5035
  %v5037 = vpop.xlane.xlu0 %5036
  %v5038 = vsel %vm1104, %v4586, 0.0
  %5039 = vadd.xlane.f32.xlu0 %v5038
  %v5040 = vpop.xlane.xlu0 %5039
  %v5041 = vsel %vm1104, %v4587, 0.0
  %5042 = vadd.xlane.f32.xlu0 %v5041
  %v5043 = vpop.xlane.xlu0 %5042
  %v5044 = vsel %vm1104, %v4588, 0.0
  %5045 = vadd.xlane.f32.xlu0 %v5044
  %v5046 = vpop.xlane.xlu0 %5045
  %v5047 = vsel %vm1104, %v4589, 0.0
  %5048 = vadd.xlane.f32.xlu0 %v5047
  %v5049 = vpop.xlane.xlu0 %5048
  %v5050 = vsel %vm1104, %v4590, 0.0
  %5051 = vadd.xlane.f32.xlu0 %v5050
  %v5052 = vpop.xlane.xlu0 %5051
  %v5053 = vsel %vm1104, %v4591, 0.0
  %5054 = vadd.xlane.f32.xlu0 %v5053
  %v5055 = vpop.xlane.xlu0 %5054
  %v5056 = vsel %vm1104, %v4592, 0.0
  %5057 = vadd.xlane.f32.xlu0 %v5056
  %v5058 = vpop.xlane.xlu0 %5057
  %v5059 = vsel %vm1104, %v4593, 0.0
  %5060 = vadd.xlane.f32.xlu0 %v5059
  %v5061 = vpop.xlane.xlu0 %5060
  %v5062 = vsel %vm1104, %v4594, 0.0
  %5063 = vadd.xlane.f32.xlu0 %v5062
  %v5064 = vpop.xlane.xlu0 %5063
  %v5065 = vsel %vm1104, %v4595, 0.0
  %5066 = vadd.xlane.f32.xlu0 %v5065
  %v5067 = vpop.xlane.xlu0 %5066
  %v5068 = vsel %vm1104, %v4596, 0.0
  %5069 = vadd.xlane.f32.xlu0 %v5068
  %v5070 = vpop.xlane.xlu0 %5069
  %v5071 = vsel %vm1104, %v4597, 0.0
  %5072 = vadd.xlane.f32.xlu0 %v5071
  %v5073 = vpop.xlane.xlu0 %5072
  %v5074 = vsel %vm1104, %v4598, 0.0
  %5075 = vadd.xlane.f32.xlu0 %v5074
  %v5076 = vpop.xlane.xlu0 %5075
  %v5077 = vsel %vm1104, %v4599, 0.0
  %5078 = vadd.xlane.f32.xlu0 %v5077
  %v5079 = vpop.xlane.xlu0 %5078
  %v5080 = vsel %vm1104, %v4600, 0.0
  %5081 = vadd.xlane.f32.xlu0 %v5080
  %v5082 = vpop.xlane.xlu0 %5081
  %v5083 = vsel %vm1104, %v4601, 0.0
  %5084 = vadd.xlane.f32.xlu0 %v5083
  %v5085 = vpop.xlane.xlu0 %5084
  %v5086 = vsel %vm1104, %v4602, 0.0
  %5087 = vadd.xlane.f32.xlu0 %v5086
  %v5088 = vpop.xlane.xlu0 %5087
  %v5089 = vsel %vm1104, %v4603, 0.0
  %5090 = vadd.xlane.f32.xlu0 %v5089
  %v5091 = vpop.xlane.xlu0 %5090
  %v5092 = vsel %vm1104, %v4604, 0.0
  %5093 = vadd.xlane.f32.xlu0 %v5092
  %v5094 = vpop.xlane.xlu0 %5093
  %v5095 = vsel %vm1104, %v4605, 0.0
  %5096 = vadd.xlane.f32.xlu0 %v5095
  %v5097 = vpop.xlane.xlu0 %5096
  %v5098 = vsel %vm1104, %v4606, 0.0
  %5099 = vadd.xlane.f32.xlu0 %v5098
  %v5100 = vpop.xlane.xlu0 %5099
  %v5101 = vsel %vm1104, %v4607, 0.0
  %5102 = vadd.xlane.f32.xlu0 %v5101
  %v5103 = vpop.xlane.xlu0 %5102
  %v5104 = vsel %vm1104, %v4608, 0.0
  %5105 = vadd.xlane.f32.xlu0 %v5104
  %v5106 = vpop.xlane.xlu0 %5105
  %v5107 = vsel %vm1104, %v4609, 0.0
  %5108 = vadd.xlane.f32.xlu0 %v5107
  %v5109 = vpop.xlane.xlu0 %5108
  %v5110 = vsel %vm1104, %v4610, 0.0
  %5111 = vadd.xlane.f32.xlu0 %v5110
  %v5112 = vpop.xlane.xlu0 %5111
  %v5113 = vsel %vm1104, %v4611, 0.0
  %5114 = vadd.xlane.f32.xlu0 %v5113
  %v5115 = vpop.xlane.xlu0 %5114
  %v5116 = vsel %vm1104, %v4612, 0.0
  %5117 = vadd.xlane.f32.xlu0 %v5116
  %v5118 = vpop.xlane.xlu0 %5117
  %v5119 = vsel %vm1104, %v4613, 0.0
  %5120 = vadd.xlane.f32.xlu0 %v5119
  %v5121 = vpop.xlane.xlu0 %5120
  %v5122 = vsel %vm1104, %v4614, 0.0
  %5123 = vadd.xlane.f32.xlu0 %v5122
  %v5124 = vpop.xlane.xlu0 %5123
  %v5125 = vsel %vm1104, %v4615, 0.0
  %5126 = vadd.xlane.f32.xlu0 %v5125
  %v5127 = vpop.xlane.xlu0 %5126
  %v5128 = vsel %vm1104, %v4616, 0.0
  %5129 = vadd.xlane.f32.xlu0 %v5128
  %v5130 = vpop.xlane.xlu0 %5129
  %v5131 = vsel %vm1104, %v4617, 0.0
  %5132 = vadd.xlane.f32.xlu0 %v5131
  %v5133 = vpop.xlane.xlu0 %5132
  %v5134 = vsel %vm1104, %v4618, 0.0
  %5135 = vadd.xlane.f32.xlu0 %v5134
  %v5136 = vpop.xlane.xlu0 %5135
  %v5137 = vsel %vm1104, %v4619, 0.0
  %5138 = vadd.xlane.f32.xlu0 %v5137
  %v5139 = vpop.xlane.xlu0 %5138
  %v5140 = vsel %vm1104, %v4620, 0.0
  %5141 = vadd.xlane.f32.xlu0 %v5140
  %v5142 = vpop.xlane.xlu0 %5141
  %v5143 = vsel %vm1104, %v4621, 0.0
  %5144 = vadd.xlane.f32.xlu0 %v5143
  %v5145 = vpop.xlane.xlu0 %5144
  %v5146 = vsel %vm1104, %v4622, 0.0
  %5147 = vadd.xlane.f32.xlu0 %v5146
  %v5148 = vpop.xlane.xlu0 %5147
  %v5149 = vsel %vm1104, %v4623, 0.0
  %5150 = vadd.xlane.f32.xlu0 %v5149
  %v5151 = vpop.xlane.xlu0 %5150
  %v5152 = vsel %vm1104, %v4624, 0.0
  %5153 = vadd.xlane.f32.xlu0 %v5152
  %v5154 = vpop.xlane.xlu0 %5153
  %v5155 = vsel %vm1104, %v4625, 0.0
  %5156 = vadd.xlane.f32.xlu0 %v5155
  %v5157 = vpop.xlane.xlu0 %5156
  %v5158 = vsel %vm1104, %v4626, 0.0
  %5159 = vadd.xlane.f32.xlu0 %v5158
  %v5160 = vpop.xlane.xlu0 %5159
  %v5161 = vsel %vm1104, %v4627, 0.0
  %5162 = vadd.xlane.f32.xlu0 %v5161
  %v5163 = vpop.xlane.xlu0 %5162
  %v5164 = vsel %vm1104, %v4628, 0.0
  %5165 = vadd.xlane.f32.xlu0 %v5164
  %v5166 = vpop.xlane.xlu0 %5165
  %v5167 = vsel %vm1104, %v4629, 0.0
  %5168 = vadd.xlane.f32.xlu0 %v5167
  %v5169 = vpop.xlane.xlu0 %5168
  %v5170 = vsel %vm1104, %v4630, 0.0
  %5171 = vadd.xlane.f32.xlu0 %v5170
  %v5172 = vpop.xlane.xlu0 %5171
  %v5173 = vsel %vm1104, %v4631, 0.0
  %5174 = vadd.xlane.f32.xlu0 %v5173
  %v5175 = vpop.xlane.xlu0 %5174
  %v5176 = vsel %vm1104, %v4632, 0.0
  %5177 = vadd.xlane.f32.xlu0 %v5176
  %v5178 = vpop.xlane.xlu0 %5177
  %v5179 = vsel %vm1104, %v4633, 0.0
  %5180 = vadd.xlane.f32.xlu0 %v5179
  %v5181 = vpop.xlane.xlu0 %5180
  %v5182 = vsel %vm1104, %v4634, 0.0
  %5183 = vadd.xlane.f32.xlu0 %v5182
  %v5184 = vpop.xlane.xlu0 %5183
  %v5185 = vsel %vm1104, %v4635, 0.0
  %5186 = vadd.xlane.f32.xlu0 %v5185
  %v5187 = vpop.xlane.xlu0 %5186
  %v5188 = vsel %vm1104, %v4636, 0.0
  %5189 = vadd.xlane.f32.xlu0 %v5188
  %v5190 = vpop.xlane.xlu0 %5189
  %v5191 = vsel %vm1104, %v4637, 0.0
  %5192 = vadd.xlane.f32.xlu0 %v5191
  %v5193 = vpop.xlane.xlu0 %5192
  %v5194 = vsel %vm1104, %v4638, 0.0
  %5195 = vadd.xlane.f32.xlu0 %v5194
  %v5196 = vpop.xlane.xlu0 %5195
  %v5197 = vsel %vm1104, %v4639, 0.0
  %5198 = vadd.xlane.f32.xlu0 %v5197
  %v5199 = vpop.xlane.xlu0 %5198
  %v5200 = vsel %vm1104, %v4640, 0.0
  %5201 = vadd.xlane.f32.xlu0 %v5200
  %v5202 = vpop.xlane.xlu0 %5201
  %v5203 = vsel %vm1104, %v4641, 0.0
  %5204 = vadd.xlane.f32.xlu0 %v5203
  %v5205 = vpop.xlane.xlu0 %5204
  %v5206 = vsel %vm1104, %v4642, 0.0
  %5207 = vadd.xlane.f32.xlu0 %v5206
  %v5208 = vpop.xlane.xlu0 %5207
  %v5209 = vsel %vm1104, %v4643, 0.0
  %5210 = vadd.xlane.f32.xlu0 %v5209
  %v5211 = vpop.xlane.xlu0 %5210
  %v5212 = vsel %vm1104, %v4644, 0.0
  %5213 = vadd.xlane.f32.xlu0 %v5212
  %v5214 = vpop.xlane.xlu0 %5213
  %v5215 = vsel %vm1104, %v4645, 0.0
  %5216 = vadd.xlane.f32.xlu0 %v5215
  %v5217 = vpop.xlane.xlu0 %5216
  %v5218 = vsel %vm1104, %v4646, 0.0
  %5219 = vadd.xlane.f32.xlu0 %v5218
  %v5220 = vpop.xlane.xlu0 %5219
  %v5221 = vsel %vm1104, %v4647, 0.0
  %5222 = vadd.xlane.f32.xlu0 %v5221
  %v5223 = vpop.xlane.xlu0 %5222
  %v5224 = vsel %vm1104, %v4648, 0.0
  %5225 = vadd.xlane.f32.xlu0 %v5224
  %v5226 = vpop.xlane.xlu0 %5225
  %v5227 = vsel %vm1104, %v4649, 0.0
  %5228 = vadd.xlane.f32.xlu0 %v5227
  %v5229 = vpop.xlane.xlu0 %5228
  %v5230 = vsel %vm1104, %v4650, 0.0
  %5231 = vadd.xlane.f32.xlu0 %v5230
  %v5232 = vpop.xlane.xlu0 %5231
  %v5233 = vsel %vm1104, %v4651, 0.0
  %5234 = vadd.xlane.f32.xlu0 %v5233
  %v5235 = vpop.xlane.xlu0 %5234
  %v5236 = vsel %vm1104, %v4652, 0.0
  %5237 = vadd.xlane.f32.xlu0 %v5236
  %v5238 = vpop.xlane.xlu0 %5237
  %v5239 = vsel %vm1104, %v4653, 0.0
  %5240 = vadd.xlane.f32.xlu0 %v5239
  %v5241 = vpop.xlane.xlu0 %5240
  %v5242 = vsel %vm1104, %v4654, 0.0
  %5243 = vadd.xlane.f32.xlu0 %v5242
  %v5244 = vpop.xlane.xlu0 %5243
  %v5245 = vsel %vm1104, %v4655, 0.0
  %5246 = vadd.xlane.f32.xlu0 %v5245
  %v5247 = vpop.xlane.xlu0 %5246
  %v5248 = vsel %vm1104, %v4656, 0.0
  %5249 = vadd.xlane.f32.xlu0 %v5248
  %v5250 = vpop.xlane.xlu0 %5249
  %v5251 = vsel %vm1104, %v4657, 0.0
  %5252 = vadd.xlane.f32.xlu0 %v5251
  %v5253 = vpop.xlane.xlu0 %5252
  %v5254 = vsel %vm1104, %v4658, 0.0
  %5255 = vadd.xlane.f32.xlu0 %v5254
  %v5256 = vpop.xlane.xlu0 %5255
  %v5257 = vsel %vm1104, %v4659, 0.0
  %5258 = vadd.xlane.f32.xlu0 %v5257
  %v5259 = vpop.xlane.xlu0 %5258
  %v5260 = vsel %vm1104, %v4660, 0.0
  %5261 = vadd.xlane.f32.xlu0 %v5260
  %v5262 = vpop.xlane.xlu0 %5261
  %v5263 = vsel %vm1104, %v4661, 0.0
  %5264 = vadd.xlane.f32.xlu0 %v5263
  %v5265 = vpop.xlane.xlu0 %5264
  %v5266 = vsel %vm1104, %v4662, 0.0
  %5267 = vadd.xlane.f32.xlu0 %v5266
  %v5268 = vpop.xlane.xlu0 %5267
  %v5269 = vsel %vm1104, %v4663, 0.0
  %5270 = vadd.xlane.f32.xlu0 %v5269
  %v5271 = vpop.xlane.xlu0 %5270
  %v5272 = vsel %vm1104, %v4664, 0.0
  %5273 = vadd.xlane.f32.xlu0 %v5272
  %v5274 = vpop.xlane.xlu0 %5273
  %v5275 = vsel %vm1104, %v4665, 0.0
  %5276 = vadd.xlane.f32.xlu0 %v5275
  %v5277 = vpop.xlane.xlu0 %5276
  %v5278 = vsel %vm1104, %v4666, 0.0
  %5279 = vadd.xlane.f32.xlu0 %v5278
  %v5280 = vpop.xlane.xlu0 %5279
  %v5281 = vsel %vm1104, %v4667, 0.0
  %5282 = vadd.xlane.f32.xlu0 %v5281
  %v5283 = vpop.xlane.xlu0 %5282
  %v5284 = vsel %vm1104, %v4668, 0.0
  %5285 = vadd.xlane.f32.xlu0 %v5284
  %v5286 = vpop.xlane.xlu0 %5285
  %v5287 = vsel %vm1104, %v4669, 0.0
  %5288 = vadd.xlane.f32.xlu0 %v5287
  %v5289 = vpop.xlane.xlu0 %5288
  %v5290 = vsel %vm1104, %v4670, 0.0
  %5291 = vadd.xlane.f32.xlu0 %v5290
  %v5292 = vpop.xlane.xlu0 %5291
  %v5293 = vsel %vm1104, %v4671, 0.0
  %5294 = vadd.xlane.f32.xlu0 %v5293
  %v5295 = vpop.xlane.xlu0 %5294
  %v5296 = vsel %vm1104, %v4672, 0.0
  %5297 = vadd.xlane.f32.xlu0 %v5296
  %v5298 = vpop.xlane.xlu0 %5297
  %v5299 = vsel %vm1104, %v4673, 0.0
  %5300 = vadd.xlane.f32.xlu0 %v5299
  %v5301 = vpop.xlane.xlu0 %5300
  %v5302 = vsel %vm1104, %v4674, 0.0
  %5303 = vadd.xlane.f32.xlu0 %v5302
  %v5304 = vpop.xlane.xlu0 %5303
  %v5305 = vsel %vm1104, %v4675, 0.0
  %5306 = vadd.xlane.f32.xlu0 %v5305
  %v5307 = vpop.xlane.xlu0 %5306
  %v5308 = vsel %vm1104, %v4676, 0.0
  %5309 = vadd.xlane.f32.xlu0 %v5308
  %v5310 = vpop.xlane.xlu0 %5309
  %v5311 = vsel %vm1104, %v4677, 0.0
  %5312 = vadd.xlane.f32.xlu0 %v5311
  %v5313 = vpop.xlane.xlu0 %5312
  %v5314 = vsel %vm1104, %v4678, 0.0
  %5315 = vadd.xlane.f32.xlu0 %v5314
  %v5316 = vpop.xlane.xlu0 %5315
  %v5317 = vsel %vm1104, %v4679, 0.0
  %5318 = vadd.xlane.f32.xlu0 %v5317
  %v5319 = vpop.xlane.xlu0 %5318
  %v5320 = vsel %vm1104, %v4680, 0.0
  %5321 = vadd.xlane.f32.xlu0 %v5320
  %v5322 = vpop.xlane.xlu0 %5321
  %v5323 = vsel %vm1104, %v4681, 0.0
  %5324 = vadd.xlane.f32.xlu0 %v5323
  %v5325 = vpop.xlane.xlu0 %5324
  %v5326 = vsel %vm1104, %v4682, 0.0
  %5327 = vadd.xlane.f32.xlu0 %v5326
  %v5328 = vpop.xlane.xlu0 %5327
  %v5329 = vsel %vm1104, %v4683, 0.0
  %5330 = vadd.xlane.f32.xlu0 %v5329
  %v5331 = vpop.xlane.xlu0 %5330
  %v5332 = vsel %vm1104, %v4684, 0.0
  %5333 = vadd.xlane.f32.xlu0 %v5332
  %v5334 = vpop.xlane.xlu0 %5333
  %v5335 = vsel %vm1104, %v4685, 0.0
  %5336 = vadd.xlane.f32.xlu0 %v5335
  %v5337 = vpop.xlane.xlu0 %5336
  %v5338 = vsel %vm1104, %v4686, 0.0
  %5339 = vadd.xlane.f32.xlu0 %v5338
  %v5340 = vpop.xlane.xlu0 %5339
  %v5341 = vsel %vm1104, %v4687, 0.0
  %5342 = vadd.xlane.f32.xlu0 %v5341
  %v5343 = vpop.xlane.xlu0 %5342
  %v5344 = vsel %vm1104, %v4688, 0.0
  %5345 = vadd.xlane.f32.xlu0 %v5344
  %v5346 = vpop.xlane.xlu0 %5345
  %v5347 = vsel %vm1104, %v4689, 0.0
  %5348 = vadd.xlane.f32.xlu0 %v5347
  %v5349 = vpop.xlane.xlu0 %5348
  %v5350 = vsel %vm1104, %v4690, 0.0
  %5351 = vadd.xlane.f32.xlu0 %v5350
  %v5352 = vpop.xlane.xlu0 %5351
  %v5353 = vsel %vm1104, %v4691, 0.0
  %5354 = vadd.xlane.f32.xlu0 %v5353
  %v5355 = vpop.xlane.xlu0 %5354
  %v5356 = vsel %vm1104, %v4692, 0.0
  %5357 = vadd.xlane.f32.xlu0 %v5356
  %v5358 = vpop.xlane.xlu0 %5357
  %v5359 = vsel %vm1104, %v4693, 0.0
  %5360 = vadd.xlane.f32.xlu0 %v5359
  %v5361 = vpop.xlane.xlu0 %5360
  %v5362 = vsel %vm1104, %v4694, 0.0
  %5363 = vadd.xlane.f32.xlu0 %v5362
  %v5364 = vpop.xlane.xlu0 %5363
  %v5365 = vsel %vm1104, %v4695, 0.0
  %5366 = vadd.xlane.f32.xlu0 %v5365
  %v5367 = vpop.xlane.xlu0 %5366
  %v5368 = vsel %vm1104, %v4696, 0.0
  %5369 = vadd.xlane.f32.xlu0 %v5368
  %v5370 = vpop.xlane.xlu0 %5369
  %v5371 = vsel %vm1104, %v4697, 0.0
  %5372 = vadd.xlane.f32.xlu0 %v5371
  %v5373 = vpop.xlane.xlu0 %5372
  %v5374 = vsel %vm1104, %v4698, 0.0
  %5375 = vadd.xlane.f32.xlu0 %v5374
  %v5376 = vpop.xlane.xlu0 %5375
  %v5377 = vsel %vm1104, %v4699, 0.0
  %5378 = vadd.xlane.f32.xlu0 %v5377
  %v5379 = vpop.xlane.xlu0 %5378
  %v5380 = vsel %vm1104, %v4700, 0.0
  %5381 = vadd.xlane.f32.xlu0 %v5380
  %v5382 = vpop.xlane.xlu0 %5381
  %v5383 = vsel %vm1104, %v4701, 0.0
  %5384 = vadd.xlane.f32.xlu0 %v5383
  %v5385 = vpop.xlane.xlu0 %5384
  %v5386 = vsel %vm1104, %v4702, 0.0
  %5387 = vadd.xlane.f32.xlu0 %v5386
  %v5388 = vpop.xlane.xlu0 %5387
  %v5389 = vsel %vm1104, %v4703, 0.0
  %5390 = vadd.xlane.f32.xlu0 %v5389
  %v5391 = vpop.xlane.xlu0 %5390
  %v5392 = vsel %vm1104, %v4704, 0.0
  %5393 = vadd.xlane.f32.xlu0 %v5392
  %v5394 = vpop.xlane.xlu0 %5393
  %v5395 = vsel %vm1104, %v4705, 0.0
  %5396 = vadd.xlane.f32.xlu0 %v5395
  %v5397 = vpop.xlane.xlu0 %5396
  %v5398 = vsel %vm1104, %v4706, 0.0
  %5399 = vadd.xlane.f32.xlu0 %v5398
  %v5400 = vpop.xlane.xlu0 %5399
  %v5401 = vsel %vm1104, %v4707, 0.0
  %5402 = vadd.xlane.f32.xlu0 %v5401
  %v5403 = vpop.xlane.xlu0 %5402
  %v5404 = vsel %vm1104, %v4708, 0.0
  %5405 = vadd.xlane.f32.xlu0 %v5404
  %v5406 = vpop.xlane.xlu0 %5405
  %v5407 = vsel %vm1104, %v4709, 0.0
  %5408 = vadd.xlane.f32.xlu0 %v5407
  %v5409 = vpop.xlane.xlu0 %5408
  %v5410 = vsel %vm1104, %v4710, 0.0
  %5411 = vadd.xlane.f32.xlu0 %v5410
  %v5412 = vpop.xlane.xlu0 %5411
  %v5413 = vsel %vm1104, %v4711, 0.0
  %5414 = vadd.xlane.f32.xlu0 %v5413
  %v5415 = vpop.xlane.xlu0 %5414
  %v5416 = vsel %vm1104, %v4712, 0.0
  %5417 = vadd.xlane.f32.xlu0 %v5416
  %v5418 = vpop.xlane.xlu0 %5417
  %v5419 = vsel %vm1104, %v4713, 0.0
  %5420 = vadd.xlane.f32.xlu0 %v5419
  %v5421 = vpop.xlane.xlu0 %5420
  %v5422 = vsel %vm1104, %v4714, 0.0
  %5423 = vadd.xlane.f32.xlu0 %v5422
  %v5424 = vpop.xlane.xlu0 %5423
  %v5425 = vsel %vm1104, %v4715, 0.0
  %5426 = vadd.xlane.f32.xlu0 %v5425
  %v5427 = vpop.xlane.xlu0 %5426
  %v5428 = vsel %vm1104, %v4716, 0.0
  %5429 = vadd.xlane.f32.xlu0 %v5428
  %v5430 = vpop.xlane.xlu0 %5429
  %v5431 = vsel %vm1104, %v4717, 0.0
  %5432 = vadd.xlane.f32.xlu0 %v5431
  %v5433 = vpop.xlane.xlu0 %5432
  %v5434 = vsel %vm1104, %v4718, 0.0
  %5435 = vadd.xlane.f32.xlu0 %v5434
  %v5436 = vpop.xlane.xlu0 %5435
  %v5437 = vsel %vm1104, %v4719, 0.0
  %5438 = vadd.xlane.f32.xlu0 %v5437
  %v5439 = vpop.xlane.xlu0 %5438
  %v5440 = vsel %vm1104, %v4720, 0.0
  %5441 = vadd.xlane.f32.xlu0 %v5440
  %v5442 = vpop.xlane.xlu0 %5441
  %v5443 = vsel %vm1104, %v4721, 0.0
  %5444 = vadd.xlane.f32.xlu0 %v5443
  %v5445 = vpop.xlane.xlu0 %5444
  %v5446 = vsel %vm1104, %v4722, 0.0
  %5447 = vadd.xlane.f32.xlu0 %v5446
  %v5448 = vpop.xlane.xlu0 %5447
  %v5449 = vsel %vm1104, %v4723, 0.0
  %5450 = vadd.xlane.f32.xlu0 %v5449
  %v5451 = vpop.xlane.xlu0 %5450
  %v5452 = vsel %vm1104, %v4724, 0.0
  %5453 = vadd.xlane.f32.xlu0 %v5452
  %v5454 = vpop.xlane.xlu0 %5453
  %v5455 = vsel %vm1104, %v4725, 0.0
  %5456 = vadd.xlane.f32.xlu0 %v5455
  %v5457 = vpop.xlane.xlu0 %5456
  %v5458 = vsel %vm1104, %v4726, 0.0
  %5459 = vadd.xlane.f32.xlu0 %v5458
  %v5460 = vpop.xlane.xlu0 %5459
  %v5461 = vsel %vm1104, %v4727, 0.0
  %5462 = vadd.xlane.f32.xlu0 %v5461
  %v5463 = vpop.xlane.xlu0 %5462
  %v5464 = vsel %vm1104, %v4728, 0.0
  %5465 = vadd.xlane.f32.xlu0 %v5464
  %v5466 = vpop.xlane.xlu0 %5465
  %v5467 = vsel %vm1104, %v4729, 0.0
  %5468 = vadd.xlane.f32.xlu0 %v5467
  %v5469 = vpop.xlane.xlu0 %5468
  %v5470 = vsel %vm1104, %v4730, 0.0
  %5471 = vadd.xlane.f32.xlu0 %v5470
  %v5472 = vpop.xlane.xlu0 %5471
  %v5473 = vsel %vm1104, %v4731, 0.0
  %5474 = vadd.xlane.f32.xlu0 %v5473
  %v5475 = vpop.xlane.xlu0 %5474
  %v5476 = vsel %vm1104, %v4732, 0.0
  %5477 = vadd.xlane.f32.xlu0 %v5476
  %v5478 = vpop.xlane.xlu0 %5477
  %v5479 = vsel %vm1104, %v4733, 0.0
  %5480 = vadd.xlane.f32.xlu0 %v5479
  %v5481 = vpop.xlane.xlu0 %5480
  %v5482 = vsel %vm1104, %v4734, 0.0
  %5483 = vadd.xlane.f32.xlu0 %v5482
  %v5484 = vpop.xlane.xlu0 %5483
  %v5485 = vsel %vm1104, %v4735, 0.0
  %5486 = vadd.xlane.f32.xlu0 %v5485
  %v5487 = vpop.xlane.xlu0 %5486
  %v5488 = vsel %vm1104, %v4736, 0.0
  %5489 = vadd.xlane.f32.xlu0 %v5488
  %v5490 = vpop.xlane.xlu0 %5489
  %v5491 = vsel %vm1104, %v4737, 0.0
  %5492 = vadd.xlane.f32.xlu0 %v5491
  %v5493 = vpop.xlane.xlu0 %5492
  %v5494 = vsel %vm1104, %v4738, 0.0
  %5495 = vadd.xlane.f32.xlu0 %v5494
  %v5496 = vpop.xlane.xlu0 %5495
  %v5497 = vsel %vm1104, %v4739, 0.0
  %5498 = vadd.xlane.f32.xlu0 %v5497
  %v5499 = vpop.xlane.xlu0 %5498
  %v5500 = vsel %vm1104, %v4740, 0.0
  %5501 = vadd.xlane.f32.xlu0 %v5500
  %v5502 = vpop.xlane.xlu0 %5501
  %v5503 = vsel %vm1104, %v4741, 0.0
  %5504 = vadd.xlane.f32.xlu0 %v5503
  %v5505 = vpop.xlane.xlu0 %5504
  %v5506 = vsel %vm1104, %v4742, 0.0
  %5507 = vadd.xlane.f32.xlu0 %v5506
  %v5508 = vpop.xlane.xlu0 %5507
  %v5509 = vsel %vm1104, %v4743, 0.0
  %5510 = vadd.xlane.f32.xlu0 %v5509
  %v5511 = vpop.xlane.xlu0 %5510
  %v5768 = vlaneseq
  %v5769 = vand.u32 %v5768, 127
  %v5770 = vlaneseq
  %v5771 = vshrl.u32 %v5770, 7
  %v5772 = vsub.s32 %v5769, %v5771
  %v5773 = vrot.slane %v4746, %v5772
  %v5774 = vlaneseq
  %v5775 = vshrl.u32 %v5774, 7
  %v5776 = vsub.s32 %v5769, %v5775
  %v5777 = vrot.slane %v4749, %v5776
  %v5778 = vlaneseq
  %v5779 = vshrl.u32 %v5778, 7
  %v5780 = vsub.s32 %v5769, %v5779
  %v5781 = vrot.slane %v4752, %v5780
  %v5782 = vlaneseq
  %v5783 = vshrl.u32 %v5782, 7
  %v5784 = vsub.s32 %v5769, %v5783
  %v5785 = vrot.slane %v4755, %v5784
  %v5786 = vlaneseq
  %v5787 = vshrl.u32 %v5786, 7
  %v5788 = vsub.s32 %v5769, %v5787
  %v5789 = vrot.slane %v4758, %v5788
  %v5790 = vlaneseq
  %v5791 = vshrl.u32 %v5790, 7
  %v5792 = vsub.s32 %v5769, %v5791
  %v5793 = vrot.slane %v4761, %v5792
  %v5794 = vlaneseq
  %v5795 = vshrl.u32 %v5794, 7
  %v5796 = vsub.s32 %v5769, %v5795
  %v5797 = vrot.slane %v4764, %v5796
  %v5798 = vlaneseq
  %v5799 = vshrl.u32 %v5798, 7
  %v5800 = vsub.s32 %v5769, %v5799
  %v5801 = vrot.slane %v4767, %v5800
  %v5802 = vlaneseq
  %v5803 = vshrl.u32 %v5802, 7
  %v5804 = vsub.s32 %v5769, %v5803
  %v5805 = vrot.slane %v4770, %v5804
  %v5806 = vlaneseq
  %v5807 = vshrl.u32 %v5806, 7
  %v5808 = vsub.s32 %v5769, %v5807
  %v5809 = vrot.slane %v4773, %v5808
  %v5810 = vlaneseq
  %v5811 = vshrl.u32 %v5810, 7
  %v5812 = vsub.s32 %v5769, %v5811
  %v5813 = vrot.slane %v4776, %v5812
  %v5814 = vlaneseq
  %v5815 = vshrl.u32 %v5814, 7
  %v5816 = vsub.s32 %v5769, %v5815
  %v5817 = vrot.slane %v4779, %v5816
  %v5818 = vlaneseq
  %v5819 = vshrl.u32 %v5818, 7
  %v5820 = vsub.s32 %v5769, %v5819
  %v5821 = vrot.slane %v4782, %v5820
  %v5822 = vlaneseq
  %v5823 = vshrl.u32 %v5822, 7
  %v5824 = vsub.s32 %v5769, %v5823
  %v5825 = vrot.slane %v4785, %v5824
  %v5826 = vlaneseq
  %v5827 = vshrl.u32 %v5826, 7
  %v5828 = vsub.s32 %v5769, %v5827
  %v5829 = vrot.slane %v4788, %v5828
  %v5830 = vlaneseq
  %v5831 = vshrl.u32 %v5830, 7
  %v5832 = vsub.s32 %v5769, %v5831
  %v5833 = vrot.slane %v4791, %v5832
  %v5834 = vlaneseq
  %v5835 = vshrl.u32 %v5834, 7
  %v5836 = vsub.s32 %v5769, %v5835
  %v5837 = vrot.slane %v4794, %v5836
  %v5838 = vlaneseq
  %v5839 = vshrl.u32 %v5838, 7
  %v5840 = vsub.s32 %v5769, %v5839
  %v5841 = vrot.slane %v4797, %v5840
  %v5842 = vlaneseq
  %v5843 = vshrl.u32 %v5842, 7
  %v5844 = vsub.s32 %v5769, %v5843
  %v5845 = vrot.slane %v4800, %v5844
  %v5846 = vlaneseq
  %v5847 = vshrl.u32 %v5846, 7
  %v5848 = vsub.s32 %v5769, %v5847
  %v5849 = vrot.slane %v4803, %v5848
  %v5850 = vlaneseq
  %v5851 = vshrl.u32 %v5850, 7
  %v5852 = vsub.s32 %v5769, %v5851
  %v5853 = vrot.slane %v4806, %v5852
  %v5854 = vlaneseq
  %v5855 = vshrl.u32 %v5854, 7
  %v5856 = vsub.s32 %v5769, %v5855
  %v5857 = vrot.slane %v4809, %v5856
  %v5858 = vlaneseq
  %v5859 = vshrl.u32 %v5858, 7
  %v5860 = vsub.s32 %v5769, %v5859
  %v5861 = vrot.slane %v4812, %v5860
  %v5862 = vlaneseq
  %v5863 = vshrl.u32 %v5862, 7
  %v5864 = vsub.s32 %v5769, %v5863
  %v5865 = vrot.slane %v4815, %v5864
  %v5866 = vlaneseq
  %v5867 = vshrl.u32 %v5866, 7
  %v5868 = vsub.s32 %v5769, %v5867
  %v5869 = vrot.slane %v4818, %v5868
  %v5870 = vlaneseq
  %v5871 = vshrl.u32 %v5870, 7
  %v5872 = vsub.s32 %v5769, %v5871
  %v5873 = vrot.slane %v4821, %v5872
  %v5874 = vlaneseq
  %v5875 = vshrl.u32 %v5874, 7
  %v5876 = vsub.s32 %v5769, %v5875
  %v5877 = vrot.slane %v4824, %v5876
  %v5878 = vlaneseq
  %v5879 = vshrl.u32 %v5878, 7
  %v5880 = vsub.s32 %v5769, %v5879
  %v5881 = vrot.slane %v4827, %v5880
  %v5882 = vlaneseq
  %v5883 = vshrl.u32 %v5882, 7
  %v5884 = vsub.s32 %v5769, %v5883
  %v5885 = vrot.slane %v4830, %v5884
  %v5886 = vlaneseq
  %v5887 = vshrl.u32 %v5886, 7
  %v5888 = vsub.s32 %v5769, %v5887
  %v5889 = vrot.slane %v4833, %v5888
  %v5890 = vlaneseq
  %v5891 = vshrl.u32 %v5890, 7
  %v5892 = vsub.s32 %v5769, %v5891
  %v5893 = vrot.slane %v4836, %v5892
  %v5894 = vlaneseq
  %v5895 = vshrl.u32 %v5894, 7
  %v5896 = vsub.s32 %v5769, %v5895
  %v5897 = vrot.slane %v4839, %v5896
  %v5898 = vlaneseq
  %v5899 = vshrl.u32 %v5898, 7
  %v5900 = vsub.s32 %v5769, %v5899
  %v5901 = vrot.slane %v4842, %v5900
  %v5902 = vlaneseq
  %v5903 = vshrl.u32 %v5902, 7
  %v5904 = vsub.s32 %v5769, %v5903
  %v5905 = vrot.slane %v4845, %v5904
  %v5906 = vlaneseq
  %v5907 = vshrl.u32 %v5906, 7
  %v5908 = vsub.s32 %v5769, %v5907
  %v5909 = vrot.slane %v4848, %v5908
  %v5910 = vlaneseq
  %v5911 = vshrl.u32 %v5910, 7
  %v5912 = vsub.s32 %v5769, %v5911
  %v5913 = vrot.slane %v4851, %v5912
  %v5914 = vlaneseq
  %v5915 = vshrl.u32 %v5914, 7
  %v5916 = vsub.s32 %v5769, %v5915
  %v5917 = vrot.slane %v4854, %v5916
  %v5918 = vlaneseq
  %v5919 = vshrl.u32 %v5918, 7
  %v5920 = vsub.s32 %v5769, %v5919
  %v5921 = vrot.slane %v4857, %v5920
  %v5922 = vlaneseq
  %v5923 = vshrl.u32 %v5922, 7
  %v5924 = vsub.s32 %v5769, %v5923
  %v5925 = vrot.slane %v4860, %v5924
  %v5926 = vlaneseq
  %v5927 = vshrl.u32 %v5926, 7
  %v5928 = vsub.s32 %v5769, %v5927
  %v5929 = vrot.slane %v4863, %v5928
  %v5930 = vlaneseq
  %v5931 = vshrl.u32 %v5930, 7
  %v5932 = vsub.s32 %v5769, %v5931
  %v5933 = vrot.slane %v4866, %v5932
  %v5934 = vlaneseq
  %v5935 = vshrl.u32 %v5934, 7
  %v5936 = vsub.s32 %v5769, %v5935
  %v5937 = vrot.slane %v4869, %v5936
  %v5938 = vlaneseq
  %v5939 = vshrl.u32 %v5938, 7
  %v5940 = vsub.s32 %v5769, %v5939
  %v5941 = vrot.slane %v4872, %v5940
  %v5942 = vlaneseq
  %v5943 = vshrl.u32 %v5942, 7
  %v5944 = vsub.s32 %v5769, %v5943
  %v5945 = vrot.slane %v4875, %v5944
  %v5946 = vlaneseq
  %v5947 = vshrl.u32 %v5946, 7
  %v5948 = vsub.s32 %v5769, %v5947
  %v5949 = vrot.slane %v4878, %v5948
  %v5950 = vlaneseq
  %v5951 = vshrl.u32 %v5950, 7
  %v5952 = vsub.s32 %v5769, %v5951
  %v5953 = vrot.slane %v4881, %v5952
  %v5954 = vlaneseq
  %v5955 = vshrl.u32 %v5954, 7
  %v5956 = vsub.s32 %v5769, %v5955
  %v5957 = vrot.slane %v4884, %v5956
  %v5958 = vlaneseq
  %v5959 = vshrl.u32 %v5958, 7
  %v5960 = vsub.s32 %v5769, %v5959
  %v5961 = vrot.slane %v4887, %v5960
  %v5962 = vlaneseq
  %v5963 = vshrl.u32 %v5962, 7
  %v5964 = vsub.s32 %v5769, %v5963
  %v5965 = vrot.slane %v4890, %v5964
  %v5966 = vlaneseq
  %v5967 = vshrl.u32 %v5966, 7
  %v5968 = vsub.s32 %v5769, %v5967
  %v5969 = vrot.slane %v4893, %v5968
  %v5970 = vlaneseq
  %v5971 = vshrl.u32 %v5970, 7
  %v5972 = vsub.s32 %v5769, %v5971
  %v5973 = vrot.slane %v4896, %v5972
  %v5974 = vlaneseq
  %v5975 = vshrl.u32 %v5974, 7
  %v5976 = vsub.s32 %v5769, %v5975
  %v5977 = vrot.slane %v4899, %v5976
  %v5978 = vlaneseq
  %v5979 = vshrl.u32 %v5978, 7
  %v5980 = vsub.s32 %v5769, %v5979
  %v5981 = vrot.slane %v4902, %v5980
  %v5982 = vlaneseq
  %v5983 = vshrl.u32 %v5982, 7
  %v5984 = vsub.s32 %v5769, %v5983
  %v5985 = vrot.slane %v4905, %v5984
  %v5986 = vlaneseq
  %v5987 = vshrl.u32 %v5986, 7
  %v5988 = vsub.s32 %v5769, %v5987
  %v5989 = vrot.slane %v4908, %v5988
  %v5990 = vlaneseq
  %v5991 = vshrl.u32 %v5990, 7
  %v5992 = vsub.s32 %v5769, %v5991
  %v5993 = vrot.slane %v4911, %v5992
  %v5994 = vlaneseq
  %v5995 = vshrl.u32 %v5994, 7
  %v5996 = vsub.s32 %v5769, %v5995
  %v5997 = vrot.slane %v4914, %v5996
  %v5998 = vlaneseq
  %v5999 = vshrl.u32 %v5998, 7
  %v6000 = vsub.s32 %v5769, %v5999
  %v6001 = vrot.slane %v4917, %v6000
  %v6002 = vlaneseq
  %v6003 = vshrl.u32 %v6002, 7
  %v6004 = vsub.s32 %v5769, %v6003
  %v6005 = vrot.slane %v4920, %v6004
  %v6006 = vlaneseq
  %v6007 = vshrl.u32 %v6006, 7
  %v6008 = vsub.s32 %v5769, %v6007
  %v6009 = vrot.slane %v4923, %v6008
  %v6010 = vlaneseq
  %v6011 = vshrl.u32 %v6010, 7
  %v6012 = vsub.s32 %v5769, %v6011
  %v6013 = vrot.slane %v4926, %v6012
  %v6014 = vlaneseq
  %v6015 = vshrl.u32 %v6014, 7
  %v6016 = vsub.s32 %v5769, %v6015
  %v6017 = vrot.slane %v4929, %v6016
  %v6018 = vlaneseq
  %v6019 = vshrl.u32 %v6018, 7
  %v6020 = vsub.s32 %v5769, %v6019
  %v6021 = vrot.slane %v4932, %v6020
  %v6022 = vlaneseq
  %v6023 = vshrl.u32 %v6022, 7
  %v6024 = vsub.s32 %v5769, %v6023
  %v6025 = vrot.slane %v4935, %v6024
  %v6026 = vlaneseq
  %v6027 = vshrl.u32 %v6026, 7
  %v6028 = vsub.s32 %v5769, %v6027
  %v6029 = vrot.slane %v4938, %v6028
  %v6030 = vlaneseq
  %v6031 = vshrl.u32 %v6030, 7
  %v6032 = vsub.s32 %v5769, %v6031
  %v6033 = vrot.slane %v4941, %v6032
  %v6034 = vlaneseq
  %v6035 = vshrl.u32 %v6034, 7
  %v6036 = vsub.s32 %v5769, %v6035
  %v6037 = vrot.slane %v4944, %v6036
  %v6038 = vlaneseq
  %v6039 = vshrl.u32 %v6038, 7
  %v6040 = vsub.s32 %v5769, %v6039
  %v6041 = vrot.slane %v4947, %v6040
  %v6042 = vlaneseq
  %v6043 = vshrl.u32 %v6042, 7
  %v6044 = vsub.s32 %v5769, %v6043
  %v6045 = vrot.slane %v4950, %v6044
  %v6046 = vlaneseq
  %v6047 = vshrl.u32 %v6046, 7
  %v6048 = vsub.s32 %v5769, %v6047
  %v6049 = vrot.slane %v4953, %v6048
  %v6050 = vlaneseq
  %v6051 = vshrl.u32 %v6050, 7
  %v6052 = vsub.s32 %v5769, %v6051
  %v6053 = vrot.slane %v4956, %v6052
  %v6054 = vlaneseq
  %v6055 = vshrl.u32 %v6054, 7
  %v6056 = vsub.s32 %v5769, %v6055
  %v6057 = vrot.slane %v4959, %v6056
  %v6058 = vlaneseq
  %v6059 = vshrl.u32 %v6058, 7
  %v6060 = vsub.s32 %v5769, %v6059
  %v6061 = vrot.slane %v4962, %v6060
  %v6062 = vlaneseq
  %v6063 = vshrl.u32 %v6062, 7
  %v6064 = vsub.s32 %v5769, %v6063
  %v6065 = vrot.slane %v4965, %v6064
  %v6066 = vlaneseq
  %v6067 = vshrl.u32 %v6066, 7
  %v6068 = vsub.s32 %v5769, %v6067
  %v6069 = vrot.slane %v4968, %v6068
  %v6070 = vlaneseq
  %v6071 = vshrl.u32 %v6070, 7
  %v6072 = vsub.s32 %v5769, %v6071
  %v6073 = vrot.slane %v4971, %v6072
  %v6074 = vlaneseq
  %v6075 = vshrl.u32 %v6074, 7
  %v6076 = vsub.s32 %v5769, %v6075
  %v6077 = vrot.slane %v4974, %v6076
  %v6078 = vlaneseq
  %v6079 = vshrl.u32 %v6078, 7
  %v6080 = vsub.s32 %v5769, %v6079
  %v6081 = vrot.slane %v4977, %v6080
  %v6082 = vlaneseq
  %v6083 = vshrl.u32 %v6082, 7
  %v6084 = vsub.s32 %v5769, %v6083
  %v6085 = vrot.slane %v4980, %v6084
  %v6086 = vlaneseq
  %v6087 = vshrl.u32 %v6086, 7
  %v6088 = vsub.s32 %v5769, %v6087
  %v6089 = vrot.slane %v4983, %v6088
  %v6090 = vlaneseq
  %v6091 = vshrl.u32 %v6090, 7
  %v6092 = vsub.s32 %v5769, %v6091
  %v6093 = vrot.slane %v4986, %v6092
  %v6094 = vlaneseq
  %v6095 = vshrl.u32 %v6094, 7
  %v6096 = vsub.s32 %v5769, %v6095
  %v6097 = vrot.slane %v4989, %v6096
  %v6098 = vlaneseq
  %v6099 = vshrl.u32 %v6098, 7
  %v6100 = vsub.s32 %v5769, %v6099
  %v6101 = vrot.slane %v4992, %v6100
  %v6102 = vlaneseq
  %v6103 = vshrl.u32 %v6102, 7
  %v6104 = vsub.s32 %v5769, %v6103
  %v6105 = vrot.slane %v4995, %v6104
  %v6106 = vlaneseq
  %v6107 = vshrl.u32 %v6106, 7
  %v6108 = vsub.s32 %v5769, %v6107
  %v6109 = vrot.slane %v4998, %v6108
  %v6110 = vlaneseq
  %v6111 = vshrl.u32 %v6110, 7
  %v6112 = vsub.s32 %v5769, %v6111
  %v6113 = vrot.slane %v5001, %v6112
  %v6114 = vlaneseq
  %v6115 = vshrl.u32 %v6114, 7
  %v6116 = vsub.s32 %v5769, %v6115
  %v6117 = vrot.slane %v5004, %v6116
  %v6118 = vlaneseq
  %v6119 = vshrl.u32 %v6118, 7
  %v6120 = vsub.s32 %v5769, %v6119
  %v6121 = vrot.slane %v5007, %v6120
  %v6122 = vlaneseq
  %v6123 = vshrl.u32 %v6122, 7
  %v6124 = vsub.s32 %v5769, %v6123
  %v6125 = vrot.slane %v5010, %v6124
  %v6126 = vlaneseq
  %v6127 = vshrl.u32 %v6126, 7
  %v6128 = vsub.s32 %v5769, %v6127
  %v6129 = vrot.slane %v5013, %v6128
  %v6130 = vlaneseq
  %v6131 = vshrl.u32 %v6130, 7
  %v6132 = vsub.s32 %v5769, %v6131
  %v6133 = vrot.slane %v5016, %v6132
  %v6134 = vlaneseq
  %v6135 = vshrl.u32 %v6134, 7
  %v6136 = vsub.s32 %v5769, %v6135
  %v6137 = vrot.slane %v5019, %v6136
  %v6138 = vlaneseq
  %v6139 = vshrl.u32 %v6138, 7
  %v6140 = vsub.s32 %v5769, %v6139
  %v6141 = vrot.slane %v5022, %v6140
  %v6142 = vlaneseq
  %v6143 = vshrl.u32 %v6142, 7
  %v6144 = vsub.s32 %v5769, %v6143
  %v6145 = vrot.slane %v5025, %v6144
  %v6146 = vlaneseq
  %v6147 = vshrl.u32 %v6146, 7
  %v6148 = vsub.s32 %v5769, %v6147
  %v6149 = vrot.slane %v5028, %v6148
  %v6150 = vlaneseq
  %v6151 = vshrl.u32 %v6150, 7
  %v6152 = vsub.s32 %v5769, %v6151
  %v6153 = vrot.slane %v5031, %v6152
  %v6154 = vlaneseq
  %v6155 = vshrl.u32 %v6154, 7
  %v6156 = vsub.s32 %v5769, %v6155
  %v6157 = vrot.slane %v5034, %v6156
  %v6158 = vlaneseq
  %v6159 = vshrl.u32 %v6158, 7
  %v6160 = vsub.s32 %v5769, %v6159
  %v6161 = vrot.slane %v5037, %v6160
  %v6162 = vlaneseq
  %v6163 = vshrl.u32 %v6162, 7
  %v6164 = vsub.s32 %v5769, %v6163
  %v6165 = vrot.slane %v5040, %v6164
  %v6166 = vlaneseq
  %v6167 = vshrl.u32 %v6166, 7
  %v6168 = vsub.s32 %v5769, %v6167
  %v6169 = vrot.slane %v5043, %v6168
  %v6170 = vlaneseq
  %v6171 = vshrl.u32 %v6170, 7
  %v6172 = vsub.s32 %v5769, %v6171
  %v6173 = vrot.slane %v5046, %v6172
  %v6174 = vlaneseq
  %v6175 = vshrl.u32 %v6174, 7
  %v6176 = vsub.s32 %v5769, %v6175
  %v6177 = vrot.slane %v5049, %v6176
  %v6178 = vlaneseq
  %v6179 = vshrl.u32 %v6178, 7
  %v6180 = vsub.s32 %v5769, %v6179
  %v6181 = vrot.slane %v5052, %v6180
  %v6182 = vlaneseq
  %v6183 = vshrl.u32 %v6182, 7
  %v6184 = vsub.s32 %v5769, %v6183
  %v6185 = vrot.slane %v5055, %v6184
  %v6186 = vlaneseq
  %v6187 = vshrl.u32 %v6186, 7
  %v6188 = vsub.s32 %v5769, %v6187
  %v6189 = vrot.slane %v5058, %v6188
  %v6190 = vlaneseq
  %v6191 = vshrl.u32 %v6190, 7
  %v6192 = vsub.s32 %v5769, %v6191
  %v6193 = vrot.slane %v5061, %v6192
  %v6194 = vlaneseq
  %v6195 = vshrl.u32 %v6194, 7
  %v6196 = vsub.s32 %v5769, %v6195
  %v6197 = vrot.slane %v5064, %v6196
  %v6198 = vlaneseq
  %v6199 = vshrl.u32 %v6198, 7
  %v6200 = vsub.s32 %v5769, %v6199
  %v6201 = vrot.slane %v5067, %v6200
  %v6202 = vlaneseq
  %v6203 = vshrl.u32 %v6202, 7
  %v6204 = vsub.s32 %v5769, %v6203
  %v6205 = vrot.slane %v5070, %v6204
  %v6206 = vlaneseq
  %v6207 = vshrl.u32 %v6206, 7
  %v6208 = vsub.s32 %v5769, %v6207
  %v6209 = vrot.slane %v5073, %v6208
  %v6210 = vlaneseq
  %v6211 = vshrl.u32 %v6210, 7
  %v6212 = vsub.s32 %v5769, %v6211
  %v6213 = vrot.slane %v5076, %v6212
  %v6214 = vlaneseq
  %v6215 = vshrl.u32 %v6214, 7
  %v6216 = vsub.s32 %v5769, %v6215
  %v6217 = vrot.slane %v5079, %v6216
  %v6218 = vlaneseq
  %v6219 = vshrl.u32 %v6218, 7
  %v6220 = vsub.s32 %v5769, %v6219
  %v6221 = vrot.slane %v5082, %v6220
  %v6222 = vlaneseq
  %v6223 = vshrl.u32 %v6222, 7
  %v6224 = vsub.s32 %v5769, %v6223
  %v6225 = vrot.slane %v5085, %v6224
  %v6226 = vlaneseq
  %v6227 = vshrl.u32 %v6226, 7
  %v6228 = vsub.s32 %v5769, %v6227
  %v6229 = vrot.slane %v5088, %v6228
  %v6230 = vlaneseq
  %v6231 = vshrl.u32 %v6230, 7
  %v6232 = vsub.s32 %v5769, %v6231
  %v6233 = vrot.slane %v5091, %v6232
  %v6234 = vlaneseq
  %v6235 = vshrl.u32 %v6234, 7
  %v6236 = vsub.s32 %v5769, %v6235
  %v6237 = vrot.slane %v5094, %v6236
  %v6238 = vlaneseq
  %v6239 = vshrl.u32 %v6238, 7
  %v6240 = vsub.s32 %v5769, %v6239
  %v6241 = vrot.slane %v5097, %v6240
  %v6242 = vlaneseq
  %v6243 = vshrl.u32 %v6242, 7
  %v6244 = vsub.s32 %v5769, %v6243
  %v6245 = vrot.slane %v5100, %v6244
  %v6246 = vlaneseq
  %v6247 = vshrl.u32 %v6246, 7
  %v6248 = vsub.s32 %v5769, %v6247
  %v6249 = vrot.slane %v5103, %v6248
  %v6250 = vlaneseq
  %v6251 = vshrl.u32 %v6250, 7
  %v6252 = vsub.s32 %v5769, %v6251
  %v6253 = vrot.slane %v5106, %v6252
  %v6254 = vlaneseq
  %v6255 = vshrl.u32 %v6254, 7
  %v6256 = vsub.s32 %v5769, %v6255
  %v6257 = vrot.slane %v5109, %v6256
  %v6258 = vlaneseq
  %v6259 = vshrl.u32 %v6258, 7
  %v6260 = vsub.s32 %v5769, %v6259
  %v6261 = vrot.slane %v5112, %v6260
  %v6262 = vlaneseq
  %v6263 = vshrl.u32 %v6262, 7
  %v6264 = vsub.s32 %v5769, %v6263
  %v6265 = vrot.slane %v5115, %v6264
  %v6266 = vlaneseq
  %v6267 = vshrl.u32 %v6266, 7
  %v6268 = vsub.s32 %v5769, %v6267
  %v6269 = vrot.slane %v5118, %v6268
  %v6270 = vlaneseq
  %v6271 = vshrl.u32 %v6270, 7
  %v6272 = vsub.s32 %v5769, %v6271
  %v6273 = vrot.slane %v5121, %v6272
  %v6274 = vlaneseq
  %v6275 = vshrl.u32 %v6274, 7
  %v6276 = vsub.s32 %v5769, %v6275
  %v6277 = vrot.slane %v5124, %v6276
  %v6278 = vlaneseq
  %v6279 = vshrl.u32 %v6278, 7
  %v6280 = vsub.s32 %v5769, %v6279
  %v6281 = vrot.slane %v5127, %v6280
  %v6282 = vlaneseq
  %v6283 = vshrl.u32 %v6282, 7
  %v6284 = vsub.s32 %v5769, %v6283
  %v6285 = vrot.slane %v5130, %v6284
  %v6286 = vlaneseq
  %v6287 = vshrl.u32 %v6286, 7
  %v6288 = vsub.s32 %v5769, %v6287
  %v6289 = vrot.slane %v5133, %v6288
  %v6290 = vlaneseq
  %v6291 = vshrl.u32 %v6290, 7
  %v6292 = vsub.s32 %v5769, %v6291
  %v6293 = vrot.slane %v5136, %v6292
  %v6294 = vlaneseq
  %v6295 = vshrl.u32 %v6294, 7
  %v6296 = vsub.s32 %v5769, %v6295
  %v6297 = vrot.slane %v5139, %v6296
  %v6298 = vlaneseq
  %v6299 = vshrl.u32 %v6298, 7
  %v6300 = vsub.s32 %v5769, %v6299
  %v6301 = vrot.slane %v5142, %v6300
  %v6302 = vlaneseq
  %v6303 = vshrl.u32 %v6302, 7
  %v6304 = vsub.s32 %v5769, %v6303
  %v6305 = vrot.slane %v5145, %v6304
  %v6306 = vlaneseq
  %v6307 = vshrl.u32 %v6306, 7
  %v6308 = vsub.s32 %v5769, %v6307
  %v6309 = vrot.slane %v5148, %v6308
  %v6310 = vlaneseq
  %v6311 = vshrl.u32 %v6310, 7
  %v6312 = vsub.s32 %v5769, %v6311
  %v6313 = vrot.slane %v5151, %v6312
  %v6314 = vlaneseq
  %v6315 = vshrl.u32 %v6314, 7
  %v6316 = vsub.s32 %v5769, %v6315
  %v6317 = vrot.slane %v5154, %v6316
  %v6318 = vlaneseq
  %v6319 = vshrl.u32 %v6318, 7
  %v6320 = vsub.s32 %v5769, %v6319
  %v6321 = vrot.slane %v5157, %v6320
  %v6322 = vlaneseq
  %v6323 = vshrl.u32 %v6322, 7
  %v6324 = vsub.s32 %v5769, %v6323
  %v6325 = vrot.slane %v5160, %v6324
  %v6326 = vlaneseq
  %v6327 = vshrl.u32 %v6326, 7
  %v6328 = vsub.s32 %v5769, %v6327
  %v6329 = vrot.slane %v5163, %v6328
  %v6330 = vlaneseq
  %v6331 = vshrl.u32 %v6330, 7
  %v6332 = vsub.s32 %v5769, %v6331
  %v6333 = vrot.slane %v5166, %v6332
  %v6334 = vlaneseq
  %v6335 = vshrl.u32 %v6334, 7
  %v6336 = vsub.s32 %v5769, %v6335
  %v6337 = vrot.slane %v5169, %v6336
  %v6338 = vlaneseq
  %v6339 = vshrl.u32 %v6338, 7
  %v6340 = vsub.s32 %v5769, %v6339
  %v6341 = vrot.slane %v5172, %v6340
  %v6342 = vlaneseq
  %v6343 = vshrl.u32 %v6342, 7
  %v6344 = vsub.s32 %v5769, %v6343
  %v6345 = vrot.slane %v5175, %v6344
  %v6346 = vlaneseq
  %v6347 = vshrl.u32 %v6346, 7
  %v6348 = vsub.s32 %v5769, %v6347
  %v6349 = vrot.slane %v5178, %v6348
  %v6350 = vlaneseq
  %v6351 = vshrl.u32 %v6350, 7
  %v6352 = vsub.s32 %v5769, %v6351
  %v6353 = vrot.slane %v5181, %v6352
  %v6354 = vlaneseq
  %v6355 = vshrl.u32 %v6354, 7
  %v6356 = vsub.s32 %v5769, %v6355
  %v6357 = vrot.slane %v5184, %v6356
  %v6358 = vlaneseq
  %v6359 = vshrl.u32 %v6358, 7
  %v6360 = vsub.s32 %v5769, %v6359
  %v6361 = vrot.slane %v5187, %v6360
  %v6362 = vlaneseq
  %v6363 = vshrl.u32 %v6362, 7
  %v6364 = vsub.s32 %v5769, %v6363
  %v6365 = vrot.slane %v5190, %v6364
  %v6366 = vlaneseq
  %v6367 = vshrl.u32 %v6366, 7
  %v6368 = vsub.s32 %v5769, %v6367
  %v6369 = vrot.slane %v5193, %v6368
  %v6370 = vlaneseq
  %v6371 = vshrl.u32 %v6370, 7
  %v6372 = vsub.s32 %v5769, %v6371
  %v6373 = vrot.slane %v5196, %v6372
  %v6374 = vlaneseq
  %v6375 = vshrl.u32 %v6374, 7
  %v6376 = vsub.s32 %v5769, %v6375
  %v6377 = vrot.slane %v5199, %v6376
  %v6378 = vlaneseq
  %v6379 = vshrl.u32 %v6378, 7
  %v6380 = vsub.s32 %v5769, %v6379
  %v6381 = vrot.slane %v5202, %v6380
  %v6382 = vlaneseq
  %v6383 = vshrl.u32 %v6382, 7
  %v6384 = vsub.s32 %v5769, %v6383
  %v6385 = vrot.slane %v5205, %v6384
  %v6386 = vlaneseq
  %v6387 = vshrl.u32 %v6386, 7
  %v6388 = vsub.s32 %v5769, %v6387
  %v6389 = vrot.slane %v5208, %v6388
  %v6390 = vlaneseq
  %v6391 = vshrl.u32 %v6390, 7
  %v6392 = vsub.s32 %v5769, %v6391
  %v6393 = vrot.slane %v5211, %v6392
  %v6394 = vlaneseq
  %v6395 = vshrl.u32 %v6394, 7
  %v6396 = vsub.s32 %v5769, %v6395
  %v6397 = vrot.slane %v5214, %v6396
  %v6398 = vlaneseq
  %v6399 = vshrl.u32 %v6398, 7
  %v6400 = vsub.s32 %v5769, %v6399
  %v6401 = vrot.slane %v5217, %v6400
  %v6402 = vlaneseq
  %v6403 = vshrl.u32 %v6402, 7
  %v6404 = vsub.s32 %v5769, %v6403
  %v6405 = vrot.slane %v5220, %v6404
  %v6406 = vlaneseq
  %v6407 = vshrl.u32 %v6406, 7
  %v6408 = vsub.s32 %v5769, %v6407
  %v6409 = vrot.slane %v5223, %v6408
  %v6410 = vlaneseq
  %v6411 = vshrl.u32 %v6410, 7
  %v6412 = vsub.s32 %v5769, %v6411
  %v6413 = vrot.slane %v5226, %v6412
  %v6414 = vlaneseq
  %v6415 = vshrl.u32 %v6414, 7
  %v6416 = vsub.s32 %v5769, %v6415
  %v6417 = vrot.slane %v5229, %v6416
  %v6418 = vlaneseq
  %v6419 = vshrl.u32 %v6418, 7
  %v6420 = vsub.s32 %v5769, %v6419
  %v6421 = vrot.slane %v5232, %v6420
  %v6422 = vlaneseq
  %v6423 = vshrl.u32 %v6422, 7
  %v6424 = vsub.s32 %v5769, %v6423
  %v6425 = vrot.slane %v5235, %v6424
  %v6426 = vlaneseq
  %v6427 = vshrl.u32 %v6426, 7
  %v6428 = vsub.s32 %v5769, %v6427
  %v6429 = vrot.slane %v5238, %v6428
  %v6430 = vlaneseq
  %v6431 = vshrl.u32 %v6430, 7
  %v6432 = vsub.s32 %v5769, %v6431
  %v6433 = vrot.slane %v5241, %v6432
  %v6434 = vlaneseq
  %v6435 = vshrl.u32 %v6434, 7
  %v6436 = vsub.s32 %v5769, %v6435
  %v6437 = vrot.slane %v5244, %v6436
  %v6438 = vlaneseq
  %v6439 = vshrl.u32 %v6438, 7
  %v6440 = vsub.s32 %v5769, %v6439
  %v6441 = vrot.slane %v5247, %v6440
  %v6442 = vlaneseq
  %v6443 = vshrl.u32 %v6442, 7
  %v6444 = vsub.s32 %v5769, %v6443
  %v6445 = vrot.slane %v5250, %v6444
  %v6446 = vlaneseq
  %v6447 = vshrl.u32 %v6446, 7
  %v6448 = vsub.s32 %v5769, %v6447
  %v6449 = vrot.slane %v5253, %v6448
  %v6450 = vlaneseq
  %v6451 = vshrl.u32 %v6450, 7
  %v6452 = vsub.s32 %v5769, %v6451
  %v6453 = vrot.slane %v5256, %v6452
  %v6454 = vlaneseq
  %v6455 = vshrl.u32 %v6454, 7
  %v6456 = vsub.s32 %v5769, %v6455
  %v6457 = vrot.slane %v5259, %v6456
  %v6458 = vlaneseq
  %v6459 = vshrl.u32 %v6458, 7
  %v6460 = vsub.s32 %v5769, %v6459
  %v6461 = vrot.slane %v5262, %v6460
  %v6462 = vlaneseq
  %v6463 = vshrl.u32 %v6462, 7
  %v6464 = vsub.s32 %v5769, %v6463
  %v6465 = vrot.slane %v5265, %v6464
  %v6466 = vlaneseq
  %v6467 = vshrl.u32 %v6466, 7
  %v6468 = vsub.s32 %v5769, %v6467
  %v6469 = vrot.slane %v5268, %v6468
  %v6470 = vlaneseq
  %v6471 = vshrl.u32 %v6470, 7
  %v6472 = vsub.s32 %v5769, %v6471
  %v6473 = vrot.slane %v5271, %v6472
  %v6474 = vlaneseq
  %v6475 = vshrl.u32 %v6474, 7
  %v6476 = vsub.s32 %v5769, %v6475
  %v6477 = vrot.slane %v5274, %v6476
  %v6478 = vlaneseq
  %v6479 = vshrl.u32 %v6478, 7
  %v6480 = vsub.s32 %v5769, %v6479
  %v6481 = vrot.slane %v5277, %v6480
  %v6482 = vlaneseq
  %v6483 = vshrl.u32 %v6482, 7
  %v6484 = vsub.s32 %v5769, %v6483
  %v6485 = vrot.slane %v5280, %v6484
  %v6486 = vlaneseq
  %v6487 = vshrl.u32 %v6486, 7
  %v6488 = vsub.s32 %v5769, %v6487
  %v6489 = vrot.slane %v5283, %v6488
  %v6490 = vlaneseq
  %v6491 = vshrl.u32 %v6490, 7
  %v6492 = vsub.s32 %v5769, %v6491
  %v6493 = vrot.slane %v5286, %v6492
  %v6494 = vlaneseq
  %v6495 = vshrl.u32 %v6494, 7
  %v6496 = vsub.s32 %v5769, %v6495
  %v6497 = vrot.slane %v5289, %v6496
  %v6498 = vlaneseq
  %v6499 = vshrl.u32 %v6498, 7
  %v6500 = vsub.s32 %v5769, %v6499
  %v6501 = vrot.slane %v5292, %v6500
  %v6502 = vlaneseq
  %v6503 = vshrl.u32 %v6502, 7
  %v6504 = vsub.s32 %v5769, %v6503
  %v6505 = vrot.slane %v5295, %v6504
  %v6506 = vlaneseq
  %v6507 = vshrl.u32 %v6506, 7
  %v6508 = vsub.s32 %v5769, %v6507
  %v6509 = vrot.slane %v5298, %v6508
  %v6510 = vlaneseq
  %v6511 = vshrl.u32 %v6510, 7
  %v6512 = vsub.s32 %v5769, %v6511
  %v6513 = vrot.slane %v5301, %v6512
  %v6514 = vlaneseq
  %v6515 = vshrl.u32 %v6514, 7
  %v6516 = vsub.s32 %v5769, %v6515
  %v6517 = vrot.slane %v5304, %v6516
  %v6518 = vlaneseq
  %v6519 = vshrl.u32 %v6518, 7
  %v6520 = vsub.s32 %v5769, %v6519
  %v6521 = vrot.slane %v5307, %v6520
  %v6522 = vlaneseq
  %v6523 = vshrl.u32 %v6522, 7
  %v6524 = vsub.s32 %v5769, %v6523
  %v6525 = vrot.slane %v5310, %v6524
  %v6526 = vlaneseq
  %v6527 = vshrl.u32 %v6526, 7
  %v6528 = vsub.s32 %v5769, %v6527
  %v6529 = vrot.slane %v5313, %v6528
  %v6530 = vlaneseq
  %v6531 = vshrl.u32 %v6530, 7
  %v6532 = vsub.s32 %v5769, %v6531
  %v6533 = vrot.slane %v5316, %v6532
  %v6534 = vlaneseq
  %v6535 = vshrl.u32 %v6534, 7
  %v6536 = vsub.s32 %v5769, %v6535
  %v6537 = vrot.slane %v5319, %v6536
  %v6538 = vlaneseq
  %v6539 = vshrl.u32 %v6538, 7
  %v6540 = vsub.s32 %v5769, %v6539
  %v6541 = vrot.slane %v5322, %v6540
  %v6542 = vlaneseq
  %v6543 = vshrl.u32 %v6542, 7
  %v6544 = vsub.s32 %v5769, %v6543
  %v6545 = vrot.slane %v5325, %v6544
  %v6546 = vlaneseq
  %v6547 = vshrl.u32 %v6546, 7
  %v6548 = vsub.s32 %v5769, %v6547
  %v6549 = vrot.slane %v5328, %v6548
  %v6550 = vlaneseq
  %v6551 = vshrl.u32 %v6550, 7
  %v6552 = vsub.s32 %v5769, %v6551
  %v6553 = vrot.slane %v5331, %v6552
  %v6554 = vlaneseq
  %v6555 = vshrl.u32 %v6554, 7
  %v6556 = vsub.s32 %v5769, %v6555
  %v6557 = vrot.slane %v5334, %v6556
  %v6558 = vlaneseq
  %v6559 = vshrl.u32 %v6558, 7
  %v6560 = vsub.s32 %v5769, %v6559
  %v6561 = vrot.slane %v5337, %v6560
  %v6562 = vlaneseq
  %v6563 = vshrl.u32 %v6562, 7
  %v6564 = vsub.s32 %v5769, %v6563
  %v6565 = vrot.slane %v5340, %v6564
  %v6566 = vlaneseq
  %v6567 = vshrl.u32 %v6566, 7
  %v6568 = vsub.s32 %v5769, %v6567
  %v6569 = vrot.slane %v5343, %v6568
  %v6570 = vlaneseq
  %v6571 = vshrl.u32 %v6570, 7
  %v6572 = vsub.s32 %v5769, %v6571
  %v6573 = vrot.slane %v5346, %v6572
  %v6574 = vlaneseq
  %v6575 = vshrl.u32 %v6574, 7
  %v6576 = vsub.s32 %v5769, %v6575
  %v6577 = vrot.slane %v5349, %v6576
  %v6578 = vlaneseq
  %v6579 = vshrl.u32 %v6578, 7
  %v6580 = vsub.s32 %v5769, %v6579
  %v6581 = vrot.slane %v5352, %v6580
  %v6582 = vlaneseq
  %v6583 = vshrl.u32 %v6582, 7
  %v6584 = vsub.s32 %v5769, %v6583
  %v6585 = vrot.slane %v5355, %v6584
  %v6586 = vlaneseq
  %v6587 = vshrl.u32 %v6586, 7
  %v6588 = vsub.s32 %v5769, %v6587
  %v6589 = vrot.slane %v5358, %v6588
  %v6590 = vlaneseq
  %v6591 = vshrl.u32 %v6590, 7
  %v6592 = vsub.s32 %v5769, %v6591
  %v6593 = vrot.slane %v5361, %v6592
  %v6594 = vlaneseq
  %v6595 = vshrl.u32 %v6594, 7
  %v6596 = vsub.s32 %v5769, %v6595
  %v6597 = vrot.slane %v5364, %v6596
  %v6598 = vlaneseq
  %v6599 = vshrl.u32 %v6598, 7
  %v6600 = vsub.s32 %v5769, %v6599
  %v6601 = vrot.slane %v5367, %v6600
  %v6602 = vlaneseq
  %v6603 = vshrl.u32 %v6602, 7
  %v6604 = vsub.s32 %v5769, %v6603
  %v6605 = vrot.slane %v5370, %v6604
  %v6606 = vlaneseq
  %v6607 = vshrl.u32 %v6606, 7
  %v6608 = vsub.s32 %v5769, %v6607
  %v6609 = vrot.slane %v5373, %v6608
  %v6610 = vlaneseq
  %v6611 = vshrl.u32 %v6610, 7
  %v6612 = vsub.s32 %v5769, %v6611
  %v6613 = vrot.slane %v5376, %v6612
  %v6614 = vlaneseq
  %v6615 = vshrl.u32 %v6614, 7
  %v6616 = vsub.s32 %v5769, %v6615
  %v6617 = vrot.slane %v5379, %v6616
  %v6618 = vlaneseq
  %v6619 = vshrl.u32 %v6618, 7
  %v6620 = vsub.s32 %v5769, %v6619
  %v6621 = vrot.slane %v5382, %v6620
  %v6622 = vlaneseq
  %v6623 = vshrl.u32 %v6622, 7
  %v6624 = vsub.s32 %v5769, %v6623
  %v6625 = vrot.slane %v5385, %v6624
  %v6626 = vlaneseq
  %v6627 = vshrl.u32 %v6626, 7
  %v6628 = vsub.s32 %v5769, %v6627
  %v6629 = vrot.slane %v5388, %v6628
  %v6630 = vlaneseq
  %v6631 = vshrl.u32 %v6630, 7
  %v6632 = vsub.s32 %v5769, %v6631
  %v6633 = vrot.slane %v5391, %v6632
  %v6634 = vlaneseq
  %v6635 = vshrl.u32 %v6634, 7
  %v6636 = vsub.s32 %v5769, %v6635
  %v6637 = vrot.slane %v5394, %v6636
  %v6638 = vlaneseq
  %v6639 = vshrl.u32 %v6638, 7
  %v6640 = vsub.s32 %v5769, %v6639
  %v6641 = vrot.slane %v5397, %v6640
  %v6642 = vlaneseq
  %v6643 = vshrl.u32 %v6642, 7
  %v6644 = vsub.s32 %v5769, %v6643
  %v6645 = vrot.slane %v5400, %v6644
  %v6646 = vlaneseq
  %v6647 = vshrl.u32 %v6646, 7
  %v6648 = vsub.s32 %v5769, %v6647
  %v6649 = vrot.slane %v5403, %v6648
  %v6650 = vlaneseq
  %v6651 = vshrl.u32 %v6650, 7
  %v6652 = vsub.s32 %v5769, %v6651
  %v6653 = vrot.slane %v5406, %v6652
  %v6654 = vlaneseq
  %v6655 = vshrl.u32 %v6654, 7
  %v6656 = vsub.s32 %v5769, %v6655
  %v6657 = vrot.slane %v5409, %v6656
  %v6658 = vlaneseq
  %v6659 = vshrl.u32 %v6658, 7
  %v6660 = vsub.s32 %v5769, %v6659
  %v6661 = vrot.slane %v5412, %v6660
  %v6662 = vlaneseq
  %v6663 = vshrl.u32 %v6662, 7
  %v6664 = vsub.s32 %v5769, %v6663
  %v6665 = vrot.slane %v5415, %v6664
  %v6666 = vlaneseq
  %v6667 = vshrl.u32 %v6666, 7
  %v6668 = vsub.s32 %v5769, %v6667
  %v6669 = vrot.slane %v5418, %v6668
  %v6670 = vlaneseq
  %v6671 = vshrl.u32 %v6670, 7
  %v6672 = vsub.s32 %v5769, %v6671
  %v6673 = vrot.slane %v5421, %v6672
  %v6674 = vlaneseq
  %v6675 = vshrl.u32 %v6674, 7
  %v6676 = vsub.s32 %v5769, %v6675
  %v6677 = vrot.slane %v5424, %v6676
  %v6678 = vlaneseq
  %v6679 = vshrl.u32 %v6678, 7
  %v6680 = vsub.s32 %v5769, %v6679
  %v6681 = vrot.slane %v5427, %v6680
  %v6682 = vlaneseq
  %v6683 = vshrl.u32 %v6682, 7
  %v6684 = vsub.s32 %v5769, %v6683
  %v6685 = vrot.slane %v5430, %v6684
  %v6686 = vlaneseq
  %v6687 = vshrl.u32 %v6686, 7
  %v6688 = vsub.s32 %v5769, %v6687
  %v6689 = vrot.slane %v5433, %v6688
  %v6690 = vlaneseq
  %v6691 = vshrl.u32 %v6690, 7
  %v6692 = vsub.s32 %v5769, %v6691
  %v6693 = vrot.slane %v5436, %v6692
  %v6694 = vlaneseq
  %v6695 = vshrl.u32 %v6694, 7
  %v6696 = vsub.s32 %v5769, %v6695
  %v6697 = vrot.slane %v5439, %v6696
  %v6698 = vlaneseq
  %v6699 = vshrl.u32 %v6698, 7
  %v6700 = vsub.s32 %v5769, %v6699
  %v6701 = vrot.slane %v5442, %v6700
  %v6702 = vlaneseq
  %v6703 = vshrl.u32 %v6702, 7
  %v6704 = vsub.s32 %v5769, %v6703
  %v6705 = vrot.slane %v5445, %v6704
  %v6706 = vlaneseq
  %v6707 = vshrl.u32 %v6706, 7
  %v6708 = vsub.s32 %v5769, %v6707
  %v6709 = vrot.slane %v5448, %v6708
  %v6710 = vlaneseq
  %v6711 = vshrl.u32 %v6710, 7
  %v6712 = vsub.s32 %v5769, %v6711
  %v6713 = vrot.slane %v5451, %v6712
  %v6714 = vlaneseq
  %v6715 = vshrl.u32 %v6714, 7
  %v6716 = vsub.s32 %v5769, %v6715
  %v6717 = vrot.slane %v5454, %v6716
  %v6718 = vlaneseq
  %v6719 = vshrl.u32 %v6718, 7
  %v6720 = vsub.s32 %v5769, %v6719
  %v6721 = vrot.slane %v5457, %v6720
  %v6722 = vlaneseq
  %v6723 = vshrl.u32 %v6722, 7
  %v6724 = vsub.s32 %v5769, %v6723
  %v6725 = vrot.slane %v5460, %v6724
  %v6726 = vlaneseq
  %v6727 = vshrl.u32 %v6726, 7
  %v6728 = vsub.s32 %v5769, %v6727
  %v6729 = vrot.slane %v5463, %v6728
  %v6730 = vlaneseq
  %v6731 = vshrl.u32 %v6730, 7
  %v6732 = vsub.s32 %v5769, %v6731
  %v6733 = vrot.slane %v5466, %v6732
  %v6734 = vlaneseq
  %v6735 = vshrl.u32 %v6734, 7
  %v6736 = vsub.s32 %v5769, %v6735
  %v6737 = vrot.slane %v5469, %v6736
  %v6738 = vlaneseq
  %v6739 = vshrl.u32 %v6738, 7
  %v6740 = vsub.s32 %v5769, %v6739
  %v6741 = vrot.slane %v5472, %v6740
  %v6742 = vlaneseq
  %v6743 = vshrl.u32 %v6742, 7
  %v6744 = vsub.s32 %v5769, %v6743
  %v6745 = vrot.slane %v5475, %v6744
  %v6746 = vlaneseq
  %v6747 = vshrl.u32 %v6746, 7
  %v6748 = vsub.s32 %v5769, %v6747
  %v6749 = vrot.slane %v5478, %v6748
  %v6750 = vlaneseq
  %v6751 = vshrl.u32 %v6750, 7
  %v6752 = vsub.s32 %v5769, %v6751
  %v6753 = vrot.slane %v5481, %v6752
  %v6754 = vlaneseq
  %v6755 = vshrl.u32 %v6754, 7
  %v6756 = vsub.s32 %v5769, %v6755
  %v6757 = vrot.slane %v5484, %v6756
  %v6758 = vlaneseq
  %v6759 = vshrl.u32 %v6758, 7
  %v6760 = vsub.s32 %v5769, %v6759
  %v6761 = vrot.slane %v5487, %v6760
  %v6762 = vlaneseq
  %v6763 = vshrl.u32 %v6762, 7
  %v6764 = vsub.s32 %v5769, %v6763
  %v6765 = vrot.slane %v5490, %v6764
  %v6766 = vlaneseq
  %v6767 = vshrl.u32 %v6766, 7
  %v6768 = vsub.s32 %v5769, %v6767
  %v6769 = vrot.slane %v5493, %v6768
  %v6770 = vlaneseq
  %v6771 = vshrl.u32 %v6770, 7
  %v6772 = vsub.s32 %v5769, %v6771
  %v6773 = vrot.slane %v5496, %v6772
  %v6774 = vlaneseq
  %v6775 = vshrl.u32 %v6774, 7
  %v6776 = vsub.s32 %v5769, %v6775
  %v6777 = vrot.slane %v5499, %v6776
  %v6778 = vlaneseq
  %v6779 = vshrl.u32 %v6778, 7
  %v6780 = vsub.s32 %v5769, %v6779
  %v6781 = vrot.slane %v5502, %v6780
  %v6782 = vlaneseq
  %v6783 = vshrl.u32 %v6782, 7
  %v6784 = vsub.s32 %v5769, %v6783
  %v6785 = vrot.slane %v5505, %v6784
  %v6786 = vlaneseq
  %v6787 = vshrl.u32 %v6786, 7
  %v6788 = vsub.s32 %v5769, %v6787
  %v6789 = vrot.slane %v5508, %v6788
  %v6790 = vlaneseq
  %v6791 = vshrl.u32 %v6790, 7
  %v6792 = vsub.s32 %v5769, %v6791
  %v6793 = vrot.slane %v5511, %v6792
  %vm6794 = vcmask 1041409
  %v6795 = vsel %vm6794, %v5777, %v5773
  %vm6796 = vcmask 1042434
  %v6797 = vsel %vm6796, %v5781, %v6795
  %vm6798 = vcmask 1043459
  %v6799 = vsel %vm6798, %v5785, %v6797
  %vm6800 = vcmask 1044484
  %v6801 = vsel %vm6800, %v5789, %v6799
  %vm6802 = vcmask 1045509
  %v6803 = vsel %vm6802, %v5793, %v6801
  %vm6804 = vcmask 1046534
  %v6805 = vsel %vm6804, %v5797, %v6803
  %vm6806 = vcmask 1047559
  %v6807 = vsel %vm6806, %v5801, %v6805
  %v6808 = vsel %vm6794, %v5809, %v5805
  %v6809 = vsel %vm6796, %v5813, %v6808
  %v6810 = vsel %vm6798, %v5817, %v6809
  %v6811 = vsel %vm6800, %v5821, %v6810
  %v6812 = vsel %vm6802, %v5825, %v6811
  %v6813 = vsel %vm6804, %v5829, %v6812
  %v6814 = vsel %vm6806, %v5833, %v6813
  %v6815 = vsel %vm6794, %v5841, %v5837
  %v6816 = vsel %vm6796, %v5845, %v6815
  %v6817 = vsel %vm6798, %v5849, %v6816
  %v6818 = vsel %vm6800, %v5853, %v6817
  %v6819 = vsel %vm6802, %v5857, %v6818
  %v6820 = vsel %vm6804, %v5861, %v6819
  %v6821 = vsel %vm6806, %v5865, %v6820
  %v6822 = vsel %vm6794, %v5873, %v5869
  %v6823 = vsel %vm6796, %v5877, %v6822
  %v6824 = vsel %vm6798, %v5881, %v6823
  %v6825 = vsel %vm6800, %v5885, %v6824
  %v6826 = vsel %vm6802, %v5889, %v6825
  %v6827 = vsel %vm6804, %v5893, %v6826
  %v6828 = vsel %vm6806, %v5897, %v6827
  %v6829 = vsel %vm6794, %v5905, %v5901
  %v6830 = vsel %vm6796, %v5909, %v6829
  %v6831 = vsel %vm6798, %v5913, %v6830
  %v6832 = vsel %vm6800, %v5917, %v6831
  %v6833 = vsel %vm6802, %v5921, %v6832
  %v6834 = vsel %vm6804, %v5925, %v6833
  %v6835 = vsel %vm6806, %v5929, %v6834
  %v6836 = vsel %vm6794, %v5937, %v5933
  %v6837 = vsel %vm6796, %v5941, %v6836
  %v6838 = vsel %vm6798, %v5945, %v6837
  %v6839 = vsel %vm6800, %v5949, %v6838
  %v6840 = vsel %vm6802, %v5953, %v6839
  %v6841 = vsel %vm6804, %v5957, %v6840
  %v6842 = vsel %vm6806, %v5961, %v6841
  %v6843 = vsel %vm6794, %v5969, %v5965
  %v6844 = vsel %vm6796, %v5973, %v6843
  %v6845 = vsel %vm6798, %v5977, %v6844
  %v6846 = vsel %vm6800, %v5981, %v6845
  %v6847 = vsel %vm6802, %v5985, %v6846
  %v6848 = vsel %vm6804, %v5989, %v6847
  %v6849 = vsel %vm6806, %v5993, %v6848
  %v6850 = vsel %vm6794, %v6001, %v5997
  %v6851 = vsel %vm6796, %v6005, %v6850
  %v6852 = vsel %vm6798, %v6009, %v6851
  %v6853 = vsel %vm6800, %v6013, %v6852
  %v6854 = vsel %vm6802, %v6017, %v6853
  %v6855 = vsel %vm6804, %v6021, %v6854
  %v6856 = vsel %vm6806, %v6025, %v6855
  %v6857 = vsel %vm6794, %v6033, %v6029
  %v6858 = vsel %vm6796, %v6037, %v6857
  %v6859 = vsel %vm6798, %v6041, %v6858
  %v6860 = vsel %vm6800, %v6045, %v6859
  %v6861 = vsel %vm6802, %v6049, %v6860
  %v6862 = vsel %vm6804, %v6053, %v6861
  %v6863 = vsel %vm6806, %v6057, %v6862
  %v6864 = vsel %vm6794, %v6065, %v6061
  %v6865 = vsel %vm6796, %v6069, %v6864
  %v6866 = vsel %vm6798, %v6073, %v6865
  %v6867 = vsel %vm6800, %v6077, %v6866
  %v6868 = vsel %vm6802, %v6081, %v6867
  %v6869 = vsel %vm6804, %v6085, %v6868
  %v6870 = vsel %vm6806, %v6089, %v6869
  %v6871 = vsel %vm6794, %v6097, %v6093
  %v6872 = vsel %vm6796, %v6101, %v6871
  %v6873 = vsel %vm6798, %v6105, %v6872
  %v6874 = vsel %vm6800, %v6109, %v6873
  %v6875 = vsel %vm6802, %v6113, %v6874
  %v6876 = vsel %vm6804, %v6117, %v6875
  %v6877 = vsel %vm6806, %v6121, %v6876
  %v6878 = vsel %vm6794, %v6129, %v6125
  %v6879 = vsel %vm6796, %v6133, %v6878
  %v6880 = vsel %vm6798, %v6137, %v6879
  %v6881 = vsel %vm6800, %v6141, %v6880
  %v6882 = vsel %vm6802, %v6145, %v6881
  %v6883 = vsel %vm6804, %v6149, %v6882
  %v6884 = vsel %vm6806, %v6153, %v6883
  %v6885 = vsel %vm6794, %v6161, %v6157
  %v6886 = vsel %vm6796, %v6165, %v6885
  %v6887 = vsel %vm6798, %v6169, %v6886
  %v6888 = vsel %vm6800, %v6173, %v6887
  %v6889 = vsel %vm6802, %v6177, %v6888
  %v6890 = vsel %vm6804, %v6181, %v6889
  %v6891 = vsel %vm6806, %v6185, %v6890
  %v6892 = vsel %vm6794, %v6193, %v6189
  %v6893 = vsel %vm6796, %v6197, %v6892
  %v6894 = vsel %vm6798, %v6201, %v6893
  %v6895 = vsel %vm6800, %v6205, %v6894
  %v6896 = vsel %vm6802, %v6209, %v6895
  %v6897 = vsel %vm6804, %v6213, %v6896
  %v6898 = vsel %vm6806, %v6217, %v6897
  %v6899 = vsel %vm6794, %v6225, %v6221
  %v6900 = vsel %vm6796, %v6229, %v6899
  %v6901 = vsel %vm6798, %v6233, %v6900
  %v6902 = vsel %vm6800, %v6237, %v6901
  %v6903 = vsel %vm6802, %v6241, %v6902
  %v6904 = vsel %vm6804, %v6245, %v6903
  %v6905 = vsel %vm6806, %v6249, %v6904
  %v6906 = vsel %vm6794, %v6257, %v6253
  %v6907 = vsel %vm6796, %v6261, %v6906
  %v6908 = vsel %vm6798, %v6265, %v6907
  %v6909 = vsel %vm6800, %v6269, %v6908
  %v6910 = vsel %vm6802, %v6273, %v6909
  %v6911 = vsel %vm6804, %v6277, %v6910
  %v6912 = vsel %vm6806, %v6281, %v6911
  %v6913 = vsel %vm6794, %v6289, %v6285
  %v6914 = vsel %vm6796, %v6293, %v6913
  %v6915 = vsel %vm6798, %v6297, %v6914
  %v6916 = vsel %vm6800, %v6301, %v6915
  %v6917 = vsel %vm6802, %v6305, %v6916
  %v6918 = vsel %vm6804, %v6309, %v6917
  %v6919 = vsel %vm6806, %v6313, %v6918
  %v6920 = vsel %vm6794, %v6321, %v6317
  %v6921 = vsel %vm6796, %v6325, %v6920
  %v6922 = vsel %vm6798, %v6329, %v6921
  %v6923 = vsel %vm6800, %v6333, %v6922
  %v6924 = vsel %vm6802, %v6337, %v6923
  %v6925 = vsel %vm6804, %v6341, %v6924
  %v6926 = vsel %vm6806, %v6345, %v6925
  %v6927 = vsel %vm6794, %v6353, %v6349
  %v6928 = vsel %vm6796, %v6357, %v6927
  %v6929 = vsel %vm6798, %v6361, %v6928
  %v6930 = vsel %vm6800, %v6365, %v6929
  %v6931 = vsel %vm6802, %v6369, %v6930
  %v6932 = vsel %vm6804, %v6373, %v6931
  %v6933 = vsel %vm6806, %v6377, %v6932
  %v6934 = vsel %vm6794, %v6385, %v6381
  %v6935 = vsel %vm6796, %v6389, %v6934
  %v6936 = vsel %vm6798, %v6393, %v6935
  %v6937 = vsel %vm6800, %v6397, %v6936
  %v6938 = vsel %vm6802, %v6401, %v6937
  %v6939 = vsel %vm6804, %v6405, %v6938
  %v6940 = vsel %vm6806, %v6409, %v6939
  %v6941 = vsel %vm6794, %v6417, %v6413
  %v6942 = vsel %vm6796, %v6421, %v6941
  %v6943 = vsel %vm6798, %v6425, %v6942
  %v6944 = vsel %vm6800, %v6429, %v6943
  %v6945 = vsel %vm6802, %v6433, %v6944
  %v6946 = vsel %vm6804, %v6437, %v6945
  %v6947 = vsel %vm6806, %v6441, %v6946
  %v6948 = vsel %vm6794, %v6449, %v6445
  %v6949 = vsel %vm6796, %v6453, %v6948
  %v6950 = vsel %vm6798, %v6457, %v6949
  %v6951 = vsel %vm6800, %v6461, %v6950
  %v6952 = vsel %vm6802, %v6465, %v6951
  %v6953 = vsel %vm6804, %v6469, %v6952
  %v6954 = vsel %vm6806, %v6473, %v6953
  %v6955 = vsel %vm6794, %v6481, %v6477
  %v6956 = vsel %vm6796, %v6485, %v6955
  %v6957 = vsel %vm6798, %v6489, %v6956
  %v6958 = vsel %vm6800, %v6493, %v6957
  %v6959 = vsel %vm6802, %v6497, %v6958
  %v6960 = vsel %vm6804, %v6501, %v6959
  %v6961 = vsel %vm6806, %v6505, %v6960
  %v6962 = vsel %vm6794, %v6513, %v6509
  %v6963 = vsel %vm6796, %v6517, %v6962
  %v6964 = vsel %vm6798, %v6521, %v6963
  %v6965 = vsel %vm6800, %v6525, %v6964
  %v6966 = vsel %vm6802, %v6529, %v6965
  %v6967 = vsel %vm6804, %v6533, %v6966
  %v6968 = vsel %vm6806, %v6537, %v6967
  %v6969 = vsel %vm6794, %v6545, %v6541
  %v6970 = vsel %vm6796, %v6549, %v6969
  %v6971 = vsel %vm6798, %v6553, %v6970
  %v6972 = vsel %vm6800, %v6557, %v6971
  %v6973 = vsel %vm6802, %v6561, %v6972
  %v6974 = vsel %vm6804, %v6565, %v6973
  %v6975 = vsel %vm6806, %v6569, %v6974
  %v6976 = vsel %vm6794, %v6577, %v6573
  %v6977 = vsel %vm6796, %v6581, %v6976
  %v6978 = vsel %vm6798, %v6585, %v6977
  %v6979 = vsel %vm6800, %v6589, %v6978
  %v6980 = vsel %vm6802, %v6593, %v6979
  %v6981 = vsel %vm6804, %v6597, %v6980
  %v6982 = vsel %vm6806, %v6601, %v6981
  %v6983 = vsel %vm6794, %v6609, %v6605
  %v6984 = vsel %vm6796, %v6613, %v6983
  %v6985 = vsel %vm6798, %v6617, %v6984
  %v6986 = vsel %vm6800, %v6621, %v6985
  %v6987 = vsel %vm6802, %v6625, %v6986
  %v6988 = vsel %vm6804, %v6629, %v6987
  %v6989 = vsel %vm6806, %v6633, %v6988
  %v6990 = vsel %vm6794, %v6641, %v6637
  %v6991 = vsel %vm6796, %v6645, %v6990
  %v6992 = vsel %vm6798, %v6649, %v6991
  %v6993 = vsel %vm6800, %v6653, %v6992
  %v6994 = vsel %vm6802, %v6657, %v6993
  %v6995 = vsel %vm6804, %v6661, %v6994
  %v6996 = vsel %vm6806, %v6665, %v6995
  %v6997 = vsel %vm6794, %v6673, %v6669
  %v6998 = vsel %vm6796, %v6677, %v6997
  %v6999 = vsel %vm6798, %v6681, %v6998
  %v7000 = vsel %vm6800, %v6685, %v6999
  %v7001 = vsel %vm6802, %v6689, %v7000
  %v7002 = vsel %vm6804, %v6693, %v7001
  %v7003 = vsel %vm6806, %v6697, %v7002
  %v7004 = vsel %vm6794, %v6705, %v6701
  %v7005 = vsel %vm6796, %v6709, %v7004
  %v7006 = vsel %vm6798, %v6713, %v7005
  %v7007 = vsel %vm6800, %v6717, %v7006
  %v7008 = vsel %vm6802, %v6721, %v7007
  %v7009 = vsel %vm6804, %v6725, %v7008
  %v7010 = vsel %vm6806, %v6729, %v7009
  %v7011 = vsel %vm6794, %v6737, %v6733
  %v7012 = vsel %vm6796, %v6741, %v7011
  %v7013 = vsel %vm6798, %v6745, %v7012
  %v7014 = vsel %vm6800, %v6749, %v7013
  %v7015 = vsel %vm6802, %v6753, %v7014
  %v7016 = vsel %vm6804, %v6757, %v7015
  %v7017 = vsel %vm6806, %v6761, %v7016
  %v7018 = vsel %vm6794, %v6769, %v6765
  %v7019 = vsel %vm6796, %v6773, %v7018
  %v7020 = vsel %vm6798, %v6777, %v7019
  %v7021 = vsel %vm6800, %v6781, %v7020
  %v7022 = vsel %vm6802, %v6785, %v7021
  %v7023 = vsel %vm6804, %v6789, %v7022
  %v7024 = vsel %vm6806, %v6793, %v7023
  %7057 = vxpose.xlu0.b32.start [1/16] %v6807, 128
  %7058 = vxpose.xlu0.b32.cont [2/16] %v6814, 128
  %7059 = vxpose.xlu0.b32.cont [3/16] %v6821, 128
  %7060 = vxpose.xlu0.b32.cont [4/16] %v6828, 128
  %7061 = vxpose.xlu0.b32.cont [5/16] %v6835, 128
  %7062 = vxpose.xlu0.b32.cont [6/16] %v6842, 128
  %7063 = vxpose.xlu0.b32.cont [7/16] %v6849, 128
  %7064 = vxpose.xlu0.b32.cont [8/16] %v6856, 128
  %7065 = vxpose.xlu0.b32.cont [9/16] %v6863, 128
  %7066 = vxpose.xlu0.b32.cont [10/16] %v6870, 128
  %7067 = vxpose.xlu0.b32.cont [11/16] %v6877, 128
  %7068 = vxpose.xlu0.b32.cont [12/16] %v6884, 128
  %7069 = vxpose.xlu0.b32.cont [13/16] %v6891, 128
  %7070 = vxpose.xlu0.b32.cont [14/16] %v6898, 128
  %7071 = vxpose.xlu0.b32.cont [15/16] %v6905, 128
  %7072 = vxpose.xlu0.b32.end [16/16] %v6912, 128
  %v7073 = vpop.trf.xlu0
  %v7074 = vpop.trf.xlu0
  %v7075 = vpop.trf.xlu0
  %v7076 = vpop.trf.xlu0
  %v7077 = vpop.trf.xlu0
  %v7078 = vpop.trf.xlu0
  %v7079 = vpop.trf.xlu0
  %v7080 = vpop.trf.xlu0
  %v7081 = vpop.trf.xlu0
  %v7082 = vpop.trf.xlu0
  %v7083 = vpop.trf.xlu0
  %v7084 = vpop.trf.xlu0
  %v7085 = vpop.trf.xlu0
  %v7086 = vpop.trf.xlu0
  %v7087 = vpop.trf.xlu0
  %v7088 = vpop.trf.xlu0
  %7089 = vxpose.xlu0.b32.start [1/16] %v6919, 128
  %7090 = vxpose.xlu0.b32.cont [2/16] %v6926, 128
  %7091 = vxpose.xlu0.b32.cont [3/16] %v6933, 128
  %7092 = vxpose.xlu0.b32.cont [4/16] %v6940, 128
  %7093 = vxpose.xlu0.b32.cont [5/16] %v6947, 128
  %7094 = vxpose.xlu0.b32.cont [6/16] %v6954, 128
  %7095 = vxpose.xlu0.b32.cont [7/16] %v6961, 128
  %7096 = vxpose.xlu0.b32.cont [8/16] %v6968, 128
  %7097 = vxpose.xlu0.b32.cont [9/16] %v6975, 128
  %7098 = vxpose.xlu0.b32.cont [10/16] %v6982, 128
  %7099 = vxpose.xlu0.b32.cont [11/16] %v6989, 128
  %7100 = vxpose.xlu0.b32.cont [12/16] %v6996, 128
  %7101 = vxpose.xlu0.b32.cont [13/16] %v7003, 128
  %7102 = vxpose.xlu0.b32.cont [14/16] %v7010, 128
  %7103 = vxpose.xlu0.b32.cont [15/16] %v7017, 128
  %7104 = vxpose.xlu0.b32.end [16/16] %v7024, 128
  %v7105 = vpop.trf.xlu0
  %v7106 = vpop.trf.xlu0
  %v7107 = vpop.trf.xlu0
  %v7108 = vpop.trf.xlu0
  %v7109 = vpop.trf.xlu0
  %v7110 = vpop.trf.xlu0
  %v7111 = vpop.trf.xlu0
  %v7112 = vpop.trf.xlu0
  %v7113 = vpop.trf.xlu0
  %v7114 = vpop.trf.xlu0
  %v7115 = vpop.trf.xlu0
  %v7116 = vpop.trf.xlu0
  %v7117 = vpop.trf.xlu0
  %v7118 = vpop.trf.xlu0
  %v7119 = vpop.trf.xlu0
  %v7120 = vpop.trf.xlu0
  %v7121 = vld [vmem:[#allocation2] sm:$0x1]
  %v7123 = vlaneseq
  %v7124 = vshrl.u32 %v7123, 7
  %v7125 = vsub.s32 0, %v7124
  %v7126 = vrot.slane %v7121, %v7125
  %7127 = vset.pattern.permute.xlu0 0
  %7128 = vperm.xlu0 %7127, %v7126
  %v7129 = vpop.permute.xlu0 %7128
  %v7131 = vadd.f32 %v7073, %v7129
  %v7132 = vadd.f32 %v7105, %v7129
  %7133 = vst [vmem:[%s14] sm:$0xff] %v7131
  %7134 = vst [vmem:[%s14 + $0x8] sm:$0xff] %v7132
  // Predicated region
  $region58: #{forward.1} parent=0 // pred_check
    _
  $region59: #{forward.1} parent=0 // pred_check_branch
    %7136 = sbr.rel (0) target = $region61
  $region60: #{forward.1} parent=0 // pred_region
    _
  $region61: #{forward.1} parent=0 // pred_fallthru
    _
  // Predicated region
  $region62: #{forward.1} parent=0 // pred_check
    _
  $region63: #{forward.1} parent=0 // pred_check_branch
    %7138 = sbr.rel (0) target = $region65
  $region64: #{forward.1} parent=0 // pred_region
    _
  $region65: #{forward.1} parent=0 // pred_fallthru
    _
  // Predicated region
  $region66: #{forward.1} parent=0 // pred_check
    _
  $region67: #{forward.1} parent=0 // pred_check_branch
    %7140 = sbr.rel (0) target = $region69
  $region68: #{forward.1} parent=0 // pred_region
    _
  $region69: #{forward.1} parent=0 // pred_fallthru
    _
  // Predicated region
  $region70: #{forward.1} parent=0 // pred_check
    _
  $region71: #{forward.1} parent=0 // pred_check_branch
    %7142 = sbr.rel (0) target = $region73
  $region72: #{forward.1} parent=0 // pred_region
    _
  $region73: #{forward.1} parent=0 // pred_fallthru
    _

</llo_original>
